<compile_context>
chip_gen: v6e
topology: v6e:2x2x1
jax: 0.10.0
libtpu: 0.0.40
codegen_flags: <defaults>
</compile_context>

<pallas_src>
import jax
import jax.numpy as jnp
from jax.experimental import pallas as pl
from jax.experimental.pallas import tpu as pltpu

# ----------------------------- model config ---------------------------------
INP_LEN = 16            # args.inp_len
EMBED_DIM = 32          # embed_dim (ESM2 hidden)
FILTER_LEN = 8          # filter_len
NBR_FILTERS = 120       # nbr_filters (torch)
NBR_PAD = 128           # lane-padded filter count used inside the kernel
NODES = 40              # args.nodes
NODES_PAD = 128         # lane-padded nodes
OUT_PAD = 128           # lane-padded output head width (real output = col 0)
PAD_LEFT = (FILTER_LEN - 1) // 2          # torch padding='same', even K: 3
PAD_RIGHT = (FILTER_LEN - 1) - PAD_LEFT   # 4

# ------------------------------ kernel tiling --------------------------------
TILE_SEQ = 16                     # sequences per grid step (M = 256 MXU rows)
M_TILE = TILE_SEQ * INP_LEN       # 256
SPAD_L = 16                       # 16-row-aligned left pad (bf16 packs 16 rows/vreg)
SPAD_ROWS = 48                    # 16 pad + 16 data + 16 pad


# ------------------------------- kernel --------------------------------------
def cnn_linear_kernel(x_ref, w1_ref, b1_ref, w2_ref, b2_ref,
                      wl_ref, bl_ref, wo_ref, bo_ref,
                      o_ref, xpad_ref, h1pad_ref):
    """conv1+relu, conv2+relu, flatten, fc+relu, output for TILE_SEQ sequences.
    Each conv = 8 accumulating bf16 MXU taps, f32 accumulation / bias / ReLU."""
    # ---- keep pad rows zero every step (scratch persists across grid steps) ----
    xpad_ref[:, :SPAD_L, :] = jnp.zeros(
        (TILE_SEQ, SPAD_L, EMBED_DIM), jnp.bfloat16)
    xpad_ref[:, SPAD_L + INP_LEN:, :] = jnp.zeros(
        (TILE_SEQ, SPAD_ROWS - SPAD_L - INP_LEN, EMBED_DIM), jnp.bfloat16)
    h1pad_ref[:, :SPAD_L, :] = jnp.zeros(
        (TILE_SEQ, SPAD_L, NBR_PAD), jnp.bfloat16)
    h1pad_ref[:, SPAD_L + INP_LEN:, :] = jnp.zeros(
        (TILE_SEQ, SPAD_ROWS - SPAD_L - INP_LEN, NBR_PAD), jnp.bfloat16)

    # ---- stage input tile into the padded scratch (16-row-aligned store) ----
    xpad_ref[:, SPAD_L:SPAD_L + INP_LEN, :] = x_ref[...]

    # ---- conv1 ('same', K=8): 8 accumulating (256,32)@(32,128) MXU taps ----
    acc1 = jnp.zeros((M_TILE, NBR_PAD), jnp.float32)
    for k in range(FILTER_LEN):
        s = SPAD_L - PAD_LEFT + k
        tap = xpad_ref[:, s:s + INP_LEN, :]                    # (T, 16, 32) bf16
        acc1 += jnp.dot(tap.reshape(M_TILE, EMBED_DIM), w1_ref[k],
                        preferred_element_type=jnp.float32)
    h1 = jnp.maximum(acc1 + b1_ref[...], 0.0)                  # (256, 128) f32

    # ---- h1 writeback: single aligned bf16 store into padded scratch ----
    h1pad_ref[:, SPAD_L:SPAD_L + INP_LEN, :] = (
        h1.astype(jnp.bfloat16).reshape(TILE_SEQ, INP_LEN, NBR_PAD))

    # ---- conv2 ('same', K=8): 8 accumulating (256,128)@(128,128) MXU taps ----
    acc2 = jnp.zeros((M_TILE, NBR_PAD), jnp.float32)
    for k in range(FILTER_LEN):
        s = SPAD_L - PAD_LEFT + k
        tap = h1pad_ref[:, s:s + INP_LEN, :]                   # (T, 16, 128) bf16
        acc2 += jnp.dot(tap.reshape(M_TILE, NBR_PAD), w2_ref[k],
                        preferred_element_type=jnp.float32)
    h2 = jnp.maximum(acc2 + b2_ref[...], 0.0)                  # (256, 128) f32
    # dropout1 / dropout3 are identity in eval mode

    # ---- flatten (l*Cpad lane-dense) -> fc (NODES padded to 128) -> ReLU ----
    flat = h2.astype(jnp.bfloat16).reshape(TILE_SEQ, INP_LEN * NBR_PAD)
    o_lin = jnp.dot(flat, wl_ref[...],
                    preferred_element_type=jnp.float32) + bl_ref[...]
    o_relu = jnp.maximum(o_lin, 0.0)                           # (T, 128) f32

    # ---- output head (lane-padded to 128; real result is column 0) ----
    o_ref[...] = jnp.dot(o_relu.astype(jnp.bfloat16), wo_ref[...],
                         preferred_element_type=jnp.float32) + bo_ref[...]


# ------------------------- one-time weight preparation ------------------------
def prepare_params(params):
    """Hoisted out of the per-call path: transpose / re-order / zero-pad the
    torch-layout weights once at load time (filters, nodes, head all -> 128)."""
    f0, fp = NBR_FILTERS, NBR_PAD
    n0, npd = NODES, NODES_PAD

    # conv1: torch (Cout, Cin, K) -> (K, Cin, Cout_pad)
    w1 = jnp.transpose(params["conv1_w"], (2, 1, 0))                 # (8, 32, 120)
    w1 = jnp.pad(w1, ((0, 0), (0, 0), (0, fp - f0))).astype(jnp.bfloat16)
    b1 = jnp.pad(params["conv1_b"], (0, fp - f0)).reshape(1, fp).astype(jnp.float32)

    # conv2: torch (Cout, Cin, K) -> (K, Cin_pad, Cout_pad)
    w2 = jnp.transpose(params["conv2_w"], (2, 1, 0))                 # (8, 120, 120)
    w2 = jnp.pad(w2, ((0, 0), (0, fp - f0), (0, fp - f0))).astype(jnp.bfloat16)
    b2 = jnp.pad(params["conv2_b"], (0, fp - f0)).reshape(1, fp).astype(jnp.float32)

    # linear: torch flattens (B, C, L) as c*L + l; kernel flattens (B, L, Cp)
    # as l*Cp + c. Re-order, insert zero rows per l, pad nodes to 128.
    wl = params["linear_w"].reshape(n0, f0, INP_LEN)                 # (n, c, l)
    wl = jnp.transpose(wl, (2, 1, 0))                                # (l, c, n)
    wl = jnp.pad(wl, ((0, 0), (0, fp - f0), (0, npd - n0)))          # (16, 128, 128)
    wl = wl.reshape(INP_LEN * fp, npd).astype(jnp.bfloat16)          # (2048, 128)
    bl = jnp.pad(params["linear_b"], (0, npd - n0)).reshape(1, npd).astype(jnp.float32)

    # output head: (1, nodes) -> (nodes, 1) -> zero-pad to (128, 128) (col 0 real)
    wo = jnp.transpose(params["output_w"], (1, 0))                   # (40, 1)
    wo = jnp.pad(wo, ((0, npd - n0), (0, OUT_PAD - 1))).astype(jnp.bfloat16)
    bo = jnp.pad(params["output_b"], (0, OUT_PAD - 1)).reshape(1, OUT_PAD).astype(jnp.float32)

    return {"w1": w1, "b1": b1, "w2": w2, "b2": b2,
            "wl": wl, "bl": bl, "wo": wo, "bo": bo}


# ------------------------------- wrapper --------------------------------------
@jax.jit
def cnn_linear_forward(rep, prepped):
    """rep: ESM2 representations (N, inp_len+2, embed_dim) incl. BOS/EOS.
    prepped: output of prepare_params() (already laid out / lane-padded).
    Returns (N, 1) predictions."""
    # x['representations'][layers][:, 1:inp_len+1]; kernel stays channels-last.
    x = rep[:, 1:INP_LEN + 1, :].astype(jnp.bfloat16)          # (N, 16, 32)
    n = x.shape[0]
    n_pad = pl.cdiv(n, TILE_SEQ) * TILE_SEQ
    if n_pad != n:
        x = jnp.pad(x, ((0, n_pad - n), (0, 0), (0, 0)))
    n_steps = n_pad // TILE_SEQ

    out_p = pl.pallas_call(
        cnn_linear_kernel,
        out_shape=jax.ShapeDtypeStruct((n_pad, OUT_PAD), jnp.float32),
        grid_spec=pltpu.PrefetchScalarGridSpec(
            num_scalar_prefetch=0,
            grid=(n_steps,),
            in_specs=[
                # per-step activation tile
                pl.BlockSpec((TILE_SEQ, INP_LEN, EMBED_DIM), lambda i: (i, 0, 0)),
                # weights: constant index_map -> VMEM-resident across the grid
                pl.BlockSpec((FILTER_LEN, EMBED_DIM, NBR_PAD), lambda i: (0, 0, 0)),
                pl.BlockSpec((1, NBR_PAD), lambda i: (0, 0)),
                pl.BlockSpec((FILTER_LEN, NBR_PAD, NBR_PAD), lambda i: (0, 0, 0)),
                pl.BlockSpec((1, NBR_PAD), lambda i: (0, 0)),
                pl.BlockSpec((INP_LEN * NBR_PAD, NODES_PAD), lambda i: (0, 0)),
                pl.BlockSpec((1, NODES_PAD), lambda i: (0, 0)),
                pl.BlockSpec((NODES_PAD, OUT_PAD), lambda i: (0, 0)),
                pl.BlockSpec((1, OUT_PAD), lambda i: (0, 0)),
            ],
            out_specs=pl.BlockSpec((TILE_SEQ, OUT_PAD), lambda i: (i, 0)),
            scratch_shapes=[
                pltpu.VMEM((TILE_SEQ, SPAD_ROWS, EMBED_DIM), jnp.bfloat16),  # xpad
                pltpu.VMEM((TILE_SEQ, SPAD_ROWS, NBR_PAD), jnp.bfloat16),    # h1pad
            ]),
        compiler_params=pltpu.CompilerParams(
            dimension_semantics=("parallel",),          # v7x megacore splits batch
            vmem_limit_bytes=32 * 1024 * 1024),
    )(x, prepped["w1"], prepped["b1"], prepped["w2"], prepped["b2"],
      prepped["wl"], prepped["bl"], prepped["wo"], prepped["bo"])

    return out_p[:n, :1]                                        # real output column


# ---------------------------- pure-JAX reference ------------------------------
def reference_forward(rep, params):
    x = rep[:, 1:INP_LEN + 1, :].astype(jnp.float32)
    x_ncw = jnp.transpose(x, (0, 2, 1))                        # (N, C, L)

    def conv1d(inp, w, b):   # torch layout w: (Cout, Cin, K)
        y = jax.lax.conv_general_dilated(
            inp, w, window_strides=(1,), padding=[(PAD_LEFT, PAD_RIGHT)],
            dimension_numbers=("NCH", "OIH", "NCH"))
        return y + b[None, :, None]

    h1 = jnp.maximum(conv1d(x_ncw, params["conv1_w"], params["conv1_b"]), 0.0)
    h2 = jnp.maximum(conv1d(h1, params["conv2_w"], params["conv2_b"]), 0.0)
    flat = h2.reshape(h2.shape[0], -1)                         # torch flatten order
    o_lin = jnp.maximum(flat @ params["linear_w"].T + params["linear_b"], 0.0)
    return o_lin @ params["output_w"].T + params["output_b"]


def init_params(key):
    ks = jax.random.split(key, 8)
    s = 0.05
    return {
        # torch layouts
        "conv1_w": s * jax.random.normal(ks[0], (NBR_FILTERS, EMBED_DIM, FILTER_LEN), jnp.float32),
        "conv1_b": s * jax.random.normal(ks[1], (NBR_FILTERS,), jnp.float32),
        "conv2_w": s * jax.random.normal(ks[2], (NBR_FILTERS, NBR_FILTERS, FILTER_LEN), jnp.float32),
        "conv2_b": s * jax.random.normal(ks[3], (NBR_FILTERS,), jnp.float32),
        "linear_w": s * jax.random.normal(ks[4], (NODES, NBR_FILTERS * INP_LEN), jnp.float32),
        "linear_b": s * jax.random.normal(ks[5], (NODES,), jnp.float32),
        "output_w": s * jax.random.normal(ks[6], (1, NODES), jnp.float32),
        "output_b": s * jax.random.normal(ks[7], (1,), jnp.float32),
    }


if __name__ == "__main__":
    key = jax.random.PRNGKey(0)
    k_rep, k_par = jax.random.split(key)
    # many sequences in one call: grid amortizes launch + weight DMA
    n_seq = 64
    # synthetic ESM2 representations: (N, inp_len + 2 [BOS/EOS], embed_dim)
    rep = jax.random.normal(k_rep, (n_seq, INP_LEN + 2, EMBED_DIM), jnp.float32)
    params = init_params(k_par)

    prepped = prepare_params(params)          # one-time weight prep (hoisted)
    out = jax.block_until_ready(cnn_linear_forward(rep, prepped))

    assert out.shape == (n_seq, 1) and out.dtype == jnp.float32
    ref = jax.block_until_ready(reference_forward(rep, params))
    assert bool(jnp.all(jnp.isfinite(out)))
    assert bool(jnp.allclose(out, ref, atol=4e-2, rtol=4e-2)), (out, ref)
    print("KERNEL_OK")
</pallas_src>

<mosaic_0001>
module attributes {stable_mosaic.version = 11 : i64} {
  func.func @cnn_linear_kernel(%arg0: i32, %arg1: memref<16x16x32xbf16, #tpu.memory_space<vmem>>, %arg2: memref<8x32x128xbf16, #tpu.memory_space<vmem>>, %arg3: memref<1x128xf32, #tpu.memory_space<vmem>>, %arg4: memref<8x128x128xbf16, #tpu.memory_space<vmem>>, %arg5: memref<1x128xf32, #tpu.memory_space<vmem>>, %arg6: memref<2048x128xbf16, #tpu.memory_space<vmem>>, %arg7: memref<1x128xf32, #tpu.memory_space<vmem>>, %arg8: memref<128x128xbf16, #tpu.memory_space<vmem>>, %arg9: memref<1x128xf32, #tpu.memory_space<vmem>>, %arg10: memref<16x128xf32, #tpu.memory_space<vmem>>, %arg11: memref<16x48x32xbf16, #tpu.memory_space<vmem>>, %arg12: memref<16x48x128xbf16, #tpu.memory_space<vmem>>) attributes {dimension_semantics = [#tpu.dimension_semantics<parallel>], iteration_bounds = array<i64: 4>, scalar_prefetch = 0 : i64, scratch_operands = 2 : i64, tpu.core_type = #tpu.core_type<tc>, window_params = [{transform_indices = @transform_0, window_bounds = array<i64: 16, 16, 32>}, {pipeline_mode = #tpu.pipeline_mode<synchronous>, transform_indices = @transform_1, window_bounds = array<i64: 8, 32, 128>}, {pipeline_mode = #tpu.pipeline_mode<synchronous>, transform_indices = @transform_2, window_bounds = array<i64: 1, 128>}, {pipeline_mode = #tpu.pipeline_mode<synchronous>, transform_indices = @transform_3, window_bounds = array<i64: 8, 128, 128>}, {pipeline_mode = #tpu.pipeline_mode<synchronous>, transform_indices = @transform_4, window_bounds = array<i64: 1, 128>}, {pipeline_mode = #tpu.pipeline_mode<synchronous>, transform_indices = @transform_5, window_bounds = array<i64: 2048, 128>}, {pipeline_mode = #tpu.pipeline_mode<synchronous>, transform_indices = @transform_6, window_bounds = array<i64: 1, 128>}, {pipeline_mode = #tpu.pipeline_mode<synchronous>, transform_indices = @transform_7, window_bounds = array<i64: 128, 128>}, {pipeline_mode = #tpu.pipeline_mode<synchronous>, transform_indices = @transform_8, window_bounds = array<i64: 1, 128>}, {transform_indices = @transform_9, window_bounds = array<i64: 16, 128>}]} {
    %cst = arith.constant 0.000000e+00 : bf16
    %0 = vector.broadcast %cst : bf16 to vector<16x16x32xbf16>
    %c0 = arith.constant 0 : index
    %c0_0 = arith.constant 0 : index
    %c0_1 = arith.constant 0 : index
    %1 = vector.load %arg11[%c0, %c0_0, %c0_1] : memref<16x48x32xbf16, #tpu.memory_space<vmem>>, vector<16x16x32xbf16>
    tpu.vector_store %arg11[%c0, %c0_0, %c0_1], %0 {strides = array<i32>} : memref<16x48x32xbf16, #tpu.memory_space<vmem>>, vector<16x16x32xbf16>,
    %cst_2 = arith.constant 0.000000e+00 : bf16
    %2 = vector.broadcast %cst_2 : bf16 to vector<16x16x32xbf16>
    %c0_3 = arith.constant 0 : index
    %c32 = arith.constant 32 : index
    %c0_4 = arith.constant 0 : index
    %3 = vector.load %arg11[%c0_3, %c32, %c0_4] : memref<16x48x32xbf16, #tpu.memory_space<vmem>>, vector<16x16x32xbf16>
    tpu.vector_store %arg11[%c0_3, %c32, %c0_4], %2 {strides = array<i32>} : memref<16x48x32xbf16, #tpu.memory_space<vmem>>, vector<16x16x32xbf16>,
    %cst_5 = arith.constant 0.000000e+00 : bf16
    %4 = vector.broadcast %cst_5 : bf16 to vector<16x16x128xbf16>
    %c0_6 = arith.constant 0 : index
    %c0_7 = arith.constant 0 : index
    %c0_8 = arith.constant 0 : index
    %5 = vector.load %arg12[%c0_6, %c0_7, %c0_8] : memref<16x48x128xbf16, #tpu.memory_space<vmem>>, vector<16x16x128xbf16>
    tpu.vector_store %arg12[%c0_6, %c0_7, %c0_8], %4 {strides = array<i32>} : memref<16x48x128xbf16, #tpu.memory_space<vmem>>, vector<16x16x128xbf16>,
    %cst_9 = arith.constant 0.000000e+00 : bf16
    %6 = vector.broadcast %cst_9 : bf16 to vector<16x16x128xbf16>
    %c0_10 = arith.constant 0 : index
    %c32_11 = arith.constant 32 : index
    %c0_12 = arith.constant 0 : index
    %7 = vector.load %arg12[%c0_10, %c32_11, %c0_12] : memref<16x48x128xbf16, #tpu.memory_space<vmem>>, vector<16x16x128xbf16>
    tpu.vector_store %arg12[%c0_10, %c32_11, %c0_12], %6 {strides = array<i32>} : memref<16x48x128xbf16, #tpu.memory_space<vmem>>, vector<16x16x128xbf16>,
    %c0_13 = arith.constant 0 : index
    %c0_14 = arith.constant 0 : index
    %c0_15 = arith.constant 0 : index
    %8 = vector.load %arg1[%c0_13, %c0_14, %c0_15] : memref<16x16x32xbf16, #tpu.memory_space<vmem>>, vector<16x16x32xbf16>
    %c0_16 = arith.constant 0 : index
    %c16 = arith.constant 16 : index
    %c0_17 = arith.constant 0 : index
    %9 = vector.load %arg11[%c0_16, %c16, %c0_17] : memref<16x48x32xbf16, #tpu.memory_space<vmem>>, vector<16x16x32xbf16>
    tpu.vector_store %arg11[%c0_16, %c16, %c0_17], %8 {strides = array<i32>} : memref<16x48x32xbf16, #tpu.memory_space<vmem>>, vector<16x16x32xbf16>,
    %cst_18 = arith.constant 0.000000e+00 : f32
    %10 = vector.broadcast %cst_18 : f32 to vector<256x128xf32>
    %c0_19 = arith.constant 0 : index
    %c13 = arith.constant 13 : index
    %c0_20 = arith.constant 0 : index
    %11 = vector.load %arg11[%c0_19, %c13, %c0_20] : memref<16x48x32xbf16, #tpu.memory_space<vmem>>, vector<16x16x32xbf16>
    %12 = vector.shape_cast %11 : vector<16x16x32xbf16> to vector<256x32xbf16>
    %c0_21 = arith.constant 0 : index
    %c0_22 = arith.constant 0 : index
    %c0_23 = arith.constant 0 : index
    %13 = vector.load %arg2[%c0_21, %c0_22, %c0_23] : memref<8x32x128xbf16, #tpu.memory_space<vmem>>, vector<1x32x128xbf16>
    %14 = vector.shape_cast %13 : vector<1x32x128xbf16> to vector<32x128xbf16>
    %cst_24 = arith.constant dense<0.000000e+00> : vector<256x128xf32>
    %15 = tpu.matmul %12, %14, %cst_24 {dimension_numbers = #tpu.dot_dimension_numbers<[1], [0], [0], [1], [0, 0, 1, 1], [], []>} : vector<256x32xbf16>, vector<32x128xbf16>, vector<256x128xf32> -> vector<256x128xf32>
    %16 = arith.addf %10, %15 : vector<256x128xf32>
    %c0_25 = arith.constant 0 : index
    %c14 = arith.constant 14 : index
    %c0_26 = arith.constant 0 : index
    %17 = vector.load %arg11[%c0_25, %c14, %c0_26] : memref<16x48x32xbf16, #tpu.memory_space<vmem>>, vector<16x16x32xbf16>
    %18 = vector.shape_cast %17 : vector<16x16x32xbf16> to vector<256x32xbf16>
    %c1 = arith.constant 1 : index
    %c0_27 = arith.constant 0 : index
    %c0_28 = arith.constant 0 : index
    %19 = vector.load %arg2[%c1, %c0_27, %c0_28] : memref<8x32x128xbf16, #tpu.memory_space<vmem>>, vector<1x32x128xbf16>
    %20 = vector.shape_cast %19 : vector<1x32x128xbf16> to vector<32x128xbf16>
    %cst_29 = arith.constant dense<0.000000e+00> : vector<256x128xf32>
    %21 = tpu.matmul %18, %20, %cst_29 {dimension_numbers = #tpu.dot_dimension_numbers<[1], [0], [0], [1], [0, 0, 1, 1], [], []>} : vector<256x32xbf16>, vector<32x128xbf16>, vector<256x128xf32> -> vector<256x128xf32>
    %22 = arith.addf %16, %21 : vector<256x128xf32>
    %c0_30 = arith.constant 0 : index
    %c15 = arith.constant 15 : index
    %c0_31 = arith.constant 0 : index
    %23 = vector.load %arg11[%c0_30, %c15, %c0_31] : memref<16x48x32xbf16, #tpu.memory_space<vmem>>, vector<16x16x32xbf16>
    %24 = vector.shape_cast %23 : vector<16x16x32xbf16> to vector<256x32xbf16>
    %c2 = arith.constant 2 : index
    %c0_32 = arith.constant 0 : index
    %c0_33 = arith.constant 0 : index
    %25 = vector.load %arg2[%c2, %c0_32, %c0_33] : memref<8x32x128xbf16, #tpu.memory_space<vmem>>, vector<1x32x128xbf16>
    %26 = vector.shape_cast %25 : vector<1x32x128xbf16> to vector<32x128xbf16>
    %cst_34 = arith.constant dense<0.000000e+00> : vector<256x128xf32>
    %27 = tpu.matmul %24, %26, %cst_34 {dimension_numbers = #tpu.dot_dimension_numbers<[1], [0], [0], [1], [0, 0, 1, 1], [], []>} : vector<256x32xbf16>, vector<32x128xbf16>, vector<256x128xf32> -> vector<256x128xf32>
    %28 = arith.addf %22, %27 : vector<256x128xf32>
    %c0_35 = arith.constant 0 : index
    %c16_36 = arith.constant 16 : index
    %c0_37 = arith.constant 0 : index
    %29 = vector.load %arg11[%c0_35, %c16_36, %c0_37] : memref<16x48x32xbf16, #tpu.memory_space<vmem>>, vector<16x16x32xbf16>
    %30 = vector.shape_cast %29 : vector<16x16x32xbf16> to vector<256x32xbf16>
    %c3 = arith.constant 3 : index
    %c0_38 = arith.constant 0 : index
    %c0_39 = arith.constant 0 : index
    %31 = vector.load %arg2[%c3, %c0_38, %c0_39] : memref<8x32x128xbf16, #tpu.memory_space<vmem>>, vector<1x32x128xbf16>
    %32 = vector.shape_cast %31 : vector<1x32x128xbf16> to vector<32x128xbf16>
    %cst_40 = arith.constant dense<0.000000e+00> : vector<256x128xf32>
    %33 = tpu.matmul %30, %32, %cst_40 {dimension_numbers = #tpu.dot_dimension_numbers<[1], [0], [0], [1], [0, 0, 1, 1], [], []>} : vector<256x32xbf16>, vector<32x128xbf16>, vector<256x128xf32> -> vector<256x128xf32>
    %34 = arith.addf %28, %33 : vector<256x128xf32>
    %c0_41 = arith.constant 0 : index
    %c17 = arith.constant 17 : index
    %c0_42 = arith.constant 0 : index
    %35 = vector.load %arg11[%c0_41, %c17, %c0_42] : memref<16x48x32xbf16, #tpu.memory_space<vmem>>, vector<16x16x32xbf16>
    %36 = vector.shape_cast %35 : vector<16x16x32xbf16> to vector<256x32xbf16>
    %c4 = arith.constant 4 : index
    %c0_43 = arith.constant 0 : index
    %c0_44 = arith.constant 0 : index
    %37 = vector.load %arg2[%c4, %c0_43, %c0_44] : memref<8x32x128xbf16, #tpu.memory_space<vmem>>, vector<1x32x128xbf16>
    %38 = vector.shape_cast %37 : vector<1x32x128xbf16> to vector<32x128xbf16>
    %cst_45 = arith.constant dense<0.000000e+00> : vector<256x128xf32>
    %39 = tpu.matmul %36, %38, %cst_45 {dimension_numbers = #tpu.dot_dimension_numbers<[1], [0], [0], [1], [0, 0, 1, 1], [], []>} : vector<256x32xbf16>, vector<32x128xbf16>, vector<256x128xf32> -> vector<256x128xf32>
    %40 = arith.addf %34, %39 : vector<256x128xf32>
    %c0_46 = arith.constant 0 : index
    %c18 = arith.constant 18 : index
    %c0_47 = arith.constant 0 : index
    %41 = vector.load %arg11[%c0_46, %c18, %c0_47] : memref<16x48x32xbf16, #tpu.memory_space<vmem>>, vector<16x16x32xbf16>
    %42 = vector.shape_cast %41 : vector<16x16x32xbf16> to vector<256x32xbf16>
    %c5 = arith.constant 5 : index
    %c0_48 = arith.constant 0 : index
    %c0_49 = arith.constant 0 : index
    %43 = vector.load %arg2[%c5, %c0_48, %c0_49] : memref<8x32x128xbf16, #tpu.memory_space<vmem>>, vector<1x32x128xbf16>
    %44 = vector.shape_cast %43 : vector<1x32x128xbf16> to vector<32x128xbf16>
    %cst_50 = arith.constant dense<0.000000e+00> : vector<256x128xf32>
    %45 = tpu.matmul %42, %44, %cst_50 {dimension_numbers = #tpu.dot_dimension_numbers<[1], [0], [0], [1], [0, 0, 1, 1], [], []>} : vector<256x32xbf16>, vector<32x128xbf16>, vector<256x128xf32> -> vector<256x128xf32>
    %46 = arith.addf %40, %45 : vector<256x128xf32>
    %c0_51 = arith.constant 0 : index
    %c19 = arith.constant 19 : index
    %c0_52 = arith.constant 0 : index
    %47 = vector.load %arg11[%c0_51, %c19, %c0_52] : memref<16x48x32xbf16, #tpu.memory_space<vmem>>, vector<16x16x32xbf16>
    %48 = vector.shape_cast %47 : vector<16x16x32xbf16> to vector<256x32xbf16>
    %c6 = arith.constant 6 : index
    %c0_53 = arith.constant 0 : index
    %c0_54 = arith.constant 0 : index
    %49 = vector.load %arg2[%c6, %c0_53, %c0_54] : memref<8x32x128xbf16, #tpu.memory_space<vmem>>, vector<1x32x128xbf16>
    %50 = vector.shape_cast %49 : vector<1x32x128xbf16> to vector<32x128xbf16>
    %cst_55 = arith.constant dense<0.000000e+00> : vector<256x128xf32>
    %51 = tpu.matmul %48, %50, %cst_55 {dimension_numbers = #tpu.dot_dimension_numbers<[1], [0], [0], [1], [0, 0, 1, 1], [], []>} : vector<256x32xbf16>, vector<32x128xbf16>, vector<256x128xf32> -> vector<256x128xf32>
    %52 = arith.addf %46, %51 : vector<256x128xf32>
    %c0_56 = arith.constant 0 : index
    %c20 = arith.constant 20 : index
    %c0_57 = arith.constant 0 : index
    %53 = vector.load %arg11[%c0_56, %c20, %c0_57] : memref<16x48x32xbf16, #tpu.memory_space<vmem>>, vector<16x16x32xbf16>
    %54 = vector.shape_cast %53 : vector<16x16x32xbf16> to vector<256x32xbf16>
    %c7 = arith.constant 7 : index
    %c0_58 = arith.constant 0 : index
    %c0_59 = arith.constant 0 : index
    %55 = vector.load %arg2[%c7, %c0_58, %c0_59] : memref<8x32x128xbf16, #tpu.memory_space<vmem>>, vector<1x32x128xbf16>
    %56 = vector.shape_cast %55 : vector<1x32x128xbf16> to vector<32x128xbf16>
    %cst_60 = arith.constant dense<0.000000e+00> : vector<256x128xf32>
    %57 = tpu.matmul %54, %56, %cst_60 {dimension_numbers = #tpu.dot_dimension_numbers<[1], [0], [0], [1], [0, 0, 1, 1], [], []>} : vector<256x32xbf16>, vector<32x128xbf16>, vector<256x128xf32> -> vector<256x128xf32>
    %58 = arith.addf %52, %57 : vector<256x128xf32>
    %c0_61 = arith.constant 0 : index
    %c0_62 = arith.constant 0 : index
    %59 = vector.load %arg3[%c0_61, %c0_62] : memref<1x128xf32, #tpu.memory_space<vmem>>, vector<1x128xf32>
    %60 = vector.broadcast %59 : vector<1x128xf32> to vector<256x128xf32>
    %61 = arith.addf %58, %60 : vector<256x128xf32>
    %cst_63 = arith.constant 0.000000e+00 : f32
    %62 = vector.broadcast %cst_63 : f32 to vector<256x128xf32>
    %63 = arith.maximumf %61, %62 : vector<256x128xf32>
    %64 = arith.truncf %63 : vector<256x128xf32> to vector<256x128xbf16>
    %65 = vector.shape_cast %64 : vector<256x128xbf16> to vector<16x16x128xbf16>
    %c0_64 = arith.constant 0 : index
    %c16_65 = arith.constant 16 : index
    %c0_66 = arith.constant 0 : index
    %66 = vector.load %arg12[%c0_64, %c16_65, %c0_66] : memref<16x48x128xbf16, #tpu.memory_space<vmem>>, vector<16x16x128xbf16>
    tpu.vector_store %arg12[%c0_64, %c16_65, %c0_66], %65 {strides = array<i32>} : memref<16x48x128xbf16, #tpu.memory_space<vmem>>, vector<16x16x128xbf16>,
    %cst_67 = arith.constant 0.000000e+00 : f32
    %67 = vector.broadcast %cst_67 : f32 to vector<256x128xf32>
    %c0_68 = arith.constant 0 : index
    %c13_69 = arith.constant 13 : index
    %c0_70 = arith.constant 0 : index
    %68 = vector.load %arg12[%c0_68, %c13_69, %c0_70] : memref<16x48x128xbf16, #tpu.memory_space<vmem>>, vector<16x16x128xbf16>
    %69 = vector.shape_cast %68 : vector<16x16x128xbf16> to vector<256x128xbf16>
    %c0_71 = arith.constant 0 : index
    %c0_72 = arith.constant 0 : index
    %c0_73 = arith.constant 0 : index
    %70 = vector.load %arg4[%c0_71, %c0_72, %c0_73] : memref<8x128x128xbf16, #tpu.memory_space<vmem>>, vector<1x128x128xbf16>
    %71 = vector.shape_cast %70 : vector<1x128x128xbf16> to vector<128x128xbf16>
    %cst_74 = arith.constant dense<0.000000e+00> : vector<256x128xf32>
    %72 = tpu.matmul %69, %71, %cst_74 {dimension_numbers = #tpu.dot_dimension_numbers<[1], [0], [0], [1], [0, 0, 1, 1], [], []>} : vector<256x128xbf16>, vector<128x128xbf16>, vector<256x128xf32> -> vector<256x128xf32>
    %73 = arith.addf %67, %72 : vector<256x128xf32>
    %c0_75 = arith.constant 0 : index
    %c14_76 = arith.constant 14 : index
    %c0_77 = arith.constant 0 : index
    %74 = vector.load %arg12[%c0_75, %c14_76, %c0_77] : memref<16x48x128xbf16, #tpu.memory_space<vmem>>, vector<16x16x128xbf16>
    %75 = vector.shape_cast %74 : vector<16x16x128xbf16> to vector<256x128xbf16>
    %c1_78 = arith.constant 1 : index
    %c0_79 = arith.constant 0 : index
    %c0_80 = arith.constant 0 : index
    %76 = vector.load %arg4[%c1_78, %c0_79, %c0_80] : memref<8x128x128xbf16, #tpu.memory_space<vmem>>, vector<1x128x128xbf16>
    %77 = vector.shape_cast %76 : vector<1x128x128xbf16> to vector<128x128xbf16>
    %cst_81 = arith.constant dense<0.000000e+00> : vector<256x128xf32>
    %78 = tpu.matmul %75, %77, %cst_81 {dimension_numbers = #tpu.dot_dimension_numbers<[1], [0], [0], [1], [0, 0, 1, 1], [], []>} : vector<256x128xbf16>, vector<128x128xbf16>, vector<256x128xf32> -> vector<256x128xf32>
    %79 = arith.addf %73, %78 : vector<256x128xf32>
    %c0_82 = arith.constant 0 : index
    %c15_83 = arith.constant 15 : index
    %c0_84 = arith.constant 0 : index
    %80 = vector.load %arg12[%c0_82, %c15_83, %c0_84] : memref<16x48x128xbf16, #tpu.memory_space<vmem>>, vector<16x16x128xbf16>
    %81 = vector.shape_cast %80 : vector<16x16x128xbf16> to vector<256x128xbf16>
    %c2_85 = arith.constant 2 : index
    %c0_86 = arith.constant 0 : index
    %c0_87 = arith.constant 0 : index
    %82 = vector.load %arg4[%c2_85, %c0_86, %c0_87] : memref<8x128x128xbf16, #tpu.memory_space<vmem>>, vector<1x128x128xbf16>
    %83 = vector.shape_cast %82 : vector<1x128x128xbf16> to vector<128x128xbf16>
    %cst_88 = arith.constant dense<0.000000e+00> : vector<256x128xf32>
    %84 = tpu.matmul %81, %83, %cst_88 {dimension_numbers = #tpu.dot_dimension_numbers<[1], [0], [0], [1], [0, 0, 1, 1], [], []>} : vector<256x128xbf16>, vector<128x128xbf16>, vector<256x128xf32> -> vector<256x128xf32>
    %85 = arith.addf %79, %84 : vector<256x128xf32>
    %c0_89 = arith.constant 0 : index
    %c16_90 = arith.constant 16 : index
    %c0_91 = arith.constant 0 : index
    %86 = vector.load %arg12[%c0_89, %c16_90, %c0_91] : memref<16x48x128xbf16, #tpu.memory_space<vmem>>, vector<16x16x128xbf16>
    %87 = vector.shape_cast %86 : vector<16x16x128xbf16> to vector<256x128xbf16>
    %c3_92 = arith.constant 3 : index
    %c0_93 = arith.constant 0 : index
    %c0_94 = arith.constant 0 : index
    %88 = vector.load %arg4[%c3_92, %c0_93, %c0_94] : memref<8x128x128xbf16, #tpu.memory_space<vmem>>, vector<1x128x128xbf16>
    %89 = vector.shape_cast %88 : vector<1x128x128xbf16> to vector<128x128xbf16>
    %cst_95 = arith.constant dense<0.000000e+00> : vector<256x128xf32>
    %90 = tpu.matmul %87, %89, %cst_95 {dimension_numbers = #tpu.dot_dimension_numbers<[1], [0], [0], [1], [0, 0, 1, 1], [], []>} : vector<256x128xbf16>, vector<128x128xbf16>, vector<256x128xf32> -> vector<256x128xf32>
    %91 = arith.addf %85, %90 : vector<256x128xf32>
    %c0_96 = arith.constant 0 : index
    %c17_97 = arith.constant 17 : index
    %c0_98 = arith.constant 0 : index
    %92 = vector.load %arg12[%c0_96, %c17_97, %c0_98] : memref<16x48x128xbf16, #tpu.memory_space<vmem>>, vector<16x16x128xbf16>
    %93 = vector.shape_cast %92 : vector<16x16x128xbf16> to vector<256x128xbf16>
    %c4_99 = arith.constant 4 : index
    %c0_100 = arith.constant 0 : index
    %c0_101 = arith.constant 0 : index
    %94 = vector.load %arg4[%c4_99, %c0_100, %c0_101] : memref<8x128x128xbf16, #tpu.memory_space<vmem>>, vector<1x128x128xbf16>
    %95 = vector.shape_cast %94 : vector<1x128x128xbf16> to vector<128x128xbf16>
    %cst_102 = arith.constant dense<0.000000e+00> : vector<256x128xf32>
    %96 = tpu.matmul %93, %95, %cst_102 {dimension_numbers = #tpu.dot_dimension_numbers<[1], [0], [0], [1], [0, 0, 1, 1], [], []>} : vector<256x128xbf16>, vector<128x128xbf16>, vector<256x128xf32> -> vector<256x128xf32>
    %97 = arith.addf %91, %96 : vector<256x128xf32>
    %c0_103 = arith.constant 0 : index
    %c18_104 = arith.constant 18 : index
    %c0_105 = arith.constant 0 : index
    %98 = vector.load %arg12[%c0_103, %c18_104, %c0_105] : memref<16x48x128xbf16, #tpu.memory_space<vmem>>, vector<16x16x128xbf16>
    %99 = vector.shape_cast %98 : vector<16x16x128xbf16> to vector<256x128xbf16>
    %c5_106 = arith.constant 5 : index
    %c0_107 = arith.constant 0 : index
    %c0_108 = arith.constant 0 : index
    %100 = vector.load %arg4[%c5_106, %c0_107, %c0_108] : memref<8x128x128xbf16, #tpu.memory_space<vmem>>, vector<1x128x128xbf16>
    %101 = vector.shape_cast %100 : vector<1x128x128xbf16> to vector<128x128xbf16>
    %cst_109 = arith.constant dense<0.000000e+00> : vector<256x128xf32>
    %102 = tpu.matmul %99, %101, %cst_109 {dimension_numbers = #tpu.dot_dimension_numbers<[1], [0], [0], [1], [0, 0, 1, 1], [], []>} : vector<256x128xbf16>, vector<128x128xbf16>, vector<256x128xf32> -> vector<256x128xf32>
    %103 = arith.addf %97, %102 : vector<256x128xf32>
    %c0_110 = arith.constant 0 : index
    %c19_111 = arith.constant 19 : index
    %c0_112 = arith.constant 0 : index
    %104 = vector.load %arg12[%c0_110, %c19_111, %c0_112] : memref<16x48x128xbf16, #tpu.memory_space<vmem>>, vector<16x16x128xbf16>
    %105 = vector.shape_cast %104 : vector<16x16x128xbf16> to vector<256x128xbf16>
    %c6_113 = arith.constant 6 : index
    %c0_114 = arith.constant 0 : index
    %c0_115 = arith.constant 0 : index
    %106 = vector.load %arg4[%c6_113, %c0_114, %c0_115] : memref<8x128x128xbf16, #tpu.memory_space<vmem>>, vector<1x128x128xbf16>
    %107 = vector.shape_cast %106 : vector<1x128x128xbf16> to vector<128x128xbf16>
    %cst_116 = arith.constant dense<0.000000e+00> : vector<256x128xf32>
    %108 = tpu.matmul %105, %107, %cst_116 {dimension_numbers = #tpu.dot_dimension_numbers<[1], [0], [0], [1], [0, 0, 1, 1], [], []>} : vector<256x128xbf16>, vector<128x128xbf16>, vector<256x128xf32> -> vector<256x128xf32>
    %109 = arith.addf %103, %108 : vector<256x128xf32>
    %c0_117 = arith.constant 0 : index
    %c20_118 = arith.constant 20 : index
    %c0_119 = arith.constant 0 : index
    %110 = vector.load %arg12[%c0_117, %c20_118, %c0_119] : memref<16x48x128xbf16, #tpu.memory_space<vmem>>, vector<16x16x128xbf16>
    %111 = vector.shape_cast %110 : vector<16x16x128xbf16> to vector<256x128xbf16>
    %c7_120 = arith.constant 7 : index
    %c0_121 = arith.constant 0 : index
    %c0_122 = arith.constant 0 : index
    %112 = vector.load %arg4[%c7_120, %c0_121, %c0_122] : memref<8x128x128xbf16, #tpu.memory_space<vmem>>, vector<1x128x128xbf16>
    %113 = vector.shape_cast %112 : vector<1x128x128xbf16> to vector<128x128xbf16>
    %cst_123 = arith.constant dense<0.000000e+00> : vector<256x128xf32>
    %114 = tpu.matmul %111, %113, %cst_123 {dimension_numbers = #tpu.dot_dimension_numbers<[1], [0], [0], [1], [0, 0, 1, 1], [], []>} : vector<256x128xbf16>, vector<128x128xbf16>, vector<256x128xf32> -> vector<256x128xf32>
    %115 = arith.addf %109, %114 : vector<256x128xf32>
    %c0_124 = arith.constant 0 : index
    %c0_125 = arith.constant 0 : index
    %116 = vector.load %arg5[%c0_124, %c0_125] : memref<1x128xf32, #tpu.memory_space<vmem>>, vector<1x128xf32>
    %117 = vector.broadcast %116 : vector<1x128xf32> to vector<256x128xf32>
    %118 = arith.addf %115, %117 : vector<256x128xf32>
    %cst_126 = arith.constant 0.000000e+00 : f32
    %119 = vector.broadcast %cst_126 : f32 to vector<256x128xf32>
    %120 = arith.maximumf %118, %119 : vector<256x128xf32>
    %121 = arith.truncf %120 : vector<256x128xf32> to vector<256x128xbf16>
    %122 = vector.shape_cast %121 : vector<256x128xbf16> to vector<16x2048xbf16>
    %c0_127 = arith.constant 0 : index
    %c0_128 = arith.constant 0 : index
    %123 = vector.load %arg6[%c0_127, %c0_128] : memref<2048x128xbf16, #tpu.memory_space<vmem>>, vector<2048x128xbf16>
    %cst_129 = arith.constant dense<0.000000e+00> : vector<16x128xf32>
    %124 = tpu.matmul %122, %123, %cst_129 {dimension_numbers = #tpu.dot_dimension_numbers<[1], [0], [0], [1], [0, 0, 1, 1], [], []>} : vector<16x2048xbf16>, vector<2048x128xbf16>, vector<16x128xf32> -> vector<16x128xf32>
    %c0_130 = arith.constant 0 : index
    %c0_131 = arith.constant 0 : index
    %125 = vector.load %arg7[%c0_130, %c0_131] : memref<1x128xf32, #tpu.memory_space<vmem>>, vector<1x128xf32>
    %126 = vector.broadcast %125 : vector<1x128xf32> to vector<16x128xf32>
    %127 = arith.addf %124, %126 : vector<16x128xf32>
    %cst_132 = arith.constant 0.000000e+00 : f32
    %128 = vector.broadcast %cst_132 : f32 to vector<16x128xf32>
    %129 = arith.maximumf %127, %128 : vector<16x128xf32>
    %130 = arith.truncf %129 : vector<16x128xf32> to vector<16x128xbf16>
    %c0_133 = arith.constant 0 : index
    %c0_134 = arith.constant 0 : index
    %131 = vector.load %arg8[%c0_133, %c0_134] : memref<128x128xbf16, #tpu.memory_space<vmem>>, vector<128x128xbf16>
    %cst_135 = arith.constant dense<0.000000e+00> : vector<16x128xf32>
    %132 = tpu.matmul %130, %131, %cst_135 {dimension_numbers = #tpu.dot_dimension_numbers<[1], [0], [0], [1], [0, 0, 1, 1], [], []>} : vector<16x128xbf16>, vector<128x128xbf16>, vector<16x128xf32> -> vector<16x128xf32>
    %c0_136 = arith.constant 0 : index
    %c0_137 = arith.constant 0 : index
    %133 = vector.load %arg9[%c0_136, %c0_137] : memref<1x128xf32, #tpu.memory_space<vmem>>, vector<1x128xf32>
    %134 = vector.broadcast %133 : vector<1x128xf32> to vector<16x128xf32>
    %135 = arith.addf %132, %134 : vector<16x128xf32>
    %c0_138 = arith.constant 0 : index
    %c0_139 = arith.constant 0 : index
    %136 = vector.load %arg10[%c0_138, %c0_139] : memref<16x128xf32, #tpu.memory_space<vmem>>, vector<16x128xf32>
    tpu.vector_store %arg10[%c0_138, %c0_139], %135 {strides = array<i32>} : memref<16x128xf32, #tpu.memory_space<vmem>>, vector<16x128xf32>,
    return
  }
  func.func @transform_0(%arg0: i32) -> (i32, i32, i32) {
    %c0_i32 = arith.constant 0 : i32
    %c0_i32_0 = arith.constant 0 : i32
    %c0_i32_1 = arith.constant 0 : i32
    return %arg0, %c0_i32, %c0_i32_0 : i32, i32, i32
  }
  func.func @transform_1(%arg0: i32) -> (i32, i32, i32) {
    %c0_i32 = arith.constant 0 : i32
    %c0_i32_0 = arith.constant 0 : i32
    %c0_i32_1 = arith.constant 0 : i32
    %c0_i32_2 = arith.constant 0 : i32
    return %c0_i32, %c0_i32_0, %c0_i32_1 : i32, i32, i32
  }
  func.func @transform_2(%arg0: i32) -> (i32, i32) {
    %c0_i32 = arith.constant 0 : i32
    %c0_i32_0 = arith.constant 0 : i32
    %c0_i32_1 = arith.constant 0 : i32
    return %c0_i32, %c0_i32_0 : i32, i32
  }
  func.func @transform_3(%arg0: i32) -> (i32, i32, i32) {
    %c0_i32 = arith.constant 0 : i32
    %c0_i32_0 = arith.constant 0 : i32
    %c0_i32_1 = arith.constant 0 : i32
    %c0_i32_2 = arith.constant 0 : i32
    return %c0_i32, %c0_i32_0, %c0_i32_1 : i32, i32, i32
  }
  func.func @transform_4(%arg0: i32) -> (i32, i32) {
    %c0_i32 = arith.constant 0 : i32
    %c0_i32_0 = arith.constant 0 : i32
    %c0_i32_1 = arith.constant 0 : i32
    return %c0_i32, %c0_i32_0 : i32, i32
  }
  func.func @transform_5(%arg0: i32) -> (i32, i32) {
    %c0_i32 = arith.constant 0 : i32
    %c0_i32_0 = arith.constant 0 : i32
    %c0_i32_1 = arith.constant 0 : i32
    return %c0_i32, %c0_i32_0 : i32, i32
  }
  func.func @transform_6(%arg0: i32) -> (i32, i32) {
    %c0_i32 = arith.constant 0 : i32
    %c0_i32_0 = arith.constant 0 : i32
    %c0_i32_1 = arith.constant 0 : i32
    return %c0_i32, %c0_i32_0 : i32, i32
  }
  func.func @transform_7(%arg0: i32) -> (i32, i32) {
    %c0_i32 = arith.constant 0 : i32
    %c0_i32_0 = arith.constant 0 : i32
    %c0_i32_1 = arith.constant 0 : i32
    return %c0_i32, %c0_i32_0 : i32, i32
  }
  func.func @transform_8(%arg0: i32) -> (i32, i32) {
    %c0_i32 = arith.constant 0 : i32
    %c0_i32_0 = arith.constant 0 : i32
    %c0_i32_1 = arith.constant 0 : i32
    return %c0_i32, %c0_i32_0 : i32, i32
  }
  func.func @transform_9(%arg0: i32) -> (i32, i32) {
    %c0_i32 = arith.constant 0 : i32
    %c0_i32_0 = arith.constant 0 : i32
    return %arg0, %c0_i32 : i32, i32
  }
}

</mosaic_0001>

<llo_original>
// kernel: cnn_linear_forward.1
$region0: #{cnn_linear_forward.1}
  #allocation0 [shape = 'u32[]', space=smem, size = 0x4, offset = 0x4, fixed_abs, tag = 'smem constant byte address 0x4 - core index']
  #allocation1 [shape = 'u32[144,128]{1,0:T(1,128)}', space=vmem, size = 0x12000, scoped, tag = 'internal scratch']
  #allocation2 [shape = 'bf16[16,48,32]{2,1,0:T(8,128)(2,1)}', space=vmem, size = 0x30000, scoped, tag = 'scratch operand']
  #allocation3 [shape = 'bf16[16,48,128]{2,1,0:T(8,128)(2,1)}', space=vmem, size = 0x30000, scoped, tag = 'scratch operand']
  %s0 = inlined_call_operand.vmem [shape: bf16[64,16,32], index: 0, kind: input, shape index: {}]
  %s1 = inlined_call_operand.vmem [shape: bf16[8,32,128], index: 1, kind: input, shape index: {}]
  %s2 = inlined_call_operand.vmem [shape: f32[1,128], index: 2, kind: input, shape index: {}]
  %s3 = inlined_call_operand.hbm [shape: bf16[8,128,128], index: 3, kind: input, shape index: {}]
  %s4 = inlined_call_operand.vmem [shape: f32[1,128], index: 4, kind: input, shape index: {}]
  %s5 = inlined_call_operand.vmem [shape: bf16[2048,128], index: 5, kind: input, shape index: {}]
  %s6 = inlined_call_operand.vmem [shape: f32[1,128], index: 6, kind: input, shape index: {}]
  %s7 = inlined_call_operand.vmem [shape: bf16[128,128], index: 7, kind: input, shape index: {}]
  %s8 = inlined_call_operand.vmem [shape: f32[1,128], index: 8, kind: input, shape index: {}]
  %s9 = inlined_call_operand.vmem [shape: f32[64,128], index: 9, kind: output, shape index: {}]
  %s10 = sld [smem:[#allocation0]]
  $region73: #{cnn_linear_forward.1} parent=0
    _
  %s12 = ssub.s32 1, %s10
  %s13 = scalar_select 0, %s12, %s10
  $region1: #{cnn_linear_forward.1} parent=0
    #allocation4 [shape = 'u8[262144]{0}', space=vmem, size = 0x40000, scoped, tag = 'input window, operand 3, single buffered']
    #allocation5 [shape = 's32[2]{0}', space=sflag, size = 0x8, scoped, tag = 'scoped memory for cnn_linear_forward.1']
    %14 = vsyncpa [#allocation5], 0
    loop: start=0, step=1, limit=6
    $region2: #{cnn_linear_forward.1} parent=1 // loop_pre_header
      _
    $region3: #{cnn_linear_forward.1} parent=1 // loop_header
      %s16 = sphi 0, %s20
      %p17 = scmp.ge.s32.totalorder %s16, 6
      %s26 = sphi 0, %s28
      %s29 = sphi 0, %s26
      %s30 = sphi 0, %s29
      %s46 = sphi 0, %s30
      %s50 = sphi 0, %s50
      %s52 = sphi 0, %s50
      %s53 = sphi 0, %s52
      %s67 = sphi 0, %s53
      %s71 = sphi 0, %s71
      %s73 = sphi 0, %s71
      %s74 = sphi 0, %s73
      %s88 = sphi 0, %s74
      %s92 = sphi 0, %s92
      %s94 = sphi 0, %s92
      %s95 = sphi 0, %s94
      %s109 = sphi 0, %s95
      %s113 = sphi 0, %s113
      %s115 = sphi 0, %s113
      %s116 = sphi 0, %s115
      %s130 = sphi 0, %s116
      %s134 = sphi 0, %s134
      %s136 = sphi 0, %s134
      %s137 = sphi 0, %s136
      %s151 = sphi 0, %s137
      %s155 = sphi 0, %s155
      %s157 = sphi 0, %s155
      %s158 = sphi 0, %s157
      %s172 = sphi 0, %s158
      %s176 = sphi 0, %s176
      %s178 = sphi 0, %s176
      %s179 = sphi 0, %s178
      %s193 = sphi 0, %s179
      %s197 = sphi 0, %s197
      %s199 = sphi 0, %s197
      %s200 = sphi 0, %s199
      %s214 = sphi 0, %s200
      %s220 = sphi 0, %s222
      %s223 = sphi 0, %s220
      %s224 = sphi 0, %s223
      %s240 = sphi 0, %s224
    $region4: #{cnn_linear_forward.1} parent=1 // loop_header_branch
      %19 = sbr.rel (%p17) target = $region8
    $region5: #{cnn_linear_forward.1} parent=1 // loop_body
      %s21 = ssub.s32 %s16, 1
      %s22 = ssub.s32 %s16, 2
      %s23 = sadd.s32 %s16, 1
      %s24 = ssub.s32 %s16, %s23
      %p25 = scmp.eq.s32.totalorder %s24, 0
      %s27 = sadd.s32 %s26, 1
      %s28 = scalar_select %p25, %s26, %s27
      %p31 = pneg %p25
      %p32 = scmp.eq.s32.totalorder %s16, 3
      %p33 = por %p31, %p32
      %p34 = scmp.ne.s32.totalorder %s26, %s29
      %p35 = scmp.eq.s32.totalorder %s16, 0
      %p36 = por %p34, %p35
      %p37 = scmp.ne.s32.totalorder %s26, %s29
      %p38 = scmp.eq.s32.totalorder %s21, 3
      %p39 = por %p37, %p38
      %p40 = scmp.ne.s32.totalorder %s29, %s30
      %p41 = scmp.eq.s32.totalorder %s21, 0
      %p42 = por %p40, %p41
      %p43 = scmp.ne.s32.totalorder %s29, %s30
      %p44 = scmp.eq.s32.totalorder %s22, 3
      %p45 = por %p43, %p44
      %p47 = scmp.ne.s32.totalorder %s30, %s46
      %p48 = scmp.eq.s32.totalorder %s22, 0
      %p49 = por %p47, %p48
      %s51 = sadd.s32 %s50, 1
      %p54 = scmp.eq.s32.totalorder %s16, 3
      %p55 = scmp.ne.s32.totalorder %s50, %s52
      %p56 = scmp.eq.s32.totalorder %s16, 0
      %p57 = por %p55, %p56
      %p58 = scmp.ne.s32.totalorder %s50, %s52
      %p59 = scmp.eq.s32.totalorder %s21, 3
      %p60 = por %p58, %p59
      %p61 = scmp.ne.s32.totalorder %s52, %s53
      %p62 = scmp.eq.s32.totalorder %s21, 0
      %p63 = por %p61, %p62
      %p64 = scmp.ne.s32.totalorder %s52, %s53
      %p65 = scmp.eq.s32.totalorder %s22, 3
      %p66 = por %p64, %p65
      %p68 = scmp.ne.s32.totalorder %s53, %s67
      %p69 = scmp.eq.s32.totalorder %s22, 0
      %p70 = por %p68, %p69
      %s72 = sadd.s32 %s71, 1
      %p75 = scmp.eq.s32.totalorder %s16, 3
      %p76 = scmp.ne.s32.totalorder %s71, %s73
      %p77 = scmp.eq.s32.totalorder %s16, 0
      %p78 = por %p76, %p77
      %p79 = scmp.ne.s32.totalorder %s71, %s73
      %p80 = scmp.eq.s32.totalorder %s21, 3
      %p81 = por %p79, %p80
      %p82 = scmp.ne.s32.totalorder %s73, %s74
      %p83 = scmp.eq.s32.totalorder %s21, 0
      %p84 = por %p82, %p83
      %p85 = scmp.ne.s32.totalorder %s73, %s74
      %p86 = scmp.eq.s32.totalorder %s22, 3
      %p87 = por %p85, %p86
      %p89 = scmp.ne.s32.totalorder %s74, %s88
      %p90 = scmp.eq.s32.totalorder %s22, 0
      %p91 = por %p89, %p90
      %s93 = sadd.s32 %s92, 1
      %p96 = scmp.eq.s32.totalorder %s16, 3
      %p97 = scmp.ne.s32.totalorder %s92, %s94
      %p98 = scmp.eq.s32.totalorder %s16, 0
      %p99 = por %p97, %p98
      %p100 = scmp.ne.s32.totalorder %s92, %s94
      %p101 = scmp.eq.s32.totalorder %s21, 3
      %p102 = por %p100, %p101
      %p103 = scmp.ne.s32.totalorder %s94, %s95
      %p104 = scmp.eq.s32.totalorder %s21, 0
      %p105 = por %p103, %p104
      %p106 = scmp.ne.s32.totalorder %s94, %s95
      %p107 = scmp.eq.s32.totalorder %s22, 3
      %p108 = por %p106, %p107
      %p110 = scmp.ne.s32.totalorder %s95, %s109
      %p111 = scmp.eq.s32.totalorder %s22, 0
      %p112 = por %p110, %p111
      %s114 = sadd.s32 %s113, 1
      %p117 = scmp.eq.s32.totalorder %s16, 3
      %p118 = scmp.ne.s32.totalorder %s113, %s115
      %p119 = scmp.eq.s32.totalorder %s16, 0
      %p120 = por %p118, %p119
      %p121 = scmp.ne.s32.totalorder %s113, %s115
      %p122 = scmp.eq.s32.totalorder %s21, 3
      %p123 = por %p121, %p122
      %p124 = scmp.ne.s32.totalorder %s115, %s116
      %p125 = scmp.eq.s32.totalorder %s21, 0
      %p126 = por %p124, %p125
      %p127 = scmp.ne.s32.totalorder %s115, %s116
      %p128 = scmp.eq.s32.totalorder %s22, 3
      %p129 = por %p127, %p128
      %p131 = scmp.ne.s32.totalorder %s116, %s130
      %p132 = scmp.eq.s32.totalorder %s22, 0
      %p133 = por %p131, %p132
      %s135 = sadd.s32 %s134, 1
      %p138 = scmp.eq.s32.totalorder %s16, 3
      %p139 = scmp.ne.s32.totalorder %s134, %s136
      %p140 = scmp.eq.s32.totalorder %s16, 0
      %p141 = por %p139, %p140
      %p142 = scmp.ne.s32.totalorder %s134, %s136
      %p143 = scmp.eq.s32.totalorder %s21, 3
      %p144 = por %p142, %p143
      %p145 = scmp.ne.s32.totalorder %s136, %s137
      %p146 = scmp.eq.s32.totalorder %s21, 0
      %p147 = por %p145, %p146
      %p148 = scmp.ne.s32.totalorder %s136, %s137
      %p149 = scmp.eq.s32.totalorder %s22, 3
      %p150 = por %p148, %p149
      %p152 = scmp.ne.s32.totalorder %s137, %s151
      %p153 = scmp.eq.s32.totalorder %s22, 0
      %p154 = por %p152, %p153
      %s156 = sadd.s32 %s155, 1
      %p159 = scmp.eq.s32.totalorder %s16, 3
      %p160 = scmp.ne.s32.totalorder %s155, %s157
      %p161 = scmp.eq.s32.totalorder %s16, 0
      %p162 = por %p160, %p161
      %p163 = scmp.ne.s32.totalorder %s155, %s157
      %p164 = scmp.eq.s32.totalorder %s21, 3
      %p165 = por %p163, %p164
      %p166 = scmp.ne.s32.totalorder %s157, %s158
      %p167 = scmp.eq.s32.totalorder %s21, 0
      %p168 = por %p166, %p167
      %p169 = scmp.ne.s32.totalorder %s157, %s158
      %p170 = scmp.eq.s32.totalorder %s22, 3
      %p171 = por %p169, %p170
      %p173 = scmp.ne.s32.totalorder %s158, %s172
      %p174 = scmp.eq.s32.totalorder %s22, 0
      %p175 = por %p173, %p174
      %s177 = sadd.s32 %s176, 1
      %p180 = scmp.eq.s32.totalorder %s16, 3
      %p181 = scmp.ne.s32.totalorder %s176, %s178
      %p182 = scmp.eq.s32.totalorder %s16, 0
      %p183 = por %p181, %p182
      %p184 = scmp.ne.s32.totalorder %s176, %s178
      %p185 = scmp.eq.s32.totalorder %s21, 3
      %p186 = por %p184, %p185
      %p187 = scmp.ne.s32.totalorder %s178, %s179
      %p188 = scmp.eq.s32.totalorder %s21, 0
      %p189 = por %p187, %p188
      %p190 = scmp.ne.s32.totalorder %s178, %s179
      %p191 = scmp.eq.s32.totalorder %s22, 3
      %p192 = por %p190, %p191
      %p194 = scmp.ne.s32.totalorder %s179, %s193
      %p195 = scmp.eq.s32.totalorder %s22, 0
      %p196 = por %p194, %p195
      %s198 = sadd.s32 %s197, 1
      %p201 = scmp.eq.s32.totalorder %s16, 3
      %p202 = scmp.ne.s32.totalorder %s197, %s199
      %p203 = scmp.eq.s32.totalorder %s16, 0
      %p204 = por %p202, %p203
      %p205 = scmp.ne.s32.totalorder %s197, %s199
      %p206 = scmp.eq.s32.totalorder %s21, 3
      %p207 = por %p205, %p206
      %p208 = scmp.ne.s32.totalorder %s199, %s200
      %p209 = scmp.eq.s32.totalorder %s21, 0
      %p210 = por %p208, %p209
      %p211 = scmp.ne.s32.totalorder %s199, %s200
      %p212 = scmp.eq.s32.totalorder %s22, 3
      %p213 = por %p211, %p212
      %p215 = scmp.ne.s32.totalorder %s200, %s214
      %p216 = scmp.eq.s32.totalorder %s22, 0
      %p217 = por %p215, %p216
      %s218 = ssub.s32 %s16, %s23
      %p219 = scmp.eq.s32.totalorder %s218, 0
      %s221 = sadd.s32 %s220, 1
      %s222 = scalar_select %p219, %s220, %s221
      %p225 = pneg %p219
      %p226 = scmp.eq.s32.totalorder %s16, 3
      %p227 = por %p225, %p226
      %p228 = scmp.ne.s32.totalorder %s220, %s223
      %p229 = scmp.eq.s32.totalorder %s16, 0
      %p230 = por %p228, %p229
      %p231 = scmp.ne.s32.totalorder %s220, %s223
      %p232 = scmp.eq.s32.totalorder %s21, 3
      %p233 = por %p231, %p232
      %p234 = scmp.ne.s32.totalorder %s223, %s224
      %p235 = scmp.eq.s32.totalorder %s21, 0
      %p236 = por %p234, %p235
      %p237 = scmp.ne.s32.totalorder %s223, %s224
      %p238 = scmp.eq.s32.totalorder %s22, 3
      %p239 = por %p237, %p238
      %p241 = scmp.ne.s32.totalorder %s224, %s240
      %p242 = scmp.eq.s32.totalorder %s22, 0
      %p243 = por %p241, %p242
      %p244 = scmp.le.s32.totalorder 1, %s16
      %p245 = scmp.lt.s32.totalorder %s16, 5
      %p246 = pnand %p244, %p245
      %p247 = pneg %p246
      // Predicated region
      $region9: #{cnn_linear_forward.1} parent=5 // pred_check
        _
      $region10: #{cnn_linear_forward.1} parent=5 // pred_check_branch
        %249 = sbr.rel (%p246) target = $region12
      $region11: #{cnn_linear_forward.1} parent=5 // pred_region
        %s250 = ssub.s32 %s16, 1
        // Predicated region
        $region13: #{cnn_linear_forward.1} parent=11 // pred_check
          %p251 = pneg %p63
        $region14: #{cnn_linear_forward.1} parent=11 // pred_check_branch
          %253 = sbr.rel (%p251) target = $region16
        $region15: #{cnn_linear_forward.1} parent=11 // pred_region
          _
        $region16: #{cnn_linear_forward.1} parent=11 // pred_fallthru
          _
        // Predicated region
        $region17: #{cnn_linear_forward.1} parent=11 // pred_check
          %p254 = pneg %p84
        $region18: #{cnn_linear_forward.1} parent=11 // pred_check_branch
          %256 = sbr.rel (%p254) target = $region20
        $region19: #{cnn_linear_forward.1} parent=11 // pred_region
          _
        $region20: #{cnn_linear_forward.1} parent=11 // pred_fallthru
          _
        // Predicated region
        $region21: #{cnn_linear_forward.1} parent=11 // pred_check
          %p257 = pneg %p105
        $region22: #{cnn_linear_forward.1} parent=11 // pred_check_branch
          %259 = sbr.rel (%p257) target = $region24
        $region23: #{cnn_linear_forward.1} parent=11 // pred_region
          %s261 = ssub.s32 8192, 8192
          %262 = vsyncadd [#allocation5], %s261
          %s263 = sshll.u32 [#allocation4], 4
          %s264 = int_to_ptr.vmem [resolvable:$true] %s263
          %269 = dma.hbm_to_vmem [thread:$0]  %s3, 8192, %s264, [#allocation5], 64, 64, 4
        $region24: #{cnn_linear_forward.1} parent=11 // pred_fallthru
          _
        // Predicated region
        $region25: #{cnn_linear_forward.1} parent=11 // pred_check
          %p270 = pneg %p126
        $region26: #{cnn_linear_forward.1} parent=11 // pred_check_branch
          %272 = sbr.rel (%p270) target = $region28
        $region27: #{cnn_linear_forward.1} parent=11 // pred_region
          _
        $region28: #{cnn_linear_forward.1} parent=11 // pred_fallthru
          _
        // Predicated region
        $region29: #{cnn_linear_forward.1} parent=11 // pred_check
          %p273 = pneg %p147
        $region30: #{cnn_linear_forward.1} parent=11 // pred_check_branch
          %275 = sbr.rel (%p273) target = $region32
        $region31: #{cnn_linear_forward.1} parent=11 // pred_region
          _
        $region32: #{cnn_linear_forward.1} parent=11 // pred_fallthru
          _
        // Predicated region
        $region33: #{cnn_linear_forward.1} parent=11 // pred_check
          %p276 = pneg %p168
        $region34: #{cnn_linear_forward.1} parent=11 // pred_check_branch
          %278 = sbr.rel (%p276) target = $region36
        $region35: #{cnn_linear_forward.1} parent=11 // pred_region
          _
        $region36: #{cnn_linear_forward.1} parent=11 // pred_fallthru
          _
        // Predicated region
        $region37: #{cnn_linear_forward.1} parent=11 // pred_check
          %p279 = pneg %p189
        $region38: #{cnn_linear_forward.1} parent=11 // pred_check_branch
          %281 = sbr.rel (%p279) target = $region40
        $region39: #{cnn_linear_forward.1} parent=11 // pred_region
          _
        $region40: #{cnn_linear_forward.1} parent=11 // pred_fallthru
          _
        // Predicated region
        $region41: #{cnn_linear_forward.1} parent=11 // pred_check
          %p282 = pneg %p210
        $region42: #{cnn_linear_forward.1} parent=11 // pred_check_branch
          %284 = sbr.rel (%p282) target = $region44
        $region43: #{cnn_linear_forward.1} parent=11 // pred_region
          _
        $region44: #{cnn_linear_forward.1} parent=11 // pred_fallthru
          _
      $region12: #{cnn_linear_forward.1} parent=5 // pred_fallthru
        _
      %p285 = scmp.lt.s32.totalorder %s16, 4
      // Predicated region
      $region45: #{cnn_linear_forward.1} parent=5 // pred_check
        %p286 = pneg %p285
      $region46: #{cnn_linear_forward.1} parent=5 // pred_check_branch
        %288 = sbr.rel (%p286) target = $region48
      $region47: #{cnn_linear_forward.1} parent=5 // pred_region
        // Predicated region
        $region49: #{cnn_linear_forward.1} parent=47 // pred_check
          %p289 = pneg %p36
        $region50: #{cnn_linear_forward.1} parent=47 // pred_check_branch
          %291 = sbr.rel (%p289) target = $region52
        $region51: #{cnn_linear_forward.1} parent=47 // pred_region
          %s292 = smul.u32 16, %s16
          %p293 = scmp.lt.s32.totalorder %s292, 63
          %s294 = scalar_select %p293, %s292, 63
          %s295 = smul.addr %s294, 2
          %s296 = smul.addr %s295, 4
          %s297 = scalar_lea.vmem %s0, %s296
          %s298 = smul.u32 16, %s16
        $region52: #{cnn_linear_forward.1} parent=47 // pred_fallthru
          _
      $region48: #{cnn_linear_forward.1} parent=5 // pred_fallthru
        _
      %p299 = scmp.le.s32.totalorder 1, %s16
      %p300 = scmp.lt.s32.totalorder %s16, 5
      %p301 = pnand %p299, %p300
      %p302 = pneg %p301
      // Predicated region
      $region53: #{cnn_linear_forward.1} parent=5 // pred_check
        _
      $region54: #{cnn_linear_forward.1} parent=5 // pred_check_branch
        %304 = sbr.rel (%p301) target = $region56
      $region55: #{cnn_linear_forward.1} parent=5 // pred_region
        %s305 = ssub.s32 %s16, 1
        // Predicated region
        $region57: #{cnn_linear_forward.1} parent=55 // pred_check
          %p306 = pneg %p105
        $region58: #{cnn_linear_forward.1} parent=55 // pred_check_branch
          %308 = sbr.rel (%p306) target = $region60
        $region59: #{cnn_linear_forward.1} parent=55 // pred_region
          %309 = dma.done [#allocation5], 8192
        $region60: #{cnn_linear_forward.1} parent=55 // pred_fallthru
          _
        %s310 = smul.u32 16, %s21
        %p311 = scmp.lt.s32.totalorder %s310, 63
        %s312 = scalar_select %p311, %s310, 63
        %s313 = smul.addr %s312, 2
        %s314 = smul.addr %s313, 4
        %s315 = scalar_lea.vmem %s0, %s314
        %p316 = pneg %p42
        %p317 = pneg %p39
        %p318 = pneg %p63
        %p319 = pneg %p60
        %p320 = pneg %p84
        %p321 = pneg %p81
        %p322 = pneg %p105
        %p323 = pneg %p102
        %p324 = pneg %p126
        %p325 = pneg %p123
        %p326 = pneg %p147
        %p327 = pneg %p144
        %p328 = pneg %p168
        %p329 = pneg %p165
        %p330 = pneg %p189
        %p331 = pneg %p186
        %p332 = pneg %p210
        %p333 = pneg %p207
        %p334 = pneg %p236
        %p335 = pneg %p233
        %s336 = smul.u32 2, %s21
        %p337 = scmp.lt.s32.totalorder %s336, 7
        %s338 = scalar_select %p337, %s336, 7
        %s339 = smul.addr %s338, 8
        %s340 = scalar_lea.vmem %s9, %s339
        %s341 = smul.u32 16, %s21
        %p342 = scmp.lt.s32.totalorder %s341, 63
        %s343 = scalar_select %p342, %s341, 63
        %s344 = smul.addr %s343, 2
        %s345 = smul.addr %s344, 4
        %s346 = scalar_lea.vmem %s0, %s345
        %s347 = smul.u32 16, %s21
        %s348 = smul.u32 2, %s21
        %p349 = scmp.lt.s32.totalorder %s348, 7
        %s350 = scalar_select %p349, %s348, 7
        %s351 = smul.addr %s350, 8
        %s352 = scalar_lea.vmem %s9, %s351
        %s353 = smul.u32 2, %s21
        %vm355 = vcmask 257024
        %356 = vst.msk [vmem:[#allocation2] sm:$0xf] %vm355, 0
        %357 = vst.msk [vmem:[#allocation2 + $0x4] sm:$0xf] %vm355, 0
        %358 = vst.msk [vmem:[#allocation2 + $0x18] sm:$0xf] %vm355, 0
        %359 = vst.msk [vmem:[#allocation2 + $0x1c] sm:$0xf] %vm355, 0
        %360 = vst.msk [vmem:[#allocation2 + $0x30] sm:$0xf] %vm355, 0
        %361 = vst.msk [vmem:[#allocation2 + $0x34] sm:$0xf] %vm355, 0
        %362 = vst.msk [vmem:[#allocation2 + $0x48] sm:$0xf] %vm355, 0
        %363 = vst.msk [vmem:[#allocation2 + $0x4c] sm:$0xf] %vm355, 0
        %364 = vst.msk [vmem:[#allocation2 + $0x60] sm:$0xf] %vm355, 0
        %365 = vst.msk [vmem:[#allocation2 + $0x64] sm:$0xf] %vm355, 0
        %366 = vst.msk [vmem:[#allocation2 + $0x78] sm:$0xf] %vm355, 0
        %367 = vst.msk [vmem:[#allocation2 + $0x7c] sm:$0xf] %vm355, 0
        %368 = vst.msk [vmem:[#allocation2 + $0x90] sm:$0xf] %vm355, 0
        %369 = vst.msk [vmem:[#allocation2 + $0x94] sm:$0xf] %vm355, 0
        %370 = vst.msk [vmem:[#allocation2 + $0xa8] sm:$0xf] %vm355, 0
        %371 = vst.msk [vmem:[#allocation2 + $0xac] sm:$0xf] %vm355, 0
        %372 = vst.msk [vmem:[#allocation2 + $0xc0] sm:$0xf] %vm355, 0
        %373 = vst.msk [vmem:[#allocation2 + $0xc4] sm:$0xf] %vm355, 0
        %374 = vst.msk [vmem:[#allocation2 + $0xd8] sm:$0xf] %vm355, 0
        %375 = vst.msk [vmem:[#allocation2 + $0xdc] sm:$0xf] %vm355, 0
        %376 = vst.msk [vmem:[#allocation2 + $0xf0] sm:$0xf] %vm355, 0
        %377 = vst.msk [vmem:[#allocation2 + $0xf4] sm:$0xf] %vm355, 0
        %378 = vst.msk [vmem:[#allocation2 + $0x108] sm:$0xf] %vm355, 0
        %379 = vst.msk [vmem:[#allocation2 + $0x10c] sm:$0xf] %vm355, 0
        %380 = vst.msk [vmem:[#allocation2 + $0x120] sm:$0xf] %vm355, 0
        %381 = vst.msk [vmem:[#allocation2 + $0x124] sm:$0xf] %vm355, 0
        %382 = vst.msk [vmem:[#allocation2 + $0x138] sm:$0xf] %vm355, 0
        %383 = vst.msk [vmem:[#allocation2 + $0x13c] sm:$0xf] %vm355, 0
        %384 = vst.msk [vmem:[#allocation2 + $0x150] sm:$0xf] %vm355, 0
        %385 = vst.msk [vmem:[#allocation2 + $0x154] sm:$0xf] %vm355, 0
        %386 = vst.msk [vmem:[#allocation2 + $0x168] sm:$0xf] %vm355, 0
        %387 = vst.msk [vmem:[#allocation2 + $0x16c] sm:$0xf] %vm355, 0
        %388 = vst.msk [vmem:[#allocation2 + $0x10] sm:$0xf] %vm355, 0
        %389 = vst.msk [vmem:[#allocation2 + $0x14] sm:$0xf] %vm355, 0
        %390 = vst.msk [vmem:[#allocation2 + $0x28] sm:$0xf] %vm355, 0
        %391 = vst.msk [vmem:[#allocation2 + $0x2c] sm:$0xf] %vm355, 0
        %392 = vst.msk [vmem:[#allocation2 + $0x40] sm:$0xf] %vm355, 0
        %393 = vst.msk [vmem:[#allocation2 + $0x44] sm:$0xf] %vm355, 0
        %394 = vst.msk [vmem:[#allocation2 + $0x58] sm:$0xf] %vm355, 0
        %395 = vst.msk [vmem:[#allocation2 + $0x5c] sm:$0xf] %vm355, 0
        %396 = vst.msk [vmem:[#allocation2 + $0x70] sm:$0xf] %vm355, 0
        %397 = vst.msk [vmem:[#allocation2 + $0x74] sm:$0xf] %vm355, 0
        %398 = vst.msk [vmem:[#allocation2 + $0x88] sm:$0xf] %vm355, 0
        %399 = vst.msk [vmem:[#allocation2 + $0x8c] sm:$0xf] %vm355, 0
        %400 = vst.msk [vmem:[#allocation2 + $0xa0] sm:$0xf] %vm355, 0
        %401 = vst.msk [vmem:[#allocation2 + $0xa4] sm:$0xf] %vm355, 0
        %402 = vst.msk [vmem:[#allocation2 + $0xb8] sm:$0xf] %vm355, 0
        %403 = vst.msk [vmem:[#allocation2 + $0xbc] sm:$0xf] %vm355, 0
        %404 = vst.msk [vmem:[#allocation2 + $0xd0] sm:$0xf] %vm355, 0
        %405 = vst.msk [vmem:[#allocation2 + $0xd4] sm:$0xf] %vm355, 0
        %406 = vst.msk [vmem:[#allocation2 + $0xe8] sm:$0xf] %vm355, 0
        %407 = vst.msk [vmem:[#allocation2 + $0xec] sm:$0xf] %vm355, 0
        %408 = vst.msk [vmem:[#allocation2 + $0x100] sm:$0xf] %vm355, 0
        %409 = vst.msk [vmem:[#allocation2 + $0x104] sm:$0xf] %vm355, 0
        %410 = vst.msk [vmem:[#allocation2 + $0x118] sm:$0xf] %vm355, 0
        %411 = vst.msk [vmem:[#allocation2 + $0x11c] sm:$0xf] %vm355, 0
        %412 = vst.msk [vmem:[#allocation2 + $0x130] sm:$0xf] %vm355, 0
        %413 = vst.msk [vmem:[#allocation2 + $0x134] sm:$0xf] %vm355, 0
        %414 = vst.msk [vmem:[#allocation2 + $0x148] sm:$0xf] %vm355, 0
        %415 = vst.msk [vmem:[#allocation2 + $0x14c] sm:$0xf] %vm355, 0
        %416 = vst.msk [vmem:[#allocation2 + $0x160] sm:$0xf] %vm355, 0
        %417 = vst.msk [vmem:[#allocation2 + $0x164] sm:$0xf] %vm355, 0
        %418 = vst.msk [vmem:[#allocation2 + $0x178] sm:$0xf] %vm355, 0
        %419 = vst.msk [vmem:[#allocation2 + $0x17c] sm:$0xf] %vm355, 0
        %420 = vst [vmem:[#allocation3] sm:$0xf] 0
        %421 = vst [vmem:[#allocation3 + $0x4] sm:$0xf] 0
        %422 = vst [vmem:[#allocation3 + $0x18] sm:$0xf] 0
        %423 = vst [vmem:[#allocation3 + $0x1c] sm:$0xf] 0
        %424 = vst [vmem:[#allocation3 + $0x30] sm:$0xf] 0
        %425 = vst [vmem:[#allocation3 + $0x34] sm:$0xf] 0
        %426 = vst [vmem:[#allocation3 + $0x48] sm:$0xf] 0
        %427 = vst [vmem:[#allocation3 + $0x4c] sm:$0xf] 0
        %428 = vst [vmem:[#allocation3 + $0x60] sm:$0xf] 0
        %429 = vst [vmem:[#allocation3 + $0x64] sm:$0xf] 0
        %430 = vst [vmem:[#allocation3 + $0x78] sm:$0xf] 0
        %431 = vst [vmem:[#allocation3 + $0x7c] sm:$0xf] 0
        %432 = vst [vmem:[#allocation3 + $0x90] sm:$0xf] 0
        %433 = vst [vmem:[#allocation3 + $0x94] sm:$0xf] 0
        %434 = vst [vmem:[#allocation3 + $0xa8] sm:$0xf] 0
        %435 = vst [vmem:[#allocation3 + $0xac] sm:$0xf] 0
        %436 = vst [vmem:[#allocation3 + $0xc0] sm:$0xf] 0
        %437 = vst [vmem:[#allocation3 + $0xc4] sm:$0xf] 0
        %438 = vst [vmem:[#allocation3 + $0xd8] sm:$0xf] 0
        %439 = vst [vmem:[#allocation3 + $0xdc] sm:$0xf] 0
        %440 = vst [vmem:[#allocation3 + $0xf0] sm:$0xf] 0
        %441 = vst [vmem:[#allocation3 + $0xf4] sm:$0xf] 0
        %442 = vst [vmem:[#allocation3 + $0x108] sm:$0xf] 0
        %443 = vst [vmem:[#allocation3 + $0x10c] sm:$0xf] 0
        %444 = vst [vmem:[#allocation3 + $0x120] sm:$0xf] 0
        %445 = vst [vmem:[#allocation3 + $0x124] sm:$0xf] 0
        %446 = vst [vmem:[#allocation3 + $0x138] sm:$0xf] 0
        %447 = vst [vmem:[#allocation3 + $0x13c] sm:$0xf] 0
        %448 = vst [vmem:[#allocation3 + $0x150] sm:$0xf] 0
        %449 = vst [vmem:[#allocation3 + $0x154] sm:$0xf] 0
        %450 = vst [vmem:[#allocation3 + $0x168] sm:$0xf] 0
        %451 = vst [vmem:[#allocation3 + $0x16c] sm:$0xf] 0
        %452 = vst [vmem:[#allocation3 + $0x10] sm:$0xf] 0
        %453 = vst [vmem:[#allocation3 + $0x14] sm:$0xf] 0
        %454 = vst [vmem:[#allocation3 + $0x28] sm:$0xf] 0
        %455 = vst [vmem:[#allocation3 + $0x2c] sm:$0xf] 0
        %456 = vst [vmem:[#allocation3 + $0x40] sm:$0xf] 0
        %457 = vst [vmem:[#allocation3 + $0x44] sm:$0xf] 0
        %458 = vst [vmem:[#allocation3 + $0x58] sm:$0xf] 0
        %459 = vst [vmem:[#allocation3 + $0x5c] sm:$0xf] 0
        %460 = vst [vmem:[#allocation3 + $0x70] sm:$0xf] 0
        %461 = vst [vmem:[#allocation3 + $0x74] sm:$0xf] 0
        %462 = vst [vmem:[#allocation3 + $0x88] sm:$0xf] 0
        %463 = vst [vmem:[#allocation3 + $0x8c] sm:$0xf] 0
        %464 = vst [vmem:[#allocation3 + $0xa0] sm:$0xf] 0
        %465 = vst [vmem:[#allocation3 + $0xa4] sm:$0xf] 0
        %466 = vst [vmem:[#allocation3 + $0xb8] sm:$0xf] 0
        %467 = vst [vmem:[#allocation3 + $0xbc] sm:$0xf] 0
        %468 = vst [vmem:[#allocation3 + $0xd0] sm:$0xf] 0
        %469 = vst [vmem:[#allocation3 + $0xd4] sm:$0xf] 0
        %470 = vst [vmem:[#allocation3 + $0xe8] sm:$0xf] 0
        %471 = vst [vmem:[#allocation3 + $0xec] sm:$0xf] 0
        %472 = vst [vmem:[#allocation3 + $0x100] sm:$0xf] 0
        %473 = vst [vmem:[#allocation3 + $0x104] sm:$0xf] 0
        %474 = vst [vmem:[#allocation3 + $0x118] sm:$0xf] 0
        %475 = vst [vmem:[#allocation3 + $0x11c] sm:$0xf] 0
        %476 = vst [vmem:[#allocation3 + $0x130] sm:$0xf] 0
        %477 = vst [vmem:[#allocation3 + $0x134] sm:$0xf] 0
        %478 = vst [vmem:[#allocation3 + $0x148] sm:$0xf] 0
        %479 = vst [vmem:[#allocation3 + $0x14c] sm:$0xf] 0
        %480 = vst [vmem:[#allocation3 + $0x160] sm:$0xf] 0
        %481 = vst [vmem:[#allocation3 + $0x164] sm:$0xf] 0
        %482 = vst [vmem:[#allocation3 + $0x178] sm:$0xf] 0
        %483 = vst [vmem:[#allocation3 + $0x17c] sm:$0xf] 0
        %v484 = vld [vmem:[%s346] sm:$0xf]
        %v485 = vld [vmem:[%s346 + $0x4] sm:$0xf]
        %v486 = vld [vmem:[%s346 + $0x8] sm:$0xf]
        %v487 = vld [vmem:[%s346 + $0xc] sm:$0xf]
        %v488 = vld [vmem:[%s346 + $0x10] sm:$0xf]
        %v489 = vld [vmem:[%s346 + $0x14] sm:$0xf]
        %v490 = vld [vmem:[%s346 + $0x18] sm:$0xf]
        %v491 = vld [vmem:[%s346 + $0x1c] sm:$0xf]
        %v492 = vld [vmem:[%s346 + $0x20] sm:$0xf]
        %v493 = vld [vmem:[%s346 + $0x24] sm:$0xf]
        %v494 = vld [vmem:[%s346 + $0x28] sm:$0xf]
        %v495 = vld [vmem:[%s346 + $0x2c] sm:$0xf]
        %v496 = vld [vmem:[%s346 + $0x30] sm:$0xf]
        %v497 = vld [vmem:[%s346 + $0x34] sm:$0xf]
        %v498 = vld [vmem:[%s346 + $0x38] sm:$0xf]
        %v499 = vld [vmem:[%s346 + $0x3c] sm:$0xf]
        %v500 = vld [vmem:[%s346 + $0x40] sm:$0xf]
        %v501 = vld [vmem:[%s346 + $0x44] sm:$0xf]
        %v502 = vld [vmem:[%s346 + $0x48] sm:$0xf]
        %v503 = vld [vmem:[%s346 + $0x4c] sm:$0xf]
        %v504 = vld [vmem:[%s346 + $0x50] sm:$0xf]
        %v505 = vld [vmem:[%s346 + $0x54] sm:$0xf]
        %v506 = vld [vmem:[%s346 + $0x58] sm:$0xf]
        %v507 = vld [vmem:[%s346 + $0x5c] sm:$0xf]
        %v508 = vld [vmem:[%s346 + $0x60] sm:$0xf]
        %v509 = vld [vmem:[%s346 + $0x64] sm:$0xf]
        %v510 = vld [vmem:[%s346 + $0x68] sm:$0xf]
        %v511 = vld [vmem:[%s346 + $0x6c] sm:$0xf]
        %v512 = vld [vmem:[%s346 + $0x70] sm:$0xf]
        %v513 = vld [vmem:[%s346 + $0x74] sm:$0xf]
        %v514 = vld [vmem:[%s346 + $0x78] sm:$0xf]
        %v515 = vld [vmem:[%s346 + $0x7c] sm:$0xf]
        %516 = vst.msk [vmem:[#allocation2 + $0x8] sm:$0xf] %vm355, %v484
        %517 = vst.msk [vmem:[#allocation2 + $0xc] sm:$0xf] %vm355, %v485
        %518 = vst.msk [vmem:[#allocation2 + $0x20] sm:$0xf] %vm355, %v486
        %519 = vst.msk [vmem:[#allocation2 + $0x24] sm:$0xf] %vm355, %v487
        %520 = vst.msk [vmem:[#allocation2 + $0x38] sm:$0xf] %vm355, %v488
        %521 = vst.msk [vmem:[#allocation2 + $0x3c] sm:$0xf] %vm355, %v489
        %522 = vst.msk [vmem:[#allocation2 + $0x50] sm:$0xf] %vm355, %v490
        %523 = vst.msk [vmem:[#allocation2 + $0x54] sm:$0xf] %vm355, %v491
        %524 = vst.msk [vmem:[#allocation2 + $0x68] sm:$0xf] %vm355, %v492
        %525 = vst.msk [vmem:[#allocation2 + $0x6c] sm:$0xf] %vm355, %v493
        %526 = vst.msk [vmem:[#allocation2 + $0x80] sm:$0xf] %vm355, %v494
        %527 = vst.msk [vmem:[#allocation2 + $0x84] sm:$0xf] %vm355, %v495
        %528 = vst.msk [vmem:[#allocation2 + $0x98] sm:$0xf] %vm355, %v496
        %529 = vst.msk [vmem:[#allocation2 + $0x9c] sm:$0xf] %vm355, %v497
        %530 = vst.msk [vmem:[#allocation2 + $0xb0] sm:$0xf] %vm355, %v498
        %531 = vst.msk [vmem:[#allocation2 + $0xb4] sm:$0xf] %vm355, %v499
        %532 = vst.msk [vmem:[#allocation2 + $0xc8] sm:$0xf] %vm355, %v500
        %533 = vst.msk [vmem:[#allocation2 + $0xcc] sm:$0xf] %vm355, %v501
        %534 = vst.msk [vmem:[#allocation2 + $0xe0] sm:$0xf] %vm355, %v502
        %535 = vst.msk [vmem:[#allocation2 + $0xe4] sm:$0xf] %vm355, %v503
        %536 = vst.msk [vmem:[#allocation2 + $0xf8] sm:$0xf] %vm355, %v504
        %537 = vst.msk [vmem:[#allocation2 + $0xfc] sm:$0xf] %vm355, %v505
        %538 = vst.msk [vmem:[#allocation2 + $0x110] sm:$0xf] %vm355, %v506
        %539 = vst.msk [vmem:[#allocation2 + $0x114] sm:$0xf] %vm355, %v507
        %540 = vst.msk [vmem:[#allocation2 + $0x128] sm:$0xf] %vm355, %v508
        %541 = vst.msk [vmem:[#allocation2 + $0x12c] sm:$0xf] %vm355, %v509
        %542 = vst.msk [vmem:[#allocation2 + $0x140] sm:$0xf] %vm355, %v510
        %543 = vst.msk [vmem:[#allocation2 + $0x144] sm:$0xf] %vm355, %v511
        %544 = vst.msk [vmem:[#allocation2 + $0x158] sm:$0xf] %vm355, %v512
        %545 = vst.msk [vmem:[#allocation2 + $0x15c] sm:$0xf] %vm355, %v513
        %546 = vst.msk [vmem:[#allocation2 + $0x170] sm:$0xf] %vm355, %v514
        %547 = vst.msk [vmem:[#allocation2 + $0x174] sm:$0xf] %vm355, %v515
        %v548 = vld [vmem:[#allocation2 + $0x4] sm:$0xc]
        %v549 = vld [vmem:[#allocation2 + $0x8] sm:$0xf]
        %v550 = vld [vmem:[#allocation2 + $0xc] sm:$0x7]
        %v551 = vld [vmem:[#allocation2 + $0x1c] sm:$0xc]
        %v552 = vld [vmem:[#allocation2 + $0x20] sm:$0xf]
        %v553 = vld [vmem:[#allocation2 + $0x24] sm:$0x7]
        %v554 = vld [vmem:[#allocation2 + $0x34] sm:$0xc]
        %v555 = vld [vmem:[#allocation2 + $0x38] sm:$0xf]
        %v556 = vld [vmem:[#allocation2 + $0x3c] sm:$0x7]
        %v557 = vld [vmem:[#allocation2 + $0x4c] sm:$0xc]
        %v558 = vld [vmem:[#allocation2 + $0x50] sm:$0xf]
        %v559 = vld [vmem:[#allocation2 + $0x54] sm:$0x7]
        %v560 = vld [vmem:[#allocation2 + $0x64] sm:$0xc]
        %v561 = vld [vmem:[#allocation2 + $0x68] sm:$0xf]
        %v562 = vld [vmem:[#allocation2 + $0x6c] sm:$0x7]
        %v563 = vld [vmem:[#allocation2 + $0x7c] sm:$0xc]
        %v564 = vld [vmem:[#allocation2 + $0x80] sm:$0xf]
        %v565 = vld [vmem:[#allocation2 + $0x84] sm:$0x7]
        %v566 = vld [vmem:[#allocation2 + $0x94] sm:$0xc]
        %v567 = vld [vmem:[#allocation2 + $0x98] sm:$0xf]
        %v568 = vld [vmem:[#allocation2 + $0x9c] sm:$0x7]
        %v569 = vld [vmem:[#allocation2 + $0xac] sm:$0xc]
        %v570 = vld [vmem:[#allocation2 + $0xb0] sm:$0xf]
        %v571 = vld [vmem:[#allocation2 + $0xb4] sm:$0x7]
        %v572 = vld [vmem:[#allocation2 + $0xc4] sm:$0xc]
        %v573 = vld [vmem:[#allocation2 + $0xc8] sm:$0xf]
        %v574 = vld [vmem:[#allocation2 + $0xcc] sm:$0x7]
        %v575 = vld [vmem:[#allocation2 + $0xdc] sm:$0xc]
        %v576 = vld [vmem:[#allocation2 + $0xe0] sm:$0xf]
        %v577 = vld [vmem:[#allocation2 + $0xe4] sm:$0x7]
        %v578 = vld [vmem:[#allocation2 + $0xf4] sm:$0xc]
        %v579 = vld [vmem:[#allocation2 + $0xf8] sm:$0xf]
        %v580 = vld [vmem:[#allocation2 + $0xfc] sm:$0x7]
        %v581 = vld [vmem:[#allocation2 + $0x10c] sm:$0xc]
        %v582 = vld [vmem:[#allocation2 + $0x110] sm:$0xf]
        %v583 = vld [vmem:[#allocation2 + $0x114] sm:$0x7]
        %v584 = vld [vmem:[#allocation2 + $0x124] sm:$0xc]
        %v585 = vld [vmem:[#allocation2 + $0x128] sm:$0xf]
        %v586 = vld [vmem:[#allocation2 + $0x12c] sm:$0x7]
        %v587 = vld [vmem:[#allocation2 + $0x13c] sm:$0xc]
        %v588 = vld [vmem:[#allocation2 + $0x140] sm:$0xf]
        %v589 = vld [vmem:[#allocation2 + $0x144] sm:$0x7]
        %v590 = vld [vmem:[#allocation2 + $0x154] sm:$0xc]
        %v591 = vld [vmem:[#allocation2 + $0x158] sm:$0xf]
        %v592 = vld [vmem:[#allocation2 + $0x15c] sm:$0x7]
        %v593 = vld [vmem:[#allocation2 + $0x16c] sm:$0xc]
        %v594 = vld [vmem:[#allocation2 + $0x170] sm:$0xf]
        %v595 = vld [vmem:[#allocation2 + $0x174] sm:$0x7]
        %vm596 = vsmask.f32 1280
        %vm597 = vsmask.f32 5392
        %vm598 = vmor %vm596, %vm597
        %v600 = vshrl.u32 %v548, 16
        %v602 = vrot.slane %v600, 6
        %v603 = vshll.u32 %v548, 16
        %v605 = vrot.slane %v603, 7
        %v606 = vor.u32 %v602, %v605
        %v607 = vrot.slane %v606, 4
        %v609 = vshrl.u32 %v549, 16
        %v611 = vrot.slane %v609, 6
        %v612 = vshll.u32 %v549, 16
        %v614 = vrot.slane %v612, 7
        %v615 = vor.u32 %v611, %v614
        %v616 = vsel %vm598, %v607, %v615
        %v617 = vrot.slane %v615, 4
        %v619 = vshrl.u32 %v550, 16
        %v621 = vrot.slane %v619, 6
        %v622 = vshll.u32 %v550, 16
        %v624 = vrot.slane %v622, 7
        %v625 = vor.u32 %v621, %v624
        %v626 = vsel %vm598, %v617, %v625
        %v628 = vshrl.u32 %v551, 16
        %v630 = vrot.slane %v628, 6
        %v631 = vshll.u32 %v551, 16
        %v633 = vrot.slane %v631, 7
        %v634 = vor.u32 %v630, %v633
        %v635 = vrot.slane %v634, 4
        %v637 = vshrl.u32 %v552, 16
        %v639 = vrot.slane %v637, 6
        %v640 = vshll.u32 %v552, 16
        %v642 = vrot.slane %v640, 7
        %v643 = vor.u32 %v639, %v642
        %v644 = vsel %vm598, %v635, %v643
        %v645 = vrot.slane %v643, 4
        %v647 = vshrl.u32 %v553, 16
        %v649 = vrot.slane %v647, 6
        %v650 = vshll.u32 %v553, 16
        %v652 = vrot.slane %v650, 7
        %v653 = vor.u32 %v649, %v652
        %v654 = vsel %vm598, %v645, %v653
        %v656 = vshrl.u32 %v554, 16
        %v658 = vrot.slane %v656, 6
        %v659 = vshll.u32 %v554, 16
        %v661 = vrot.slane %v659, 7
        %v662 = vor.u32 %v658, %v661
        %v663 = vrot.slane %v662, 4
        %v665 = vshrl.u32 %v555, 16
        %v667 = vrot.slane %v665, 6
        %v668 = vshll.u32 %v555, 16
        %v670 = vrot.slane %v668, 7
        %v671 = vor.u32 %v667, %v670
        %v672 = vsel %vm598, %v663, %v671
        %v673 = vrot.slane %v671, 4
        %v675 = vshrl.u32 %v556, 16
        %v677 = vrot.slane %v675, 6
        %v678 = vshll.u32 %v556, 16
        %v680 = vrot.slane %v678, 7
        %v681 = vor.u32 %v677, %v680
        %v682 = vsel %vm598, %v673, %v681
        %v684 = vshrl.u32 %v557, 16
        %v686 = vrot.slane %v684, 6
        %v687 = vshll.u32 %v557, 16
        %v689 = vrot.slane %v687, 7
        %v690 = vor.u32 %v686, %v689
        %v691 = vrot.slane %v690, 4
        %v693 = vshrl.u32 %v558, 16
        %v695 = vrot.slane %v693, 6
        %v696 = vshll.u32 %v558, 16
        %v698 = vrot.slane %v696, 7
        %v699 = vor.u32 %v695, %v698
        %v700 = vsel %vm598, %v691, %v699
        %v701 = vrot.slane %v699, 4
        %v703 = vshrl.u32 %v559, 16
        %v705 = vrot.slane %v703, 6
        %v706 = vshll.u32 %v559, 16
        %v708 = vrot.slane %v706, 7
        %v709 = vor.u32 %v705, %v708
        %v710 = vsel %vm598, %v701, %v709
        %v712 = vshrl.u32 %v560, 16
        %v714 = vrot.slane %v712, 6
        %v715 = vshll.u32 %v560, 16
        %v717 = vrot.slane %v715, 7
        %v718 = vor.u32 %v714, %v717
        %v719 = vrot.slane %v718, 4
        %v721 = vshrl.u32 %v561, 16
        %v723 = vrot.slane %v721, 6
        %v724 = vshll.u32 %v561, 16
        %v726 = vrot.slane %v724, 7
        %v727 = vor.u32 %v723, %v726
        %v728 = vsel %vm598, %v719, %v727
        %v729 = vrot.slane %v727, 4
        %v731 = vshrl.u32 %v562, 16
        %v733 = vrot.slane %v731, 6
        %v734 = vshll.u32 %v562, 16
        %v736 = vrot.slane %v734, 7
        %v737 = vor.u32 %v733, %v736
        %v738 = vsel %vm598, %v729, %v737
        %v740 = vshrl.u32 %v563, 16
        %v742 = vrot.slane %v740, 6
        %v743 = vshll.u32 %v563, 16
        %v745 = vrot.slane %v743, 7
        %v746 = vor.u32 %v742, %v745
        %v747 = vrot.slane %v746, 4
        %v749 = vshrl.u32 %v564, 16
        %v751 = vrot.slane %v749, 6
        %v752 = vshll.u32 %v564, 16
        %v754 = vrot.slane %v752, 7
        %v755 = vor.u32 %v751, %v754
        %v756 = vsel %vm598, %v747, %v755
        %v757 = vrot.slane %v755, 4
        %v759 = vshrl.u32 %v565, 16
        %v761 = vrot.slane %v759, 6
        %v762 = vshll.u32 %v565, 16
        %v764 = vrot.slane %v762, 7
        %v765 = vor.u32 %v761, %v764
        %v766 = vsel %vm598, %v757, %v765
        %v768 = vshrl.u32 %v566, 16
        %v770 = vrot.slane %v768, 6
        %v771 = vshll.u32 %v566, 16
        %v773 = vrot.slane %v771, 7
        %v774 = vor.u32 %v770, %v773
        %v775 = vrot.slane %v774, 4
        %v777 = vshrl.u32 %v567, 16
        %v779 = vrot.slane %v777, 6
        %v780 = vshll.u32 %v567, 16
        %v782 = vrot.slane %v780, 7
        %v783 = vor.u32 %v779, %v782
        %v784 = vsel %vm598, %v775, %v783
        %v785 = vrot.slane %v783, 4
        %v787 = vshrl.u32 %v568, 16
        %v789 = vrot.slane %v787, 6
        %v790 = vshll.u32 %v568, 16
        %v792 = vrot.slane %v790, 7
        %v793 = vor.u32 %v789, %v792
        %v794 = vsel %vm598, %v785, %v793
        %v796 = vshrl.u32 %v569, 16
        %v798 = vrot.slane %v796, 6
        %v799 = vshll.u32 %v569, 16
        %v801 = vrot.slane %v799, 7
        %v802 = vor.u32 %v798, %v801
        %v803 = vrot.slane %v802, 4
        %v805 = vshrl.u32 %v570, 16
        %v807 = vrot.slane %v805, 6
        %v808 = vshll.u32 %v570, 16
        %v810 = vrot.slane %v808, 7
        %v811 = vor.u32 %v807, %v810
        %v812 = vsel %vm598, %v803, %v811
        %v813 = vrot.slane %v811, 4
        %v815 = vshrl.u32 %v571, 16
        %v817 = vrot.slane %v815, 6
        %v818 = vshll.u32 %v571, 16
        %v820 = vrot.slane %v818, 7
        %v821 = vor.u32 %v817, %v820
        %v822 = vsel %vm598, %v813, %v821
        %v824 = vshrl.u32 %v572, 16
        %v826 = vrot.slane %v824, 6
        %v827 = vshll.u32 %v572, 16
        %v829 = vrot.slane %v827, 7
        %v830 = vor.u32 %v826, %v829
        %v831 = vrot.slane %v830, 4
        %v833 = vshrl.u32 %v573, 16
        %v835 = vrot.slane %v833, 6
        %v836 = vshll.u32 %v573, 16
        %v838 = vrot.slane %v836, 7
        %v839 = vor.u32 %v835, %v838
        %v840 = vsel %vm598, %v831, %v839
        %v841 = vrot.slane %v839, 4
        %v843 = vshrl.u32 %v574, 16
        %v845 = vrot.slane %v843, 6
        %v846 = vshll.u32 %v574, 16
        %v848 = vrot.slane %v846, 7
        %v849 = vor.u32 %v845, %v848
        %v850 = vsel %vm598, %v841, %v849
        %v852 = vshrl.u32 %v575, 16
        %v854 = vrot.slane %v852, 6
        %v855 = vshll.u32 %v575, 16
        %v857 = vrot.slane %v855, 7
        %v858 = vor.u32 %v854, %v857
        %v859 = vrot.slane %v858, 4
        %v861 = vshrl.u32 %v576, 16
        %v863 = vrot.slane %v861, 6
        %v864 = vshll.u32 %v576, 16
        %v866 = vrot.slane %v864, 7
        %v867 = vor.u32 %v863, %v866
        %v868 = vsel %vm598, %v859, %v867
        %v869 = vrot.slane %v867, 4
        %v871 = vshrl.u32 %v577, 16
        %v873 = vrot.slane %v871, 6
        %v874 = vshll.u32 %v577, 16
        %v876 = vrot.slane %v874, 7
        %v877 = vor.u32 %v873, %v876
        %v878 = vsel %vm598, %v869, %v877
        %v880 = vshrl.u32 %v578, 16
        %v882 = vrot.slane %v880, 6
        %v883 = vshll.u32 %v578, 16
        %v885 = vrot.slane %v883, 7
        %v886 = vor.u32 %v882, %v885
        %v887 = vrot.slane %v886, 4
        %v889 = vshrl.u32 %v579, 16
        %v891 = vrot.slane %v889, 6
        %v892 = vshll.u32 %v579, 16
        %v894 = vrot.slane %v892, 7
        %v895 = vor.u32 %v891, %v894
        %v896 = vsel %vm598, %v887, %v895
        %v897 = vrot.slane %v895, 4
        %v899 = vshrl.u32 %v580, 16
        %v901 = vrot.slane %v899, 6
        %v902 = vshll.u32 %v580, 16
        %v904 = vrot.slane %v902, 7
        %v905 = vor.u32 %v901, %v904
        %v906 = vsel %vm598, %v897, %v905
        %v908 = vshrl.u32 %v581, 16
        %v910 = vrot.slane %v908, 6
        %v911 = vshll.u32 %v581, 16
        %v913 = vrot.slane %v911, 7
        %v914 = vor.u32 %v910, %v913
        %v915 = vrot.slane %v914, 4
        %v917 = vshrl.u32 %v582, 16
        %v919 = vrot.slane %v917, 6
        %v920 = vshll.u32 %v582, 16
        %v922 = vrot.slane %v920, 7
        %v923 = vor.u32 %v919, %v922
        %v924 = vsel %vm598, %v915, %v923
        %v925 = vrot.slane %v923, 4
        %v927 = vshrl.u32 %v583, 16
        %v929 = vrot.slane %v927, 6
        %v930 = vshll.u32 %v583, 16
        %v932 = vrot.slane %v930, 7
        %v933 = vor.u32 %v929, %v932
        %v934 = vsel %vm598, %v925, %v933
        %v936 = vshrl.u32 %v584, 16
        %v938 = vrot.slane %v936, 6
        %v939 = vshll.u32 %v584, 16
        %v941 = vrot.slane %v939, 7
        %v942 = vor.u32 %v938, %v941
        %v943 = vrot.slane %v942, 4
        %v945 = vshrl.u32 %v585, 16
        %v947 = vrot.slane %v945, 6
        %v948 = vshll.u32 %v585, 16
        %v950 = vrot.slane %v948, 7
        %v951 = vor.u32 %v947, %v950
        %v952 = vsel %vm598, %v943, %v951
        %v953 = vrot.slane %v951, 4
        %v955 = vshrl.u32 %v586, 16
        %v957 = vrot.slane %v955, 6
        %v958 = vshll.u32 %v586, 16
        %v960 = vrot.slane %v958, 7
        %v961 = vor.u32 %v957, %v960
        %v962 = vsel %vm598, %v953, %v961
        %v964 = vshrl.u32 %v587, 16
        %v966 = vrot.slane %v964, 6
        %v967 = vshll.u32 %v587, 16
        %v969 = vrot.slane %v967, 7
        %v970 = vor.u32 %v966, %v969
        %v971 = vrot.slane %v970, 4
        %v973 = vshrl.u32 %v588, 16
        %v975 = vrot.slane %v973, 6
        %v976 = vshll.u32 %v588, 16
        %v978 = vrot.slane %v976, 7
        %v979 = vor.u32 %v975, %v978
        %v980 = vsel %vm598, %v971, %v979
        %v981 = vrot.slane %v979, 4
        %v983 = vshrl.u32 %v589, 16
        %v985 = vrot.slane %v983, 6
        %v986 = vshll.u32 %v589, 16
        %v988 = vrot.slane %v986, 7
        %v989 = vor.u32 %v985, %v988
        %v990 = vsel %vm598, %v981, %v989
        %v992 = vshrl.u32 %v590, 16
        %v994 = vrot.slane %v992, 6
        %v995 = vshll.u32 %v590, 16
        %v997 = vrot.slane %v995, 7
        %v998 = vor.u32 %v994, %v997
        %v999 = vrot.slane %v998, 4
        %v1001 = vshrl.u32 %v591, 16
        %v1003 = vrot.slane %v1001, 6
        %v1004 = vshll.u32 %v591, 16
        %v1006 = vrot.slane %v1004, 7
        %v1007 = vor.u32 %v1003, %v1006
        %v1008 = vsel %vm598, %v999, %v1007
        %v1009 = vrot.slane %v1007, 4
        %v1011 = vshrl.u32 %v592, 16
        %v1013 = vrot.slane %v1011, 6
        %v1014 = vshll.u32 %v592, 16
        %v1016 = vrot.slane %v1014, 7
        %v1017 = vor.u32 %v1013, %v1016
        %v1018 = vsel %vm598, %v1009, %v1017
        %v1020 = vshrl.u32 %v593, 16
        %v1022 = vrot.slane %v1020, 6
        %v1023 = vshll.u32 %v593, 16
        %v1025 = vrot.slane %v1023, 7
        %v1026 = vor.u32 %v1022, %v1025
        %v1027 = vrot.slane %v1026, 4
        %v1029 = vshrl.u32 %v594, 16
        %v1031 = vrot.slane %v1029, 6
        %v1032 = vshll.u32 %v594, 16
        %v1034 = vrot.slane %v1032, 7
        %v1035 = vor.u32 %v1031, %v1034
        %v1036 = vsel %vm598, %v1027, %v1035
        %v1037 = vrot.slane %v1035, 4
        %v1039 = vshrl.u32 %v595, 16
        %v1041 = vrot.slane %v1039, 6
        %v1042 = vshll.u32 %v595, 16
        %v1044 = vrot.slane %v1042, 7
        %v1045 = vor.u32 %v1041, %v1044
        %v1046 = vsel %vm598, %v1037, %v1045
        %v1047 = vld [vmem:[%s1] sm:$0xf]
        %v1048 = vld [vmem:[%s1 + $0x4] sm:$0xf]
        %v1049 = vld [vmem:[%s1 + $0x8] sm:$0xf]
        %v1050 = vld [vmem:[%s1 + $0xc] sm:$0xf]
        %v1051 = vld [vmem:[#allocation2 + $0x4] sm:$0x8]
        %v1052 = vld [vmem:[#allocation2 + $0x1c] sm:$0x8]
        %v1053 = vld [vmem:[#allocation2 + $0x34] sm:$0x8]
        %v1054 = vld [vmem:[#allocation2 + $0x4c] sm:$0x8]
        %v1055 = vld [vmem:[#allocation2 + $0x64] sm:$0x8]
        %v1056 = vld [vmem:[#allocation2 + $0x7c] sm:$0x8]
        %v1057 = vld [vmem:[#allocation2 + $0x94] sm:$0x8]
        %v1058 = vld [vmem:[#allocation2 + $0xac] sm:$0x8]
        %v1059 = vld [vmem:[#allocation2 + $0xc4] sm:$0x8]
        %v1060 = vld [vmem:[#allocation2 + $0xdc] sm:$0x8]
        %v1061 = vld [vmem:[#allocation2 + $0xf4] sm:$0x8]
        %v1062 = vld [vmem:[#allocation2 + $0x10c] sm:$0x8]
        %v1063 = vld [vmem:[#allocation2 + $0x124] sm:$0x8]
        %v1064 = vld [vmem:[#allocation2 + $0x13c] sm:$0x8]
        %v1065 = vld [vmem:[#allocation2 + $0x154] sm:$0x8]
        %v1066 = vld [vmem:[#allocation2 + $0x16c] sm:$0x8]
        %vm1115 = vcmask 1040384
        %vm1116 = vcmask 1044484
        %vm1117 = vmor %vm1115, %vm1116
        %v1118 = vrot.slane %v1051, 7
        %v1119 = vrot.slane %v1118, 4
        %v1120 = vrot.slane %v549, 7
        %v1121 = vsel %vm1117, %v1119, %v1120
        %v1122 = vrot.slane %v1120, 4
        %v1123 = vrot.slane %v550, 7
        %v1124 = vsel %vm1117, %v1122, %v1123
        %v1125 = vrot.slane %v1052, 7
        %v1126 = vrot.slane %v1125, 4
        %v1127 = vrot.slane %v552, 7
        %v1128 = vsel %vm1117, %v1126, %v1127
        %v1129 = vrot.slane %v1127, 4
        %v1130 = vrot.slane %v553, 7
        %v1131 = vsel %vm1117, %v1129, %v1130
        %v1132 = vrot.slane %v1053, 7
        %v1133 = vrot.slane %v1132, 4
        %v1134 = vrot.slane %v555, 7
        %v1135 = vsel %vm1117, %v1133, %v1134
        %v1136 = vrot.slane %v1134, 4
        %v1137 = vrot.slane %v556, 7
        %v1138 = vsel %vm1117, %v1136, %v1137
        %v1139 = vrot.slane %v1054, 7
        %v1140 = vrot.slane %v1139, 4
        %v1141 = vrot.slane %v558, 7
        %v1142 = vsel %vm1117, %v1140, %v1141
        %v1143 = vrot.slane %v1141, 4
        %v1144 = vrot.slane %v559, 7
        %v1145 = vsel %vm1117, %v1143, %v1144
        %v1146 = vrot.slane %v1055, 7
        %v1147 = vrot.slane %v1146, 4
        %v1148 = vrot.slane %v561, 7
        %v1149 = vsel %vm1117, %v1147, %v1148
        %v1150 = vrot.slane %v1148, 4
        %v1151 = vrot.slane %v562, 7
        %v1152 = vsel %vm1117, %v1150, %v1151
        %v1153 = vrot.slane %v1056, 7
        %v1154 = vrot.slane %v1153, 4
        %v1155 = vrot.slane %v564, 7
        %v1156 = vsel %vm1117, %v1154, %v1155
        %v1157 = vrot.slane %v1155, 4
        %v1158 = vrot.slane %v565, 7
        %v1159 = vsel %vm1117, %v1157, %v1158
        %v1160 = vrot.slane %v1057, 7
        %v1161 = vrot.slane %v1160, 4
        %v1162 = vrot.slane %v567, 7
        %v1163 = vsel %vm1117, %v1161, %v1162
        %v1164 = vrot.slane %v1162, 4
        %v1165 = vrot.slane %v568, 7
        %v1166 = vsel %vm1117, %v1164, %v1165
        %v1167 = vrot.slane %v1058, 7
        %v1168 = vrot.slane %v1167, 4
        %v1169 = vrot.slane %v570, 7
        %v1170 = vsel %vm1117, %v1168, %v1169
        %v1171 = vrot.slane %v1169, 4
        %v1172 = vrot.slane %v571, 7
        %v1173 = vsel %vm1117, %v1171, %v1172
        %v1174 = vrot.slane %v1059, 7
        %v1175 = vrot.slane %v1174, 4
        %v1176 = vrot.slane %v573, 7
        %v1177 = vsel %vm1117, %v1175, %v1176
        %v1178 = vrot.slane %v1176, 4
        %v1179 = vrot.slane %v574, 7
        %v1180 = vsel %vm1117, %v1178, %v1179
        %v1181 = vrot.slane %v1060, 7
        %v1182 = vrot.slane %v1181, 4
        %v1183 = vrot.slane %v576, 7
        %v1184 = vsel %vm1117, %v1182, %v1183
        %v1185 = vrot.slane %v1183, 4
        %v1186 = vrot.slane %v577, 7
        %v1187 = vsel %vm1117, %v1185, %v1186
        %v1188 = vrot.slane %v1061, 7
        %v1189 = vrot.slane %v1188, 4
        %v1190 = vrot.slane %v579, 7
        %v1191 = vsel %vm1117, %v1189, %v1190
        %v1192 = vrot.slane %v1190, 4
        %v1193 = vrot.slane %v580, 7
        %v1194 = vsel %vm1117, %v1192, %v1193
        %v1195 = vrot.slane %v1062, 7
        %v1196 = vrot.slane %v1195, 4
        %v1197 = vrot.slane %v582, 7
        %v1198 = vsel %vm1117, %v1196, %v1197
        %v1199 = vrot.slane %v1197, 4
        %v1200 = vrot.slane %v583, 7
        %v1201 = vsel %vm1117, %v1199, %v1200
        %v1202 = vrot.slane %v1063, 7
        %v1203 = vrot.slane %v1202, 4
        %v1204 = vrot.slane %v585, 7
        %v1205 = vsel %vm1117, %v1203, %v1204
        %v1206 = vrot.slane %v1204, 4
        %v1207 = vrot.slane %v586, 7
        %v1208 = vsel %vm1117, %v1206, %v1207
        %v1209 = vrot.slane %v1064, 7
        %v1210 = vrot.slane %v1209, 4
        %v1211 = vrot.slane %v588, 7
        %v1212 = vsel %vm1117, %v1210, %v1211
        %v1213 = vrot.slane %v1211, 4
        %v1214 = vrot.slane %v589, 7
        %v1215 = vsel %vm1117, %v1213, %v1214
        %v1216 = vrot.slane %v1065, 7
        %v1217 = vrot.slane %v1216, 4
        %v1218 = vrot.slane %v591, 7
        %v1219 = vsel %vm1117, %v1217, %v1218
        %v1220 = vrot.slane %v1218, 4
        %v1221 = vrot.slane %v592, 7
        %v1222 = vsel %vm1117, %v1220, %v1221
        %v1223 = vrot.slane %v1066, 7
        %v1224 = vrot.slane %v1223, 4
        %v1225 = vrot.slane %v594, 7
        %v1226 = vsel %vm1117, %v1224, %v1225
        %v1227 = vrot.slane %v1225, 4
        %v1228 = vrot.slane %v595, 7
        %v1229 = vsel %vm1117, %v1227, %v1228
        %s1230 = scalar_lea.vmem %s1, 16
        %v1231 = vld [vmem:[%s1230] sm:$0xf]
        %v1232 = vld [vmem:[%s1230 + $0x4] sm:$0xf]
        %v1233 = vld [vmem:[%s1230 + $0x8] sm:$0xf]
        %v1234 = vld [vmem:[%s1230 + $0xc] sm:$0xf]
        %v1235 = vunpack.c.l.b16 %v1121
        %v1236 = vunpack.c.l.b16 %v1124
        %v1237 = vunpack.c.l.b16 %v1128
        %v1238 = vunpack.c.l.b16 %v1131
        %v1239 = vunpack.c.l.b16 %v1135
        %v1240 = vunpack.c.l.b16 %v1138
        %v1241 = vunpack.c.l.b16 %v1142
        %v1242 = vunpack.c.l.b16 %v1145
        %v1243 = vunpack.c.l.b16 %v1149
        %v1244 = vunpack.c.l.b16 %v1152
        %v1245 = vunpack.c.l.b16 %v1156
        %v1246 = vunpack.c.l.b16 %v1159
        %v1247 = vunpack.c.l.b16 %v1163
        %v1248 = vunpack.c.l.b16 %v1166
        %v1249 = vunpack.c.l.b16 %v1170
        %v1250 = vunpack.c.l.b16 %v1173
        %v1251 = vunpack.c.l.b16 %v1177
        %v1252 = vunpack.c.l.b16 %v1180
        %v1253 = vunpack.c.l.b16 %v1184
        %v1254 = vunpack.c.l.b16 %v1187
        %v1255 = vunpack.c.l.b16 %v1191
        %v1256 = vunpack.c.l.b16 %v1194
        %v1257 = vunpack.c.l.b16 %v1198
        %v1258 = vunpack.c.l.b16 %v1201
        %v1259 = vunpack.c.l.b16 %v1205
        %v1260 = vunpack.c.l.b16 %v1208
        %v1261 = vunpack.c.l.b16 %v1212
        %v1262 = vunpack.c.l.b16 %v1215
        %v1263 = vunpack.c.l.b16 %v1219
        %v1264 = vunpack.c.l.b16 %v1222
        %v1265 = vunpack.c.l.b16 %v1226
        %v1266 = vunpack.c.l.b16 %v1229
        %v1267 = vpack.c.b16 %v1236, %v1235
        %v1268 = vpack.c.b16 %v1238, %v1237
        %v1269 = vpack.c.b16 %v1240, %v1239
        %v1270 = vpack.c.b16 %v1242, %v1241
        %v1271 = vpack.c.b16 %v1244, %v1243
        %v1272 = vpack.c.b16 %v1246, %v1245
        %v1273 = vpack.c.b16 %v1248, %v1247
        %v1274 = vpack.c.b16 %v1250, %v1249
        %v1275 = vpack.c.b16 %v1252, %v1251
        %v1276 = vpack.c.b16 %v1254, %v1253
        %v1277 = vpack.c.b16 %v1256, %v1255
        %v1278 = vpack.c.b16 %v1258, %v1257
        %v1279 = vpack.c.b16 %v1260, %v1259
        %v1280 = vpack.c.b16 %v1262, %v1261
        %v1281 = vpack.c.b16 %v1264, %v1263
        %v1282 = vpack.c.b16 %v1266, %v1265
        %v1287 = vunpack.c.l.b16 %v1231
        %v1288 = vunpack.c.l.b16 %v1232
        %v1289 = vunpack.c.l.b16 %v1233
        %v1290 = vunpack.c.l.b16 %v1234
        %v1291 = vpack.c.b16 %v1288, %v1287
        %v1292 = vpack.c.b16 %v1290, %v1289
        %vm1295 = vcmask 261120
        %v1297 = vsel %vm1295, %v1267, 0
        %v1300 = vsel %vm1295, %v1268, 0
        %v1303 = vsel %vm1295, %v1269, 0
        %v1306 = vsel %vm1295, %v1270, 0
        %v1309 = vsel %vm1295, %v1271, 0
        %v1312 = vsel %vm1295, %v1272, 0
        %v1315 = vsel %vm1295, %v1273, 0
        %v1318 = vsel %vm1295, %v1274, 0
        %v1321 = vsel %vm1295, %v1275, 0
        %v1324 = vsel %vm1295, %v1276, 0
        %v1327 = vsel %vm1295, %v1277, 0
        %v1330 = vsel %vm1295, %v1278, 0
        %v1333 = vsel %vm1295, %v1279, 0
        %v1336 = vsel %vm1295, %v1280, 0
        %v1339 = vsel %vm1295, %v1281, 0
        %v1342 = vsel %vm1295, %v1282, 0
        %1344 = vmatprep.subr.bf16.mxu0 0
        %1345 = vmatpush1.bf16.msra.mxu0 0
        %1346 = vmatprep.subr.bf16.mxu0 0
        %1347 = vmatpush1.bf16.msra.mxu0 0
        %1348 = vmatprep.subr.bf16.mxu0 0
        %1349 = vmatpush1.bf16.msra.mxu0 0
        %1350 = vmatprep.subr.bf16.mxu0 0
        %1351 = vmatpush1.bf16.msra.mxu0 0
        %1352 = vmatprep.subr.bf16.mxu0 0
        %1353 = vmatpush1.bf16.msra.mxu0 0
        %1354 = vmatprep.subr.bf16.mxu0 0
        %1355 = vmatpush1.bf16.msra.mxu0 0
        %1356 = vmatprep.subr.bf16.mxu0 0
        %1357 = vmatpush1.bf16.msra.mxu0 %v1292
        %1358 = vmatprep.subr.bf16.mxu0 0
        %1359 = vmatpush1.bf16.msra.mxu0 %v1291
        %1360 = vmatprep.subr.bf16.mxu0 0
        %1361 = vmatpush2.bf16.msra.mxu0 0
        %1362 = vmatprep.subr.bf16.mxu0 0
        %1363 = vmatpush2.bf16.msra.mxu0 0
        %1364 = vmatprep.subr.bf16.mxu0 0
        %1365 = vmatpush2.bf16.msra.mxu0 0
        %1366 = vmatprep.subr.bf16.mxu0 0
        %1367 = vmatpush2.bf16.msra.mxu0 0
        %1368 = vmatprep.subr.bf16.mxu0 0
        %1369 = vmatpush2.bf16.msra.mxu0 0
        %1370 = vmatprep.subr.bf16.mxu0 0
        %1371 = vmatpush2.bf16.msra.mxu0 0
        %1372 = vmatprep.subr.bf16.mxu0 0
        %1373 = vmatpush2.bf16.msra.mxu0 0
        %1374 = vmatprep.subr.bf16.mxu0 0
        %1375 = vmatpush2.bf16.msra.mxu0 0
        %1376 = vmatprep.mubr.bf16.mxu0 0
        %1377 = vmatmul.mubr.bf16.gmra.mxu0 %v1297
        %v1378 = vpop.f32.mrf.mxu0
        %v1379 = vadd.f32 0.0, %v1378
        %v1380 = vpop.f32.mrf.mxu0
        %v1381 = vpop.f32.mrf.mxu0
        %v1382 = vadd.f32 0.0, %v1381
        %v1383 = vpop.f32.mrf.mxu0
        %1384 = vmatprep.mubr.bf16.mxu0 0
        %1385 = vmatmul.mubr.bf16.gmra.mxu0 %v1300
        %v1386 = vpop.f32.mrf.mxu0
        %v1387 = vadd.f32 0.0, %v1386
        %v1388 = vpop.f32.mrf.mxu0
        %v1389 = vpop.f32.mrf.mxu0
        %v1390 = vadd.f32 0.0, %v1389
        %v1391 = vpop.f32.mrf.mxu0
        %1392 = vmatprep.mubr.bf16.mxu0 0
        %1393 = vmatmul.mubr.bf16.gmra.mxu0 %v1303
        %v1394 = vpop.f32.mrf.mxu0
        %v1395 = vadd.f32 0.0, %v1394
        %v1396 = vpop.f32.mrf.mxu0
        %v1397 = vpop.f32.mrf.mxu0
        %v1398 = vadd.f32 0.0, %v1397
        %v1399 = vpop.f32.mrf.mxu0
        %1400 = vmatprep.mubr.bf16.mxu0 0
        %1401 = vmatmul.mubr.bf16.gmra.mxu0 %v1306
        %v1402 = vpop.f32.mrf.mxu0
        %v1403 = vadd.f32 0.0, %v1402
        %v1404 = vpop.f32.mrf.mxu0
        %v1405 = vpop.f32.mrf.mxu0
        %v1406 = vadd.f32 0.0, %v1405
        %v1407 = vpop.f32.mrf.mxu0
        %1408 = vmatprep.mubr.bf16.mxu0 0
        %1409 = vmatmul.mubr.bf16.gmra.mxu0 %v1309
        %v1410 = vpop.f32.mrf.mxu0
        %v1411 = vadd.f32 0.0, %v1410
        %v1412 = vpop.f32.mrf.mxu0
        %v1413 = vpop.f32.mrf.mxu0
        %v1414 = vadd.f32 0.0, %v1413
        %v1415 = vpop.f32.mrf.mxu0
        %1416 = vmatprep.mubr.bf16.mxu0 0
        %1417 = vmatmul.mubr.bf16.gmra.mxu0 %v1312
        %v1418 = vpop.f32.mrf.mxu0
        %v1419 = vadd.f32 0.0, %v1418
        %v1420 = vpop.f32.mrf.mxu0
        %v1421 = vpop.f32.mrf.mxu0
        %v1422 = vadd.f32 0.0, %v1421
        %v1423 = vpop.f32.mrf.mxu0
        %1424 = vmatprep.mubr.bf16.mxu0 0
        %1425 = vmatmul.mubr.bf16.gmra.mxu0 %v1315
        %v1426 = vpop.f32.mrf.mxu0
        %v1427 = vadd.f32 0.0, %v1426
        %v1428 = vpop.f32.mrf.mxu0
        %v1429 = vpop.f32.mrf.mxu0
        %v1430 = vadd.f32 0.0, %v1429
        %v1431 = vpop.f32.mrf.mxu0
        %1432 = vmatprep.mubr.bf16.mxu0 0
        %1433 = vmatmul.mubr.bf16.gmra.mxu0 %v1318
        %v1434 = vpop.f32.mrf.mxu0
        %v1435 = vadd.f32 0.0, %v1434
        %v1436 = vpop.f32.mrf.mxu0
        %v1437 = vpop.f32.mrf.mxu0
        %v1438 = vadd.f32 0.0, %v1437
        %v1439 = vpop.f32.mrf.mxu0
        %1440 = vmatprep.mubr.bf16.mxu0 0
        %1441 = vmatmul.mubr.bf16.gmra.mxu0 %v1321
        %v1442 = vpop.f32.mrf.mxu0
        %v1443 = vadd.f32 0.0, %v1442
        %v1444 = vpop.f32.mrf.mxu0
        %v1445 = vpop.f32.mrf.mxu0
        %v1446 = vadd.f32 0.0, %v1445
        %v1447 = vpop.f32.mrf.mxu0
        %1448 = vmatprep.mubr.bf16.mxu0 0
        %1449 = vmatmul.mubr.bf16.gmra.mxu0 %v1324
        %v1450 = vpop.f32.mrf.mxu0
        %v1451 = vadd.f32 0.0, %v1450
        %v1452 = vpop.f32.mrf.mxu0
        %v1453 = vpop.f32.mrf.mxu0
        %v1454 = vadd.f32 0.0, %v1453
        %v1455 = vpop.f32.mrf.mxu0
        %1456 = vmatprep.mubr.bf16.mxu0 0
        %1457 = vmatmul.mubr.bf16.gmra.mxu0 %v1327
        %v1458 = vpop.f32.mrf.mxu0
        %v1459 = vadd.f32 0.0, %v1458
        %v1460 = vpop.f32.mrf.mxu0
        %v1461 = vpop.f32.mrf.mxu0
        %v1462 = vadd.f32 0.0, %v1461
        %v1463 = vpop.f32.mrf.mxu0
        %1464 = vmatprep.mubr.bf16.mxu0 0
        %1465 = vmatmul.mubr.bf16.gmra.mxu0 %v1330
        %v1466 = vpop.f32.mrf.mxu0
        %v1467 = vadd.f32 0.0, %v1466
        %v1468 = vpop.f32.mrf.mxu0
        %v1469 = vpop.f32.mrf.mxu0
        %v1470 = vadd.f32 0.0, %v1469
        %v1471 = vpop.f32.mrf.mxu0
        %1472 = vmatprep.mubr.bf16.mxu0 0
        %1473 = vmatmul.mubr.bf16.gmra.mxu0 %v1333
        %v1474 = vpop.f32.mrf.mxu0
        %v1475 = vadd.f32 0.0, %v1474
        %v1476 = vpop.f32.mrf.mxu0
        %v1477 = vpop.f32.mrf.mxu0
        %v1478 = vadd.f32 0.0, %v1477
        %v1479 = vpop.f32.mrf.mxu0
        %1480 = vmatprep.mubr.bf16.mxu0 0
        %1481 = vmatmul.mubr.bf16.gmra.mxu0 %v1336
        %v1482 = vpop.f32.mrf.mxu0
        %v1483 = vadd.f32 0.0, %v1482
        %v1484 = vpop.f32.mrf.mxu0
        %v1485 = vpop.f32.mrf.mxu0
        %v1486 = vadd.f32 0.0, %v1485
        %v1487 = vpop.f32.mrf.mxu0
        %1488 = vmatprep.mubr.bf16.mxu0 0
        %1489 = vmatmul.mubr.bf16.gmra.mxu0 %v1339
        %v1490 = vpop.f32.mrf.mxu0
        %v1491 = vadd.f32 0.0, %v1490
        %v1492 = vpop.f32.mrf.mxu0
        %v1493 = vpop.f32.mrf.mxu0
        %v1494 = vadd.f32 0.0, %v1493
        %v1495 = vpop.f32.mrf.mxu0
        %1496 = vmatprep.mubr.bf16.mxu0 0
        %1497 = vmatmul.mubr.bf16.gmra.mxu0 %v1342
        %v1498 = vpop.f32.mrf.mxu0
        %v1499 = vadd.f32 0.0, %v1498
        %v1500 = vpop.f32.mrf.mxu0
        %v1501 = vpop.f32.mrf.mxu0
        %v1502 = vadd.f32 0.0, %v1501
        %v1503 = vpop.f32.mrf.mxu0
        %1504 = vdwg.mxu0
        %v1505 = vunpack.c.l.b16 %v616
        %v1506 = vunpack.c.l.b16 %v626
        %v1507 = vunpack.c.l.b16 %v644
        %v1508 = vunpack.c.l.b16 %v654
        %v1509 = vunpack.c.l.b16 %v672
        %v1510 = vunpack.c.l.b16 %v682
        %v1511 = vunpack.c.l.b16 %v700
        %v1512 = vunpack.c.l.b16 %v710
        %v1513 = vunpack.c.l.b16 %v728
        %v1514 = vunpack.c.l.b16 %v738
        %v1515 = vunpack.c.l.b16 %v756
        %v1516 = vunpack.c.l.b16 %v766
        %v1517 = vunpack.c.l.b16 %v784
        %v1518 = vunpack.c.l.b16 %v794
        %v1519 = vunpack.c.l.b16 %v812
        %v1520 = vunpack.c.l.b16 %v822
        %v1521 = vunpack.c.l.b16 %v840
        %v1522 = vunpack.c.l.b16 %v850
        %v1523 = vunpack.c.l.b16 %v868
        %v1524 = vunpack.c.l.b16 %v878
        %v1525 = vunpack.c.l.b16 %v896
        %v1526 = vunpack.c.l.b16 %v906
        %v1527 = vunpack.c.l.b16 %v924
        %v1528 = vunpack.c.l.b16 %v934
        %v1529 = vunpack.c.l.b16 %v952
        %v1530 = vunpack.c.l.b16 %v962
        %v1531 = vunpack.c.l.b16 %v980
        %v1532 = vunpack.c.l.b16 %v990
        %v1533 = vunpack.c.l.b16 %v1008
        %v1534 = vunpack.c.l.b16 %v1018
        %v1535 = vunpack.c.l.b16 %v1036
        %v1536 = vunpack.c.l.b16 %v1046
        %v1537 = vpack.c.b16 %v1506, %v1505
        %v1538 = vpack.c.b16 %v1508, %v1507
        %v1539 = vpack.c.b16 %v1510, %v1509
        %v1540 = vpack.c.b16 %v1512, %v1511
        %v1541 = vpack.c.b16 %v1514, %v1513
        %v1542 = vpack.c.b16 %v1516, %v1515
        %v1543 = vpack.c.b16 %v1518, %v1517
        %v1544 = vpack.c.b16 %v1520, %v1519
        %v1545 = vpack.c.b16 %v1522, %v1521
        %v1546 = vpack.c.b16 %v1524, %v1523
        %v1547 = vpack.c.b16 %v1526, %v1525
        %v1548 = vpack.c.b16 %v1528, %v1527
        %v1549 = vpack.c.b16 %v1530, %v1529
        %v1550 = vpack.c.b16 %v1532, %v1531
        %v1551 = vpack.c.b16 %v1534, %v1533
        %v1552 = vpack.c.b16 %v1536, %v1535
        %v1557 = vunpack.c.l.b16 %v1047
        %v1558 = vunpack.c.l.b16 %v1048
        %v1559 = vunpack.c.l.b16 %v1049
        %v1560 = vunpack.c.l.b16 %v1050
        %v1561 = vpack.c.b16 %v1558, %v1557
        %v1562 = vpack.c.b16 %v1560, %v1559
        %v1566 = vsel %vm1295, %v1537, 0
        %v1569 = vsel %vm1295, %v1538, 0
        %v1572 = vsel %vm1295, %v1539, 0
        %v1575 = vsel %vm1295, %v1540, 0
        %v1578 = vsel %vm1295, %v1541, 0
        %v1581 = vsel %vm1295, %v1542, 0
        %v1584 = vsel %vm1295, %v1543, 0
        %v1587 = vsel %vm1295, %v1544, 0
        %v1590 = vsel %vm1295, %v1545, 0
        %v1593 = vsel %vm1295, %v1546, 0
        %v1596 = vsel %vm1295, %v1547, 0
        %v1599 = vsel %vm1295, %v1548, 0
        %v1602 = vsel %vm1295, %v1549, 0
        %v1605 = vsel %vm1295, %v1550, 0
        %v1608 = vsel %vm1295, %v1551, 0
        %v1611 = vsel %vm1295, %v1552, 0
        %1613 = vmatprep.subr.bf16.mxu0 0
        %1614 = vmatpush1.bf16.msra.mxu0 0
        %1615 = vmatprep.subr.bf16.mxu0 0
        %1616 = vmatpush1.bf16.msra.mxu0 0
        %1617 = vmatprep.subr.bf16.mxu0 0
        %1618 = vmatpush1.bf16.msra.mxu0 0
        %1619 = vmatprep.subr.bf16.mxu0 0
        %1620 = vmatpush1.bf16.msra.mxu0 0
        %1621 = vmatprep.subr.bf16.mxu0 0
        %1622 = vmatpush1.bf16.msra.mxu0 0
        %1623 = vmatprep.subr.bf16.mxu0 0
        %1624 = vmatpush1.bf16.msra.mxu0 0
        %1625 = vmatprep.subr.bf16.mxu0 0
        %1626 = vmatpush1.bf16.msra.mxu0 %v1562
        %1627 = vmatprep.subr.bf16.mxu0 0
        %1628 = vmatpush1.bf16.msra.mxu0 %v1561
        %1629 = vmatprep.subr.bf16.mxu0 0
        %1630 = vmatpush2.bf16.msra.mxu0 0
        %1631 = vmatprep.subr.bf16.mxu0 0
        %1632 = vmatpush2.bf16.msra.mxu0 0
        %1633 = vmatprep.subr.bf16.mxu0 0
        %1634 = vmatpush2.bf16.msra.mxu0 0
        %1635 = vmatprep.subr.bf16.mxu0 0
        %1636 = vmatpush2.bf16.msra.mxu0 0
        %1637 = vmatprep.subr.bf16.mxu0 0
        %1638 = vmatpush2.bf16.msra.mxu0 0
        %1639 = vmatprep.subr.bf16.mxu0 0
        %1640 = vmatpush2.bf16.msra.mxu0 0
        %1641 = vmatprep.subr.bf16.mxu0 0
        %1642 = vmatpush2.bf16.msra.mxu0 0
        %1643 = vmatprep.subr.bf16.mxu0 0
        %1644 = vmatpush2.bf16.msra.mxu0 0
        %1645 = vmatprep.mubr.bf16.mxu0 0
        %1646 = vmatmul.mubr.bf16.gmra.mxu0 %v1566
        %v1647 = vpop.f32.mrf.mxu0
        %v1648 = vadd.f32 %v1379, %v1647
        %v1649 = vpop.f32.mrf.mxu0
        %v1650 = vpop.f32.mrf.mxu0
        %v1651 = vadd.f32 %v1382, %v1650
        %v1652 = vpop.f32.mrf.mxu0
        %1653 = vmatprep.mubr.bf16.mxu0 0
        %1654 = vmatmul.mubr.bf16.gmra.mxu0 %v1569
        %v1655 = vpop.f32.mrf.mxu0
        %v1656 = vadd.f32 %v1387, %v1655
        %v1657 = vpop.f32.mrf.mxu0
        %v1658 = vpop.f32.mrf.mxu0
        %v1659 = vadd.f32 %v1390, %v1658
        %v1660 = vpop.f32.mrf.mxu0
        %1661 = vmatprep.mubr.bf16.mxu0 0
        %1662 = vmatmul.mubr.bf16.gmra.mxu0 %v1572
        %v1663 = vpop.f32.mrf.mxu0
        %v1664 = vadd.f32 %v1395, %v1663
        %v1665 = vpop.f32.mrf.mxu0
        %v1666 = vpop.f32.mrf.mxu0
        %v1667 = vadd.f32 %v1398, %v1666
        %v1668 = vpop.f32.mrf.mxu0
        %1669 = vmatprep.mubr.bf16.mxu0 0
        %1670 = vmatmul.mubr.bf16.gmra.mxu0 %v1575
        %v1671 = vpop.f32.mrf.mxu0
        %v1672 = vadd.f32 %v1403, %v1671
        %v1673 = vpop.f32.mrf.mxu0
        %v1674 = vpop.f32.mrf.mxu0
        %v1675 = vadd.f32 %v1406, %v1674
        %v1676 = vpop.f32.mrf.mxu0
        %1677 = vmatprep.mubr.bf16.mxu0 0
        %1678 = vmatmul.mubr.bf16.gmra.mxu0 %v1578
        %v1679 = vpop.f32.mrf.mxu0
        %v1680 = vadd.f32 %v1411, %v1679
        %v1681 = vpop.f32.mrf.mxu0
        %v1682 = vpop.f32.mrf.mxu0
        %v1683 = vadd.f32 %v1414, %v1682
        %v1684 = vpop.f32.mrf.mxu0
        %1685 = vmatprep.mubr.bf16.mxu0 0
        %1686 = vmatmul.mubr.bf16.gmra.mxu0 %v1581
        %v1687 = vpop.f32.mrf.mxu0
        %v1688 = vadd.f32 %v1419, %v1687
        %v1689 = vpop.f32.mrf.mxu0
        %v1690 = vpop.f32.mrf.mxu0
        %v1691 = vadd.f32 %v1422, %v1690
        %v1692 = vpop.f32.mrf.mxu0
        %1693 = vmatprep.mubr.bf16.mxu0 0
        %1694 = vmatmul.mubr.bf16.gmra.mxu0 %v1584
        %v1695 = vpop.f32.mrf.mxu0
        %v1696 = vadd.f32 %v1427, %v1695
        %v1697 = vpop.f32.mrf.mxu0
        %v1698 = vpop.f32.mrf.mxu0
        %v1699 = vadd.f32 %v1430, %v1698
        %v1700 = vpop.f32.mrf.mxu0
        %1701 = vmatprep.mubr.bf16.mxu0 0
        %1702 = vmatmul.mubr.bf16.gmra.mxu0 %v1587
        %v1703 = vpop.f32.mrf.mxu0
        %v1704 = vadd.f32 %v1435, %v1703
        %v1705 = vpop.f32.mrf.mxu0
        %v1706 = vpop.f32.mrf.mxu0
        %v1707 = vadd.f32 %v1438, %v1706
        %v1708 = vpop.f32.mrf.mxu0
        %1709 = vmatprep.mubr.bf16.mxu0 0
        %1710 = vmatmul.mubr.bf16.gmra.mxu0 %v1590
        %v1711 = vpop.f32.mrf.mxu0
        %v1712 = vadd.f32 %v1443, %v1711
        %v1713 = vpop.f32.mrf.mxu0
        %v1714 = vpop.f32.mrf.mxu0
        %v1715 = vadd.f32 %v1446, %v1714
        %v1716 = vpop.f32.mrf.mxu0
        %1717 = vmatprep.mubr.bf16.mxu0 0
        %1718 = vmatmul.mubr.bf16.gmra.mxu0 %v1593
        %v1719 = vpop.f32.mrf.mxu0
        %v1720 = vadd.f32 %v1451, %v1719
        %v1721 = vpop.f32.mrf.mxu0
        %v1722 = vpop.f32.mrf.mxu0
        %v1723 = vadd.f32 %v1454, %v1722
        %v1724 = vpop.f32.mrf.mxu0
        %1725 = vmatprep.mubr.bf16.mxu0 0
        %1726 = vmatmul.mubr.bf16.gmra.mxu0 %v1596
        %v1727 = vpop.f32.mrf.mxu0
        %v1728 = vadd.f32 %v1459, %v1727
        %v1729 = vpop.f32.mrf.mxu0
        %v1730 = vpop.f32.mrf.mxu0
        %v1731 = vadd.f32 %v1462, %v1730
        %v1732 = vpop.f32.mrf.mxu0
        %1733 = vmatprep.mubr.bf16.mxu0 0
        %1734 = vmatmul.mubr.bf16.gmra.mxu0 %v1599
        %v1735 = vpop.f32.mrf.mxu0
        %v1736 = vadd.f32 %v1467, %v1735
        %v1737 = vpop.f32.mrf.mxu0
        %v1738 = vpop.f32.mrf.mxu0
        %v1739 = vadd.f32 %v1470, %v1738
        %v1740 = vpop.f32.mrf.mxu0
        %1741 = vmatprep.mubr.bf16.mxu0 0
        %1742 = vmatmul.mubr.bf16.gmra.mxu0 %v1602
        %v1743 = vpop.f32.mrf.mxu0
        %v1744 = vadd.f32 %v1475, %v1743
        %v1745 = vpop.f32.mrf.mxu0
        %v1746 = vpop.f32.mrf.mxu0
        %v1747 = vadd.f32 %v1478, %v1746
        %v1748 = vpop.f32.mrf.mxu0
        %1749 = vmatprep.mubr.bf16.mxu0 0
        %1750 = vmatmul.mubr.bf16.gmra.mxu0 %v1605
        %v1751 = vpop.f32.mrf.mxu0
        %v1752 = vadd.f32 %v1483, %v1751
        %v1753 = vpop.f32.mrf.mxu0
        %v1754 = vpop.f32.mrf.mxu0
        %v1755 = vadd.f32 %v1486, %v1754
        %v1756 = vpop.f32.mrf.mxu0
        %1757 = vmatprep.mubr.bf16.mxu0 0
        %1758 = vmatmul.mubr.bf16.gmra.mxu0 %v1608
        %v1759 = vpop.f32.mrf.mxu0
        %v1760 = vadd.f32 %v1491, %v1759
        %v1761 = vpop.f32.mrf.mxu0
        %v1762 = vpop.f32.mrf.mxu0
        %v1763 = vadd.f32 %v1494, %v1762
        %v1764 = vpop.f32.mrf.mxu0
        %1765 = vmatprep.mubr.bf16.mxu0 0
        %1766 = vmatmul.mubr.bf16.gmra.mxu0 %v1611
        %v1767 = vpop.f32.mrf.mxu0
        %v1768 = vadd.f32 %v1499, %v1767
        %v1769 = vpop.f32.mrf.mxu0
        %v1770 = vpop.f32.mrf.mxu0
        %v1771 = vadd.f32 %v1502, %v1770
        %v1772 = vpop.f32.mrf.mxu0
        %1773 = vdwg.mxu0
        %v1774 = vld [vmem:[#allocation2 + $0xc] sm:$0xf]
        %v1775 = vld [vmem:[#allocation2 + $0x24] sm:$0xf]
        %v1776 = vld [vmem:[#allocation2 + $0x3c] sm:$0xf]
        %v1777 = vld [vmem:[#allocation2 + $0x54] sm:$0xf]
        %v1778 = vld [vmem:[#allocation2 + $0x6c] sm:$0xf]
        %v1779 = vld [vmem:[#allocation2 + $0x84] sm:$0xf]
        %v1780 = vld [vmem:[#allocation2 + $0x9c] sm:$0xf]
        %v1781 = vld [vmem:[#allocation2 + $0xb4] sm:$0xf]
        %v1782 = vld [vmem:[#allocation2 + $0xcc] sm:$0xf]
        %v1783 = vld [vmem:[#allocation2 + $0xe4] sm:$0xf]
        %v1784 = vld [vmem:[#allocation2 + $0xfc] sm:$0xf]
        %v1785 = vld [vmem:[#allocation2 + $0x114] sm:$0xf]
        %v1786 = vld [vmem:[#allocation2 + $0x12c] sm:$0xf]
        %v1787 = vld [vmem:[#allocation2 + $0x144] sm:$0xf]
        %v1788 = vld [vmem:[#allocation2 + $0x15c] sm:$0xf]
        %v1789 = vld [vmem:[#allocation2 + $0x174] sm:$0xf]
        %vm1790 = vsmask.f32 256
        %vm1791 = vsmask.f32 4368
        %vm1792 = vmor %vm1790, %vm1791
        %v1794 = vshrl.u32 %v1051, 16
        %v1796 = vrot.slane %v1794, 7
        %v1797 = vrot.slane %v1796, 4
        %v1798 = vrot.slane %v609, 7
        %v1799 = vor.u32 %v1798, %v612
        %v1800 = vsel %vm1792, %v1797, %v1799
        %v1801 = vrot.slane %v1798, 4
        %v1803 = vshrl.u32 %v1774, 16
        %v1805 = vrot.slane %v1803, 7
        %v1806 = vshll.u32 %v1774, 16
        %v1808 = vor.u32 %v1805, %v1806
        %v1809 = vsel %vm1792, %v1801, %v1808
        %v1811 = vshrl.u32 %v1052, 16
        %v1813 = vrot.slane %v1811, 7
        %v1814 = vrot.slane %v1813, 4
        %v1815 = vrot.slane %v637, 7
        %v1816 = vor.u32 %v1815, %v640
        %v1817 = vsel %vm1792, %v1814, %v1816
        %v1818 = vrot.slane %v1815, 4
        %v1820 = vshrl.u32 %v1775, 16
        %v1822 = vrot.slane %v1820, 7
        %v1823 = vshll.u32 %v1775, 16
        %v1825 = vor.u32 %v1822, %v1823
        %v1826 = vsel %vm1792, %v1818, %v1825
        %v1828 = vshrl.u32 %v1053, 16
        %v1830 = vrot.slane %v1828, 7
        %v1831 = vrot.slane %v1830, 4
        %v1832 = vrot.slane %v665, 7
        %v1833 = vor.u32 %v1832, %v668
        %v1834 = vsel %vm1792, %v1831, %v1833
        %v1835 = vrot.slane %v1832, 4
        %v1837 = vshrl.u32 %v1776, 16
        %v1839 = vrot.slane %v1837, 7
        %v1840 = vshll.u32 %v1776, 16
        %v1842 = vor.u32 %v1839, %v1840
        %v1843 = vsel %vm1792, %v1835, %v1842
        %v1845 = vshrl.u32 %v1054, 16
        %v1847 = vrot.slane %v1845, 7
        %v1848 = vrot.slane %v1847, 4
        %v1849 = vrot.slane %v693, 7
        %v1850 = vor.u32 %v1849, %v696
        %v1851 = vsel %vm1792, %v1848, %v1850
        %v1852 = vrot.slane %v1849, 4
        %v1854 = vshrl.u32 %v1777, 16
        %v1856 = vrot.slane %v1854, 7
        %v1857 = vshll.u32 %v1777, 16
        %v1859 = vor.u32 %v1856, %v1857
        %v1860 = vsel %vm1792, %v1852, %v1859
        %v1862 = vshrl.u32 %v1055, 16
        %v1864 = vrot.slane %v1862, 7
        %v1865 = vrot.slane %v1864, 4
        %v1866 = vrot.slane %v721, 7
        %v1867 = vor.u32 %v1866, %v724
        %v1868 = vsel %vm1792, %v1865, %v1867
        %v1869 = vrot.slane %v1866, 4
        %v1871 = vshrl.u32 %v1778, 16
        %v1873 = vrot.slane %v1871, 7
        %v1874 = vshll.u32 %v1778, 16
        %v1876 = vor.u32 %v1873, %v1874
        %v1877 = vsel %vm1792, %v1869, %v1876
        %v1879 = vshrl.u32 %v1056, 16
        %v1881 = vrot.slane %v1879, 7
        %v1882 = vrot.slane %v1881, 4
        %v1883 = vrot.slane %v749, 7
        %v1884 = vor.u32 %v1883, %v752
        %v1885 = vsel %vm1792, %v1882, %v1884
        %v1886 = vrot.slane %v1883, 4
        %v1888 = vshrl.u32 %v1779, 16
        %v1890 = vrot.slane %v1888, 7
        %v1891 = vshll.u32 %v1779, 16
        %v1893 = vor.u32 %v1890, %v1891
        %v1894 = vsel %vm1792, %v1886, %v1893
        %v1896 = vshrl.u32 %v1057, 16
        %v1898 = vrot.slane %v1896, 7
        %v1899 = vrot.slane %v1898, 4
        %v1900 = vrot.slane %v777, 7
        %v1901 = vor.u32 %v1900, %v780
        %v1902 = vsel %vm1792, %v1899, %v1901
        %v1903 = vrot.slane %v1900, 4
        %v1905 = vshrl.u32 %v1780, 16
        %v1907 = vrot.slane %v1905, 7
        %v1908 = vshll.u32 %v1780, 16
        %v1910 = vor.u32 %v1907, %v1908
        %v1911 = vsel %vm1792, %v1903, %v1910
        %v1913 = vshrl.u32 %v1058, 16
        %v1915 = vrot.slane %v1913, 7
        %v1916 = vrot.slane %v1915, 4
        %v1917 = vrot.slane %v805, 7
        %v1918 = vor.u32 %v1917, %v808
        %v1919 = vsel %vm1792, %v1916, %v1918
        %v1920 = vrot.slane %v1917, 4
        %v1922 = vshrl.u32 %v1781, 16
        %v1924 = vrot.slane %v1922, 7
        %v1925 = vshll.u32 %v1781, 16
        %v1927 = vor.u32 %v1924, %v1925
        %v1928 = vsel %vm1792, %v1920, %v1927
        %v1930 = vshrl.u32 %v1059, 16
        %v1932 = vrot.slane %v1930, 7
        %v1933 = vrot.slane %v1932, 4
        %v1934 = vrot.slane %v833, 7
        %v1935 = vor.u32 %v1934, %v836
        %v1936 = vsel %vm1792, %v1933, %v1935
        %v1937 = vrot.slane %v1934, 4
        %v1939 = vshrl.u32 %v1782, 16
        %v1941 = vrot.slane %v1939, 7
        %v1942 = vshll.u32 %v1782, 16
        %v1944 = vor.u32 %v1941, %v1942
        %v1945 = vsel %vm1792, %v1937, %v1944
        %v1947 = vshrl.u32 %v1060, 16
        %v1949 = vrot.slane %v1947, 7
        %v1950 = vrot.slane %v1949, 4
        %v1951 = vrot.slane %v861, 7
        %v1952 = vor.u32 %v1951, %v864
        %v1953 = vsel %vm1792, %v1950, %v1952
        %v1954 = vrot.slane %v1951, 4
        %v1956 = vshrl.u32 %v1783, 16
        %v1958 = vrot.slane %v1956, 7
        %v1959 = vshll.u32 %v1783, 16
        %v1961 = vor.u32 %v1958, %v1959
        %v1962 = vsel %vm1792, %v1954, %v1961
        %v1964 = vshrl.u32 %v1061, 16
        %v1966 = vrot.slane %v1964, 7
        %v1967 = vrot.slane %v1966, 4
        %v1968 = vrot.slane %v889, 7
        %v1969 = vor.u32 %v1968, %v892
        %v1970 = vsel %vm1792, %v1967, %v1969
        %v1971 = vrot.slane %v1968, 4
        %v1973 = vshrl.u32 %v1784, 16
        %v1975 = vrot.slane %v1973, 7
        %v1976 = vshll.u32 %v1784, 16
        %v1978 = vor.u32 %v1975, %v1976
        %v1979 = vsel %vm1792, %v1971, %v1978
        %v1981 = vshrl.u32 %v1062, 16
        %v1983 = vrot.slane %v1981, 7
        %v1984 = vrot.slane %v1983, 4
        %v1985 = vrot.slane %v917, 7
        %v1986 = vor.u32 %v1985, %v920
        %v1987 = vsel %vm1792, %v1984, %v1986
        %v1988 = vrot.slane %v1985, 4
        %v1990 = vshrl.u32 %v1785, 16
        %v1992 = vrot.slane %v1990, 7
        %v1993 = vshll.u32 %v1785, 16
        %v1995 = vor.u32 %v1992, %v1993
        %v1996 = vsel %vm1792, %v1988, %v1995
        %v1998 = vshrl.u32 %v1063, 16
        %v2000 = vrot.slane %v1998, 7
        %v2001 = vrot.slane %v2000, 4
        %v2002 = vrot.slane %v945, 7
        %v2003 = vor.u32 %v2002, %v948
        %v2004 = vsel %vm1792, %v2001, %v2003
        %v2005 = vrot.slane %v2002, 4
        %v2007 = vshrl.u32 %v1786, 16
        %v2009 = vrot.slane %v2007, 7
        %v2010 = vshll.u32 %v1786, 16
        %v2012 = vor.u32 %v2009, %v2010
        %v2013 = vsel %vm1792, %v2005, %v2012
        %v2015 = vshrl.u32 %v1064, 16
        %v2017 = vrot.slane %v2015, 7
        %v2018 = vrot.slane %v2017, 4
        %v2019 = vrot.slane %v973, 7
        %v2020 = vor.u32 %v2019, %v976
        %v2021 = vsel %vm1792, %v2018, %v2020
        %v2022 = vrot.slane %v2019, 4
        %v2024 = vshrl.u32 %v1787, 16
        %v2026 = vrot.slane %v2024, 7
        %v2027 = vshll.u32 %v1787, 16
        %v2029 = vor.u32 %v2026, %v2027
        %v2030 = vsel %vm1792, %v2022, %v2029
        %v2032 = vshrl.u32 %v1065, 16
        %v2034 = vrot.slane %v2032, 7
        %v2035 = vrot.slane %v2034, 4
        %v2036 = vrot.slane %v1001, 7
        %v2037 = vor.u32 %v2036, %v1004
        %v2038 = vsel %vm1792, %v2035, %v2037
        %v2039 = vrot.slane %v2036, 4
        %v2041 = vshrl.u32 %v1788, 16
        %v2043 = vrot.slane %v2041, 7
        %v2044 = vshll.u32 %v1788, 16
        %v2046 = vor.u32 %v2043, %v2044
        %v2047 = vsel %vm1792, %v2039, %v2046
        %v2049 = vshrl.u32 %v1066, 16
        %v2051 = vrot.slane %v2049, 7
        %v2052 = vrot.slane %v2051, 4
        %v2053 = vrot.slane %v1029, 7
        %v2054 = vor.u32 %v2053, %v1032
        %v2055 = vsel %vm1792, %v2052, %v2054
        %v2056 = vrot.slane %v2053, 4
        %v2058 = vshrl.u32 %v1789, 16
        %v2060 = vrot.slane %v2058, 7
        %v2061 = vshll.u32 %v1789, 16
        %v2063 = vor.u32 %v2060, %v2061
        %v2064 = vsel %vm1792, %v2056, %v2063
        %s2065 = scalar_lea.vmem %s1, 32
        %v2066 = vld [vmem:[%s2065] sm:$0xf]
        %v2067 = vld [vmem:[%s2065 + $0x4] sm:$0xf]
        %v2068 = vld [vmem:[%s2065 + $0x8] sm:$0xf]
        %v2069 = vld [vmem:[%s2065 + $0xc] sm:$0xf]
        %v2070 = vunpack.c.l.b16 %v1800
        %v2071 = vunpack.c.l.b16 %v1809
        %v2072 = vunpack.c.l.b16 %v1817
        %v2073 = vunpack.c.l.b16 %v1826
        %v2074 = vunpack.c.l.b16 %v1834
        %v2075 = vunpack.c.l.b16 %v1843
        %v2076 = vunpack.c.l.b16 %v1851
        %v2077 = vunpack.c.l.b16 %v1860
        %v2078 = vunpack.c.l.b16 %v1868
        %v2079 = vunpack.c.l.b16 %v1877
        %v2080 = vunpack.c.l.b16 %v1885
        %v2081 = vunpack.c.l.b16 %v1894
        %v2082 = vunpack.c.l.b16 %v1902
        %v2083 = vunpack.c.l.b16 %v1911
        %v2084 = vunpack.c.l.b16 %v1919
        %v2085 = vunpack.c.l.b16 %v1928
        %v2086 = vunpack.c.l.b16 %v1936
        %v2087 = vunpack.c.l.b16 %v1945
        %v2088 = vunpack.c.l.b16 %v1953
        %v2089 = vunpack.c.l.b16 %v1962
        %v2090 = vunpack.c.l.b16 %v1970
        %v2091 = vunpack.c.l.b16 %v1979
        %v2092 = vunpack.c.l.b16 %v1987
        %v2093 = vunpack.c.l.b16 %v1996
        %v2094 = vunpack.c.l.b16 %v2004
        %v2095 = vunpack.c.l.b16 %v2013
        %v2096 = vunpack.c.l.b16 %v2021
        %v2097 = vunpack.c.l.b16 %v2030
        %v2098 = vunpack.c.l.b16 %v2038
        %v2099 = vunpack.c.l.b16 %v2047
        %v2100 = vunpack.c.l.b16 %v2055
        %v2101 = vunpack.c.l.b16 %v2064
        %v2102 = vpack.c.b16 %v2071, %v2070
        %v2103 = vpack.c.b16 %v2073, %v2072
        %v2104 = vpack.c.b16 %v2075, %v2074
        %v2105 = vpack.c.b16 %v2077, %v2076
        %v2106 = vpack.c.b16 %v2079, %v2078
        %v2107 = vpack.c.b16 %v2081, %v2080
        %v2108 = vpack.c.b16 %v2083, %v2082
        %v2109 = vpack.c.b16 %v2085, %v2084
        %v2110 = vpack.c.b16 %v2087, %v2086
        %v2111 = vpack.c.b16 %v2089, %v2088
        %v2112 = vpack.c.b16 %v2091, %v2090
        %v2113 = vpack.c.b16 %v2093, %v2092
        %v2114 = vpack.c.b16 %v2095, %v2094
        %v2115 = vpack.c.b16 %v2097, %v2096
        %v2116 = vpack.c.b16 %v2099, %v2098
        %v2117 = vpack.c.b16 %v2101, %v2100
        %v2122 = vunpack.c.l.b16 %v2066
        %v2123 = vunpack.c.l.b16 %v2067
        %v2124 = vunpack.c.l.b16 %v2068
        %v2125 = vunpack.c.l.b16 %v2069
        %v2126 = vpack.c.b16 %v2123, %v2122
        %v2127 = vpack.c.b16 %v2125, %v2124
        %v2131 = vsel %vm1295, %v2102, 0
        %v2134 = vsel %vm1295, %v2103, 0
        %v2137 = vsel %vm1295, %v2104, 0
        %v2140 = vsel %vm1295, %v2105, 0
        %v2143 = vsel %vm1295, %v2106, 0
        %v2146 = vsel %vm1295, %v2107, 0
        %v2149 = vsel %vm1295, %v2108, 0
        %v2152 = vsel %vm1295, %v2109, 0
        %v2155 = vsel %vm1295, %v2110, 0
        %v2158 = vsel %vm1295, %v2111, 0
        %v2161 = vsel %vm1295, %v2112, 0
        %v2164 = vsel %vm1295, %v2113, 0
        %v2167 = vsel %vm1295, %v2114, 0
        %v2170 = vsel %vm1295, %v2115, 0
        %v2173 = vsel %vm1295, %v2116, 0
        %v2176 = vsel %vm1295, %v2117, 0
        %2178 = vmatprep.subr.bf16.mxu0 0
        %2179 = vmatpush1.bf16.msra.mxu0 0
        %2180 = vmatprep.subr.bf16.mxu0 0
        %2181 = vmatpush1.bf16.msra.mxu0 0
        %2182 = vmatprep.subr.bf16.mxu0 0
        %2183 = vmatpush1.bf16.msra.mxu0 0
        %2184 = vmatprep.subr.bf16.mxu0 0
        %2185 = vmatpush1.bf16.msra.mxu0 0
        %2186 = vmatprep.subr.bf16.mxu0 0
        %2187 = vmatpush1.bf16.msra.mxu0 0
        %2188 = vmatprep.subr.bf16.mxu0 0
        %2189 = vmatpush1.bf16.msra.mxu0 0
        %2190 = vmatprep.subr.bf16.mxu0 0
        %2191 = vmatpush1.bf16.msra.mxu0 %v2127
        %2192 = vmatprep.subr.bf16.mxu0 0
        %2193 = vmatpush1.bf16.msra.mxu0 %v2126
        %2194 = vmatprep.subr.bf16.mxu0 0
        %2195 = vmatpush2.bf16.msra.mxu0 0
        %2196 = vmatprep.subr.bf16.mxu0 0
        %2197 = vmatpush2.bf16.msra.mxu0 0
        %2198 = vmatprep.subr.bf16.mxu0 0
        %2199 = vmatpush2.bf16.msra.mxu0 0
        %2200 = vmatprep.subr.bf16.mxu0 0
        %2201 = vmatpush2.bf16.msra.mxu0 0
        %2202 = vmatprep.subr.bf16.mxu0 0
        %2203 = vmatpush2.bf16.msra.mxu0 0
        %2204 = vmatprep.subr.bf16.mxu0 0
        %2205 = vmatpush2.bf16.msra.mxu0 0
        %2206 = vmatprep.subr.bf16.mxu0 0
        %2207 = vmatpush2.bf16.msra.mxu0 0
        %2208 = vmatprep.subr.bf16.mxu0 0
        %2209 = vmatpush2.bf16.msra.mxu0 0
        %2210 = vmatprep.mubr.bf16.mxu0 0
        %2211 = vmatmul.mubr.bf16.gmra.mxu0 %v2131
        %v2212 = vpop.f32.mrf.mxu0
        %v2213 = vadd.f32 0.0, %v2212
        %v2214 = vpop.f32.mrf.mxu0
        %v2215 = vpop.f32.mrf.mxu0
        %v2216 = vadd.f32 0.0, %v2215
        %v2217 = vpop.f32.mrf.mxu0
        %2218 = vmatprep.mubr.bf16.mxu0 0
        %2219 = vmatmul.mubr.bf16.gmra.mxu0 %v2134
        %v2220 = vpop.f32.mrf.mxu0
        %v2221 = vadd.f32 0.0, %v2220
        %v2222 = vpop.f32.mrf.mxu0
        %v2223 = vpop.f32.mrf.mxu0
        %v2224 = vadd.f32 0.0, %v2223
        %v2225 = vpop.f32.mrf.mxu0
        %2226 = vmatprep.mubr.bf16.mxu0 0
        %2227 = vmatmul.mubr.bf16.gmra.mxu0 %v2137
        %v2228 = vpop.f32.mrf.mxu0
        %v2229 = vadd.f32 0.0, %v2228
        %v2230 = vpop.f32.mrf.mxu0
        %v2231 = vpop.f32.mrf.mxu0
        %v2232 = vadd.f32 0.0, %v2231
        %v2233 = vpop.f32.mrf.mxu0
        %2234 = vmatprep.mubr.bf16.mxu0 0
        %2235 = vmatmul.mubr.bf16.gmra.mxu0 %v2140
        %v2236 = vpop.f32.mrf.mxu0
        %v2237 = vadd.f32 0.0, %v2236
        %v2238 = vpop.f32.mrf.mxu0
        %v2239 = vpop.f32.mrf.mxu0
        %v2240 = vadd.f32 0.0, %v2239
        %v2241 = vpop.f32.mrf.mxu0
        %2242 = vmatprep.mubr.bf16.mxu0 0
        %2243 = vmatmul.mubr.bf16.gmra.mxu0 %v2143
        %v2244 = vpop.f32.mrf.mxu0
        %v2245 = vadd.f32 0.0, %v2244
        %v2246 = vpop.f32.mrf.mxu0
        %v2247 = vpop.f32.mrf.mxu0
        %v2248 = vadd.f32 0.0, %v2247
        %v2249 = vpop.f32.mrf.mxu0
        %2250 = vmatprep.mubr.bf16.mxu0 0
        %2251 = vmatmul.mubr.bf16.gmra.mxu0 %v2146
        %v2252 = vpop.f32.mrf.mxu0
        %v2253 = vadd.f32 0.0, %v2252
        %v2254 = vpop.f32.mrf.mxu0
        %v2255 = vpop.f32.mrf.mxu0
        %v2256 = vadd.f32 0.0, %v2255
        %v2257 = vpop.f32.mrf.mxu0
        %2258 = vmatprep.mubr.bf16.mxu0 0
        %2259 = vmatmul.mubr.bf16.gmra.mxu0 %v2149
        %v2260 = vpop.f32.mrf.mxu0
        %v2261 = vadd.f32 0.0, %v2260
        %v2262 = vpop.f32.mrf.mxu0
        %v2263 = vpop.f32.mrf.mxu0
        %v2264 = vadd.f32 0.0, %v2263
        %v2265 = vpop.f32.mrf.mxu0
        %2266 = vmatprep.mubr.bf16.mxu0 0
        %2267 = vmatmul.mubr.bf16.gmra.mxu0 %v2152
        %v2268 = vpop.f32.mrf.mxu0
        %v2269 = vadd.f32 0.0, %v2268
        %v2270 = vpop.f32.mrf.mxu0
        %v2271 = vpop.f32.mrf.mxu0
        %v2272 = vadd.f32 0.0, %v2271
        %v2273 = vpop.f32.mrf.mxu0
        %2274 = vmatprep.mubr.bf16.mxu0 0
        %2275 = vmatmul.mubr.bf16.gmra.mxu0 %v2155
        %v2276 = vpop.f32.mrf.mxu0
        %v2277 = vadd.f32 0.0, %v2276
        %v2278 = vpop.f32.mrf.mxu0
        %v2279 = vpop.f32.mrf.mxu0
        %v2280 = vadd.f32 0.0, %v2279
        %v2281 = vpop.f32.mrf.mxu0
        %2282 = vmatprep.mubr.bf16.mxu0 0
        %2283 = vmatmul.mubr.bf16.gmra.mxu0 %v2158
        %v2284 = vpop.f32.mrf.mxu0
        %v2285 = vadd.f32 0.0, %v2284
        %v2286 = vpop.f32.mrf.mxu0
        %v2287 = vpop.f32.mrf.mxu0
        %v2288 = vadd.f32 0.0, %v2287
        %v2289 = vpop.f32.mrf.mxu0
        %2290 = vmatprep.mubr.bf16.mxu0 0
        %2291 = vmatmul.mubr.bf16.gmra.mxu0 %v2161
        %v2292 = vpop.f32.mrf.mxu0
        %v2293 = vadd.f32 0.0, %v2292
        %v2294 = vpop.f32.mrf.mxu0
        %v2295 = vpop.f32.mrf.mxu0
        %v2296 = vadd.f32 0.0, %v2295
        %v2297 = vpop.f32.mrf.mxu0
        %2298 = vmatprep.mubr.bf16.mxu0 0
        %2299 = vmatmul.mubr.bf16.gmra.mxu0 %v2164
        %v2300 = vpop.f32.mrf.mxu0
        %v2301 = vadd.f32 0.0, %v2300
        %v2302 = vpop.f32.mrf.mxu0
        %v2303 = vpop.f32.mrf.mxu0
        %v2304 = vadd.f32 0.0, %v2303
        %v2305 = vpop.f32.mrf.mxu0
        %2306 = vmatprep.mubr.bf16.mxu0 0
        %2307 = vmatmul.mubr.bf16.gmra.mxu0 %v2167
        %v2308 = vpop.f32.mrf.mxu0
        %v2309 = vadd.f32 0.0, %v2308
        %v2310 = vpop.f32.mrf.mxu0
        %v2311 = vpop.f32.mrf.mxu0
        %v2312 = vadd.f32 0.0, %v2311
        %v2313 = vpop.f32.mrf.mxu0
        %2314 = vmatprep.mubr.bf16.mxu0 0
        %2315 = vmatmul.mubr.bf16.gmra.mxu0 %v2170
        %v2316 = vpop.f32.mrf.mxu0
        %v2317 = vadd.f32 0.0, %v2316
        %v2318 = vpop.f32.mrf.mxu0
        %v2319 = vpop.f32.mrf.mxu0
        %v2320 = vadd.f32 0.0, %v2319
        %v2321 = vpop.f32.mrf.mxu0
        %2322 = vmatprep.mubr.bf16.mxu0 0
        %2323 = vmatmul.mubr.bf16.gmra.mxu0 %v2173
        %v2324 = vpop.f32.mrf.mxu0
        %v2325 = vadd.f32 0.0, %v2324
        %v2326 = vpop.f32.mrf.mxu0
        %v2327 = vpop.f32.mrf.mxu0
        %v2328 = vadd.f32 0.0, %v2327
        %v2329 = vpop.f32.mrf.mxu0
        %2330 = vmatprep.mubr.bf16.mxu0 0
        %2331 = vmatmul.mubr.bf16.gmra.mxu0 %v2176
        %v2332 = vpop.f32.mrf.mxu0
        %v2333 = vadd.f32 0.0, %v2332
        %v2334 = vpop.f32.mrf.mxu0
        %v2335 = vpop.f32.mrf.mxu0
        %v2336 = vadd.f32 0.0, %v2335
        %v2337 = vpop.f32.mrf.mxu0
        %2338 = vdwg.mxu0
        %v2339 = vadd.f32 %v1648, %v2213
        %v2340 = vadd.f32 %v1651, %v2216
        %v2341 = vadd.f32 %v1656, %v2221
        %v2342 = vadd.f32 %v1659, %v2224
        %v2343 = vadd.f32 %v1664, %v2229
        %v2344 = vadd.f32 %v1667, %v2232
        %v2345 = vadd.f32 %v1672, %v2237
        %v2346 = vadd.f32 %v1675, %v2240
        %v2347 = vadd.f32 %v1680, %v2245
        %v2348 = vadd.f32 %v1683, %v2248
        %v2349 = vadd.f32 %v1688, %v2253
        %v2350 = vadd.f32 %v1691, %v2256
        %v2351 = vadd.f32 %v1696, %v2261
        %v2352 = vadd.f32 %v1699, %v2264
        %v2353 = vadd.f32 %v1704, %v2269
        %v2354 = vadd.f32 %v1707, %v2272
        %v2355 = vadd.f32 %v1712, %v2277
        %v2356 = vadd.f32 %v1715, %v2280
        %v2357 = vadd.f32 %v1720, %v2285
        %v2358 = vadd.f32 %v1723, %v2288
        %v2359 = vadd.f32 %v1728, %v2293
        %v2360 = vadd.f32 %v1731, %v2296
        %v2361 = vadd.f32 %v1736, %v2301
        %v2362 = vadd.f32 %v1739, %v2304
        %v2363 = vadd.f32 %v1744, %v2309
        %v2364 = vadd.f32 %v1747, %v2312
        %v2365 = vadd.f32 %v1752, %v2317
        %v2366 = vadd.f32 %v1755, %v2320
        %v2367 = vadd.f32 %v1760, %v2325
        %v2368 = vadd.f32 %v1763, %v2328
        %v2369 = vadd.f32 %v1768, %v2333
        %v2370 = vadd.f32 %v1771, %v2336
        %s2371 = scalar_lea.vmem %s1, 48
        %v2372 = vld [vmem:[%s2371] sm:$0xf]
        %v2373 = vld [vmem:[%s2371 + $0x4] sm:$0xf]
        %v2374 = vld [vmem:[%s2371 + $0x8] sm:$0xf]
        %v2375 = vld [vmem:[%s2371 + $0xc] sm:$0xf]
        %v2392 = vunpack.c.l.b16 %v549
        %v2393 = vunpack.c.l.b16 %v1774
        %v2394 = vunpack.c.l.b16 %v552
        %v2395 = vunpack.c.l.b16 %v1775
        %v2396 = vunpack.c.l.b16 %v555
        %v2397 = vunpack.c.l.b16 %v1776
        %v2398 = vunpack.c.l.b16 %v558
        %v2399 = vunpack.c.l.b16 %v1777
        %v2400 = vunpack.c.l.b16 %v561
        %v2401 = vunpack.c.l.b16 %v1778
        %v2402 = vunpack.c.l.b16 %v564
        %v2403 = vunpack.c.l.b16 %v1779
        %v2404 = vunpack.c.l.b16 %v567
        %v2405 = vunpack.c.l.b16 %v1780
        %v2406 = vunpack.c.l.b16 %v570
        %v2407 = vunpack.c.l.b16 %v1781
        %v2408 = vunpack.c.l.b16 %v573
        %v2409 = vunpack.c.l.b16 %v1782
        %v2410 = vunpack.c.l.b16 %v576
        %v2411 = vunpack.c.l.b16 %v1783
        %v2412 = vunpack.c.l.b16 %v579
        %v2413 = vunpack.c.l.b16 %v1784
        %v2414 = vunpack.c.l.b16 %v582
        %v2415 = vunpack.c.l.b16 %v1785
        %v2416 = vunpack.c.l.b16 %v585
        %v2417 = vunpack.c.l.b16 %v1786
        %v2418 = vunpack.c.l.b16 %v588
        %v2419 = vunpack.c.l.b16 %v1787
        %v2420 = vunpack.c.l.b16 %v591
        %v2421 = vunpack.c.l.b16 %v1788
        %v2422 = vunpack.c.l.b16 %v594
        %v2423 = vunpack.c.l.b16 %v1789
        %v2424 = vpack.c.b16 %v2393, %v2392
        %v2425 = vpack.c.b16 %v2395, %v2394
        %v2426 = vpack.c.b16 %v2397, %v2396
        %v2427 = vpack.c.b16 %v2399, %v2398
        %v2428 = vpack.c.b16 %v2401, %v2400
        %v2429 = vpack.c.b16 %v2403, %v2402
        %v2430 = vpack.c.b16 %v2405, %v2404
        %v2431 = vpack.c.b16 %v2407, %v2406
        %v2432 = vpack.c.b16 %v2409, %v2408
        %v2433 = vpack.c.b16 %v2411, %v2410
        %v2434 = vpack.c.b16 %v2413, %v2412
        %v2435 = vpack.c.b16 %v2415, %v2414
        %v2436 = vpack.c.b16 %v2417, %v2416
        %v2437 = vpack.c.b16 %v2419, %v2418
        %v2438 = vpack.c.b16 %v2421, %v2420
        %v2439 = vpack.c.b16 %v2423, %v2422
        %v2444 = vunpack.c.l.b16 %v2372
        %v2445 = vunpack.c.l.b16 %v2373
        %v2446 = vunpack.c.l.b16 %v2374
        %v2447 = vunpack.c.l.b16 %v2375
        %v2448 = vpack.c.b16 %v2445, %v2444
        %v2449 = vpack.c.b16 %v2447, %v2446
        %v2453 = vsel %vm1295, %v2424, 0
        %v2456 = vsel %vm1295, %v2425, 0
        %v2459 = vsel %vm1295, %v2426, 0
        %v2462 = vsel %vm1295, %v2427, 0
        %v2465 = vsel %vm1295, %v2428, 0
        %v2468 = vsel %vm1295, %v2429, 0
        %v2471 = vsel %vm1295, %v2430, 0
        %v2474 = vsel %vm1295, %v2431, 0
        %v2477 = vsel %vm1295, %v2432, 0
        %v2480 = vsel %vm1295, %v2433, 0
        %v2483 = vsel %vm1295, %v2434, 0
        %v2486 = vsel %vm1295, %v2435, 0
        %v2489 = vsel %vm1295, %v2436, 0
        %v2492 = vsel %vm1295, %v2437, 0
        %v2495 = vsel %vm1295, %v2438, 0
        %v2498 = vsel %vm1295, %v2439, 0
        %2500 = vmatprep.subr.bf16.mxu0 0
        %2501 = vmatpush1.bf16.msra.mxu0 0
        %2502 = vmatprep.subr.bf16.mxu0 0
        %2503 = vmatpush1.bf16.msra.mxu0 0
        %2504 = vmatprep.subr.bf16.mxu0 0
        %2505 = vmatpush1.bf16.msra.mxu0 0
        %2506 = vmatprep.subr.bf16.mxu0 0
        %2507 = vmatpush1.bf16.msra.mxu0 0
        %2508 = vmatprep.subr.bf16.mxu0 0
        %2509 = vmatpush1.bf16.msra.mxu0 0
        %2510 = vmatprep.subr.bf16.mxu0 0
        %2511 = vmatpush1.bf16.msra.mxu0 0
        %2512 = vmatprep.subr.bf16.mxu0 0
        %2513 = vmatpush1.bf16.msra.mxu0 %v2449
        %2514 = vmatprep.subr.bf16.mxu0 0
        %2515 = vmatpush1.bf16.msra.mxu0 %v2448
        %2516 = vmatprep.subr.bf16.mxu0 0
        %2517 = vmatpush2.bf16.msra.mxu0 0
        %2518 = vmatprep.subr.bf16.mxu0 0
        %2519 = vmatpush2.bf16.msra.mxu0 0
        %2520 = vmatprep.subr.bf16.mxu0 0
        %2521 = vmatpush2.bf16.msra.mxu0 0
        %2522 = vmatprep.subr.bf16.mxu0 0
        %2523 = vmatpush2.bf16.msra.mxu0 0
        %2524 = vmatprep.subr.bf16.mxu0 0
        %2525 = vmatpush2.bf16.msra.mxu0 0
        %2526 = vmatprep.subr.bf16.mxu0 0
        %2527 = vmatpush2.bf16.msra.mxu0 0
        %2528 = vmatprep.subr.bf16.mxu0 0
        %2529 = vmatpush2.bf16.msra.mxu0 0
        %2530 = vmatprep.subr.bf16.mxu0 0
        %2531 = vmatpush2.bf16.msra.mxu0 0
        %2532 = vmatprep.mubr.bf16.mxu0 0
        %2533 = vmatmul.mubr.bf16.gmra.mxu0 %v2453
        %v2534 = vpop.f32.mrf.mxu0
        %v2535 = vadd.f32 0.0, %v2534
        %v2536 = vpop.f32.mrf.mxu0
        %v2537 = vpop.f32.mrf.mxu0
        %v2538 = vadd.f32 0.0, %v2537
        %v2539 = vpop.f32.mrf.mxu0
        %2540 = vmatprep.mubr.bf16.mxu0 0
        %2541 = vmatmul.mubr.bf16.gmra.mxu0 %v2456
        %v2542 = vpop.f32.mrf.mxu0
        %v2543 = vadd.f32 0.0, %v2542
        %v2544 = vpop.f32.mrf.mxu0
        %v2545 = vpop.f32.mrf.mxu0
        %v2546 = vadd.f32 0.0, %v2545
        %v2547 = vpop.f32.mrf.mxu0
        %2548 = vmatprep.mubr.bf16.mxu0 0
        %2549 = vmatmul.mubr.bf16.gmra.mxu0 %v2459
        %v2550 = vpop.f32.mrf.mxu0
        %v2551 = vadd.f32 0.0, %v2550
        %v2552 = vpop.f32.mrf.mxu0
        %v2553 = vpop.f32.mrf.mxu0
        %v2554 = vadd.f32 0.0, %v2553
        %v2555 = vpop.f32.mrf.mxu0
        %2556 = vmatprep.mubr.bf16.mxu0 0
        %2557 = vmatmul.mubr.bf16.gmra.mxu0 %v2462
        %v2558 = vpop.f32.mrf.mxu0
        %v2559 = vadd.f32 0.0, %v2558
        %v2560 = vpop.f32.mrf.mxu0
        %v2561 = vpop.f32.mrf.mxu0
        %v2562 = vadd.f32 0.0, %v2561
        %v2563 = vpop.f32.mrf.mxu0
        %2564 = vmatprep.mubr.bf16.mxu0 0
        %2565 = vmatmul.mubr.bf16.gmra.mxu0 %v2465
        %v2566 = vpop.f32.mrf.mxu0
        %v2567 = vadd.f32 0.0, %v2566
        %v2568 = vpop.f32.mrf.mxu0
        %v2569 = vpop.f32.mrf.mxu0
        %v2570 = vadd.f32 0.0, %v2569
        %v2571 = vpop.f32.mrf.mxu0
        %2572 = vmatprep.mubr.bf16.mxu0 0
        %2573 = vmatmul.mubr.bf16.gmra.mxu0 %v2468
        %v2574 = vpop.f32.mrf.mxu0
        %v2575 = vadd.f32 0.0, %v2574
        %v2576 = vpop.f32.mrf.mxu0
        %v2577 = vpop.f32.mrf.mxu0
        %v2578 = vadd.f32 0.0, %v2577
        %v2579 = vpop.f32.mrf.mxu0
        %2580 = vmatprep.mubr.bf16.mxu0 0
        %2581 = vmatmul.mubr.bf16.gmra.mxu0 %v2471
        %v2582 = vpop.f32.mrf.mxu0
        %v2583 = vadd.f32 0.0, %v2582
        %v2584 = vpop.f32.mrf.mxu0
        %v2585 = vpop.f32.mrf.mxu0
        %v2586 = vadd.f32 0.0, %v2585
        %v2587 = vpop.f32.mrf.mxu0
        %2588 = vmatprep.mubr.bf16.mxu0 0
        %2589 = vmatmul.mubr.bf16.gmra.mxu0 %v2474
        %v2590 = vpop.f32.mrf.mxu0
        %v2591 = vadd.f32 0.0, %v2590
        %v2592 = vpop.f32.mrf.mxu0
        %v2593 = vpop.f32.mrf.mxu0
        %v2594 = vadd.f32 0.0, %v2593
        %v2595 = vpop.f32.mrf.mxu0
        %2596 = vmatprep.mubr.bf16.mxu0 0
        %2597 = vmatmul.mubr.bf16.gmra.mxu0 %v2477
        %v2598 = vpop.f32.mrf.mxu0
        %v2599 = vadd.f32 0.0, %v2598
        %v2600 = vpop.f32.mrf.mxu0
        %v2601 = vpop.f32.mrf.mxu0
        %v2602 = vadd.f32 0.0, %v2601
        %v2603 = vpop.f32.mrf.mxu0
        %2604 = vmatprep.mubr.bf16.mxu0 0
        %2605 = vmatmul.mubr.bf16.gmra.mxu0 %v2480
        %v2606 = vpop.f32.mrf.mxu0
        %v2607 = vadd.f32 0.0, %v2606
        %v2608 = vpop.f32.mrf.mxu0
        %v2609 = vpop.f32.mrf.mxu0
        %v2610 = vadd.f32 0.0, %v2609
        %v2611 = vpop.f32.mrf.mxu0
        %2612 = vmatprep.mubr.bf16.mxu0 0
        %2613 = vmatmul.mubr.bf16.gmra.mxu0 %v2483
        %v2614 = vpop.f32.mrf.mxu0
        %v2615 = vadd.f32 0.0, %v2614
        %v2616 = vpop.f32.mrf.mxu0
        %v2617 = vpop.f32.mrf.mxu0
        %v2618 = vadd.f32 0.0, %v2617
        %v2619 = vpop.f32.mrf.mxu0
        %2620 = vmatprep.mubr.bf16.mxu0 0
        %2621 = vmatmul.mubr.bf16.gmra.mxu0 %v2486
        %v2622 = vpop.f32.mrf.mxu0
        %v2623 = vadd.f32 0.0, %v2622
        %v2624 = vpop.f32.mrf.mxu0
        %v2625 = vpop.f32.mrf.mxu0
        %v2626 = vadd.f32 0.0, %v2625
        %v2627 = vpop.f32.mrf.mxu0
        %2628 = vmatprep.mubr.bf16.mxu0 0
        %2629 = vmatmul.mubr.bf16.gmra.mxu0 %v2489
        %v2630 = vpop.f32.mrf.mxu0
        %v2631 = vadd.f32 0.0, %v2630
        %v2632 = vpop.f32.mrf.mxu0
        %v2633 = vpop.f32.mrf.mxu0
        %v2634 = vadd.f32 0.0, %v2633
        %v2635 = vpop.f32.mrf.mxu0
        %2636 = vmatprep.mubr.bf16.mxu0 0
        %2637 = vmatmul.mubr.bf16.gmra.mxu0 %v2492
        %v2638 = vpop.f32.mrf.mxu0
        %v2639 = vadd.f32 0.0, %v2638
        %v2640 = vpop.f32.mrf.mxu0
        %v2641 = vpop.f32.mrf.mxu0
        %v2642 = vadd.f32 0.0, %v2641
        %v2643 = vpop.f32.mrf.mxu0
        %2644 = vmatprep.mubr.bf16.mxu0 0
        %2645 = vmatmul.mubr.bf16.gmra.mxu0 %v2495
        %v2646 = vpop.f32.mrf.mxu0
        %v2647 = vadd.f32 0.0, %v2646
        %v2648 = vpop.f32.mrf.mxu0
        %v2649 = vpop.f32.mrf.mxu0
        %v2650 = vadd.f32 0.0, %v2649
        %v2651 = vpop.f32.mrf.mxu0
        %2652 = vmatprep.mubr.bf16.mxu0 0
        %2653 = vmatmul.mubr.bf16.gmra.mxu0 %v2498
        %v2654 = vpop.f32.mrf.mxu0
        %v2655 = vadd.f32 0.0, %v2654
        %v2656 = vpop.f32.mrf.mxu0
        %v2657 = vpop.f32.mrf.mxu0
        %v2658 = vadd.f32 0.0, %v2657
        %v2659 = vpop.f32.mrf.mxu0
        %2660 = vdwg.mxu0
        %v2661 = vadd.f32 %v2339, %v2535
        %v2662 = vadd.f32 %v2340, %v2538
        %v2663 = vadd.f32 %v2341, %v2543
        %v2664 = vadd.f32 %v2342, %v2546
        %v2665 = vadd.f32 %v2343, %v2551
        %v2666 = vadd.f32 %v2344, %v2554
        %v2667 = vadd.f32 %v2345, %v2559
        %v2668 = vadd.f32 %v2346, %v2562
        %v2669 = vadd.f32 %v2347, %v2567
        %v2670 = vadd.f32 %v2348, %v2570
        %v2671 = vadd.f32 %v2349, %v2575
        %v2672 = vadd.f32 %v2350, %v2578
        %v2673 = vadd.f32 %v2351, %v2583
        %v2674 = vadd.f32 %v2352, %v2586
        %v2675 = vadd.f32 %v2353, %v2591
        %v2676 = vadd.f32 %v2354, %v2594
        %v2677 = vadd.f32 %v2355, %v2599
        %v2678 = vadd.f32 %v2356, %v2602
        %v2679 = vadd.f32 %v2357, %v2607
        %v2680 = vadd.f32 %v2358, %v2610
        %v2681 = vadd.f32 %v2359, %v2615
        %v2682 = vadd.f32 %v2360, %v2618
        %v2683 = vadd.f32 %v2361, %v2623
        %v2684 = vadd.f32 %v2362, %v2626
        %v2685 = vadd.f32 %v2363, %v2631
        %v2686 = vadd.f32 %v2364, %v2634
        %v2687 = vadd.f32 %v2365, %v2639
        %v2688 = vadd.f32 %v2366, %v2642
        %v2689 = vadd.f32 %v2367, %v2647
        %v2690 = vadd.f32 %v2368, %v2650
        %v2691 = vadd.f32 %v2369, %v2655
        %v2692 = vadd.f32 %v2370, %v2658
        %v2693 = vld [vmem:[#allocation2 + $0x8] sm:$0xf]
        %v2694 = vld [vmem:[#allocation2 + $0xc] sm:$0xf]
        %v2695 = vld [vmem:[#allocation2 + $0x10] sm:$0x1]
        %v2696 = vld [vmem:[#allocation2 + $0x20] sm:$0xf]
        %v2697 = vld [vmem:[#allocation2 + $0x24] sm:$0xf]
        %v2698 = vld [vmem:[#allocation2 + $0x28] sm:$0x1]
        %v2699 = vld [vmem:[#allocation2 + $0x38] sm:$0xf]
        %v2700 = vld [vmem:[#allocation2 + $0x3c] sm:$0xf]
        %v2701 = vld [vmem:[#allocation2 + $0x40] sm:$0x1]
        %v2702 = vld [vmem:[#allocation2 + $0x50] sm:$0xf]
        %v2703 = vld [vmem:[#allocation2 + $0x54] sm:$0xf]
        %v2704 = vld [vmem:[#allocation2 + $0x58] sm:$0x1]
        %v2705 = vld [vmem:[#allocation2 + $0x68] sm:$0xf]
        %v2706 = vld [vmem:[#allocation2 + $0x6c] sm:$0xf]
        %v2707 = vld [vmem:[#allocation2 + $0x70] sm:$0x1]
        %v2708 = vld [vmem:[#allocation2 + $0x80] sm:$0xf]
        %v2709 = vld [vmem:[#allocation2 + $0x84] sm:$0xf]
        %v2710 = vld [vmem:[#allocation2 + $0x88] sm:$0x1]
        %v2711 = vld [vmem:[#allocation2 + $0x98] sm:$0xf]
        %v2712 = vld [vmem:[#allocation2 + $0x9c] sm:$0xf]
        %v2713 = vld [vmem:[#allocation2 + $0xa0] sm:$0x1]
        %v2714 = vld [vmem:[#allocation2 + $0xb0] sm:$0xf]
        %v2715 = vld [vmem:[#allocation2 + $0xb4] sm:$0xf]
        %v2716 = vld [vmem:[#allocation2 + $0xb8] sm:$0x1]
        %v2717 = vld [vmem:[#allocation2 + $0xc8] sm:$0xf]
        %v2718 = vld [vmem:[#allocation2 + $0xcc] sm:$0xf]
        %v2719 = vld [vmem:[#allocation2 + $0xd0] sm:$0x1]
        %v2720 = vld [vmem:[#allocation2 + $0xe0] sm:$0xf]
        %v2721 = vld [vmem:[#allocation2 + $0xe4] sm:$0xf]
        %v2722 = vld [vmem:[#allocation2 + $0xe8] sm:$0x1]
        %v2723 = vld [vmem:[#allocation2 + $0xf8] sm:$0xf]
        %v2724 = vld [vmem:[#allocation2 + $0xfc] sm:$0xf]
        %v2725 = vld [vmem:[#allocation2 + $0x100] sm:$0x1]
        %v2726 = vld [vmem:[#allocation2 + $0x110] sm:$0xf]
        %v2727 = vld [vmem:[#allocation2 + $0x114] sm:$0xf]
        %v2728 = vld [vmem:[#allocation2 + $0x118] sm:$0x1]
        %v2729 = vld [vmem:[#allocation2 + $0x128] sm:$0xf]
        %v2730 = vld [vmem:[#allocation2 + $0x12c] sm:$0xf]
        %v2731 = vld [vmem:[#allocation2 + $0x130] sm:$0x1]
        %v2732 = vld [vmem:[#allocation2 + $0x140] sm:$0xf]
        %v2733 = vld [vmem:[#allocation2 + $0x144] sm:$0xf]
        %v2734 = vld [vmem:[#allocation2 + $0x148] sm:$0x1]
        %v2735 = vld [vmem:[#allocation2 + $0x158] sm:$0xf]
        %v2736 = vld [vmem:[#allocation2 + $0x15c] sm:$0xf]
        %v2737 = vld [vmem:[#allocation2 + $0x160] sm:$0x1]
        %v2738 = vld [vmem:[#allocation2 + $0x170] sm:$0xf]
        %v2739 = vld [vmem:[#allocation2 + $0x174] sm:$0xf]
        %v2740 = vld [vmem:[#allocation2 + $0x178] sm:$0x1]
        %vm2741 = vsmask.f32 3328
        %vm2742 = vsmask.f32 7440
        %vm2743 = vmor %vm2741, %vm2742
        %v2745 = vshrl.u32 %v2693, 16
        %v2747 = vrot.slane %v2745, 4
        %v2748 = vshll.u32 %v2693, 16
        %v2750 = vrot.slane %v2748, 5
        %v2751 = vor.u32 %v2747, %v2750
        %v2752 = vrot.slane %v2751, 4
        %v2754 = vshll.u32 %v2694, 16
        %v2756 = vrot.slane %v2754, 5
        %v2757 = vsel %vm2743, %v2752, %v2756
        %v2758 = vshrl.u32 %v2694, 16
        %v2760 = vrot.slane %v2758, 4
        %v2761 = vor.u32 %v2760, %v2756
        %v2762 = vrot.slane %v2761, 4
        %v2764 = vshll.u32 %v2695, 16
        %v2766 = vrot.slane %v2764, 5
        %v2767 = vsel %vm2743, %v2762, %v2766
        %v2769 = vshrl.u32 %v2696, 16
        %v2771 = vrot.slane %v2769, 4
        %v2772 = vshll.u32 %v2696, 16
        %v2774 = vrot.slane %v2772, 5
        %v2775 = vor.u32 %v2771, %v2774
        %v2776 = vrot.slane %v2775, 4
        %v2778 = vshll.u32 %v2697, 16
        %v2780 = vrot.slane %v2778, 5
        %v2781 = vsel %vm2743, %v2776, %v2780
        %v2782 = vshrl.u32 %v2697, 16
        %v2784 = vrot.slane %v2782, 4
        %v2785 = vor.u32 %v2784, %v2780
        %v2786 = vrot.slane %v2785, 4
        %v2788 = vshll.u32 %v2698, 16
        %v2790 = vrot.slane %v2788, 5
        %v2791 = vsel %vm2743, %v2786, %v2790
        %v2793 = vshrl.u32 %v2699, 16
        %v2795 = vrot.slane %v2793, 4
        %v2796 = vshll.u32 %v2699, 16
        %v2798 = vrot.slane %v2796, 5
        %v2799 = vor.u32 %v2795, %v2798
        %v2800 = vrot.slane %v2799, 4
        %v2802 = vshll.u32 %v2700, 16
        %v2804 = vrot.slane %v2802, 5
        %v2805 = vsel %vm2743, %v2800, %v2804
        %v2806 = vshrl.u32 %v2700, 16
        %v2808 = vrot.slane %v2806, 4
        %v2809 = vor.u32 %v2808, %v2804
        %v2810 = vrot.slane %v2809, 4
        %v2812 = vshll.u32 %v2701, 16
        %v2814 = vrot.slane %v2812, 5
        %v2815 = vsel %vm2743, %v2810, %v2814
        %v2817 = vshrl.u32 %v2702, 16
        %v2819 = vrot.slane %v2817, 4
        %v2820 = vshll.u32 %v2702, 16
        %v2822 = vrot.slane %v2820, 5
        %v2823 = vor.u32 %v2819, %v2822
        %v2824 = vrot.slane %v2823, 4
        %v2826 = vshll.u32 %v2703, 16
        %v2828 = vrot.slane %v2826, 5
        %v2829 = vsel %vm2743, %v2824, %v2828
        %v2830 = vshrl.u32 %v2703, 16
        %v2832 = vrot.slane %v2830, 4
        %v2833 = vor.u32 %v2832, %v2828
        %v2834 = vrot.slane %v2833, 4
        %v2836 = vshll.u32 %v2704, 16
        %v2838 = vrot.slane %v2836, 5
        %v2839 = vsel %vm2743, %v2834, %v2838
        %v2841 = vshrl.u32 %v2705, 16
        %v2843 = vrot.slane %v2841, 4
        %v2844 = vshll.u32 %v2705, 16
        %v2846 = vrot.slane %v2844, 5
        %v2847 = vor.u32 %v2843, %v2846
        %v2848 = vrot.slane %v2847, 4
        %v2850 = vshll.u32 %v2706, 16
        %v2852 = vrot.slane %v2850, 5
        %v2853 = vsel %vm2743, %v2848, %v2852
        %v2854 = vshrl.u32 %v2706, 16
        %v2856 = vrot.slane %v2854, 4
        %v2857 = vor.u32 %v2856, %v2852
        %v2858 = vrot.slane %v2857, 4
        %v2860 = vshll.u32 %v2707, 16
        %v2862 = vrot.slane %v2860, 5
        %v2863 = vsel %vm2743, %v2858, %v2862
        %v2865 = vshrl.u32 %v2708, 16
        %v2867 = vrot.slane %v2865, 4
        %v2868 = vshll.u32 %v2708, 16
        %v2870 = vrot.slane %v2868, 5
        %v2871 = vor.u32 %v2867, %v2870
        %v2872 = vrot.slane %v2871, 4
        %v2874 = vshll.u32 %v2709, 16
        %v2876 = vrot.slane %v2874, 5
        %v2877 = vsel %vm2743, %v2872, %v2876
        %v2878 = vshrl.u32 %v2709, 16
        %v2880 = vrot.slane %v2878, 4
        %v2881 = vor.u32 %v2880, %v2876
        %v2882 = vrot.slane %v2881, 4
        %v2884 = vshll.u32 %v2710, 16
        %v2886 = vrot.slane %v2884, 5
        %v2887 = vsel %vm2743, %v2882, %v2886
        %v2889 = vshrl.u32 %v2711, 16
        %v2891 = vrot.slane %v2889, 4
        %v2892 = vshll.u32 %v2711, 16
        %v2894 = vrot.slane %v2892, 5
        %v2895 = vor.u32 %v2891, %v2894
        %v2896 = vrot.slane %v2895, 4
        %v2898 = vshll.u32 %v2712, 16
        %v2900 = vrot.slane %v2898, 5
        %v2901 = vsel %vm2743, %v2896, %v2900
        %v2902 = vshrl.u32 %v2712, 16
        %v2904 = vrot.slane %v2902, 4
        %v2905 = vor.u32 %v2904, %v2900
        %v2906 = vrot.slane %v2905, 4
        %v2908 = vshll.u32 %v2713, 16
        %v2910 = vrot.slane %v2908, 5
        %v2911 = vsel %vm2743, %v2906, %v2910
        %v2913 = vshrl.u32 %v2714, 16
        %v2915 = vrot.slane %v2913, 4
        %v2916 = vshll.u32 %v2714, 16
        %v2918 = vrot.slane %v2916, 5
        %v2919 = vor.u32 %v2915, %v2918
        %v2920 = vrot.slane %v2919, 4
        %v2922 = vshll.u32 %v2715, 16
        %v2924 = vrot.slane %v2922, 5
        %v2925 = vsel %vm2743, %v2920, %v2924
        %v2926 = vshrl.u32 %v2715, 16
        %v2928 = vrot.slane %v2926, 4
        %v2929 = vor.u32 %v2928, %v2924
        %v2930 = vrot.slane %v2929, 4
        %v2932 = vshll.u32 %v2716, 16
        %v2934 = vrot.slane %v2932, 5
        %v2935 = vsel %vm2743, %v2930, %v2934
        %v2937 = vshrl.u32 %v2717, 16
        %v2939 = vrot.slane %v2937, 4
        %v2940 = vshll.u32 %v2717, 16
        %v2942 = vrot.slane %v2940, 5
        %v2943 = vor.u32 %v2939, %v2942
        %v2944 = vrot.slane %v2943, 4
        %v2946 = vshll.u32 %v2718, 16
        %v2948 = vrot.slane %v2946, 5
        %v2949 = vsel %vm2743, %v2944, %v2948
        %v2950 = vshrl.u32 %v2718, 16
        %v2952 = vrot.slane %v2950, 4
        %v2953 = vor.u32 %v2952, %v2948
        %v2954 = vrot.slane %v2953, 4
        %v2956 = vshll.u32 %v2719, 16
        %v2958 = vrot.slane %v2956, 5
        %v2959 = vsel %vm2743, %v2954, %v2958
        %v2961 = vshrl.u32 %v2720, 16
        %v2963 = vrot.slane %v2961, 4
        %v2964 = vshll.u32 %v2720, 16
        %v2966 = vrot.slane %v2964, 5
        %v2967 = vor.u32 %v2963, %v2966
        %v2968 = vrot.slane %v2967, 4
        %v2970 = vshll.u32 %v2721, 16
        %v2972 = vrot.slane %v2970, 5
        %v2973 = vsel %vm2743, %v2968, %v2972
        %v2974 = vshrl.u32 %v2721, 16
        %v2976 = vrot.slane %v2974, 4
        %v2977 = vor.u32 %v2976, %v2972
        %v2978 = vrot.slane %v2977, 4
        %v2980 = vshll.u32 %v2722, 16
        %v2982 = vrot.slane %v2980, 5
        %v2983 = vsel %vm2743, %v2978, %v2982
        %v2985 = vshrl.u32 %v2723, 16
        %v2987 = vrot.slane %v2985, 4
        %v2988 = vshll.u32 %v2723, 16
        %v2990 = vrot.slane %v2988, 5
        %v2991 = vor.u32 %v2987, %v2990
        %v2992 = vrot.slane %v2991, 4
        %v2994 = vshll.u32 %v2724, 16
        %v2996 = vrot.slane %v2994, 5
        %v2997 = vsel %vm2743, %v2992, %v2996
        %v2998 = vshrl.u32 %v2724, 16
        %v3000 = vrot.slane %v2998, 4
        %v3001 = vor.u32 %v3000, %v2996
        %v3002 = vrot.slane %v3001, 4
        %v3004 = vshll.u32 %v2725, 16
        %v3006 = vrot.slane %v3004, 5
        %v3007 = vsel %vm2743, %v3002, %v3006
        %v3009 = vshrl.u32 %v2726, 16
        %v3011 = vrot.slane %v3009, 4
        %v3012 = vshll.u32 %v2726, 16
        %v3014 = vrot.slane %v3012, 5
        %v3015 = vor.u32 %v3011, %v3014
        %v3016 = vrot.slane %v3015, 4
        %v3018 = vshll.u32 %v2727, 16
        %v3020 = vrot.slane %v3018, 5
        %v3021 = vsel %vm2743, %v3016, %v3020
        %v3022 = vshrl.u32 %v2727, 16
        %v3024 = vrot.slane %v3022, 4
        %v3025 = vor.u32 %v3024, %v3020
        %v3026 = vrot.slane %v3025, 4
        %v3028 = vshll.u32 %v2728, 16
        %v3030 = vrot.slane %v3028, 5
        %v3031 = vsel %vm2743, %v3026, %v3030
        %v3033 = vshrl.u32 %v2729, 16
        %v3035 = vrot.slane %v3033, 4
        %v3036 = vshll.u32 %v2729, 16
        %v3038 = vrot.slane %v3036, 5
        %v3039 = vor.u32 %v3035, %v3038
        %v3040 = vrot.slane %v3039, 4
        %v3042 = vshll.u32 %v2730, 16
        %v3044 = vrot.slane %v3042, 5
        %v3045 = vsel %vm2743, %v3040, %v3044
        %v3046 = vshrl.u32 %v2730, 16
        %v3048 = vrot.slane %v3046, 4
        %v3049 = vor.u32 %v3048, %v3044
        %v3050 = vrot.slane %v3049, 4
        %v3052 = vshll.u32 %v2731, 16
        %v3054 = vrot.slane %v3052, 5
        %v3055 = vsel %vm2743, %v3050, %v3054
        %v3057 = vshrl.u32 %v2732, 16
        %v3059 = vrot.slane %v3057, 4
        %v3060 = vshll.u32 %v2732, 16
        %v3062 = vrot.slane %v3060, 5
        %v3063 = vor.u32 %v3059, %v3062
        %v3064 = vrot.slane %v3063, 4
        %v3066 = vshll.u32 %v2733, 16
        %v3068 = vrot.slane %v3066, 5
        %v3069 = vsel %vm2743, %v3064, %v3068
        %v3070 = vshrl.u32 %v2733, 16
        %v3072 = vrot.slane %v3070, 4
        %v3073 = vor.u32 %v3072, %v3068
        %v3074 = vrot.slane %v3073, 4
        %v3076 = vshll.u32 %v2734, 16
        %v3078 = vrot.slane %v3076, 5
        %v3079 = vsel %vm2743, %v3074, %v3078
        %v3081 = vshrl.u32 %v2735, 16
        %v3083 = vrot.slane %v3081, 4
        %v3084 = vshll.u32 %v2735, 16
        %v3086 = vrot.slane %v3084, 5
        %v3087 = vor.u32 %v3083, %v3086
        %v3088 = vrot.slane %v3087, 4
        %v3090 = vshll.u32 %v2736, 16
        %v3092 = vrot.slane %v3090, 5
        %v3093 = vsel %vm2743, %v3088, %v3092
        %v3094 = vshrl.u32 %v2736, 16
        %v3096 = vrot.slane %v3094, 4
        %v3097 = vor.u32 %v3096, %v3092
        %v3098 = vrot.slane %v3097, 4
        %v3100 = vshll.u32 %v2737, 16
        %v3102 = vrot.slane %v3100, 5
        %v3103 = vsel %vm2743, %v3098, %v3102
        %v3105 = vshrl.u32 %v2738, 16
        %v3107 = vrot.slane %v3105, 4
        %v3108 = vshll.u32 %v2738, 16
        %v3110 = vrot.slane %v3108, 5
        %v3111 = vor.u32 %v3107, %v3110
        %v3112 = vrot.slane %v3111, 4
        %v3114 = vshll.u32 %v2739, 16
        %v3116 = vrot.slane %v3114, 5
        %v3117 = vsel %vm2743, %v3112, %v3116
        %v3118 = vshrl.u32 %v2739, 16
        %v3120 = vrot.slane %v3118, 4
        %v3121 = vor.u32 %v3120, %v3116
        %v3122 = vrot.slane %v3121, 4
        %v3124 = vshll.u32 %v2740, 16
        %v3126 = vrot.slane %v3124, 5
        %v3127 = vsel %vm2743, %v3122, %v3126
        %s3128 = scalar_lea.vmem %s1, 64
        %v3129 = vld [vmem:[%s3128] sm:$0xf]
        %v3130 = vld [vmem:[%s3128 + $0x4] sm:$0xf]
        %v3131 = vld [vmem:[%s3128 + $0x8] sm:$0xf]
        %v3132 = vld [vmem:[%s3128 + $0xc] sm:$0xf]
        %v3133 = vunpack.c.l.b16 %v2757
        %v3134 = vunpack.c.l.b16 %v2767
        %v3135 = vunpack.c.l.b16 %v2781
        %v3136 = vunpack.c.l.b16 %v2791
        %v3137 = vunpack.c.l.b16 %v2805
        %v3138 = vunpack.c.l.b16 %v2815
        %v3139 = vunpack.c.l.b16 %v2829
        %v3140 = vunpack.c.l.b16 %v2839
        %v3141 = vunpack.c.l.b16 %v2853
        %v3142 = vunpack.c.l.b16 %v2863
        %v3143 = vunpack.c.l.b16 %v2877
        %v3144 = vunpack.c.l.b16 %v2887
        %v3145 = vunpack.c.l.b16 %v2901
        %v3146 = vunpack.c.l.b16 %v2911
        %v3147 = vunpack.c.l.b16 %v2925
        %v3148 = vunpack.c.l.b16 %v2935
        %v3149 = vunpack.c.l.b16 %v2949
        %v3150 = vunpack.c.l.b16 %v2959
        %v3151 = vunpack.c.l.b16 %v2973
        %v3152 = vunpack.c.l.b16 %v2983
        %v3153 = vunpack.c.l.b16 %v2997
        %v3154 = vunpack.c.l.b16 %v3007
        %v3155 = vunpack.c.l.b16 %v3021
        %v3156 = vunpack.c.l.b16 %v3031
        %v3157 = vunpack.c.l.b16 %v3045
        %v3158 = vunpack.c.l.b16 %v3055
        %v3159 = vunpack.c.l.b16 %v3069
        %v3160 = vunpack.c.l.b16 %v3079
        %v3161 = vunpack.c.l.b16 %v3093
        %v3162 = vunpack.c.l.b16 %v3103
        %v3163 = vunpack.c.l.b16 %v3117
        %v3164 = vunpack.c.l.b16 %v3127
        %v3165 = vpack.c.b16 %v3134, %v3133
        %v3166 = vpack.c.b16 %v3136, %v3135
        %v3167 = vpack.c.b16 %v3138, %v3137
        %v3168 = vpack.c.b16 %v3140, %v3139
        %v3169 = vpack.c.b16 %v3142, %v3141
        %v3170 = vpack.c.b16 %v3144, %v3143
        %v3171 = vpack.c.b16 %v3146, %v3145
        %v3172 = vpack.c.b16 %v3148, %v3147
        %v3173 = vpack.c.b16 %v3150, %v3149
        %v3174 = vpack.c.b16 %v3152, %v3151
        %v3175 = vpack.c.b16 %v3154, %v3153
        %v3176 = vpack.c.b16 %v3156, %v3155
        %v3177 = vpack.c.b16 %v3158, %v3157
        %v3178 = vpack.c.b16 %v3160, %v3159
        %v3179 = vpack.c.b16 %v3162, %v3161
        %v3180 = vpack.c.b16 %v3164, %v3163
        %v3185 = vunpack.c.l.b16 %v3129
        %v3186 = vunpack.c.l.b16 %v3130
        %v3187 = vunpack.c.l.b16 %v3131
        %v3188 = vunpack.c.l.b16 %v3132
        %v3189 = vpack.c.b16 %v3186, %v3185
        %v3190 = vpack.c.b16 %v3188, %v3187
        %v3194 = vsel %vm1295, %v3165, 0
        %v3197 = vsel %vm1295, %v3166, 0
        %v3200 = vsel %vm1295, %v3167, 0
        %v3203 = vsel %vm1295, %v3168, 0
        %v3206 = vsel %vm1295, %v3169, 0
        %v3209 = vsel %vm1295, %v3170, 0
        %v3212 = vsel %vm1295, %v3171, 0
        %v3215 = vsel %vm1295, %v3172, 0
        %v3218 = vsel %vm1295, %v3173, 0
        %v3221 = vsel %vm1295, %v3174, 0
        %v3224 = vsel %vm1295, %v3175, 0
        %v3227 = vsel %vm1295, %v3176, 0
        %v3230 = vsel %vm1295, %v3177, 0
        %v3233 = vsel %vm1295, %v3178, 0
        %v3236 = vsel %vm1295, %v3179, 0
        %v3239 = vsel %vm1295, %v3180, 0
        %3241 = vmatprep.subr.bf16.mxu0 0
        %3242 = vmatpush1.bf16.msra.mxu0 0
        %3243 = vmatprep.subr.bf16.mxu0 0
        %3244 = vmatpush1.bf16.msra.mxu0 0
        %3245 = vmatprep.subr.bf16.mxu0 0
        %3246 = vmatpush1.bf16.msra.mxu0 0
        %3247 = vmatprep.subr.bf16.mxu0 0
        %3248 = vmatpush1.bf16.msra.mxu0 0
        %3249 = vmatprep.subr.bf16.mxu0 0
        %3250 = vmatpush1.bf16.msra.mxu0 0
        %3251 = vmatprep.subr.bf16.mxu0 0
        %3252 = vmatpush1.bf16.msra.mxu0 0
        %3253 = vmatprep.subr.bf16.mxu0 0
        %3254 = vmatpush1.bf16.msra.mxu0 %v3190
        %3255 = vmatprep.subr.bf16.mxu0 0
        %3256 = vmatpush1.bf16.msra.mxu0 %v3189
        %3257 = vmatprep.subr.bf16.mxu0 0
        %3258 = vmatpush2.bf16.msra.mxu0 0
        %3259 = vmatprep.subr.bf16.mxu0 0
        %3260 = vmatpush2.bf16.msra.mxu0 0
        %3261 = vmatprep.subr.bf16.mxu0 0
        %3262 = vmatpush2.bf16.msra.mxu0 0
        %3263 = vmatprep.subr.bf16.mxu0 0
        %3264 = vmatpush2.bf16.msra.mxu0 0
        %3265 = vmatprep.subr.bf16.mxu0 0
        %3266 = vmatpush2.bf16.msra.mxu0 0
        %3267 = vmatprep.subr.bf16.mxu0 0
        %3268 = vmatpush2.bf16.msra.mxu0 0
        %3269 = vmatprep.subr.bf16.mxu0 0
        %3270 = vmatpush2.bf16.msra.mxu0 0
        %3271 = vmatprep.subr.bf16.mxu0 0
        %3272 = vmatpush2.bf16.msra.mxu0 0
        %3273 = vmatprep.mubr.bf16.mxu0 0
        %3274 = vmatmul.mubr.bf16.gmra.mxu0 %v3194
        %v3275 = vpop.f32.mrf.mxu0
        %v3276 = vadd.f32 0.0, %v3275
        %v3277 = vpop.f32.mrf.mxu0
        %v3278 = vpop.f32.mrf.mxu0
        %v3279 = vadd.f32 0.0, %v3278
        %v3280 = vpop.f32.mrf.mxu0
        %3281 = vmatprep.mubr.bf16.mxu0 0
        %3282 = vmatmul.mubr.bf16.gmra.mxu0 %v3197
        %v3283 = vpop.f32.mrf.mxu0
        %v3284 = vadd.f32 0.0, %v3283
        %v3285 = vpop.f32.mrf.mxu0
        %v3286 = vpop.f32.mrf.mxu0
        %v3287 = vadd.f32 0.0, %v3286
        %v3288 = vpop.f32.mrf.mxu0
        %3289 = vmatprep.mubr.bf16.mxu0 0
        %3290 = vmatmul.mubr.bf16.gmra.mxu0 %v3200
        %v3291 = vpop.f32.mrf.mxu0
        %v3292 = vadd.f32 0.0, %v3291
        %v3293 = vpop.f32.mrf.mxu0
        %v3294 = vpop.f32.mrf.mxu0
        %v3295 = vadd.f32 0.0, %v3294
        %v3296 = vpop.f32.mrf.mxu0
        %3297 = vmatprep.mubr.bf16.mxu0 0
        %3298 = vmatmul.mubr.bf16.gmra.mxu0 %v3203
        %v3299 = vpop.f32.mrf.mxu0
        %v3300 = vadd.f32 0.0, %v3299
        %v3301 = vpop.f32.mrf.mxu0
        %v3302 = vpop.f32.mrf.mxu0
        %v3303 = vadd.f32 0.0, %v3302
        %v3304 = vpop.f32.mrf.mxu0
        %3305 = vmatprep.mubr.bf16.mxu0 0
        %3306 = vmatmul.mubr.bf16.gmra.mxu0 %v3206
        %v3307 = vpop.f32.mrf.mxu0
        %v3308 = vadd.f32 0.0, %v3307
        %v3309 = vpop.f32.mrf.mxu0
        %v3310 = vpop.f32.mrf.mxu0
        %v3311 = vadd.f32 0.0, %v3310
        %v3312 = vpop.f32.mrf.mxu0
        %3313 = vmatprep.mubr.bf16.mxu0 0
        %3314 = vmatmul.mubr.bf16.gmra.mxu0 %v3209
        %v3315 = vpop.f32.mrf.mxu0
        %v3316 = vadd.f32 0.0, %v3315
        %v3317 = vpop.f32.mrf.mxu0
        %v3318 = vpop.f32.mrf.mxu0
        %v3319 = vadd.f32 0.0, %v3318
        %v3320 = vpop.f32.mrf.mxu0
        %3321 = vmatprep.mubr.bf16.mxu0 0
        %3322 = vmatmul.mubr.bf16.gmra.mxu0 %v3212
        %v3323 = vpop.f32.mrf.mxu0
        %v3324 = vadd.f32 0.0, %v3323
        %v3325 = vpop.f32.mrf.mxu0
        %v3326 = vpop.f32.mrf.mxu0
        %v3327 = vadd.f32 0.0, %v3326
        %v3328 = vpop.f32.mrf.mxu0
        %3329 = vmatprep.mubr.bf16.mxu0 0
        %3330 = vmatmul.mubr.bf16.gmra.mxu0 %v3215
        %v3331 = vpop.f32.mrf.mxu0
        %v3332 = vadd.f32 0.0, %v3331
        %v3333 = vpop.f32.mrf.mxu0
        %v3334 = vpop.f32.mrf.mxu0
        %v3335 = vadd.f32 0.0, %v3334
        %v3336 = vpop.f32.mrf.mxu0
        %3337 = vmatprep.mubr.bf16.mxu0 0
        %3338 = vmatmul.mubr.bf16.gmra.mxu0 %v3218
        %v3339 = vpop.f32.mrf.mxu0
        %v3340 = vadd.f32 0.0, %v3339
        %v3341 = vpop.f32.mrf.mxu0
        %v3342 = vpop.f32.mrf.mxu0
        %v3343 = vadd.f32 0.0, %v3342
        %v3344 = vpop.f32.mrf.mxu0
        %3345 = vmatprep.mubr.bf16.mxu0 0
        %3346 = vmatmul.mubr.bf16.gmra.mxu0 %v3221
        %v3347 = vpop.f32.mrf.mxu0
        %v3348 = vadd.f32 0.0, %v3347
        %v3349 = vpop.f32.mrf.mxu0
        %v3350 = vpop.f32.mrf.mxu0
        %v3351 = vadd.f32 0.0, %v3350
        %v3352 = vpop.f32.mrf.mxu0
        %3353 = vmatprep.mubr.bf16.mxu0 0
        %3354 = vmatmul.mubr.bf16.gmra.mxu0 %v3224
        %v3355 = vpop.f32.mrf.mxu0
        %v3356 = vadd.f32 0.0, %v3355
        %v3357 = vpop.f32.mrf.mxu0
        %v3358 = vpop.f32.mrf.mxu0
        %v3359 = vadd.f32 0.0, %v3358
        %v3360 = vpop.f32.mrf.mxu0
        %3361 = vmatprep.mubr.bf16.mxu0 0
        %3362 = vmatmul.mubr.bf16.gmra.mxu0 %v3227
        %v3363 = vpop.f32.mrf.mxu0
        %v3364 = vadd.f32 0.0, %v3363
        %v3365 = vpop.f32.mrf.mxu0
        %v3366 = vpop.f32.mrf.mxu0
        %v3367 = vadd.f32 0.0, %v3366
        %v3368 = vpop.f32.mrf.mxu0
        %3369 = vmatprep.mubr.bf16.mxu0 0
        %3370 = vmatmul.mubr.bf16.gmra.mxu0 %v3230
        %v3371 = vpop.f32.mrf.mxu0
        %v3372 = vadd.f32 0.0, %v3371
        %v3373 = vpop.f32.mrf.mxu0
        %v3374 = vpop.f32.mrf.mxu0
        %v3375 = vadd.f32 0.0, %v3374
        %v3376 = vpop.f32.mrf.mxu0
        %3377 = vmatprep.mubr.bf16.mxu0 0
        %3378 = vmatmul.mubr.bf16.gmra.mxu0 %v3233
        %v3379 = vpop.f32.mrf.mxu0
        %v3380 = vadd.f32 0.0, %v3379
        %v3381 = vpop.f32.mrf.mxu0
        %v3382 = vpop.f32.mrf.mxu0
        %v3383 = vadd.f32 0.0, %v3382
        %v3384 = vpop.f32.mrf.mxu0
        %3385 = vmatprep.mubr.bf16.mxu0 0
        %3386 = vmatmul.mubr.bf16.gmra.mxu0 %v3236
        %v3387 = vpop.f32.mrf.mxu0
        %v3388 = vadd.f32 0.0, %v3387
        %v3389 = vpop.f32.mrf.mxu0
        %v3390 = vpop.f32.mrf.mxu0
        %v3391 = vadd.f32 0.0, %v3390
        %v3392 = vpop.f32.mrf.mxu0
        %3393 = vmatprep.mubr.bf16.mxu0 0
        %3394 = vmatmul.mubr.bf16.gmra.mxu0 %v3239
        %v3395 = vpop.f32.mrf.mxu0
        %v3396 = vadd.f32 0.0, %v3395
        %v3397 = vpop.f32.mrf.mxu0
        %v3398 = vpop.f32.mrf.mxu0
        %v3399 = vadd.f32 0.0, %v3398
        %v3400 = vpop.f32.mrf.mxu0
        %3401 = vdwg.mxu0
        %v3402 = vadd.f32 %v2661, %v3276
        %v3403 = vadd.f32 %v2662, %v3279
        %v3404 = vadd.f32 %v2663, %v3284
        %v3405 = vadd.f32 %v2664, %v3287
        %v3406 = vadd.f32 %v2665, %v3292
        %v3407 = vadd.f32 %v2666, %v3295
        %v3408 = vadd.f32 %v2667, %v3300
        %v3409 = vadd.f32 %v2668, %v3303
        %v3410 = vadd.f32 %v2669, %v3308
        %v3411 = vadd.f32 %v2670, %v3311
        %v3412 = vadd.f32 %v2671, %v3316
        %v3413 = vadd.f32 %v2672, %v3319
        %v3414 = vadd.f32 %v2673, %v3324
        %v3415 = vadd.f32 %v2674, %v3327
        %v3416 = vadd.f32 %v2675, %v3332
        %v3417 = vadd.f32 %v2676, %v3335
        %v3418 = vadd.f32 %v2677, %v3340
        %v3419 = vadd.f32 %v2678, %v3343
        %v3420 = vadd.f32 %v2679, %v3348
        %v3421 = vadd.f32 %v2680, %v3351
        %v3422 = vadd.f32 %v2681, %v3356
        %v3423 = vadd.f32 %v2682, %v3359
        %v3424 = vadd.f32 %v2683, %v3364
        %v3425 = vadd.f32 %v2684, %v3367
        %v3426 = vadd.f32 %v2685, %v3372
        %v3427 = vadd.f32 %v2686, %v3375
        %v3428 = vadd.f32 %v2687, %v3380
        %v3429 = vadd.f32 %v2688, %v3383
        %v3430 = vadd.f32 %v2689, %v3388
        %v3431 = vadd.f32 %v2690, %v3391
        %v3432 = vadd.f32 %v2691, %v3396
        %v3433 = vadd.f32 %v2692, %v3399
        %v3434 = vld [vmem:[#allocation2 + $0x8] sm:$0xe]
        %v3435 = vld [vmem:[#allocation2 + $0x20] sm:$0xe]
        %v3436 = vld [vmem:[#allocation2 + $0x38] sm:$0xe]
        %v3437 = vld [vmem:[#allocation2 + $0x50] sm:$0xe]
        %v3438 = vld [vmem:[#allocation2 + $0x68] sm:$0xe]
        %v3439 = vld [vmem:[#allocation2 + $0x80] sm:$0xe]
        %v3440 = vld [vmem:[#allocation2 + $0x98] sm:$0xe]
        %v3441 = vld [vmem:[#allocation2 + $0xb0] sm:$0xe]
        %v3442 = vld [vmem:[#allocation2 + $0xc8] sm:$0xe]
        %v3443 = vld [vmem:[#allocation2 + $0xe0] sm:$0xe]
        %v3444 = vld [vmem:[#allocation2 + $0xf8] sm:$0xe]
        %v3445 = vld [vmem:[#allocation2 + $0x110] sm:$0xe]
        %v3446 = vld [vmem:[#allocation2 + $0x128] sm:$0xe]
        %v3447 = vld [vmem:[#allocation2 + $0x140] sm:$0xe]
        %v3448 = vld [vmem:[#allocation2 + $0x158] sm:$0xe]
        %v3449 = vld [vmem:[#allocation2 + $0x170] sm:$0xe]
        %vm3498 = vcmask 1042432
        %vm3499 = vcmask 1046532
        %vm3500 = vmor %vm3498, %vm3499
        %v3501 = vrot.slane %v3434, 5
        %v3502 = vrot.slane %v3501, 4
        %v3503 = vrot.slane %v2694, 5
        %v3504 = vsel %vm3500, %v3502, %v3503
        %v3505 = vrot.slane %v3503, 4
        %v3506 = vrot.slane %v2695, 5
        %v3507 = vsel %vm3500, %v3505, %v3506
        %v3508 = vrot.slane %v3435, 5
        %v3509 = vrot.slane %v3508, 4
        %v3510 = vrot.slane %v2697, 5
        %v3511 = vsel %vm3500, %v3509, %v3510
        %v3512 = vrot.slane %v3510, 4
        %v3513 = vrot.slane %v2698, 5
        %v3514 = vsel %vm3500, %v3512, %v3513
        %v3515 = vrot.slane %v3436, 5
        %v3516 = vrot.slane %v3515, 4
        %v3517 = vrot.slane %v2700, 5
        %v3518 = vsel %vm3500, %v3516, %v3517
        %v3519 = vrot.slane %v3517, 4
        %v3520 = vrot.slane %v2701, 5
        %v3521 = vsel %vm3500, %v3519, %v3520
        %v3522 = vrot.slane %v3437, 5
        %v3523 = vrot.slane %v3522, 4
        %v3524 = vrot.slane %v2703, 5
        %v3525 = vsel %vm3500, %v3523, %v3524
        %v3526 = vrot.slane %v3524, 4
        %v3527 = vrot.slane %v2704, 5
        %v3528 = vsel %vm3500, %v3526, %v3527
        %v3529 = vrot.slane %v3438, 5
        %v3530 = vrot.slane %v3529, 4
        %v3531 = vrot.slane %v2706, 5
        %v3532 = vsel %vm3500, %v3530, %v3531
        %v3533 = vrot.slane %v3531, 4
        %v3534 = vrot.slane %v2707, 5
        %v3535 = vsel %vm3500, %v3533, %v3534
        %v3536 = vrot.slane %v3439, 5
        %v3537 = vrot.slane %v3536, 4
        %v3538 = vrot.slane %v2709, 5
        %v3539 = vsel %vm3500, %v3537, %v3538
        %v3540 = vrot.slane %v3538, 4
        %v3541 = vrot.slane %v2710, 5
        %v3542 = vsel %vm3500, %v3540, %v3541
        %v3543 = vrot.slane %v3440, 5
        %v3544 = vrot.slane %v3543, 4
        %v3545 = vrot.slane %v2712, 5
        %v3546 = vsel %vm3500, %v3544, %v3545
        %v3547 = vrot.slane %v3545, 4
        %v3548 = vrot.slane %v2713, 5
        %v3549 = vsel %vm3500, %v3547, %v3548
        %v3550 = vrot.slane %v3441, 5
        %v3551 = vrot.slane %v3550, 4
        %v3552 = vrot.slane %v2715, 5
        %v3553 = vsel %vm3500, %v3551, %v3552
        %v3554 = vrot.slane %v3552, 4
        %v3555 = vrot.slane %v2716, 5
        %v3556 = vsel %vm3500, %v3554, %v3555
        %v3557 = vrot.slane %v3442, 5
        %v3558 = vrot.slane %v3557, 4
        %v3559 = vrot.slane %v2718, 5
        %v3560 = vsel %vm3500, %v3558, %v3559
        %v3561 = vrot.slane %v3559, 4
        %v3562 = vrot.slane %v2719, 5
        %v3563 = vsel %vm3500, %v3561, %v3562
        %v3564 = vrot.slane %v3443, 5
        %v3565 = vrot.slane %v3564, 4
        %v3566 = vrot.slane %v2721, 5
        %v3567 = vsel %vm3500, %v3565, %v3566
        %v3568 = vrot.slane %v3566, 4
        %v3569 = vrot.slane %v2722, 5
        %v3570 = vsel %vm3500, %v3568, %v3569
        %v3571 = vrot.slane %v3444, 5
        %v3572 = vrot.slane %v3571, 4
        %v3573 = vrot.slane %v2724, 5
        %v3574 = vsel %vm3500, %v3572, %v3573
        %v3575 = vrot.slane %v3573, 4
        %v3576 = vrot.slane %v2725, 5
        %v3577 = vsel %vm3500, %v3575, %v3576
        %v3578 = vrot.slane %v3445, 5
        %v3579 = vrot.slane %v3578, 4
        %v3580 = vrot.slane %v2727, 5
        %v3581 = vsel %vm3500, %v3579, %v3580
        %v3582 = vrot.slane %v3580, 4
        %v3583 = vrot.slane %v2728, 5
        %v3584 = vsel %vm3500, %v3582, %v3583
        %v3585 = vrot.slane %v3446, 5
        %v3586 = vrot.slane %v3585, 4
        %v3587 = vrot.slane %v2730, 5
        %v3588 = vsel %vm3500, %v3586, %v3587
        %v3589 = vrot.slane %v3587, 4
        %v3590 = vrot.slane %v2731, 5
        %v3591 = vsel %vm3500, %v3589, %v3590
        %v3592 = vrot.slane %v3447, 5
        %v3593 = vrot.slane %v3592, 4
        %v3594 = vrot.slane %v2733, 5
        %v3595 = vsel %vm3500, %v3593, %v3594
        %v3596 = vrot.slane %v3594, 4
        %v3597 = vrot.slane %v2734, 5
        %v3598 = vsel %vm3500, %v3596, %v3597
        %v3599 = vrot.slane %v3448, 5
        %v3600 = vrot.slane %v3599, 4
        %v3601 = vrot.slane %v2736, 5
        %v3602 = vsel %vm3500, %v3600, %v3601
        %v3603 = vrot.slane %v3601, 4
        %v3604 = vrot.slane %v2737, 5
        %v3605 = vsel %vm3500, %v3603, %v3604
        %v3606 = vrot.slane %v3449, 5
        %v3607 = vrot.slane %v3606, 4
        %v3608 = vrot.slane %v2739, 5
        %v3609 = vsel %vm3500, %v3607, %v3608
        %v3610 = vrot.slane %v3608, 4
        %v3611 = vrot.slane %v2740, 5
        %v3612 = vsel %vm3500, %v3610, %v3611
        %s3613 = scalar_lea.vmem %s1, 80
        %v3614 = vld [vmem:[%s3613] sm:$0xf]
        %v3615 = vld [vmem:[%s3613 + $0x4] sm:$0xf]
        %v3616 = vld [vmem:[%s3613 + $0x8] sm:$0xf]
        %v3617 = vld [vmem:[%s3613 + $0xc] sm:$0xf]
        %v3618 = vunpack.c.l.b16 %v3504
        %v3619 = vunpack.c.l.b16 %v3507
        %v3620 = vunpack.c.l.b16 %v3511
        %v3621 = vunpack.c.l.b16 %v3514
        %v3622 = vunpack.c.l.b16 %v3518
        %v3623 = vunpack.c.l.b16 %v3521
        %v3624 = vunpack.c.l.b16 %v3525
        %v3625 = vunpack.c.l.b16 %v3528
        %v3626 = vunpack.c.l.b16 %v3532
        %v3627 = vunpack.c.l.b16 %v3535
        %v3628 = vunpack.c.l.b16 %v3539
        %v3629 = vunpack.c.l.b16 %v3542
        %v3630 = vunpack.c.l.b16 %v3546
        %v3631 = vunpack.c.l.b16 %v3549
        %v3632 = vunpack.c.l.b16 %v3553
        %v3633 = vunpack.c.l.b16 %v3556
        %v3634 = vunpack.c.l.b16 %v3560
        %v3635 = vunpack.c.l.b16 %v3563
        %v3636 = vunpack.c.l.b16 %v3567
        %v3637 = vunpack.c.l.b16 %v3570
        %v3638 = vunpack.c.l.b16 %v3574
        %v3639 = vunpack.c.l.b16 %v3577
        %v3640 = vunpack.c.l.b16 %v3581
        %v3641 = vunpack.c.l.b16 %v3584
        %v3642 = vunpack.c.l.b16 %v3588
        %v3643 = vunpack.c.l.b16 %v3591
        %v3644 = vunpack.c.l.b16 %v3595
        %v3645 = vunpack.c.l.b16 %v3598
        %v3646 = vunpack.c.l.b16 %v3602
        %v3647 = vunpack.c.l.b16 %v3605
        %v3648 = vunpack.c.l.b16 %v3609
        %v3649 = vunpack.c.l.b16 %v3612
        %v3650 = vpack.c.b16 %v3619, %v3618
        %v3651 = vpack.c.b16 %v3621, %v3620
        %v3652 = vpack.c.b16 %v3623, %v3622
        %v3653 = vpack.c.b16 %v3625, %v3624
        %v3654 = vpack.c.b16 %v3627, %v3626
        %v3655 = vpack.c.b16 %v3629, %v3628
        %v3656 = vpack.c.b16 %v3631, %v3630
        %v3657 = vpack.c.b16 %v3633, %v3632
        %v3658 = vpack.c.b16 %v3635, %v3634
        %v3659 = vpack.c.b16 %v3637, %v3636
        %v3660 = vpack.c.b16 %v3639, %v3638
        %v3661 = vpack.c.b16 %v3641, %v3640
        %v3662 = vpack.c.b16 %v3643, %v3642
        %v3663 = vpack.c.b16 %v3645, %v3644
        %v3664 = vpack.c.b16 %v3647, %v3646
        %v3665 = vpack.c.b16 %v3649, %v3648
        %v3670 = vunpack.c.l.b16 %v3614
        %v3671 = vunpack.c.l.b16 %v3615
        %v3672 = vunpack.c.l.b16 %v3616
        %v3673 = vunpack.c.l.b16 %v3617
        %v3674 = vpack.c.b16 %v3671, %v3670
        %v3675 = vpack.c.b16 %v3673, %v3672
        %v3679 = vsel %vm1295, %v3650, 0
        %v3682 = vsel %vm1295, %v3651, 0
        %v3685 = vsel %vm1295, %v3652, 0
        %v3688 = vsel %vm1295, %v3653, 0
        %v3691 = vsel %vm1295, %v3654, 0
        %v3694 = vsel %vm1295, %v3655, 0
        %v3697 = vsel %vm1295, %v3656, 0
        %v3700 = vsel %vm1295, %v3657, 0
        %v3703 = vsel %vm1295, %v3658, 0
        %v3706 = vsel %vm1295, %v3659, 0
        %v3709 = vsel %vm1295, %v3660, 0
        %v3712 = vsel %vm1295, %v3661, 0
        %v3715 = vsel %vm1295, %v3662, 0
        %v3718 = vsel %vm1295, %v3663, 0
        %v3721 = vsel %vm1295, %v3664, 0
        %v3724 = vsel %vm1295, %v3665, 0
        %3726 = vmatprep.subr.bf16.mxu0 0
        %3727 = vmatpush1.bf16.msra.mxu0 0
        %3728 = vmatprep.subr.bf16.mxu0 0
        %3729 = vmatpush1.bf16.msra.mxu0 0
        %3730 = vmatprep.subr.bf16.mxu0 0
        %3731 = vmatpush1.bf16.msra.mxu0 0
        %3732 = vmatprep.subr.bf16.mxu0 0
        %3733 = vmatpush1.bf16.msra.mxu0 0
        %3734 = vmatprep.subr.bf16.mxu0 0
        %3735 = vmatpush1.bf16.msra.mxu0 0
        %3736 = vmatprep.subr.bf16.mxu0 0
        %3737 = vmatpush1.bf16.msra.mxu0 0
        %3738 = vmatprep.subr.bf16.mxu0 0
        %3739 = vmatpush1.bf16.msra.mxu0 %v3675
        %3740 = vmatprep.subr.bf16.mxu0 0
        %3741 = vmatpush1.bf16.msra.mxu0 %v3674
        %3742 = vmatprep.subr.bf16.mxu0 0
        %3743 = vmatpush2.bf16.msra.mxu0 0
        %3744 = vmatprep.subr.bf16.mxu0 0
        %3745 = vmatpush2.bf16.msra.mxu0 0
        %3746 = vmatprep.subr.bf16.mxu0 0
        %3747 = vmatpush2.bf16.msra.mxu0 0
        %3748 = vmatprep.subr.bf16.mxu0 0
        %3749 = vmatpush2.bf16.msra.mxu0 0
        %3750 = vmatprep.subr.bf16.mxu0 0
        %3751 = vmatpush2.bf16.msra.mxu0 0
        %3752 = vmatprep.subr.bf16.mxu0 0
        %3753 = vmatpush2.bf16.msra.mxu0 0
        %3754 = vmatprep.subr.bf16.mxu0 0
        %3755 = vmatpush2.bf16.msra.mxu0 0
        %3756 = vmatprep.subr.bf16.mxu0 0
        %3757 = vmatpush2.bf16.msra.mxu0 0
        %3758 = vmatprep.mubr.bf16.mxu0 0
        %3759 = vmatmul.mubr.bf16.gmra.mxu0 %v3679
        %v3760 = vpop.f32.mrf.mxu0
        %v3761 = vadd.f32 0.0, %v3760
        %v3762 = vpop.f32.mrf.mxu0
        %v3763 = vpop.f32.mrf.mxu0
        %v3764 = vadd.f32 0.0, %v3763
        %v3765 = vpop.f32.mrf.mxu0
        %3766 = vmatprep.mubr.bf16.mxu0 0
        %3767 = vmatmul.mubr.bf16.gmra.mxu0 %v3682
        %v3768 = vpop.f32.mrf.mxu0
        %v3769 = vadd.f32 0.0, %v3768
        %v3770 = vpop.f32.mrf.mxu0
        %v3771 = vpop.f32.mrf.mxu0
        %v3772 = vadd.f32 0.0, %v3771
        %v3773 = vpop.f32.mrf.mxu0
        %3774 = vmatprep.mubr.bf16.mxu0 0
        %3775 = vmatmul.mubr.bf16.gmra.mxu0 %v3685
        %v3776 = vpop.f32.mrf.mxu0
        %v3777 = vadd.f32 0.0, %v3776
        %v3778 = vpop.f32.mrf.mxu0
        %v3779 = vpop.f32.mrf.mxu0
        %v3780 = vadd.f32 0.0, %v3779
        %v3781 = vpop.f32.mrf.mxu0
        %3782 = vmatprep.mubr.bf16.mxu0 0
        %3783 = vmatmul.mubr.bf16.gmra.mxu0 %v3688
        %v3784 = vpop.f32.mrf.mxu0
        %v3785 = vadd.f32 0.0, %v3784
        %v3786 = vpop.f32.mrf.mxu0
        %v3787 = vpop.f32.mrf.mxu0
        %v3788 = vadd.f32 0.0, %v3787
        %v3789 = vpop.f32.mrf.mxu0
        %3790 = vmatprep.mubr.bf16.mxu0 0
        %3791 = vmatmul.mubr.bf16.gmra.mxu0 %v3691
        %v3792 = vpop.f32.mrf.mxu0
        %v3793 = vadd.f32 0.0, %v3792
        %v3794 = vpop.f32.mrf.mxu0
        %v3795 = vpop.f32.mrf.mxu0
        %v3796 = vadd.f32 0.0, %v3795
        %v3797 = vpop.f32.mrf.mxu0
        %3798 = vmatprep.mubr.bf16.mxu0 0
        %3799 = vmatmul.mubr.bf16.gmra.mxu0 %v3694
        %v3800 = vpop.f32.mrf.mxu0
        %v3801 = vadd.f32 0.0, %v3800
        %v3802 = vpop.f32.mrf.mxu0
        %v3803 = vpop.f32.mrf.mxu0
        %v3804 = vadd.f32 0.0, %v3803
        %v3805 = vpop.f32.mrf.mxu0
        %3806 = vmatprep.mubr.bf16.mxu0 0
        %3807 = vmatmul.mubr.bf16.gmra.mxu0 %v3697
        %v3808 = vpop.f32.mrf.mxu0
        %v3809 = vadd.f32 0.0, %v3808
        %v3810 = vpop.f32.mrf.mxu0
        %v3811 = vpop.f32.mrf.mxu0
        %v3812 = vadd.f32 0.0, %v3811
        %v3813 = vpop.f32.mrf.mxu0
        %3814 = vmatprep.mubr.bf16.mxu0 0
        %3815 = vmatmul.mubr.bf16.gmra.mxu0 %v3700
        %v3816 = vpop.f32.mrf.mxu0
        %v3817 = vadd.f32 0.0, %v3816
        %v3818 = vpop.f32.mrf.mxu0
        %v3819 = vpop.f32.mrf.mxu0
        %v3820 = vadd.f32 0.0, %v3819
        %v3821 = vpop.f32.mrf.mxu0
        %3822 = vmatprep.mubr.bf16.mxu0 0
        %3823 = vmatmul.mubr.bf16.gmra.mxu0 %v3703
        %v3824 = vpop.f32.mrf.mxu0
        %v3825 = vadd.f32 0.0, %v3824
        %v3826 = vpop.f32.mrf.mxu0
        %v3827 = vpop.f32.mrf.mxu0
        %v3828 = vadd.f32 0.0, %v3827
        %v3829 = vpop.f32.mrf.mxu0
        %3830 = vmatprep.mubr.bf16.mxu0 0
        %3831 = vmatmul.mubr.bf16.gmra.mxu0 %v3706
        %v3832 = vpop.f32.mrf.mxu0
        %v3833 = vadd.f32 0.0, %v3832
        %v3834 = vpop.f32.mrf.mxu0
        %v3835 = vpop.f32.mrf.mxu0
        %v3836 = vadd.f32 0.0, %v3835
        %v3837 = vpop.f32.mrf.mxu0
        %3838 = vmatprep.mubr.bf16.mxu0 0
        %3839 = vmatmul.mubr.bf16.gmra.mxu0 %v3709
        %v3840 = vpop.f32.mrf.mxu0
        %v3841 = vadd.f32 0.0, %v3840
        %v3842 = vpop.f32.mrf.mxu0
        %v3843 = vpop.f32.mrf.mxu0
        %v3844 = vadd.f32 0.0, %v3843
        %v3845 = vpop.f32.mrf.mxu0
        %3846 = vmatprep.mubr.bf16.mxu0 0
        %3847 = vmatmul.mubr.bf16.gmra.mxu0 %v3712
        %v3848 = vpop.f32.mrf.mxu0
        %v3849 = vadd.f32 0.0, %v3848
        %v3850 = vpop.f32.mrf.mxu0
        %v3851 = vpop.f32.mrf.mxu0
        %v3852 = vadd.f32 0.0, %v3851
        %v3853 = vpop.f32.mrf.mxu0
        %3854 = vmatprep.mubr.bf16.mxu0 0
        %3855 = vmatmul.mubr.bf16.gmra.mxu0 %v3715
        %v3856 = vpop.f32.mrf.mxu0
        %v3857 = vadd.f32 0.0, %v3856
        %v3858 = vpop.f32.mrf.mxu0
        %v3859 = vpop.f32.mrf.mxu0
        %v3860 = vadd.f32 0.0, %v3859
        %v3861 = vpop.f32.mrf.mxu0
        %3862 = vmatprep.mubr.bf16.mxu0 0
        %3863 = vmatmul.mubr.bf16.gmra.mxu0 %v3718
        %v3864 = vpop.f32.mrf.mxu0
        %v3865 = vadd.f32 0.0, %v3864
        %v3866 = vpop.f32.mrf.mxu0
        %v3867 = vpop.f32.mrf.mxu0
        %v3868 = vadd.f32 0.0, %v3867
        %v3869 = vpop.f32.mrf.mxu0
        %3870 = vmatprep.mubr.bf16.mxu0 0
        %3871 = vmatmul.mubr.bf16.gmra.mxu0 %v3721
        %v3872 = vpop.f32.mrf.mxu0
        %v3873 = vadd.f32 0.0, %v3872
        %v3874 = vpop.f32.mrf.mxu0
        %v3875 = vpop.f32.mrf.mxu0
        %v3876 = vadd.f32 0.0, %v3875
        %v3877 = vpop.f32.mrf.mxu0
        %3878 = vmatprep.mubr.bf16.mxu0 0
        %3879 = vmatmul.mubr.bf16.gmra.mxu0 %v3724
        %v3880 = vpop.f32.mrf.mxu0
        %v3881 = vadd.f32 0.0, %v3880
        %v3882 = vpop.f32.mrf.mxu0
        %v3883 = vpop.f32.mrf.mxu0
        %v3884 = vadd.f32 0.0, %v3883
        %v3885 = vpop.f32.mrf.mxu0
        %3886 = vdwg.mxu0
        %v3887 = vadd.f32 %v3402, %v3761
        %v3888 = vadd.f32 %v3403, %v3764
        %v3889 = vadd.f32 %v3404, %v3769
        %v3890 = vadd.f32 %v3405, %v3772
        %v3891 = vadd.f32 %v3406, %v3777
        %v3892 = vadd.f32 %v3407, %v3780
        %v3893 = vadd.f32 %v3408, %v3785
        %v3894 = vadd.f32 %v3409, %v3788
        %v3895 = vadd.f32 %v3410, %v3793
        %v3896 = vadd.f32 %v3411, %v3796
        %v3897 = vadd.f32 %v3412, %v3801
        %v3898 = vadd.f32 %v3413, %v3804
        %v3899 = vadd.f32 %v3414, %v3809
        %v3900 = vadd.f32 %v3415, %v3812
        %v3901 = vadd.f32 %v3416, %v3817
        %v3902 = vadd.f32 %v3417, %v3820
        %v3903 = vadd.f32 %v3418, %v3825
        %v3904 = vadd.f32 %v3419, %v3828
        %v3905 = vadd.f32 %v3420, %v3833
        %v3906 = vadd.f32 %v3421, %v3836
        %v3907 = vadd.f32 %v3422, %v3841
        %v3908 = vadd.f32 %v3423, %v3844
        %v3909 = vadd.f32 %v3424, %v3849
        %v3910 = vadd.f32 %v3425, %v3852
        %v3911 = vadd.f32 %v3426, %v3857
        %v3912 = vadd.f32 %v3427, %v3860
        %v3913 = vadd.f32 %v3428, %v3865
        %v3914 = vadd.f32 %v3429, %v3868
        %v3915 = vadd.f32 %v3430, %v3873
        %v3916 = vadd.f32 %v3431, %v3876
        %v3917 = vadd.f32 %v3432, %v3881
        %v3918 = vadd.f32 %v3433, %v3884
        %v3919 = vld [vmem:[#allocation2 + $0x10] sm:$0x3]
        %v3920 = vld [vmem:[#allocation2 + $0x28] sm:$0x3]
        %v3921 = vld [vmem:[#allocation2 + $0x40] sm:$0x3]
        %v3922 = vld [vmem:[#allocation2 + $0x58] sm:$0x3]
        %v3923 = vld [vmem:[#allocation2 + $0x70] sm:$0x3]
        %v3924 = vld [vmem:[#allocation2 + $0x88] sm:$0x3]
        %v3925 = vld [vmem:[#allocation2 + $0xa0] sm:$0x3]
        %v3926 = vld [vmem:[#allocation2 + $0xb8] sm:$0x3]
        %v3927 = vld [vmem:[#allocation2 + $0xd0] sm:$0x3]
        %v3928 = vld [vmem:[#allocation2 + $0xe8] sm:$0x3]
        %v3929 = vld [vmem:[#allocation2 + $0x100] sm:$0x3]
        %v3930 = vld [vmem:[#allocation2 + $0x118] sm:$0x3]
        %v3931 = vld [vmem:[#allocation2 + $0x130] sm:$0x3]
        %v3932 = vld [vmem:[#allocation2 + $0x148] sm:$0x3]
        %v3933 = vld [vmem:[#allocation2 + $0x160] sm:$0x3]
        %v3934 = vld [vmem:[#allocation2 + $0x178] sm:$0x3]
        %vm3935 = vsmask.f32 2304
        %vm3936 = vsmask.f32 6416
        %vm3937 = vmor %vm3935, %vm3936
        %v3939 = vshrl.u32 %v3434, 16
        %v3941 = vrot.slane %v3939, 5
        %v3942 = vshll.u32 %v3434, 16
        %v3944 = vrot.slane %v3942, 6
        %v3945 = vor.u32 %v3941, %v3944
        %v3946 = vrot.slane %v3945, 4
        %v3947 = vrot.slane %v2758, 5
        %v3948 = vrot.slane %v2754, 6
        %v3949 = vor.u32 %v3947, %v3948
        %v3950 = vsel %vm3937, %v3946, %v3949
        %v3951 = vrot.slane %v3949, 4
        %v3953 = vshrl.u32 %v3919, 16
        %v3955 = vrot.slane %v3953, 5
        %v3956 = vshll.u32 %v3919, 16
        %v3958 = vrot.slane %v3956, 6
        %v3959 = vor.u32 %v3955, %v3958
        %v3960 = vsel %vm3937, %v3951, %v3959
        %v3962 = vshrl.u32 %v3435, 16
        %v3964 = vrot.slane %v3962, 5
        %v3965 = vshll.u32 %v3435, 16
        %v3967 = vrot.slane %v3965, 6
        %v3968 = vor.u32 %v3964, %v3967
        %v3969 = vrot.slane %v3968, 4
        %v3970 = vrot.slane %v2782, 5
        %v3971 = vrot.slane %v2778, 6
        %v3972 = vor.u32 %v3970, %v3971
        %v3973 = vsel %vm3937, %v3969, %v3972
        %v3974 = vrot.slane %v3972, 4
        %v3976 = vshrl.u32 %v3920, 16
        %v3978 = vrot.slane %v3976, 5
        %v3979 = vshll.u32 %v3920, 16
        %v3981 = vrot.slane %v3979, 6
        %v3982 = vor.u32 %v3978, %v3981
        %v3983 = vsel %vm3937, %v3974, %v3982
        %v3985 = vshrl.u32 %v3436, 16
        %v3987 = vrot.slane %v3985, 5
        %v3988 = vshll.u32 %v3436, 16
        %v3990 = vrot.slane %v3988, 6
        %v3991 = vor.u32 %v3987, %v3990
        %v3992 = vrot.slane %v3991, 4
        %v3993 = vrot.slane %v2806, 5
        %v3994 = vrot.slane %v2802, 6
        %v3995 = vor.u32 %v3993, %v3994
        %v3996 = vsel %vm3937, %v3992, %v3995
        %v3997 = vrot.slane %v3995, 4
        %v3999 = vshrl.u32 %v3921, 16
        %v4001 = vrot.slane %v3999, 5
        %v4002 = vshll.u32 %v3921, 16
        %v4004 = vrot.slane %v4002, 6
        %v4005 = vor.u32 %v4001, %v4004
        %v4006 = vsel %vm3937, %v3997, %v4005
        %v4008 = vshrl.u32 %v3437, 16
        %v4010 = vrot.slane %v4008, 5
        %v4011 = vshll.u32 %v3437, 16
        %v4013 = vrot.slane %v4011, 6
        %v4014 = vor.u32 %v4010, %v4013
        %v4015 = vrot.slane %v4014, 4
        %v4016 = vrot.slane %v2830, 5
        %v4017 = vrot.slane %v2826, 6
        %v4018 = vor.u32 %v4016, %v4017
        %v4019 = vsel %vm3937, %v4015, %v4018
        %v4020 = vrot.slane %v4018, 4
        %v4022 = vshrl.u32 %v3922, 16
        %v4024 = vrot.slane %v4022, 5
        %v4025 = vshll.u32 %v3922, 16
        %v4027 = vrot.slane %v4025, 6
        %v4028 = vor.u32 %v4024, %v4027
        %v4029 = vsel %vm3937, %v4020, %v4028
        %v4031 = vshrl.u32 %v3438, 16
        %v4033 = vrot.slane %v4031, 5
        %v4034 = vshll.u32 %v3438, 16
        %v4036 = vrot.slane %v4034, 6
        %v4037 = vor.u32 %v4033, %v4036
        %v4038 = vrot.slane %v4037, 4
        %v4039 = vrot.slane %v2854, 5
        %v4040 = vrot.slane %v2850, 6
        %v4041 = vor.u32 %v4039, %v4040
        %v4042 = vsel %vm3937, %v4038, %v4041
        %v4043 = vrot.slane %v4041, 4
        %v4045 = vshrl.u32 %v3923, 16
        %v4047 = vrot.slane %v4045, 5
        %v4048 = vshll.u32 %v3923, 16
        %v4050 = vrot.slane %v4048, 6
        %v4051 = vor.u32 %v4047, %v4050
        %v4052 = vsel %vm3937, %v4043, %v4051
        %v4054 = vshrl.u32 %v3439, 16
        %v4056 = vrot.slane %v4054, 5
        %v4057 = vshll.u32 %v3439, 16
        %v4059 = vrot.slane %v4057, 6
        %v4060 = vor.u32 %v4056, %v4059
        %v4061 = vrot.slane %v4060, 4
        %v4062 = vrot.slane %v2878, 5
        %v4063 = vrot.slane %v2874, 6
        %v4064 = vor.u32 %v4062, %v4063
        %v4065 = vsel %vm3937, %v4061, %v4064
        %v4066 = vrot.slane %v4064, 4
        %v4068 = vshrl.u32 %v3924, 16
        %v4070 = vrot.slane %v4068, 5
        %v4071 = vshll.u32 %v3924, 16
        %v4073 = vrot.slane %v4071, 6
        %v4074 = vor.u32 %v4070, %v4073
        %v4075 = vsel %vm3937, %v4066, %v4074
        %v4077 = vshrl.u32 %v3440, 16
        %v4079 = vrot.slane %v4077, 5
        %v4080 = vshll.u32 %v3440, 16
        %v4082 = vrot.slane %v4080, 6
        %v4083 = vor.u32 %v4079, %v4082
        %v4084 = vrot.slane %v4083, 4
        %v4085 = vrot.slane %v2902, 5
        %v4086 = vrot.slane %v2898, 6
        %v4087 = vor.u32 %v4085, %v4086
        %v4088 = vsel %vm3937, %v4084, %v4087
        %v4089 = vrot.slane %v4087, 4
        %v4091 = vshrl.u32 %v3925, 16
        %v4093 = vrot.slane %v4091, 5
        %v4094 = vshll.u32 %v3925, 16
        %v4096 = vrot.slane %v4094, 6
        %v4097 = vor.u32 %v4093, %v4096
        %v4098 = vsel %vm3937, %v4089, %v4097
        %v4100 = vshrl.u32 %v3441, 16
        %v4102 = vrot.slane %v4100, 5
        %v4103 = vshll.u32 %v3441, 16
        %v4105 = vrot.slane %v4103, 6
        %v4106 = vor.u32 %v4102, %v4105
        %v4107 = vrot.slane %v4106, 4
        %v4108 = vrot.slane %v2926, 5
        %v4109 = vrot.slane %v2922, 6
        %v4110 = vor.u32 %v4108, %v4109
        %v4111 = vsel %vm3937, %v4107, %v4110
        %v4112 = vrot.slane %v4110, 4
        %v4114 = vshrl.u32 %v3926, 16
        %v4116 = vrot.slane %v4114, 5
        %v4117 = vshll.u32 %v3926, 16
        %v4119 = vrot.slane %v4117, 6
        %v4120 = vor.u32 %v4116, %v4119
        %v4121 = vsel %vm3937, %v4112, %v4120
        %v4123 = vshrl.u32 %v3442, 16
        %v4125 = vrot.slane %v4123, 5
        %v4126 = vshll.u32 %v3442, 16
        %v4128 = vrot.slane %v4126, 6
        %v4129 = vor.u32 %v4125, %v4128
        %v4130 = vrot.slane %v4129, 4
        %v4131 = vrot.slane %v2950, 5
        %v4132 = vrot.slane %v2946, 6
        %v4133 = vor.u32 %v4131, %v4132
        %v4134 = vsel %vm3937, %v4130, %v4133
        %v4135 = vrot.slane %v4133, 4
        %v4137 = vshrl.u32 %v3927, 16
        %v4139 = vrot.slane %v4137, 5
        %v4140 = vshll.u32 %v3927, 16
        %v4142 = vrot.slane %v4140, 6
        %v4143 = vor.u32 %v4139, %v4142
        %v4144 = vsel %vm3937, %v4135, %v4143
        %v4146 = vshrl.u32 %v3443, 16
        %v4148 = vrot.slane %v4146, 5
        %v4149 = vshll.u32 %v3443, 16
        %v4151 = vrot.slane %v4149, 6
        %v4152 = vor.u32 %v4148, %v4151
        %v4153 = vrot.slane %v4152, 4
        %v4154 = vrot.slane %v2974, 5
        %v4155 = vrot.slane %v2970, 6
        %v4156 = vor.u32 %v4154, %v4155
        %v4157 = vsel %vm3937, %v4153, %v4156
        %v4158 = vrot.slane %v4156, 4
        %v4160 = vshrl.u32 %v3928, 16
        %v4162 = vrot.slane %v4160, 5
        %v4163 = vshll.u32 %v3928, 16
        %v4165 = vrot.slane %v4163, 6
        %v4166 = vor.u32 %v4162, %v4165
        %v4167 = vsel %vm3937, %v4158, %v4166
        %v4169 = vshrl.u32 %v3444, 16
        %v4171 = vrot.slane %v4169, 5
        %v4172 = vshll.u32 %v3444, 16
        %v4174 = vrot.slane %v4172, 6
        %v4175 = vor.u32 %v4171, %v4174
        %v4176 = vrot.slane %v4175, 4
        %v4177 = vrot.slane %v2998, 5
        %v4178 = vrot.slane %v2994, 6
        %v4179 = vor.u32 %v4177, %v4178
        %v4180 = vsel %vm3937, %v4176, %v4179
        %v4181 = vrot.slane %v4179, 4
        %v4183 = vshrl.u32 %v3929, 16
        %v4185 = vrot.slane %v4183, 5
        %v4186 = vshll.u32 %v3929, 16
        %v4188 = vrot.slane %v4186, 6
        %v4189 = vor.u32 %v4185, %v4188
        %v4190 = vsel %vm3937, %v4181, %v4189
        %v4192 = vshrl.u32 %v3445, 16
        %v4194 = vrot.slane %v4192, 5
        %v4195 = vshll.u32 %v3445, 16
        %v4197 = vrot.slane %v4195, 6
        %v4198 = vor.u32 %v4194, %v4197
        %v4199 = vrot.slane %v4198, 4
        %v4200 = vrot.slane %v3022, 5
        %v4201 = vrot.slane %v3018, 6
        %v4202 = vor.u32 %v4200, %v4201
        %v4203 = vsel %vm3937, %v4199, %v4202
        %v4204 = vrot.slane %v4202, 4
        %v4206 = vshrl.u32 %v3930, 16
        %v4208 = vrot.slane %v4206, 5
        %v4209 = vshll.u32 %v3930, 16
        %v4211 = vrot.slane %v4209, 6
        %v4212 = vor.u32 %v4208, %v4211
        %v4213 = vsel %vm3937, %v4204, %v4212
        %v4215 = vshrl.u32 %v3446, 16
        %v4217 = vrot.slane %v4215, 5
        %v4218 = vshll.u32 %v3446, 16
        %v4220 = vrot.slane %v4218, 6
        %v4221 = vor.u32 %v4217, %v4220
        %v4222 = vrot.slane %v4221, 4
        %v4223 = vrot.slane %v3046, 5
        %v4224 = vrot.slane %v3042, 6
        %v4225 = vor.u32 %v4223, %v4224
        %v4226 = vsel %vm3937, %v4222, %v4225
        %v4227 = vrot.slane %v4225, 4
        %v4229 = vshrl.u32 %v3931, 16
        %v4231 = vrot.slane %v4229, 5
        %v4232 = vshll.u32 %v3931, 16
        %v4234 = vrot.slane %v4232, 6
        %v4235 = vor.u32 %v4231, %v4234
        %v4236 = vsel %vm3937, %v4227, %v4235
        %v4238 = vshrl.u32 %v3447, 16
        %v4240 = vrot.slane %v4238, 5
        %v4241 = vshll.u32 %v3447, 16
        %v4243 = vrot.slane %v4241, 6
        %v4244 = vor.u32 %v4240, %v4243
        %v4245 = vrot.slane %v4244, 4
        %v4246 = vrot.slane %v3070, 5
        %v4247 = vrot.slane %v3066, 6
        %v4248 = vor.u32 %v4246, %v4247
        %v4249 = vsel %vm3937, %v4245, %v4248
        %v4250 = vrot.slane %v4248, 4
        %v4252 = vshrl.u32 %v3932, 16
        %v4254 = vrot.slane %v4252, 5
        %v4255 = vshll.u32 %v3932, 16
        %v4257 = vrot.slane %v4255, 6
        %v4258 = vor.u32 %v4254, %v4257
        %v4259 = vsel %vm3937, %v4250, %v4258
        %v4261 = vshrl.u32 %v3448, 16
        %v4263 = vrot.slane %v4261, 5
        %v4264 = vshll.u32 %v3448, 16
        %v4266 = vrot.slane %v4264, 6
        %v4267 = vor.u32 %v4263, %v4266
        %v4268 = vrot.slane %v4267, 4
        %v4269 = vrot.slane %v3094, 5
        %v4270 = vrot.slane %v3090, 6
        %v4271 = vor.u32 %v4269, %v4270
        %v4272 = vsel %vm3937, %v4268, %v4271
        %v4273 = vrot.slane %v4271, 4
        %v4275 = vshrl.u32 %v3933, 16
        %v4277 = vrot.slane %v4275, 5
        %v4278 = vshll.u32 %v3933, 16
        %v4280 = vrot.slane %v4278, 6
        %v4281 = vor.u32 %v4277, %v4280
        %v4282 = vsel %vm3937, %v4273, %v4281
        %v4284 = vshrl.u32 %v3449, 16
        %v4286 = vrot.slane %v4284, 5
        %v4287 = vshll.u32 %v3449, 16
        %v4289 = vrot.slane %v4287, 6
        %v4290 = vor.u32 %v4286, %v4289
        %v4291 = vrot.slane %v4290, 4
        %v4292 = vrot.slane %v3118, 5
        %v4293 = vrot.slane %v3114, 6
        %v4294 = vor.u32 %v4292, %v4293
        %v4295 = vsel %vm3937, %v4291, %v4294
        %v4296 = vrot.slane %v4294, 4
        %v4298 = vshrl.u32 %v3934, 16
        %v4300 = vrot.slane %v4298, 5
        %v4301 = vshll.u32 %v3934, 16
        %v4303 = vrot.slane %v4301, 6
        %v4304 = vor.u32 %v4300, %v4303
        %v4305 = vsel %vm3937, %v4296, %v4304
        %s4306 = scalar_lea.vmem %s1, 96
        %v4307 = vld [vmem:[%s4306] sm:$0xf]
        %v4308 = vld [vmem:[%s4306 + $0x4] sm:$0xf]
        %v4309 = vld [vmem:[%s4306 + $0x8] sm:$0xf]
        %v4310 = vld [vmem:[%s4306 + $0xc] sm:$0xf]
        %v4311 = vunpack.c.l.b16 %v3950
        %v4312 = vunpack.c.l.b16 %v3960
        %v4313 = vunpack.c.l.b16 %v3973
        %v4314 = vunpack.c.l.b16 %v3983
        %v4315 = vunpack.c.l.b16 %v3996
        %v4316 = vunpack.c.l.b16 %v4006
        %v4317 = vunpack.c.l.b16 %v4019
        %v4318 = vunpack.c.l.b16 %v4029
        %v4319 = vunpack.c.l.b16 %v4042
        %v4320 = vunpack.c.l.b16 %v4052
        %v4321 = vunpack.c.l.b16 %v4065
        %v4322 = vunpack.c.l.b16 %v4075
        %v4323 = vunpack.c.l.b16 %v4088
        %v4324 = vunpack.c.l.b16 %v4098
        %v4325 = vunpack.c.l.b16 %v4111
        %v4326 = vunpack.c.l.b16 %v4121
        %v4327 = vunpack.c.l.b16 %v4134
        %v4328 = vunpack.c.l.b16 %v4144
        %v4329 = vunpack.c.l.b16 %v4157
        %v4330 = vunpack.c.l.b16 %v4167
        %v4331 = vunpack.c.l.b16 %v4180
        %v4332 = vunpack.c.l.b16 %v4190
        %v4333 = vunpack.c.l.b16 %v4203
        %v4334 = vunpack.c.l.b16 %v4213
        %v4335 = vunpack.c.l.b16 %v4226
        %v4336 = vunpack.c.l.b16 %v4236
        %v4337 = vunpack.c.l.b16 %v4249
        %v4338 = vunpack.c.l.b16 %v4259
        %v4339 = vunpack.c.l.b16 %v4272
        %v4340 = vunpack.c.l.b16 %v4282
        %v4341 = vunpack.c.l.b16 %v4295
        %v4342 = vunpack.c.l.b16 %v4305
        %v4343 = vpack.c.b16 %v4312, %v4311
        %v4344 = vpack.c.b16 %v4314, %v4313
        %v4345 = vpack.c.b16 %v4316, %v4315
        %v4346 = vpack.c.b16 %v4318, %v4317
        %v4347 = vpack.c.b16 %v4320, %v4319
        %v4348 = vpack.c.b16 %v4322, %v4321
        %v4349 = vpack.c.b16 %v4324, %v4323
        %v4350 = vpack.c.b16 %v4326, %v4325
        %v4351 = vpack.c.b16 %v4328, %v4327
        %v4352 = vpack.c.b16 %v4330, %v4329
        %v4353 = vpack.c.b16 %v4332, %v4331
        %v4354 = vpack.c.b16 %v4334, %v4333
        %v4355 = vpack.c.b16 %v4336, %v4335
        %v4356 = vpack.c.b16 %v4338, %v4337
        %v4357 = vpack.c.b16 %v4340, %v4339
        %v4358 = vpack.c.b16 %v4342, %v4341
        %v4363 = vunpack.c.l.b16 %v4307
        %v4364 = vunpack.c.l.b16 %v4308
        %v4365 = vunpack.c.l.b16 %v4309
        %v4366 = vunpack.c.l.b16 %v4310
        %v4367 = vpack.c.b16 %v4364, %v4363
        %v4368 = vpack.c.b16 %v4366, %v4365
        %v4372 = vsel %vm1295, %v4343, 0
        %v4375 = vsel %vm1295, %v4344, 0
        %v4378 = vsel %vm1295, %v4345, 0
        %v4381 = vsel %vm1295, %v4346, 0
        %v4384 = vsel %vm1295, %v4347, 0
        %v4387 = vsel %vm1295, %v4348, 0
        %v4390 = vsel %vm1295, %v4349, 0
        %v4393 = vsel %vm1295, %v4350, 0
        %v4396 = vsel %vm1295, %v4351, 0
        %v4399 = vsel %vm1295, %v4352, 0
        %v4402 = vsel %vm1295, %v4353, 0
        %v4405 = vsel %vm1295, %v4354, 0
        %v4408 = vsel %vm1295, %v4355, 0
        %v4411 = vsel %vm1295, %v4356, 0
        %v4414 = vsel %vm1295, %v4357, 0
        %v4417 = vsel %vm1295, %v4358, 0
        %4419 = vmatprep.subr.bf16.mxu0 0
        %4420 = vmatpush1.bf16.msra.mxu0 0
        %4421 = vmatprep.subr.bf16.mxu0 0
        %4422 = vmatpush1.bf16.msra.mxu0 0
        %4423 = vmatprep.subr.bf16.mxu0 0
        %4424 = vmatpush1.bf16.msra.mxu0 0
        %4425 = vmatprep.subr.bf16.mxu0 0
        %4426 = vmatpush1.bf16.msra.mxu0 0
        %4427 = vmatprep.subr.bf16.mxu0 0
        %4428 = vmatpush1.bf16.msra.mxu0 0
        %4429 = vmatprep.subr.bf16.mxu0 0
        %4430 = vmatpush1.bf16.msra.mxu0 0
        %4431 = vmatprep.subr.bf16.mxu0 0
        %4432 = vmatpush1.bf16.msra.mxu0 %v4368
        %4433 = vmatprep.subr.bf16.mxu0 0
        %4434 = vmatpush1.bf16.msra.mxu0 %v4367
        %4435 = vmatprep.subr.bf16.mxu0 0
        %4436 = vmatpush2.bf16.msra.mxu0 0
        %4437 = vmatprep.subr.bf16.mxu0 0
        %4438 = vmatpush2.bf16.msra.mxu0 0
        %4439 = vmatprep.subr.bf16.mxu0 0
        %4440 = vmatpush2.bf16.msra.mxu0 0
        %4441 = vmatprep.subr.bf16.mxu0 0
        %4442 = vmatpush2.bf16.msra.mxu0 0
        %4443 = vmatprep.subr.bf16.mxu0 0
        %4444 = vmatpush2.bf16.msra.mxu0 0
        %4445 = vmatprep.subr.bf16.mxu0 0
        %4446 = vmatpush2.bf16.msra.mxu0 0
        %4447 = vmatprep.subr.bf16.mxu0 0
        %4448 = vmatpush2.bf16.msra.mxu0 0
        %4449 = vmatprep.subr.bf16.mxu0 0
        %4450 = vmatpush2.bf16.msra.mxu0 0
        %4451 = vmatprep.mubr.bf16.mxu0 0
        %4452 = vmatmul.mubr.bf16.gmra.mxu0 %v4372
        %v4453 = vpop.f32.mrf.mxu0
        %v4454 = vadd.f32 0.0, %v4453
        %v4455 = vpop.f32.mrf.mxu0
        %v4456 = vpop.f32.mrf.mxu0
        %v4457 = vadd.f32 0.0, %v4456
        %v4458 = vpop.f32.mrf.mxu0
        %4459 = vmatprep.mubr.bf16.mxu0 0
        %4460 = vmatmul.mubr.bf16.gmra.mxu0 %v4375
        %v4461 = vpop.f32.mrf.mxu0
        %v4462 = vadd.f32 0.0, %v4461
        %v4463 = vpop.f32.mrf.mxu0
        %v4464 = vpop.f32.mrf.mxu0
        %v4465 = vadd.f32 0.0, %v4464
        %v4466 = vpop.f32.mrf.mxu0
        %4467 = vmatprep.mubr.bf16.mxu0 0
        %4468 = vmatmul.mubr.bf16.gmra.mxu0 %v4378
        %v4469 = vpop.f32.mrf.mxu0
        %v4470 = vadd.f32 0.0, %v4469
        %v4471 = vpop.f32.mrf.mxu0
        %v4472 = vpop.f32.mrf.mxu0
        %v4473 = vadd.f32 0.0, %v4472
        %v4474 = vpop.f32.mrf.mxu0
        %4475 = vmatprep.mubr.bf16.mxu0 0
        %4476 = vmatmul.mubr.bf16.gmra.mxu0 %v4381
        %v4477 = vpop.f32.mrf.mxu0
        %v4478 = vadd.f32 0.0, %v4477
        %v4479 = vpop.f32.mrf.mxu0
        %v4480 = vpop.f32.mrf.mxu0
        %v4481 = vadd.f32 0.0, %v4480
        %v4482 = vpop.f32.mrf.mxu0
        %4483 = vmatprep.mubr.bf16.mxu0 0
        %4484 = vmatmul.mubr.bf16.gmra.mxu0 %v4384
        %v4485 = vpop.f32.mrf.mxu0
        %v4486 = vadd.f32 0.0, %v4485
        %v4487 = vpop.f32.mrf.mxu0
        %v4488 = vpop.f32.mrf.mxu0
        %v4489 = vadd.f32 0.0, %v4488
        %v4490 = vpop.f32.mrf.mxu0
        %4491 = vmatprep.mubr.bf16.mxu0 0
        %4492 = vmatmul.mubr.bf16.gmra.mxu0 %v4387
        %v4493 = vpop.f32.mrf.mxu0
        %v4494 = vadd.f32 0.0, %v4493
        %v4495 = vpop.f32.mrf.mxu0
        %v4496 = vpop.f32.mrf.mxu0
        %v4497 = vadd.f32 0.0, %v4496
        %v4498 = vpop.f32.mrf.mxu0
        %4499 = vmatprep.mubr.bf16.mxu0 0
        %4500 = vmatmul.mubr.bf16.gmra.mxu0 %v4390
        %v4501 = vpop.f32.mrf.mxu0
        %v4502 = vadd.f32 0.0, %v4501
        %v4503 = vpop.f32.mrf.mxu0
        %v4504 = vpop.f32.mrf.mxu0
        %v4505 = vadd.f32 0.0, %v4504
        %v4506 = vpop.f32.mrf.mxu0
        %4507 = vmatprep.mubr.bf16.mxu0 0
        %4508 = vmatmul.mubr.bf16.gmra.mxu0 %v4393
        %v4509 = vpop.f32.mrf.mxu0
        %v4510 = vadd.f32 0.0, %v4509
        %v4511 = vpop.f32.mrf.mxu0
        %v4512 = vpop.f32.mrf.mxu0
        %v4513 = vadd.f32 0.0, %v4512
        %v4514 = vpop.f32.mrf.mxu0
        %4515 = vmatprep.mubr.bf16.mxu0 0
        %4516 = vmatmul.mubr.bf16.gmra.mxu0 %v4396
        %v4517 = vpop.f32.mrf.mxu0
        %v4518 = vadd.f32 0.0, %v4517
        %v4519 = vpop.f32.mrf.mxu0
        %v4520 = vpop.f32.mrf.mxu0
        %v4521 = vadd.f32 0.0, %v4520
        %v4522 = vpop.f32.mrf.mxu0
        %4523 = vmatprep.mubr.bf16.mxu0 0
        %4524 = vmatmul.mubr.bf16.gmra.mxu0 %v4399
        %v4525 = vpop.f32.mrf.mxu0
        %v4526 = vadd.f32 0.0, %v4525
        %v4527 = vpop.f32.mrf.mxu0
        %v4528 = vpop.f32.mrf.mxu0
        %v4529 = vadd.f32 0.0, %v4528
        %v4530 = vpop.f32.mrf.mxu0
        %4531 = vmatprep.mubr.bf16.mxu0 0
        %4532 = vmatmul.mubr.bf16.gmra.mxu0 %v4402
        %v4533 = vpop.f32.mrf.mxu0
        %v4534 = vadd.f32 0.0, %v4533
        %v4535 = vpop.f32.mrf.mxu0
        %v4536 = vpop.f32.mrf.mxu0
        %v4537 = vadd.f32 0.0, %v4536
        %v4538 = vpop.f32.mrf.mxu0
        %4539 = vmatprep.mubr.bf16.mxu0 0
        %4540 = vmatmul.mubr.bf16.gmra.mxu0 %v4405
        %v4541 = vpop.f32.mrf.mxu0
        %v4542 = vadd.f32 0.0, %v4541
        %v4543 = vpop.f32.mrf.mxu0
        %v4544 = vpop.f32.mrf.mxu0
        %v4545 = vadd.f32 0.0, %v4544
        %v4546 = vpop.f32.mrf.mxu0
        %4547 = vmatprep.mubr.bf16.mxu0 0
        %4548 = vmatmul.mubr.bf16.gmra.mxu0 %v4408
        %v4549 = vpop.f32.mrf.mxu0
        %v4550 = vadd.f32 0.0, %v4549
        %v4551 = vpop.f32.mrf.mxu0
        %v4552 = vpop.f32.mrf.mxu0
        %v4553 = vadd.f32 0.0, %v4552
        %v4554 = vpop.f32.mrf.mxu0
        %4555 = vmatprep.mubr.bf16.mxu0 0
        %4556 = vmatmul.mubr.bf16.gmra.mxu0 %v4411
        %v4557 = vpop.f32.mrf.mxu0
        %v4558 = vadd.f32 0.0, %v4557
        %v4559 = vpop.f32.mrf.mxu0
        %v4560 = vpop.f32.mrf.mxu0
        %v4561 = vadd.f32 0.0, %v4560
        %v4562 = vpop.f32.mrf.mxu0
        %4563 = vmatprep.mubr.bf16.mxu0 0
        %4564 = vmatmul.mubr.bf16.gmra.mxu0 %v4414
        %v4565 = vpop.f32.mrf.mxu0
        %v4566 = vadd.f32 0.0, %v4565
        %v4567 = vpop.f32.mrf.mxu0
        %v4568 = vpop.f32.mrf.mxu0
        %v4569 = vadd.f32 0.0, %v4568
        %v4570 = vpop.f32.mrf.mxu0
        %4571 = vmatprep.mubr.bf16.mxu0 0
        %4572 = vmatmul.mubr.bf16.gmra.mxu0 %v4417
        %v4573 = vpop.f32.mrf.mxu0
        %v4574 = vadd.f32 0.0, %v4573
        %v4575 = vpop.f32.mrf.mxu0
        %v4576 = vpop.f32.mrf.mxu0
        %v4577 = vadd.f32 0.0, %v4576
        %v4578 = vpop.f32.mrf.mxu0
        %4579 = vdwg.mxu0
        %v4580 = vadd.f32 %v3887, %v4454
        %v4581 = vadd.f32 %v3888, %v4457
        %v4582 = vadd.f32 %v3889, %v4462
        %v4583 = vadd.f32 %v3890, %v4465
        %v4584 = vadd.f32 %v3891, %v4470
        %v4585 = vadd.f32 %v3892, %v4473
        %v4586 = vadd.f32 %v3893, %v4478
        %v4587 = vadd.f32 %v3894, %v4481
        %v4588 = vadd.f32 %v3895, %v4486
        %v4589 = vadd.f32 %v3896, %v4489
        %v4590 = vadd.f32 %v3897, %v4494
        %v4591 = vadd.f32 %v3898, %v4497
        %v4592 = vadd.f32 %v3899, %v4502
        %v4593 = vadd.f32 %v3900, %v4505
        %v4594 = vadd.f32 %v3901, %v4510
        %v4595 = vadd.f32 %v3902, %v4513
        %v4596 = vadd.f32 %v3903, %v4518
        %v4597 = vadd.f32 %v3904, %v4521
        %v4598 = vadd.f32 %v3905, %v4526
        %v4599 = vadd.f32 %v3906, %v4529
        %v4600 = vadd.f32 %v3907, %v4534
        %v4601 = vadd.f32 %v3908, %v4537
        %v4602 = vadd.f32 %v3909, %v4542
        %v4603 = vadd.f32 %v3910, %v4545
        %v4604 = vadd.f32 %v3911, %v4550
        %v4605 = vadd.f32 %v3912, %v4553
        %v4606 = vadd.f32 %v3913, %v4558
        %v4607 = vadd.f32 %v3914, %v4561
        %v4608 = vadd.f32 %v3915, %v4566
        %v4609 = vadd.f32 %v3916, %v4569
        %v4610 = vadd.f32 %v3917, %v4574
        %v4611 = vadd.f32 %v3918, %v4577
        %v4612 = vld [vmem:[#allocation2 + $0x8] sm:$0xc]
        %v4613 = vld [vmem:[#allocation2 + $0x20] sm:$0xc]
        %v4614 = vld [vmem:[#allocation2 + $0x38] sm:$0xc]
        %v4615 = vld [vmem:[#allocation2 + $0x50] sm:$0xc]
        %v4616 = vld [vmem:[#allocation2 + $0x68] sm:$0xc]
        %v4617 = vld [vmem:[#allocation2 + $0x80] sm:$0xc]
        %v4618 = vld [vmem:[#allocation2 + $0x98] sm:$0xc]
        %v4619 = vld [vmem:[#allocation2 + $0xb0] sm:$0xc]
        %v4620 = vld [vmem:[#allocation2 + $0xc8] sm:$0xc]
        %v4621 = vld [vmem:[#allocation2 + $0xe0] sm:$0xc]
        %v4622 = vld [vmem:[#allocation2 + $0xf8] sm:$0xc]
        %v4623 = vld [vmem:[#allocation2 + $0x110] sm:$0xc]
        %v4624 = vld [vmem:[#allocation2 + $0x128] sm:$0xc]
        %v4625 = vld [vmem:[#allocation2 + $0x140] sm:$0xc]
        %v4626 = vld [vmem:[#allocation2 + $0x158] sm:$0xc]
        %v4627 = vld [vmem:[#allocation2 + $0x170] sm:$0xc]
        %vm4660 = vcmask 1041408
        %vm4661 = vcmask 1045508
        %vm4662 = vmor %vm4660, %vm4661
        %v4663 = vrot.slane %v4612, 6
        %v4664 = vrot.slane %v4663, 4
        %v4665 = vrot.slane %v2694, 6
        %v4666 = vsel %vm4662, %v4664, %v4665
        %v4667 = vrot.slane %v4665, 4
        %v4668 = vrot.slane %v3919, 6
        %v4669 = vsel %vm4662, %v4667, %v4668
        %v4670 = vrot.slane %v4613, 6
        %v4671 = vrot.slane %v4670, 4
        %v4672 = vrot.slane %v2697, 6
        %v4673 = vsel %vm4662, %v4671, %v4672
        %v4674 = vrot.slane %v4672, 4
        %v4675 = vrot.slane %v3920, 6
        %v4676 = vsel %vm4662, %v4674, %v4675
        %v4677 = vrot.slane %v4614, 6
        %v4678 = vrot.slane %v4677, 4
        %v4679 = vrot.slane %v2700, 6
        %v4680 = vsel %vm4662, %v4678, %v4679
        %v4681 = vrot.slane %v4679, 4
        %v4682 = vrot.slane %v3921, 6
        %v4683 = vsel %vm4662, %v4681, %v4682
        %v4684 = vrot.slane %v4615, 6
        %v4685 = vrot.slane %v4684, 4
        %v4686 = vrot.slane %v2703, 6
        %v4687 = vsel %vm4662, %v4685, %v4686
        %v4688 = vrot.slane %v4686, 4
        %v4689 = vrot.slane %v3922, 6
        %v4690 = vsel %vm4662, %v4688, %v4689
        %v4691 = vrot.slane %v4616, 6
        %v4692 = vrot.slane %v4691, 4
        %v4693 = vrot.slane %v2706, 6
        %v4694 = vsel %vm4662, %v4692, %v4693
        %v4695 = vrot.slane %v4693, 4
        %v4696 = vrot.slane %v3923, 6
        %v4697 = vsel %vm4662, %v4695, %v4696
        %v4698 = vrot.slane %v4617, 6
        %v4699 = vrot.slane %v4698, 4
        %v4700 = vrot.slane %v2709, 6
        %v4701 = vsel %vm4662, %v4699, %v4700
        %v4702 = vrot.slane %v4700, 4
        %v4703 = vrot.slane %v3924, 6
        %v4704 = vsel %vm4662, %v4702, %v4703
        %v4705 = vrot.slane %v4618, 6
        %v4706 = vrot.slane %v4705, 4
        %v4707 = vrot.slane %v2712, 6
        %v4708 = vsel %vm4662, %v4706, %v4707
        %v4709 = vrot.slane %v4707, 4
        %v4710 = vrot.slane %v3925, 6
        %v4711 = vsel %vm4662, %v4709, %v4710
        %v4712 = vrot.slane %v4619, 6
        %v4713 = vrot.slane %v4712, 4
        %v4714 = vrot.slane %v2715, 6
        %v4715 = vsel %vm4662, %v4713, %v4714
        %v4716 = vrot.slane %v4714, 4
        %v4717 = vrot.slane %v3926, 6
        %v4718 = vsel %vm4662, %v4716, %v4717
        %v4719 = vrot.slane %v4620, 6
        %v4720 = vrot.slane %v4719, 4
        %v4721 = vrot.slane %v2718, 6
        %v4722 = vsel %vm4662, %v4720, %v4721
        %v4723 = vrot.slane %v4721, 4
        %v4724 = vrot.slane %v3927, 6
        %v4725 = vsel %vm4662, %v4723, %v4724
        %v4726 = vrot.slane %v4621, 6
        %v4727 = vrot.slane %v4726, 4
        %v4728 = vrot.slane %v2721, 6
        %v4729 = vsel %vm4662, %v4727, %v4728
        %v4730 = vrot.slane %v4728, 4
        %v4731 = vrot.slane %v3928, 6
        %v4732 = vsel %vm4662, %v4730, %v4731
        %v4733 = vrot.slane %v4622, 6
        %v4734 = vrot.slane %v4733, 4
        %v4735 = vrot.slane %v2724, 6
        %v4736 = vsel %vm4662, %v4734, %v4735
        %v4737 = vrot.slane %v4735, 4
        %v4738 = vrot.slane %v3929, 6
        %v4739 = vsel %vm4662, %v4737, %v4738
        %v4740 = vrot.slane %v4623, 6
        %v4741 = vrot.slane %v4740, 4
        %v4742 = vrot.slane %v2727, 6
        %v4743 = vsel %vm4662, %v4741, %v4742
        %v4744 = vrot.slane %v4742, 4
        %v4745 = vrot.slane %v3930, 6
        %v4746 = vsel %vm4662, %v4744, %v4745
        %v4747 = vrot.slane %v4624, 6
        %v4748 = vrot.slane %v4747, 4
        %v4749 = vrot.slane %v2730, 6
        %v4750 = vsel %vm4662, %v4748, %v4749
        %v4751 = vrot.slane %v4749, 4
        %v4752 = vrot.slane %v3931, 6
        %v4753 = vsel %vm4662, %v4751, %v4752
        %v4754 = vrot.slane %v4625, 6
        %v4755 = vrot.slane %v4754, 4
        %v4756 = vrot.slane %v2733, 6
        %v4757 = vsel %vm4662, %v4755, %v4756
        %v4758 = vrot.slane %v4756, 4
        %v4759 = vrot.slane %v3932, 6
        %v4760 = vsel %vm4662, %v4758, %v4759
        %v4761 = vrot.slane %v4626, 6
        %v4762 = vrot.slane %v4761, 4
        %v4763 = vrot.slane %v2736, 6
        %v4764 = vsel %vm4662, %v4762, %v4763
        %v4765 = vrot.slane %v4763, 4
        %v4766 = vrot.slane %v3933, 6
        %v4767 = vsel %vm4662, %v4765, %v4766
        %v4768 = vrot.slane %v4627, 6
        %v4769 = vrot.slane %v4768, 4
        %v4770 = vrot.slane %v2739, 6
        %v4771 = vsel %vm4662, %v4769, %v4770
        %v4772 = vrot.slane %v4770, 4
        %v4773 = vrot.slane %v3934, 6
        %v4774 = vsel %vm4662, %v4772, %v4773
        %s4775 = scalar_lea.vmem %s1, 112
        %v4776 = vld [vmem:[%s4775] sm:$0xf]
        %v4777 = vld [vmem:[%s4775 + $0x4] sm:$0xf]
        %v4778 = vld [vmem:[%s4775 + $0x8] sm:$0xf]
        %v4779 = vld [vmem:[%s4775 + $0xc] sm:$0xf]
        %v4780 = vunpack.c.l.b16 %v4666
        %v4781 = vunpack.c.l.b16 %v4669
        %v4782 = vunpack.c.l.b16 %v4673
        %v4783 = vunpack.c.l.b16 %v4676
        %v4784 = vunpack.c.l.b16 %v4680
        %v4785 = vunpack.c.l.b16 %v4683
        %v4786 = vunpack.c.l.b16 %v4687
        %v4787 = vunpack.c.l.b16 %v4690
        %v4788 = vunpack.c.l.b16 %v4694
        %v4789 = vunpack.c.l.b16 %v4697
        %v4790 = vunpack.c.l.b16 %v4701
        %v4791 = vunpack.c.l.b16 %v4704
        %v4792 = vunpack.c.l.b16 %v4708
        %v4793 = vunpack.c.l.b16 %v4711
        %v4794 = vunpack.c.l.b16 %v4715
        %v4795 = vunpack.c.l.b16 %v4718
        %v4796 = vunpack.c.l.b16 %v4722
        %v4797 = vunpack.c.l.b16 %v4725
        %v4798 = vunpack.c.l.b16 %v4729
        %v4799 = vunpack.c.l.b16 %v4732
        %v4800 = vunpack.c.l.b16 %v4736
        %v4801 = vunpack.c.l.b16 %v4739
        %v4802 = vunpack.c.l.b16 %v4743
        %v4803 = vunpack.c.l.b16 %v4746
        %v4804 = vunpack.c.l.b16 %v4750
        %v4805 = vunpack.c.l.b16 %v4753
        %v4806 = vunpack.c.l.b16 %v4757
        %v4807 = vunpack.c.l.b16 %v4760
        %v4808 = vunpack.c.l.b16 %v4764
        %v4809 = vunpack.c.l.b16 %v4767
        %v4810 = vunpack.c.l.b16 %v4771
        %v4811 = vunpack.c.l.b16 %v4774
        %v4812 = vpack.c.b16 %v4781, %v4780
        %v4813 = vpack.c.b16 %v4783, %v4782
        %v4814 = vpack.c.b16 %v4785, %v4784
        %v4815 = vpack.c.b16 %v4787, %v4786
        %v4816 = vpack.c.b16 %v4789, %v4788
        %v4817 = vpack.c.b16 %v4791, %v4790
        %v4818 = vpack.c.b16 %v4793, %v4792
        %v4819 = vpack.c.b16 %v4795, %v4794
        %v4820 = vpack.c.b16 %v4797, %v4796
        %v4821 = vpack.c.b16 %v4799, %v4798
        %v4822 = vpack.c.b16 %v4801, %v4800
        %v4823 = vpack.c.b16 %v4803, %v4802
        %v4824 = vpack.c.b16 %v4805, %v4804
        %v4825 = vpack.c.b16 %v4807, %v4806
        %v4826 = vpack.c.b16 %v4809, %v4808
        %v4827 = vpack.c.b16 %v4811, %v4810
        %v4832 = vunpack.c.l.b16 %v4776
        %v4833 = vunpack.c.l.b16 %v4777
        %v4834 = vunpack.c.l.b16 %v4778
        %v4835 = vunpack.c.l.b16 %v4779
        %v4836 = vpack.c.b16 %v4833, %v4832
        %v4837 = vpack.c.b16 %v4835, %v4834
        %v4841 = vsel %vm1295, %v4812, 0
        %v4844 = vsel %vm1295, %v4813, 0
        %v4847 = vsel %vm1295, %v4814, 0
        %v4850 = vsel %vm1295, %v4815, 0
        %v4853 = vsel %vm1295, %v4816, 0
        %v4856 = vsel %vm1295, %v4817, 0
        %v4859 = vsel %vm1295, %v4818, 0
        %v4862 = vsel %vm1295, %v4819, 0
        %v4865 = vsel %vm1295, %v4820, 0
        %v4868 = vsel %vm1295, %v4821, 0
        %v4871 = vsel %vm1295, %v4822, 0
        %v4874 = vsel %vm1295, %v4823, 0
        %v4877 = vsel %vm1295, %v4824, 0
        %v4880 = vsel %vm1295, %v4825, 0
        %v4883 = vsel %vm1295, %v4826, 0
        %v4886 = vsel %vm1295, %v4827, 0
        %4888 = vmatprep.subr.bf16.mxu0 0
        %4889 = vmatpush1.bf16.msra.mxu0 0
        %4890 = vmatprep.subr.bf16.mxu0 0
        %4891 = vmatpush1.bf16.msra.mxu0 0
        %4892 = vmatprep.subr.bf16.mxu0 0
        %4893 = vmatpush1.bf16.msra.mxu0 0
        %4894 = vmatprep.subr.bf16.mxu0 0
        %4895 = vmatpush1.bf16.msra.mxu0 0
        %4896 = vmatprep.subr.bf16.mxu0 0
        %4897 = vmatpush1.bf16.msra.mxu0 0
        %4898 = vmatprep.subr.bf16.mxu0 0
        %4899 = vmatpush1.bf16.msra.mxu0 0
        %4900 = vmatprep.subr.bf16.mxu0 0
        %4901 = vmatpush1.bf16.msra.mxu0 %v4837
        %4902 = vmatprep.subr.bf16.mxu0 0
        %4903 = vmatpush1.bf16.msra.mxu0 %v4836
        %4904 = vmatprep.subr.bf16.mxu0 0
        %4905 = vmatpush2.bf16.msra.mxu0 0
        %4906 = vmatprep.subr.bf16.mxu0 0
        %4907 = vmatpush2.bf16.msra.mxu0 0
        %4908 = vmatprep.subr.bf16.mxu0 0
        %4909 = vmatpush2.bf16.msra.mxu0 0
        %4910 = vmatprep.subr.bf16.mxu0 0
        %4911 = vmatpush2.bf16.msra.mxu0 0
        %4912 = vmatprep.subr.bf16.mxu0 0
        %4913 = vmatpush2.bf16.msra.mxu0 0
        %4914 = vmatprep.subr.bf16.mxu0 0
        %4915 = vmatpush2.bf16.msra.mxu0 0
        %4916 = vmatprep.subr.bf16.mxu0 0
        %4917 = vmatpush2.bf16.msra.mxu0 0
        %4918 = vmatprep.subr.bf16.mxu0 0
        %4919 = vmatpush2.bf16.msra.mxu0 0
        %4920 = vmatprep.mubr.bf16.mxu0 0
        %4921 = vmatmul.mubr.bf16.gmra.mxu0 %v4841
        %v4922 = vpop.f32.mrf.mxu0
        %v4923 = vadd.f32 0.0, %v4922
        %v4924 = vpop.f32.mrf.mxu0
        %v4925 = vpop.f32.mrf.mxu0
        %v4926 = vadd.f32 0.0, %v4925
        %v4927 = vpop.f32.mrf.mxu0
        %4928 = vmatprep.mubr.bf16.mxu0 0
        %4929 = vmatmul.mubr.bf16.gmra.mxu0 %v4844
        %v4930 = vpop.f32.mrf.mxu0
        %v4931 = vadd.f32 0.0, %v4930
        %v4932 = vpop.f32.mrf.mxu0
        %v4933 = vpop.f32.mrf.mxu0
        %v4934 = vadd.f32 0.0, %v4933
        %v4935 = vpop.f32.mrf.mxu0
        %4936 = vmatprep.mubr.bf16.mxu0 0
        %4937 = vmatmul.mubr.bf16.gmra.mxu0 %v4847
        %v4938 = vpop.f32.mrf.mxu0
        %v4939 = vadd.f32 0.0, %v4938
        %v4940 = vpop.f32.mrf.mxu0
        %v4941 = vpop.f32.mrf.mxu0
        %v4942 = vadd.f32 0.0, %v4941
        %v4943 = vpop.f32.mrf.mxu0
        %4944 = vmatprep.mubr.bf16.mxu0 0
        %4945 = vmatmul.mubr.bf16.gmra.mxu0 %v4850
        %v4946 = vpop.f32.mrf.mxu0
        %v4947 = vadd.f32 0.0, %v4946
        %v4948 = vpop.f32.mrf.mxu0
        %v4949 = vpop.f32.mrf.mxu0
        %v4950 = vadd.f32 0.0, %v4949
        %v4951 = vpop.f32.mrf.mxu0
        %4952 = vmatprep.mubr.bf16.mxu0 0
        %4953 = vmatmul.mubr.bf16.gmra.mxu0 %v4853
        %v4954 = vpop.f32.mrf.mxu0
        %v4955 = vadd.f32 0.0, %v4954
        %v4956 = vpop.f32.mrf.mxu0
        %v4957 = vpop.f32.mrf.mxu0
        %v4958 = vadd.f32 0.0, %v4957
        %v4959 = vpop.f32.mrf.mxu0
        %4960 = vmatprep.mubr.bf16.mxu0 0
        %4961 = vmatmul.mubr.bf16.gmra.mxu0 %v4856
        %v4962 = vpop.f32.mrf.mxu0
        %v4963 = vadd.f32 0.0, %v4962
        %v4964 = vpop.f32.mrf.mxu0
        %v4965 = vpop.f32.mrf.mxu0
        %v4966 = vadd.f32 0.0, %v4965
        %v4967 = vpop.f32.mrf.mxu0
        %4968 = vmatprep.mubr.bf16.mxu0 0
        %4969 = vmatmul.mubr.bf16.gmra.mxu0 %v4859
        %v4970 = vpop.f32.mrf.mxu0
        %v4971 = vadd.f32 0.0, %v4970
        %v4972 = vpop.f32.mrf.mxu0
        %v4973 = vpop.f32.mrf.mxu0
        %v4974 = vadd.f32 0.0, %v4973
        %v4975 = vpop.f32.mrf.mxu0
        %4976 = vmatprep.mubr.bf16.mxu0 0
        %4977 = vmatmul.mubr.bf16.gmra.mxu0 %v4862
        %v4978 = vpop.f32.mrf.mxu0
        %v4979 = vadd.f32 0.0, %v4978
        %v4980 = vpop.f32.mrf.mxu0
        %v4981 = vpop.f32.mrf.mxu0
        %v4982 = vadd.f32 0.0, %v4981
        %v4983 = vpop.f32.mrf.mxu0
        %4984 = vmatprep.mubr.bf16.mxu0 0
        %4985 = vmatmul.mubr.bf16.gmra.mxu0 %v4865
        %v4986 = vpop.f32.mrf.mxu0
        %v4987 = vadd.f32 0.0, %v4986
        %v4988 = vpop.f32.mrf.mxu0
        %v4989 = vpop.f32.mrf.mxu0
        %v4990 = vadd.f32 0.0, %v4989
        %v4991 = vpop.f32.mrf.mxu0
        %4992 = vmatprep.mubr.bf16.mxu0 0
        %4993 = vmatmul.mubr.bf16.gmra.mxu0 %v4868
        %v4994 = vpop.f32.mrf.mxu0
        %v4995 = vadd.f32 0.0, %v4994
        %v4996 = vpop.f32.mrf.mxu0
        %v4997 = vpop.f32.mrf.mxu0
        %v4998 = vadd.f32 0.0, %v4997
        %v4999 = vpop.f32.mrf.mxu0
        %5000 = vmatprep.mubr.bf16.mxu0 0
        %5001 = vmatmul.mubr.bf16.gmra.mxu0 %v4871
        %v5002 = vpop.f32.mrf.mxu0
        %v5003 = vadd.f32 0.0, %v5002
        %v5004 = vpop.f32.mrf.mxu0
        %v5005 = vpop.f32.mrf.mxu0
        %v5006 = vadd.f32 0.0, %v5005
        %v5007 = vpop.f32.mrf.mxu0
        %5008 = vmatprep.mubr.bf16.mxu0 0
        %5009 = vmatmul.mubr.bf16.gmra.mxu0 %v4874
        %v5010 = vpop.f32.mrf.mxu0
        %v5011 = vadd.f32 0.0, %v5010
        %v5012 = vpop.f32.mrf.mxu0
        %v5013 = vpop.f32.mrf.mxu0
        %v5014 = vadd.f32 0.0, %v5013
        %v5015 = vpop.f32.mrf.mxu0
        %5016 = vmatprep.mubr.bf16.mxu0 0
        %5017 = vmatmul.mubr.bf16.gmra.mxu0 %v4877
        %v5018 = vpop.f32.mrf.mxu0
        %v5019 = vadd.f32 0.0, %v5018
        %v5020 = vpop.f32.mrf.mxu0
        %v5021 = vpop.f32.mrf.mxu0
        %v5022 = vadd.f32 0.0, %v5021
        %v5023 = vpop.f32.mrf.mxu0
        %5024 = vmatprep.mubr.bf16.mxu0 0
        %5025 = vmatmul.mubr.bf16.gmra.mxu0 %v4880
        %v5026 = vpop.f32.mrf.mxu0
        %v5027 = vadd.f32 0.0, %v5026
        %v5028 = vpop.f32.mrf.mxu0
        %v5029 = vpop.f32.mrf.mxu0
        %v5030 = vadd.f32 0.0, %v5029
        %v5031 = vpop.f32.mrf.mxu0
        %5032 = vmatprep.mubr.bf16.mxu0 0
        %5033 = vmatmul.mubr.bf16.gmra.mxu0 %v4883
        %v5034 = vpop.f32.mrf.mxu0
        %v5035 = vadd.f32 0.0, %v5034
        %v5036 = vpop.f32.mrf.mxu0
        %v5037 = vpop.f32.mrf.mxu0
        %v5038 = vadd.f32 0.0, %v5037
        %v5039 = vpop.f32.mrf.mxu0
        %5040 = vmatprep.mubr.bf16.mxu0 0
        %5041 = vmatmul.mubr.bf16.gmra.mxu0 %v4886
        %v5042 = vpop.f32.mrf.mxu0
        %v5043 = vadd.f32 0.0, %v5042
        %v5044 = vpop.f32.mrf.mxu0
        %v5045 = vpop.f32.mrf.mxu0
        %v5046 = vadd.f32 0.0, %v5045
        %v5047 = vpop.f32.mrf.mxu0
        %5048 = vdwg.mxu0
        %v5049 = vadd.f32 %v4580, %v4923
        %v5050 = vadd.f32 %v4581, %v4926
        %v5051 = vadd.f32 %v4582, %v4931
        %v5052 = vadd.f32 %v4583, %v4934
        %v5053 = vadd.f32 %v4584, %v4939
        %v5054 = vadd.f32 %v4585, %v4942
        %v5055 = vadd.f32 %v4586, %v4947
        %v5056 = vadd.f32 %v4587, %v4950
        %v5057 = vadd.f32 %v4588, %v4955
        %v5058 = vadd.f32 %v4589, %v4958
        %v5059 = vadd.f32 %v4590, %v4963
        %v5060 = vadd.f32 %v4591, %v4966
        %v5061 = vadd.f32 %v4592, %v4971
        %v5062 = vadd.f32 %v4593, %v4974
        %v5063 = vadd.f32 %v4594, %v4979
        %v5064 = vadd.f32 %v4595, %v4982
        %v5065 = vadd.f32 %v4596, %v4987
        %v5066 = vadd.f32 %v4597, %v4990
        %v5067 = vadd.f32 %v4598, %v4995
        %v5068 = vadd.f32 %v4599, %v4998
        %v5069 = vadd.f32 %v4600, %v5003
        %v5070 = vadd.f32 %v4601, %v5006
        %v5071 = vadd.f32 %v4602, %v5011
        %v5072 = vadd.f32 %v4603, %v5014
        %v5073 = vadd.f32 %v4604, %v5019
        %v5074 = vadd.f32 %v4605, %v5022
        %v5075 = vadd.f32 %v4606, %v5027
        %v5076 = vadd.f32 %v4607, %v5030
        %v5077 = vadd.f32 %v4608, %v5035
        %v5078 = vadd.f32 %v4609, %v5038
        %v5079 = vadd.f32 %v4610, %v5043
        %v5080 = vadd.f32 %v4611, %v5046
        %v5081 = vld [vmem:[%s2] sm:$0x1]
        %v5083 = vlaneseq
        %v5084 = vshrl.u32 %v5083, 7
        %v5085 = vsub.s32 0, %v5084
        %v5086 = vrot.slane %v5081, %v5085
        %v5088 = vadd.f32 %v5049, %v5086
        %v5089 = vadd.f32 %v5050, %v5086
        %v5090 = vadd.f32 %v5051, %v5086
        %v5091 = vadd.f32 %v5052, %v5086
        %v5092 = vadd.f32 %v5053, %v5086
        %v5093 = vadd.f32 %v5054, %v5086
        %v5094 = vadd.f32 %v5055, %v5086
        %v5095 = vadd.f32 %v5056, %v5086
        %v5096 = vadd.f32 %v5057, %v5086
        %v5097 = vadd.f32 %v5058, %v5086
        %v5098 = vadd.f32 %v5059, %v5086
        %v5099 = vadd.f32 %v5060, %v5086
        %v5100 = vadd.f32 %v5061, %v5086
        %v5101 = vadd.f32 %v5062, %v5086
        %v5102 = vadd.f32 %v5063, %v5086
        %v5103 = vadd.f32 %v5064, %v5086
        %v5104 = vadd.f32 %v5065, %v5086
        %v5105 = vadd.f32 %v5066, %v5086
        %v5106 = vadd.f32 %v5067, %v5086
        %v5107 = vadd.f32 %v5068, %v5086
        %v5108 = vadd.f32 %v5069, %v5086
        %v5109 = vadd.f32 %v5070, %v5086
        %v5110 = vadd.f32 %v5071, %v5086
        %v5111 = vadd.f32 %v5072, %v5086
        %v5112 = vadd.f32 %v5073, %v5086
        %v5113 = vadd.f32 %v5074, %v5086
        %v5114 = vadd.f32 %v5075, %v5086
        %v5115 = vadd.f32 %v5076, %v5086
        %v5116 = vadd.f32 %v5077, %v5086
        %v5117 = vadd.f32 %v5078, %v5086
        %v5118 = vadd.f32 %v5079, %v5086
        %v5119 = vadd.f32 %v5080, %v5086
        %v5120 = vmax.f32 %v5088, 0.0
        %v5121 = vmax.f32 %v5089, 0.0
        %v5122 = vmax.f32 %v5090, 0.0
        %v5123 = vmax.f32 %v5091, 0.0
        %v5124 = vmax.f32 %v5092, 0.0
        %v5125 = vmax.f32 %v5093, 0.0
        %v5126 = vmax.f32 %v5094, 0.0
        %v5127 = vmax.f32 %v5095, 0.0
        %v5128 = vmax.f32 %v5096, 0.0
        %v5129 = vmax.f32 %v5097, 0.0
        %v5130 = vmax.f32 %v5098, 0.0
        %v5131 = vmax.f32 %v5099, 0.0
        %v5132 = vmax.f32 %v5100, 0.0
        %v5133 = vmax.f32 %v5101, 0.0
        %v5134 = vmax.f32 %v5102, 0.0
        %v5135 = vmax.f32 %v5103, 0.0
        %v5136 = vmax.f32 %v5104, 0.0
        %v5137 = vmax.f32 %v5105, 0.0
        %v5138 = vmax.f32 %v5106, 0.0
        %v5139 = vmax.f32 %v5107, 0.0
        %v5140 = vmax.f32 %v5108, 0.0
        %v5141 = vmax.f32 %v5109, 0.0
        %v5142 = vmax.f32 %v5110, 0.0
        %v5143 = vmax.f32 %v5111, 0.0
        %v5144 = vmax.f32 %v5112, 0.0
        %v5145 = vmax.f32 %v5113, 0.0
        %v5146 = vmax.f32 %v5114, 0.0
        %v5147 = vmax.f32 %v5115, 0.0
        %v5148 = vmax.f32 %v5116, 0.0
        %v5149 = vmax.f32 %v5117, 0.0
        %v5150 = vmax.f32 %v5118, 0.0
        %v5151 = vmax.f32 %v5119, 0.0
        %v5152 = vpack.c.bf16 %v5121, %v5120
        %v5153 = vpack.c.bf16 %v5123, %v5122
        %v5154 = vpack.c.bf16 %v5125, %v5124
        %v5155 = vpack.c.bf16 %v5127, %v5126
        %v5156 = vpack.c.bf16 %v5129, %v5128
        %v5157 = vpack.c.bf16 %v5131, %v5130
        %v5158 = vpack.c.bf16 %v5133, %v5132
        %v5159 = vpack.c.bf16 %v5135, %v5134
        %v5160 = vpack.c.bf16 %v5137, %v5136
        %v5161 = vpack.c.bf16 %v5139, %v5138
        %v5162 = vpack.c.bf16 %v5141, %v5140
        %v5163 = vpack.c.bf16 %v5143, %v5142
        %v5164 = vpack.c.bf16 %v5145, %v5144
        %v5165 = vpack.c.bf16 %v5147, %v5146
        %v5166 = vpack.c.bf16 %v5149, %v5148
        %v5167 = vpack.c.bf16 %v5151, %v5150
        %v5184 = vunpack.c.l.b16 %v5152
        %v5185 = vunpack.c.h.b16 %v5152
        %v5186 = vunpack.c.l.b16 %v5153
        %v5187 = vunpack.c.h.b16 %v5153
        %v5188 = vunpack.c.l.b16 %v5154
        %v5189 = vunpack.c.h.b16 %v5154
        %v5190 = vunpack.c.l.b16 %v5155
        %v5191 = vunpack.c.h.b16 %v5155
        %v5192 = vunpack.c.l.b16 %v5156
        %v5193 = vunpack.c.h.b16 %v5156
        %v5194 = vunpack.c.l.b16 %v5157
        %v5195 = vunpack.c.h.b16 %v5157
        %v5196 = vunpack.c.l.b16 %v5158
        %v5197 = vunpack.c.h.b16 %v5158
        %v5198 = vunpack.c.l.b16 %v5159
        %v5199 = vunpack.c.h.b16 %v5159
        %v5200 = vunpack.c.l.b16 %v5160
        %v5201 = vunpack.c.h.b16 %v5160
        %v5202 = vunpack.c.l.b16 %v5161
        %v5203 = vunpack.c.h.b16 %v5161
        %v5204 = vunpack.c.l.b16 %v5162
        %v5205 = vunpack.c.h.b16 %v5162
        %v5206 = vunpack.c.l.b16 %v5163
        %v5207 = vunpack.c.h.b16 %v5163
        %v5208 = vunpack.c.l.b16 %v5164
        %v5209 = vunpack.c.h.b16 %v5164
        %v5210 = vunpack.c.l.b16 %v5165
        %v5211 = vunpack.c.h.b16 %v5165
        %v5212 = vunpack.c.l.b16 %v5166
        %v5213 = vunpack.c.h.b16 %v5166
        %v5214 = vunpack.c.l.b16 %v5167
        %v5215 = vunpack.c.h.b16 %v5167
        %v5216 = vpack.c.b16 %v5184, %v5184
        %v5217 = vpack.c.b16 %v5185, %v5185
        %v5218 = vpack.c.b16 %v5186, %v5186
        %v5219 = vpack.c.b16 %v5187, %v5187
        %v5220 = vpack.c.b16 %v5188, %v5188
        %v5221 = vpack.c.b16 %v5189, %v5189
        %v5222 = vpack.c.b16 %v5190, %v5190
        %v5223 = vpack.c.b16 %v5191, %v5191
        %v5224 = vpack.c.b16 %v5192, %v5192
        %v5225 = vpack.c.b16 %v5193, %v5193
        %v5226 = vpack.c.b16 %v5194, %v5194
        %v5227 = vpack.c.b16 %v5195, %v5195
        %v5228 = vpack.c.b16 %v5196, %v5196
        %v5229 = vpack.c.b16 %v5197, %v5197
        %v5230 = vpack.c.b16 %v5198, %v5198
        %v5231 = vpack.c.b16 %v5199, %v5199
        %v5232 = vpack.c.b16 %v5200, %v5200
        %v5233 = vpack.c.b16 %v5201, %v5201
        %v5234 = vpack.c.b16 %v5202, %v5202
        %v5235 = vpack.c.b16 %v5203, %v5203
        %v5236 = vpack.c.b16 %v5204, %v5204
        %v5237 = vpack.c.b16 %v5205, %v5205
        %v5238 = vpack.c.b16 %v5206, %v5206
        %v5239 = vpack.c.b16 %v5207, %v5207
        %v5240 = vpack.c.b16 %v5208, %v5208
        %v5241 = vpack.c.b16 %v5209, %v5209
        %v5242 = vpack.c.b16 %v5210, %v5210
        %v5243 = vpack.c.b16 %v5211, %v5211
        %v5244 = vpack.c.b16 %v5212, %v5212
        %v5245 = vpack.c.b16 %v5213, %v5213
        %v5246 = vpack.c.b16 %v5214, %v5214
        %v5247 = vpack.c.b16 %v5215, %v5215
        %5280 = vst [vmem:[#allocation3 + $0x8] sm:$0xf] %v5216
        %5281 = vst [vmem:[#allocation3 + $0xc] sm:$0xf] %v5217
        %5282 = vst [vmem:[#allocation3 + $0x20] sm:$0xf] %v5218
        %5283 = vst [vmem:[#allocation3 + $0x24] sm:$0xf] %v5219
        %5284 = vst [vmem:[#allocation3 + $0x38] sm:$0xf] %v5220
        %5285 = vst [vmem:[#allocation3 + $0x3c] sm:$0xf] %v5221
        %5286 = vst [vmem:[#allocation3 + $0x50] sm:$0xf] %v5222
        %5287 = vst [vmem:[#allocation3 + $0x54] sm:$0xf] %v5223
        %5288 = vst [vmem:[#allocation3 + $0x68] sm:$0xf] %v5224
        %5289 = vst [vmem:[#allocation3 + $0x6c] sm:$0xf] %v5225
        %5290 = vst [vmem:[#allocation3 + $0x80] sm:$0xf] %v5226
        %5291 = vst [vmem:[#allocation3 + $0x84] sm:$0xf] %v5227
        %5292 = vst [vmem:[#allocation3 + $0x98] sm:$0xf] %v5228
        %5293 = vst [vmem:[#allocation3 + $0x9c] sm:$0xf] %v5229
        %5294 = vst [vmem:[#allocation3 + $0xb0] sm:$0xf] %v5230
        %5295 = vst [vmem:[#allocation3 + $0xb4] sm:$0xf] %v5231
        %5296 = vst [vmem:[#allocation3 + $0xc8] sm:$0xf] %v5232
        %5297 = vst [vmem:[#allocation3 + $0xcc] sm:$0xf] %v5233
        %5298 = vst [vmem:[#allocation3 + $0xe0] sm:$0xf] %v5234
        %5299 = vst [vmem:[#allocation3 + $0xe4] sm:$0xf] %v5235
        %5300 = vst [vmem:[#allocation3 + $0xf8] sm:$0xf] %v5236
        %5301 = vst [vmem:[#allocation3 + $0xfc] sm:$0xf] %v5237
        %5302 = vst [vmem:[#allocation3 + $0x110] sm:$0xf] %v5238
        %5303 = vst [vmem:[#allocation3 + $0x114] sm:$0xf] %v5239
        %5304 = vst [vmem:[#allocation3 + $0x128] sm:$0xf] %v5240
        %5305 = vst [vmem:[#allocation3 + $0x12c] sm:$0xf] %v5241
        %5306 = vst [vmem:[#allocation3 + $0x140] sm:$0xf] %v5242
        %5307 = vst [vmem:[#allocation3 + $0x144] sm:$0xf] %v5243
        %5308 = vst [vmem:[#allocation3 + $0x158] sm:$0xf] %v5244
        %5309 = vst [vmem:[#allocation3 + $0x15c] sm:$0xf] %v5245
        %5310 = vst [vmem:[#allocation3 + $0x170] sm:$0xf] %v5246
        %5311 = vst [vmem:[#allocation3 + $0x174] sm:$0xf] %v5247
        %v5312 = vld [vmem:[#allocation3 + $0x4] sm:$0xc]
        %v5313 = vld [vmem:[#allocation3 + $0x8] sm:$0xf]
        %v5314 = vld [vmem:[#allocation3 + $0xc] sm:$0x7]
        %v5315 = vld [vmem:[#allocation3 + $0x1c] sm:$0xc]
        %v5316 = vld [vmem:[#allocation3 + $0x20] sm:$0xf]
        %v5317 = vld [vmem:[#allocation3 + $0x24] sm:$0x7]
        %v5318 = vld [vmem:[#allocation3 + $0x34] sm:$0xc]
        %v5319 = vld [vmem:[#allocation3 + $0x38] sm:$0xf]
        %v5320 = vld [vmem:[#allocation3 + $0x3c] sm:$0x7]
        %v5321 = vld [vmem:[#allocation3 + $0x4c] sm:$0xc]
        %v5322 = vld [vmem:[#allocation3 + $0x50] sm:$0xf]
        %v5323 = vld [vmem:[#allocation3 + $0x54] sm:$0x7]
        %v5324 = vld [vmem:[#allocation3 + $0x64] sm:$0xc]
        %v5325 = vld [vmem:[#allocation3 + $0x68] sm:$0xf]
        %v5326 = vld [vmem:[#allocation3 + $0x6c] sm:$0x7]
        %v5327 = vld [vmem:[#allocation3 + $0x7c] sm:$0xc]
        %v5328 = vld [vmem:[#allocation3 + $0x80] sm:$0xf]
        %v5329 = vld [vmem:[#allocation3 + $0x84] sm:$0x7]
        %v5330 = vld [vmem:[#allocation3 + $0x94] sm:$0xc]
        %v5331 = vld [vmem:[#allocation3 + $0x98] sm:$0xf]
        %v5332 = vld [vmem:[#allocation3 + $0x9c] sm:$0x7]
        %v5333 = vld [vmem:[#allocation3 + $0xac] sm:$0xc]
        %v5334 = vld [vmem:[#allocation3 + $0xb0] sm:$0xf]
        %v5335 = vld [vmem:[#allocation3 + $0xb4] sm:$0x7]
        %v5336 = vld [vmem:[#allocation3 + $0xc4] sm:$0xc]
        %v5337 = vld [vmem:[#allocation3 + $0xc8] sm:$0xf]
        %v5338 = vld [vmem:[#allocation3 + $0xcc] sm:$0x7]
        %v5339 = vld [vmem:[#allocation3 + $0xdc] sm:$0xc]
        %v5340 = vld [vmem:[#allocation3 + $0xe0] sm:$0xf]
        %v5341 = vld [vmem:[#allocation3 + $0xe4] sm:$0x7]
        %v5342 = vld [vmem:[#allocation3 + $0xf4] sm:$0xc]
        %v5343 = vld [vmem:[#allocation3 + $0xf8] sm:$0xf]
        %v5344 = vld [vmem:[#allocation3 + $0xfc] sm:$0x7]
        %v5345 = vld [vmem:[#allocation3 + $0x10c] sm:$0xc]
        %v5346 = vld [vmem:[#allocation3 + $0x110] sm:$0xf]
        %v5347 = vld [vmem:[#allocation3 + $0x114] sm:$0x7]
        %v5348 = vld [vmem:[#allocation3 + $0x124] sm:$0xc]
        %v5349 = vld [vmem:[#allocation3 + $0x128] sm:$0xf]
        %v5350 = vld [vmem:[#allocation3 + $0x12c] sm:$0x7]
        %v5351 = vld [vmem:[#allocation3 + $0x13c] sm:$0xc]
        %v5352 = vld [vmem:[#allocation3 + $0x140] sm:$0xf]
        %v5353 = vld [vmem:[#allocation3 + $0x144] sm:$0x7]
        %v5354 = vld [vmem:[#allocation3 + $0x154] sm:$0xc]
        %v5355 = vld [vmem:[#allocation3 + $0x158] sm:$0xf]
        %v5356 = vld [vmem:[#allocation3 + $0x15c] sm:$0x7]
        %v5357 = vld [vmem:[#allocation3 + $0x16c] sm:$0xc]
        %v5358 = vld [vmem:[#allocation3 + $0x170] sm:$0xf]
        %v5359 = vld [vmem:[#allocation3 + $0x174] sm:$0x7]
        %v5361 = vshrl.u32 %v5312, 16
        %v5363 = vrot.slane %v5361, 6
        %v5364 = vshll.u32 %v5312, 16
        %v5366 = vrot.slane %v5364, 7
        %v5367 = vor.u32 %v5363, %v5366
        %v5368 = vrot.slane %v5367, 4
        %v5370 = vshrl.u32 %v5313, 16
        %v5372 = vrot.slane %v5370, 6
        %v5373 = vshll.u32 %v5313, 16
        %v5375 = vrot.slane %v5373, 7
        %v5376 = vor.u32 %v5372, %v5375
        %v5377 = vsel %vm598, %v5368, %v5376
        %v5378 = vrot.slane %v5376, 4
        %v5380 = vshrl.u32 %v5314, 16
        %v5382 = vrot.slane %v5380, 6
        %v5383 = vshll.u32 %v5314, 16
        %v5385 = vrot.slane %v5383, 7
        %v5386 = vor.u32 %v5382, %v5385
        %v5387 = vsel %vm598, %v5378, %v5386
        %v5389 = vshrl.u32 %v5315, 16
        %v5391 = vrot.slane %v5389, 6
        %v5392 = vshll.u32 %v5315, 16
        %v5394 = vrot.slane %v5392, 7
        %v5395 = vor.u32 %v5391, %v5394
        %v5396 = vrot.slane %v5395, 4
        %v5398 = vshrl.u32 %v5316, 16
        %v5400 = vrot.slane %v5398, 6
        %v5401 = vshll.u32 %v5316, 16
        %v5403 = vrot.slane %v5401, 7
        %v5404 = vor.u32 %v5400, %v5403
        %v5405 = vsel %vm598, %v5396, %v5404
        %v5406 = vrot.slane %v5404, 4
        %v5408 = vshrl.u32 %v5317, 16
        %v5410 = vrot.slane %v5408, 6
        %v5411 = vshll.u32 %v5317, 16
        %v5413 = vrot.slane %v5411, 7
        %v5414 = vor.u32 %v5410, %v5413
        %v5415 = vsel %vm598, %v5406, %v5414
        %v5417 = vshrl.u32 %v5318, 16
        %v5419 = vrot.slane %v5417, 6
        %v5420 = vshll.u32 %v5318, 16
        %v5422 = vrot.slane %v5420, 7
        %v5423 = vor.u32 %v5419, %v5422
        %v5424 = vrot.slane %v5423, 4
        %v5426 = vshrl.u32 %v5319, 16
        %v5428 = vrot.slane %v5426, 6
        %v5429 = vshll.u32 %v5319, 16
        %v5431 = vrot.slane %v5429, 7
        %v5432 = vor.u32 %v5428, %v5431
        %v5433 = vsel %vm598, %v5424, %v5432
        %v5434 = vrot.slane %v5432, 4
        %v5436 = vshrl.u32 %v5320, 16
        %v5438 = vrot.slane %v5436, 6
        %v5439 = vshll.u32 %v5320, 16
        %v5441 = vrot.slane %v5439, 7
        %v5442 = vor.u32 %v5438, %v5441
        %v5443 = vsel %vm598, %v5434, %v5442
        %v5445 = vshrl.u32 %v5321, 16
        %v5447 = vrot.slane %v5445, 6
        %v5448 = vshll.u32 %v5321, 16
        %v5450 = vrot.slane %v5448, 7
        %v5451 = vor.u32 %v5447, %v5450
        %v5452 = vrot.slane %v5451, 4
        %v5454 = vshrl.u32 %v5322, 16
        %v5456 = vrot.slane %v5454, 6
        %v5457 = vshll.u32 %v5322, 16
        %v5459 = vrot.slane %v5457, 7
        %v5460 = vor.u32 %v5456, %v5459
        %v5461 = vsel %vm598, %v5452, %v5460
        %v5462 = vrot.slane %v5460, 4
        %v5464 = vshrl.u32 %v5323, 16
        %v5466 = vrot.slane %v5464, 6
        %v5467 = vshll.u32 %v5323, 16
        %v5469 = vrot.slane %v5467, 7
        %v5470 = vor.u32 %v5466, %v5469
        %v5471 = vsel %vm598, %v5462, %v5470
        %v5473 = vshrl.u32 %v5324, 16
        %v5475 = vrot.slane %v5473, 6
        %v5476 = vshll.u32 %v5324, 16
        %v5478 = vrot.slane %v5476, 7
        %v5479 = vor.u32 %v5475, %v5478
        %v5480 = vrot.slane %v5479, 4
        %v5482 = vshrl.u32 %v5325, 16
        %v5484 = vrot.slane %v5482, 6
        %v5485 = vshll.u32 %v5325, 16
        %v5487 = vrot.slane %v5485, 7
        %v5488 = vor.u32 %v5484, %v5487
        %v5489 = vsel %vm598, %v5480, %v5488
        %v5490 = vrot.slane %v5488, 4
        %v5492 = vshrl.u32 %v5326, 16
        %v5494 = vrot.slane %v5492, 6
        %v5495 = vshll.u32 %v5326, 16
        %v5497 = vrot.slane %v5495, 7
        %v5498 = vor.u32 %v5494, %v5497
        %v5499 = vsel %vm598, %v5490, %v5498
        %v5501 = vshrl.u32 %v5327, 16
        %v5503 = vrot.slane %v5501, 6
        %v5504 = vshll.u32 %v5327, 16
        %v5506 = vrot.slane %v5504, 7
        %v5507 = vor.u32 %v5503, %v5506
        %v5508 = vrot.slane %v5507, 4
        %v5510 = vshrl.u32 %v5328, 16
        %v5512 = vrot.slane %v5510, 6
        %v5513 = vshll.u32 %v5328, 16
        %v5515 = vrot.slane %v5513, 7
        %v5516 = vor.u32 %v5512, %v5515
        %v5517 = vsel %vm598, %v5508, %v5516
        %v5518 = vrot.slane %v5516, 4
        %v5520 = vshrl.u32 %v5329, 16
        %v5522 = vrot.slane %v5520, 6
        %v5523 = vshll.u32 %v5329, 16
        %v5525 = vrot.slane %v5523, 7
        %v5526 = vor.u32 %v5522, %v5525
        %v5527 = vsel %vm598, %v5518, %v5526
        %v5529 = vshrl.u32 %v5330, 16
        %v5531 = vrot.slane %v5529, 6
        %v5532 = vshll.u32 %v5330, 16
        %v5534 = vrot.slane %v5532, 7
        %v5535 = vor.u32 %v5531, %v5534
        %v5536 = vrot.slane %v5535, 4
        %v5538 = vshrl.u32 %v5331, 16
        %v5540 = vrot.slane %v5538, 6
        %v5541 = vshll.u32 %v5331, 16
        %v5543 = vrot.slane %v5541, 7
        %v5544 = vor.u32 %v5540, %v5543
        %v5545 = vsel %vm598, %v5536, %v5544
        %v5546 = vrot.slane %v5544, 4
        %v5548 = vshrl.u32 %v5332, 16
        %v5550 = vrot.slane %v5548, 6
        %v5551 = vshll.u32 %v5332, 16
        %v5553 = vrot.slane %v5551, 7
        %v5554 = vor.u32 %v5550, %v5553
        %v5555 = vsel %vm598, %v5546, %v5554
        %v5557 = vshrl.u32 %v5333, 16
        %v5559 = vrot.slane %v5557, 6
        %v5560 = vshll.u32 %v5333, 16
        %v5562 = vrot.slane %v5560, 7
        %v5563 = vor.u32 %v5559, %v5562
        %v5564 = vrot.slane %v5563, 4
        %v5566 = vshrl.u32 %v5334, 16
        %v5568 = vrot.slane %v5566, 6
        %v5569 = vshll.u32 %v5334, 16
        %v5571 = vrot.slane %v5569, 7
        %v5572 = vor.u32 %v5568, %v5571
        %v5573 = vsel %vm598, %v5564, %v5572
        %v5574 = vrot.slane %v5572, 4
        %v5576 = vshrl.u32 %v5335, 16
        %v5578 = vrot.slane %v5576, 6
        %v5579 = vshll.u32 %v5335, 16
        %v5581 = vrot.slane %v5579, 7
        %v5582 = vor.u32 %v5578, %v5581
        %v5583 = vsel %vm598, %v5574, %v5582
        %v5585 = vshrl.u32 %v5336, 16
        %v5587 = vrot.slane %v5585, 6
        %v5588 = vshll.u32 %v5336, 16
        %v5590 = vrot.slane %v5588, 7
        %v5591 = vor.u32 %v5587, %v5590
        %v5592 = vrot.slane %v5591, 4
        %v5594 = vshrl.u32 %v5337, 16
        %v5596 = vrot.slane %v5594, 6
        %v5597 = vshll.u32 %v5337, 16
        %v5599 = vrot.slane %v5597, 7
        %v5600 = vor.u32 %v5596, %v5599
        %v5601 = vsel %vm598, %v5592, %v5600
        %v5602 = vrot.slane %v5600, 4
        %v5604 = vshrl.u32 %v5338, 16
        %v5606 = vrot.slane %v5604, 6
        %v5607 = vshll.u32 %v5338, 16
        %v5609 = vrot.slane %v5607, 7
        %v5610 = vor.u32 %v5606, %v5609
        %v5611 = vsel %vm598, %v5602, %v5610
        %v5613 = vshrl.u32 %v5339, 16
        %v5615 = vrot.slane %v5613, 6
        %v5616 = vshll.u32 %v5339, 16
        %v5618 = vrot.slane %v5616, 7
        %v5619 = vor.u32 %v5615, %v5618
        %v5620 = vrot.slane %v5619, 4
        %v5622 = vshrl.u32 %v5340, 16
        %v5624 = vrot.slane %v5622, 6
        %v5625 = vshll.u32 %v5340, 16
        %v5627 = vrot.slane %v5625, 7
        %v5628 = vor.u32 %v5624, %v5627
        %v5629 = vsel %vm598, %v5620, %v5628
        %v5630 = vrot.slane %v5628, 4
        %v5632 = vshrl.u32 %v5341, 16
        %v5634 = vrot.slane %v5632, 6
        %v5635 = vshll.u32 %v5341, 16
        %v5637 = vrot.slane %v5635, 7
        %v5638 = vor.u32 %v5634, %v5637
        %v5639 = vsel %vm598, %v5630, %v5638
        %v5641 = vshrl.u32 %v5342, 16
        %v5643 = vrot.slane %v5641, 6
        %v5644 = vshll.u32 %v5342, 16
        %v5646 = vrot.slane %v5644, 7
        %v5647 = vor.u32 %v5643, %v5646
        %v5648 = vrot.slane %v5647, 4
        %v5650 = vshrl.u32 %v5343, 16
        %v5652 = vrot.slane %v5650, 6
        %v5653 = vshll.u32 %v5343, 16
        %v5655 = vrot.slane %v5653, 7
        %v5656 = vor.u32 %v5652, %v5655
        %v5657 = vsel %vm598, %v5648, %v5656
        %v5658 = vrot.slane %v5656, 4
        %v5660 = vshrl.u32 %v5344, 16
        %v5662 = vrot.slane %v5660, 6
        %v5663 = vshll.u32 %v5344, 16
        %v5665 = vrot.slane %v5663, 7
        %v5666 = vor.u32 %v5662, %v5665
        %v5667 = vsel %vm598, %v5658, %v5666
        %v5669 = vshrl.u32 %v5345, 16
        %v5671 = vrot.slane %v5669, 6
        %v5672 = vshll.u32 %v5345, 16
        %v5674 = vrot.slane %v5672, 7
        %v5675 = vor.u32 %v5671, %v5674
        %v5676 = vrot.slane %v5675, 4
        %v5678 = vshrl.u32 %v5346, 16
        %v5680 = vrot.slane %v5678, 6
        %v5681 = vshll.u32 %v5346, 16
        %v5683 = vrot.slane %v5681, 7
        %v5684 = vor.u32 %v5680, %v5683
        %v5685 = vsel %vm598, %v5676, %v5684
        %v5686 = vrot.slane %v5684, 4
        %v5688 = vshrl.u32 %v5347, 16
        %v5690 = vrot.slane %v5688, 6
        %v5691 = vshll.u32 %v5347, 16
        %v5693 = vrot.slane %v5691, 7
        %v5694 = vor.u32 %v5690, %v5693
        %v5695 = vsel %vm598, %v5686, %v5694
        %v5697 = vshrl.u32 %v5348, 16
        %v5699 = vrot.slane %v5697, 6
        %v5700 = vshll.u32 %v5348, 16
        %v5702 = vrot.slane %v5700, 7
        %v5703 = vor.u32 %v5699, %v5702
        %v5704 = vrot.slane %v5703, 4
        %v5706 = vshrl.u32 %v5349, 16
        %v5708 = vrot.slane %v5706, 6
        %v5709 = vshll.u32 %v5349, 16
        %v5711 = vrot.slane %v5709, 7
        %v5712 = vor.u32 %v5708, %v5711
        %v5713 = vsel %vm598, %v5704, %v5712
        %v5714 = vrot.slane %v5712, 4
        %v5716 = vshrl.u32 %v5350, 16
        %v5718 = vrot.slane %v5716, 6
        %v5719 = vshll.u32 %v5350, 16
        %v5721 = vrot.slane %v5719, 7
        %v5722 = vor.u32 %v5718, %v5721
        %v5723 = vsel %vm598, %v5714, %v5722
        %v5725 = vshrl.u32 %v5351, 16
        %v5727 = vrot.slane %v5725, 6
        %v5728 = vshll.u32 %v5351, 16
        %v5730 = vrot.slane %v5728, 7
        %v5731 = vor.u32 %v5727, %v5730
        %v5732 = vrot.slane %v5731, 4
        %v5734 = vshrl.u32 %v5352, 16
        %v5736 = vrot.slane %v5734, 6
        %v5737 = vshll.u32 %v5352, 16
        %v5739 = vrot.slane %v5737, 7
        %v5740 = vor.u32 %v5736, %v5739
        %v5741 = vsel %vm598, %v5732, %v5740
        %v5742 = vrot.slane %v5740, 4
        %v5744 = vshrl.u32 %v5353, 16
        %v5746 = vrot.slane %v5744, 6
        %v5747 = vshll.u32 %v5353, 16
        %v5749 = vrot.slane %v5747, 7
        %v5750 = vor.u32 %v5746, %v5749
        %v5751 = vsel %vm598, %v5742, %v5750
        %v5753 = vshrl.u32 %v5354, 16
        %v5755 = vrot.slane %v5753, 6
        %v5756 = vshll.u32 %v5354, 16
        %v5758 = vrot.slane %v5756, 7
        %v5759 = vor.u32 %v5755, %v5758
        %v5760 = vrot.slane %v5759, 4
        %v5762 = vshrl.u32 %v5355, 16
        %v5764 = vrot.slane %v5762, 6
        %v5765 = vshll.u32 %v5355, 16
        %v5767 = vrot.slane %v5765, 7
        %v5768 = vor.u32 %v5764, %v5767
        %v5769 = vsel %vm598, %v5760, %v5768
        %v5770 = vrot.slane %v5768, 4
        %v5772 = vshrl.u32 %v5356, 16
        %v5774 = vrot.slane %v5772, 6
        %v5775 = vshll.u32 %v5356, 16
        %v5777 = vrot.slane %v5775, 7
        %v5778 = vor.u32 %v5774, %v5777
        %v5779 = vsel %vm598, %v5770, %v5778
        %v5781 = vshrl.u32 %v5357, 16
        %v5783 = vrot.slane %v5781, 6
        %v5784 = vshll.u32 %v5357, 16
        %v5786 = vrot.slane %v5784, 7
        %v5787 = vor.u32 %v5783, %v5786
        %v5788 = vrot.slane %v5787, 4
        %v5790 = vshrl.u32 %v5358, 16
        %v5792 = vrot.slane %v5790, 6
        %v5793 = vshll.u32 %v5358, 16
        %v5795 = vrot.slane %v5793, 7
        %v5796 = vor.u32 %v5792, %v5795
        %v5797 = vsel %vm598, %v5788, %v5796
        %v5798 = vrot.slane %v5796, 4
        %v5800 = vshrl.u32 %v5359, 16
        %v5802 = vrot.slane %v5800, 6
        %v5803 = vshll.u32 %v5359, 16
        %v5805 = vrot.slane %v5803, 7
        %v5806 = vor.u32 %v5802, %v5805
        %v5807 = vsel %vm598, %v5798, %v5806
        %v5808 = vld [vmem:[#allocation4] sm:$0xf]
        %v5809 = vld [vmem:[#allocation4 + $0x4] sm:$0xf]
        %v5810 = vld [vmem:[#allocation4 + $0x8] sm:$0xf]
        %v5811 = vld [vmem:[#allocation4 + $0xc] sm:$0xf]
        %v5812 = vld [vmem:[#allocation4 + $0x10] sm:$0xf]
        %v5813 = vld [vmem:[#allocation4 + $0x14] sm:$0xf]
        %v5814 = vld [vmem:[#allocation4 + $0x18] sm:$0xf]
        %v5815 = vld [vmem:[#allocation4 + $0x1c] sm:$0xf]
        %v5816 = vld [vmem:[#allocation4 + $0x20] sm:$0xf]
        %v5817 = vld [vmem:[#allocation4 + $0x24] sm:$0xf]
        %v5818 = vld [vmem:[#allocation4 + $0x28] sm:$0xf]
        %v5819 = vld [vmem:[#allocation4 + $0x2c] sm:$0xf]
        %v5820 = vld [vmem:[#allocation4 + $0x30] sm:$0xf]
        %v5821 = vld [vmem:[#allocation4 + $0x34] sm:$0xf]
        %v5822 = vld [vmem:[#allocation4 + $0x38] sm:$0xf]
        %v5823 = vld [vmem:[#allocation4 + $0x3c] sm:$0xf]
        %v5824 = vld [vmem:[#allocation3 + $0x4] sm:$0x8]
        %v5825 = vld [vmem:[#allocation3 + $0x1c] sm:$0x8]
        %v5826 = vld [vmem:[#allocation3 + $0x34] sm:$0x8]
        %v5827 = vld [vmem:[#allocation3 + $0x4c] sm:$0x8]
        %v5828 = vld [vmem:[#allocation3 + $0x64] sm:$0x8]
        %v5829 = vld [vmem:[#allocation3 + $0x7c] sm:$0x8]
        %v5830 = vld [vmem:[#allocation3 + $0x94] sm:$0x8]
        %v5831 = vld [vmem:[#allocation3 + $0xac] sm:$0x8]
        %v5832 = vld [vmem:[#allocation3 + $0xc4] sm:$0x8]
        %v5833 = vld [vmem:[#allocation3 + $0xdc] sm:$0x8]
        %v5834 = vld [vmem:[#allocation3 + $0xf4] sm:$0x8]
        %v5835 = vld [vmem:[#allocation3 + $0x10c] sm:$0x8]
        %v5836 = vld [vmem:[#allocation3 + $0x124] sm:$0x8]
        %v5837 = vld [vmem:[#allocation3 + $0x13c] sm:$0x8]
        %v5838 = vld [vmem:[#allocation3 + $0x154] sm:$0x8]
        %v5839 = vld [vmem:[#allocation3 + $0x16c] sm:$0x8]
        %v5888 = vrot.slane %v5824, 7
        %v5889 = vrot.slane %v5888, 4
        %v5890 = vrot.slane %v5313, 7
        %v5891 = vsel %vm1117, %v5889, %v5890
        %v5892 = vrot.slane %v5890, 4
        %v5893 = vrot.slane %v5314, 7
        %v5894 = vsel %vm1117, %v5892, %v5893
        %v5895 = vrot.slane %v5825, 7
        %v5896 = vrot.slane %v5895, 4
        %v5897 = vrot.slane %v5316, 7
        %v5898 = vsel %vm1117, %v5896, %v5897
        %v5899 = vrot.slane %v5897, 4
        %v5900 = vrot.slane %v5317, 7
        %v5901 = vsel %vm1117, %v5899, %v5900
        %v5902 = vrot.slane %v5826, 7
        %v5903 = vrot.slane %v5902, 4
        %v5904 = vrot.slane %v5319, 7
        %v5905 = vsel %vm1117, %v5903, %v5904
        %v5906 = vrot.slane %v5904, 4
        %v5907 = vrot.slane %v5320, 7
        %v5908 = vsel %vm1117, %v5906, %v5907
        %v5909 = vrot.slane %v5827, 7
        %v5910 = vrot.slane %v5909, 4
        %v5911 = vrot.slane %v5322, 7
        %v5912 = vsel %vm1117, %v5910, %v5911
        %v5913 = vrot.slane %v5911, 4
        %v5914 = vrot.slane %v5323, 7
        %v5915 = vsel %vm1117, %v5913, %v5914
        %v5916 = vrot.slane %v5828, 7
        %v5917 = vrot.slane %v5916, 4
        %v5918 = vrot.slane %v5325, 7
        %v5919 = vsel %vm1117, %v5917, %v5918
        %v5920 = vrot.slane %v5918, 4
        %v5921 = vrot.slane %v5326, 7
        %v5922 = vsel %vm1117, %v5920, %v5921
        %v5923 = vrot.slane %v5829, 7
        %v5924 = vrot.slane %v5923, 4
        %v5925 = vrot.slane %v5328, 7
        %v5926 = vsel %vm1117, %v5924, %v5925
        %v5927 = vrot.slane %v5925, 4
        %v5928 = vrot.slane %v5329, 7
        %v5929 = vsel %vm1117, %v5927, %v5928
        %v5930 = vrot.slane %v5830, 7
        %v5931 = vrot.slane %v5930, 4
        %v5932 = vrot.slane %v5331, 7
        %v5933 = vsel %vm1117, %v5931, %v5932
        %v5934 = vrot.slane %v5932, 4
        %v5935 = vrot.slane %v5332, 7
        %v5936 = vsel %vm1117, %v5934, %v5935
        %v5937 = vrot.slane %v5831, 7
        %v5938 = vrot.slane %v5937, 4
        %v5939 = vrot.slane %v5334, 7
        %v5940 = vsel %vm1117, %v5938, %v5939
        %v5941 = vrot.slane %v5939, 4
        %v5942 = vrot.slane %v5335, 7
        %v5943 = vsel %vm1117, %v5941, %v5942
        %v5944 = vrot.slane %v5832, 7
        %v5945 = vrot.slane %v5944, 4
        %v5946 = vrot.slane %v5337, 7
        %v5947 = vsel %vm1117, %v5945, %v5946
        %v5948 = vrot.slane %v5946, 4
        %v5949 = vrot.slane %v5338, 7
        %v5950 = vsel %vm1117, %v5948, %v5949
        %v5951 = vrot.slane %v5833, 7
        %v5952 = vrot.slane %v5951, 4
        %v5953 = vrot.slane %v5340, 7
        %v5954 = vsel %vm1117, %v5952, %v5953
        %v5955 = vrot.slane %v5953, 4
        %v5956 = vrot.slane %v5341, 7
        %v5957 = vsel %vm1117, %v5955, %v5956
        %v5958 = vrot.slane %v5834, 7
        %v5959 = vrot.slane %v5958, 4
        %v5960 = vrot.slane %v5343, 7
        %v5961 = vsel %vm1117, %v5959, %v5960
        %v5962 = vrot.slane %v5960, 4
        %v5963 = vrot.slane %v5344, 7
        %v5964 = vsel %vm1117, %v5962, %v5963
        %v5965 = vrot.slane %v5835, 7
        %v5966 = vrot.slane %v5965, 4
        %v5967 = vrot.slane %v5346, 7
        %v5968 = vsel %vm1117, %v5966, %v5967
        %v5969 = vrot.slane %v5967, 4
        %v5970 = vrot.slane %v5347, 7
        %v5971 = vsel %vm1117, %v5969, %v5970
        %v5972 = vrot.slane %v5836, 7
        %v5973 = vrot.slane %v5972, 4
        %v5974 = vrot.slane %v5349, 7
        %v5975 = vsel %vm1117, %v5973, %v5974
        %v5976 = vrot.slane %v5974, 4
        %v5977 = vrot.slane %v5350, 7
        %v5978 = vsel %vm1117, %v5976, %v5977
        %v5979 = vrot.slane %v5837, 7
        %v5980 = vrot.slane %v5979, 4
        %v5981 = vrot.slane %v5352, 7
        %v5982 = vsel %vm1117, %v5980, %v5981
        %v5983 = vrot.slane %v5981, 4
        %v5984 = vrot.slane %v5353, 7
        %v5985 = vsel %vm1117, %v5983, %v5984
        %v5986 = vrot.slane %v5838, 7
        %v5987 = vrot.slane %v5986, 4
        %v5988 = vrot.slane %v5355, 7
        %v5989 = vsel %vm1117, %v5987, %v5988
        %v5990 = vrot.slane %v5988, 4
        %v5991 = vrot.slane %v5356, 7
        %v5992 = vsel %vm1117, %v5990, %v5991
        %v5993 = vrot.slane %v5839, 7
        %v5994 = vrot.slane %v5993, 4
        %v5995 = vrot.slane %v5358, 7
        %v5996 = vsel %vm1117, %v5994, %v5995
        %v5997 = vrot.slane %v5995, 4
        %v5998 = vrot.slane %v5359, 7
        %v5999 = vsel %vm1117, %v5997, %v5998
        %s6000 = scalar_lea.vmem [#allocation4], 64
        %v6001 = vld [vmem:[%s6000] sm:$0xf]
        %v6002 = vld [vmem:[%s6000 + $0x4] sm:$0xf]
        %v6003 = vld [vmem:[%s6000 + $0x8] sm:$0xf]
        %v6004 = vld [vmem:[%s6000 + $0xc] sm:$0xf]
        %v6005 = vld [vmem:[%s6000 + $0x10] sm:$0xf]
        %v6006 = vld [vmem:[%s6000 + $0x14] sm:$0xf]
        %v6007 = vld [vmem:[%s6000 + $0x18] sm:$0xf]
        %v6008 = vld [vmem:[%s6000 + $0x1c] sm:$0xf]
        %v6009 = vld [vmem:[%s6000 + $0x20] sm:$0xf]
        %v6010 = vld [vmem:[%s6000 + $0x24] sm:$0xf]
        %v6011 = vld [vmem:[%s6000 + $0x28] sm:$0xf]
        %v6012 = vld [vmem:[%s6000 + $0x2c] sm:$0xf]
        %v6013 = vld [vmem:[%s6000 + $0x30] sm:$0xf]
        %v6014 = vld [vmem:[%s6000 + $0x34] sm:$0xf]
        %v6015 = vld [vmem:[%s6000 + $0x38] sm:$0xf]
        %v6016 = vld [vmem:[%s6000 + $0x3c] sm:$0xf]
        %v6017 = vunpack.c.l.b16 %v5891
        %v6018 = vunpack.c.l.b16 %v5894
        %v6019 = vunpack.c.l.b16 %v5898
        %v6020 = vunpack.c.l.b16 %v5901
        %v6021 = vunpack.c.l.b16 %v5905
        %v6022 = vunpack.c.l.b16 %v5908
        %v6023 = vunpack.c.l.b16 %v5912
        %v6024 = vunpack.c.l.b16 %v5915
        %v6025 = vunpack.c.l.b16 %v5919
        %v6026 = vunpack.c.l.b16 %v5922
        %v6027 = vunpack.c.l.b16 %v5926
        %v6028 = vunpack.c.l.b16 %v5929
        %v6029 = vunpack.c.l.b16 %v5933
        %v6030 = vunpack.c.l.b16 %v5936
        %v6031 = vunpack.c.l.b16 %v5940
        %v6032 = vunpack.c.l.b16 %v5943
        %v6033 = vunpack.c.l.b16 %v5947
        %v6034 = vunpack.c.l.b16 %v5950
        %v6035 = vunpack.c.l.b16 %v5954
        %v6036 = vunpack.c.l.b16 %v5957
        %v6037 = vunpack.c.l.b16 %v5961
        %v6038 = vunpack.c.l.b16 %v5964
        %v6039 = vunpack.c.l.b16 %v5968
        %v6040 = vunpack.c.l.b16 %v5971
        %v6041 = vunpack.c.l.b16 %v5975
        %v6042 = vunpack.c.l.b16 %v5978
        %v6043 = vunpack.c.l.b16 %v5982
        %v6044 = vunpack.c.l.b16 %v5985
        %v6045 = vunpack.c.l.b16 %v5989
        %v6046 = vunpack.c.l.b16 %v5992
        %v6047 = vunpack.c.l.b16 %v5996
        %v6048 = vunpack.c.l.b16 %v5999
        %v6049 = vpack.c.b16 %v6018, %v6017
        %v6050 = vpack.c.b16 %v6020, %v6019
        %v6051 = vpack.c.b16 %v6022, %v6021
        %v6052 = vpack.c.b16 %v6024, %v6023
        %v6053 = vpack.c.b16 %v6026, %v6025
        %v6054 = vpack.c.b16 %v6028, %v6027
        %v6055 = vpack.c.b16 %v6030, %v6029
        %v6056 = vpack.c.b16 %v6032, %v6031
        %v6057 = vpack.c.b16 %v6034, %v6033
        %v6058 = vpack.c.b16 %v6036, %v6035
        %v6059 = vpack.c.b16 %v6038, %v6037
        %v6060 = vpack.c.b16 %v6040, %v6039
        %v6061 = vpack.c.b16 %v6042, %v6041
        %v6062 = vpack.c.b16 %v6044, %v6043
        %v6063 = vpack.c.b16 %v6046, %v6045
        %v6064 = vpack.c.b16 %v6048, %v6047
        %v6097 = vunpack.c.l.b16 %v6001
        %v6098 = vunpack.c.l.b16 %v6002
        %v6099 = vunpack.c.l.b16 %v6003
        %v6100 = vunpack.c.l.b16 %v6004
        %v6101 = vunpack.c.l.b16 %v6005
        %v6102 = vunpack.c.l.b16 %v6006
        %v6103 = vunpack.c.l.b16 %v6007
        %v6104 = vunpack.c.l.b16 %v6008
        %v6105 = vunpack.c.l.b16 %v6009
        %v6106 = vunpack.c.l.b16 %v6010
        %v6107 = vunpack.c.l.b16 %v6011
        %v6108 = vunpack.c.l.b16 %v6012
        %v6109 = vunpack.c.l.b16 %v6013
        %v6110 = vunpack.c.l.b16 %v6014
        %v6111 = vunpack.c.l.b16 %v6015
        %v6112 = vunpack.c.l.b16 %v6016
        %v6113 = vpack.c.b16 %v6098, %v6097
        %v6114 = vpack.c.b16 %v6100, %v6099
        %v6115 = vpack.c.b16 %v6102, %v6101
        %v6116 = vpack.c.b16 %v6104, %v6103
        %v6117 = vpack.c.b16 %v6106, %v6105
        %v6118 = vpack.c.b16 %v6108, %v6107
        %v6119 = vpack.c.b16 %v6110, %v6109
        %v6120 = vpack.c.b16 %v6112, %v6111
        %6129 = vmatprep.subr.bf16.mxu0 0
        %6130 = vmatpush1.bf16.msra.mxu0 %v6120
        %6131 = vmatprep.subr.bf16.mxu0 0
        %6132 = vmatpush1.bf16.msra.mxu0 %v6119
        %6133 = vmatprep.subr.bf16.mxu0 0
        %6134 = vmatpush1.bf16.msra.mxu0 %v6118
        %6135 = vmatprep.subr.bf16.mxu0 0
        %6136 = vmatpush1.bf16.msra.mxu0 %v6117
        %6137 = vmatprep.subr.bf16.mxu0 0
        %6138 = vmatpush1.bf16.msra.mxu0 %v6116
        %6139 = vmatprep.subr.bf16.mxu0 0
        %6140 = vmatpush1.bf16.msra.mxu0 %v6115
        %6141 = vmatprep.subr.bf16.mxu0 0
        %6142 = vmatpush1.bf16.msra.mxu0 %v6114
        %6143 = vmatprep.subr.bf16.mxu0 0
        %6144 = vmatpush1.bf16.msra.mxu0 %v6113
        %6145 = vmatprep.subr.bf16.mxu0 0
        %6146 = vmatpush2.bf16.msra.mxu0 0
        %6147 = vmatprep.subr.bf16.mxu0 0
        %6148 = vmatpush2.bf16.msra.mxu0 0
        %6149 = vmatprep.subr.bf16.mxu0 0
        %6150 = vmatpush2.bf16.msra.mxu0 0
        %6151 = vmatprep.subr.bf16.mxu0 0
        %6152 = vmatpush2.bf16.msra.mxu0 0
        %6153 = vmatprep.subr.bf16.mxu0 0
        %6154 = vmatpush2.bf16.msra.mxu0 0
        %6155 = vmatprep.subr.bf16.mxu0 0
        %6156 = vmatpush2.bf16.msra.mxu0 0
        %6157 = vmatprep.subr.bf16.mxu0 0
        %6158 = vmatpush2.bf16.msra.mxu0 0
        %6159 = vmatprep.subr.bf16.mxu0 0
        %6160 = vmatpush2.bf16.msra.mxu0 0
        %6161 = vmatprep.mubr.bf16.mxu0 0
        %6162 = vmatmul.mubr.bf16.gmra.mxu0 %v6049
        %v6163 = vpop.f32.mrf.mxu0
        %v6164 = vadd.f32 0.0, %v6163
        %v6165 = vpop.f32.mrf.mxu0
        %v6166 = vpop.f32.mrf.mxu0
        %v6167 = vadd.f32 0.0, %v6166
        %v6168 = vpop.f32.mrf.mxu0
        %6169 = vmatprep.mubr.bf16.mxu0 0
        %6170 = vmatmul.mubr.bf16.gmra.mxu0 %v6050
        %v6171 = vpop.f32.mrf.mxu0
        %v6172 = vadd.f32 0.0, %v6171
        %v6173 = vpop.f32.mrf.mxu0
        %v6174 = vpop.f32.mrf.mxu0
        %v6175 = vadd.f32 0.0, %v6174
        %v6176 = vpop.f32.mrf.mxu0
        %6177 = vmatprep.mubr.bf16.mxu0 0
        %6178 = vmatmul.mubr.bf16.gmra.mxu0 %v6051
        %v6179 = vpop.f32.mrf.mxu0
        %v6180 = vadd.f32 0.0, %v6179
        %v6181 = vpop.f32.mrf.mxu0
        %v6182 = vpop.f32.mrf.mxu0
        %v6183 = vadd.f32 0.0, %v6182
        %v6184 = vpop.f32.mrf.mxu0
        %6185 = vmatprep.mubr.bf16.mxu0 0
        %6186 = vmatmul.mubr.bf16.gmra.mxu0 %v6052
        %v6187 = vpop.f32.mrf.mxu0
        %v6188 = vadd.f32 0.0, %v6187
        %v6189 = vpop.f32.mrf.mxu0
        %v6190 = vpop.f32.mrf.mxu0
        %v6191 = vadd.f32 0.0, %v6190
        %v6192 = vpop.f32.mrf.mxu0
        %6193 = vmatprep.mubr.bf16.mxu0 0
        %6194 = vmatmul.mubr.bf16.gmra.mxu0 %v6053
        %v6195 = vpop.f32.mrf.mxu0
        %v6196 = vadd.f32 0.0, %v6195
        %v6197 = vpop.f32.mrf.mxu0
        %v6198 = vpop.f32.mrf.mxu0
        %v6199 = vadd.f32 0.0, %v6198
        %v6200 = vpop.f32.mrf.mxu0
        %6201 = vmatprep.mubr.bf16.mxu0 0
        %6202 = vmatmul.mubr.bf16.gmra.mxu0 %v6054
        %v6203 = vpop.f32.mrf.mxu0
        %v6204 = vadd.f32 0.0, %v6203
        %v6205 = vpop.f32.mrf.mxu0
        %v6206 = vpop.f32.mrf.mxu0
        %v6207 = vadd.f32 0.0, %v6206
        %v6208 = vpop.f32.mrf.mxu0
        %6209 = vmatprep.mubr.bf16.mxu0 0
        %6210 = vmatmul.mubr.bf16.gmra.mxu0 %v6055
        %v6211 = vpop.f32.mrf.mxu0
        %v6212 = vadd.f32 0.0, %v6211
        %v6213 = vpop.f32.mrf.mxu0
        %v6214 = vpop.f32.mrf.mxu0
        %v6215 = vadd.f32 0.0, %v6214
        %v6216 = vpop.f32.mrf.mxu0
        %6217 = vmatprep.mubr.bf16.mxu0 0
        %6218 = vmatmul.mubr.bf16.gmra.mxu0 %v6056
        %v6219 = vpop.f32.mrf.mxu0
        %v6220 = vadd.f32 0.0, %v6219
        %v6221 = vpop.f32.mrf.mxu0
        %v6222 = vpop.f32.mrf.mxu0
        %v6223 = vadd.f32 0.0, %v6222
        %v6224 = vpop.f32.mrf.mxu0
        %6225 = vmatprep.mubr.bf16.mxu0 0
        %6226 = vmatmul.mubr.bf16.gmra.mxu0 %v6057
        %v6227 = vpop.f32.mrf.mxu0
        %v6228 = vadd.f32 0.0, %v6227
        %v6229 = vpop.f32.mrf.mxu0
        %v6230 = vpop.f32.mrf.mxu0
        %v6231 = vadd.f32 0.0, %v6230
        %v6232 = vpop.f32.mrf.mxu0
        %6233 = vmatprep.mubr.bf16.mxu0 0
        %6234 = vmatmul.mubr.bf16.gmra.mxu0 %v6058
        %v6235 = vpop.f32.mrf.mxu0
        %v6236 = vadd.f32 0.0, %v6235
        %v6237 = vpop.f32.mrf.mxu0
        %v6238 = vpop.f32.mrf.mxu0
        %v6239 = vadd.f32 0.0, %v6238
        %v6240 = vpop.f32.mrf.mxu0
        %6241 = vmatprep.mubr.bf16.mxu0 0
        %6242 = vmatmul.mubr.bf16.gmra.mxu0 %v6059
        %v6243 = vpop.f32.mrf.mxu0
        %v6244 = vadd.f32 0.0, %v6243
        %v6245 = vpop.f32.mrf.mxu0
        %v6246 = vpop.f32.mrf.mxu0
        %v6247 = vadd.f32 0.0, %v6246
        %v6248 = vpop.f32.mrf.mxu0
        %6249 = vmatprep.mubr.bf16.mxu0 0
        %6250 = vmatmul.mubr.bf16.gmra.mxu0 %v6060
        %v6251 = vpop.f32.mrf.mxu0
        %v6252 = vadd.f32 0.0, %v6251
        %v6253 = vpop.f32.mrf.mxu0
        %v6254 = vpop.f32.mrf.mxu0
        %v6255 = vadd.f32 0.0, %v6254
        %v6256 = vpop.f32.mrf.mxu0
        %6257 = vmatprep.mubr.bf16.mxu0 0
        %6258 = vmatmul.mubr.bf16.gmra.mxu0 %v6061
        %v6259 = vpop.f32.mrf.mxu0
        %v6260 = vadd.f32 0.0, %v6259
        %v6261 = vpop.f32.mrf.mxu0
        %v6262 = vpop.f32.mrf.mxu0
        %v6263 = vadd.f32 0.0, %v6262
        %v6264 = vpop.f32.mrf.mxu0
        %6265 = vmatprep.mubr.bf16.mxu0 0
        %6266 = vmatmul.mubr.bf16.gmra.mxu0 %v6062
        %v6267 = vpop.f32.mrf.mxu0
        %v6268 = vadd.f32 0.0, %v6267
        %v6269 = vpop.f32.mrf.mxu0
        %v6270 = vpop.f32.mrf.mxu0
        %v6271 = vadd.f32 0.0, %v6270
        %v6272 = vpop.f32.mrf.mxu0
        %6273 = vmatprep.mubr.bf16.mxu0 0
        %6274 = vmatmul.mubr.bf16.gmra.mxu0 %v6063
        %v6275 = vpop.f32.mrf.mxu0
        %v6276 = vadd.f32 0.0, %v6275
        %v6277 = vpop.f32.mrf.mxu0
        %v6278 = vpop.f32.mrf.mxu0
        %v6279 = vadd.f32 0.0, %v6278
        %v6280 = vpop.f32.mrf.mxu0
        %6281 = vmatprep.mubr.bf16.mxu0 0
        %6282 = vmatmul.mubr.bf16.gmra.mxu0 %v6064
        %v6283 = vpop.f32.mrf.mxu0
        %v6284 = vadd.f32 0.0, %v6283
        %v6285 = vpop.f32.mrf.mxu0
        %v6286 = vpop.f32.mrf.mxu0
        %v6287 = vadd.f32 0.0, %v6286
        %v6288 = vpop.f32.mrf.mxu0
        %6289 = vdwg.mxu0
        %v6290 = vunpack.c.l.b16 %v5377
        %v6291 = vunpack.c.l.b16 %v5387
        %v6292 = vunpack.c.l.b16 %v5405
        %v6293 = vunpack.c.l.b16 %v5415
        %v6294 = vunpack.c.l.b16 %v5433
        %v6295 = vunpack.c.l.b16 %v5443
        %v6296 = vunpack.c.l.b16 %v5461
        %v6297 = vunpack.c.l.b16 %v5471
        %v6298 = vunpack.c.l.b16 %v5489
        %v6299 = vunpack.c.l.b16 %v5499
        %v6300 = vunpack.c.l.b16 %v5517
        %v6301 = vunpack.c.l.b16 %v5527
        %v6302 = vunpack.c.l.b16 %v5545
        %v6303 = vunpack.c.l.b16 %v5555
        %v6304 = vunpack.c.l.b16 %v5573
        %v6305 = vunpack.c.l.b16 %v5583
        %v6306 = vunpack.c.l.b16 %v5601
        %v6307 = vunpack.c.l.b16 %v5611
        %v6308 = vunpack.c.l.b16 %v5629
        %v6309 = vunpack.c.l.b16 %v5639
        %v6310 = vunpack.c.l.b16 %v5657
        %v6311 = vunpack.c.l.b16 %v5667
        %v6312 = vunpack.c.l.b16 %v5685
        %v6313 = vunpack.c.l.b16 %v5695
        %v6314 = vunpack.c.l.b16 %v5713
        %v6315 = vunpack.c.l.b16 %v5723
        %v6316 = vunpack.c.l.b16 %v5741
        %v6317 = vunpack.c.l.b16 %v5751
        %v6318 = vunpack.c.l.b16 %v5769
        %v6319 = vunpack.c.l.b16 %v5779
        %v6320 = vunpack.c.l.b16 %v5797
        %v6321 = vunpack.c.l.b16 %v5807
        %v6322 = vpack.c.b16 %v6291, %v6290
        %v6323 = vpack.c.b16 %v6293, %v6292
        %v6324 = vpack.c.b16 %v6295, %v6294
        %v6325 = vpack.c.b16 %v6297, %v6296
        %v6326 = vpack.c.b16 %v6299, %v6298
        %v6327 = vpack.c.b16 %v6301, %v6300
        %v6328 = vpack.c.b16 %v6303, %v6302
        %v6329 = vpack.c.b16 %v6305, %v6304
        %v6330 = vpack.c.b16 %v6307, %v6306
        %v6331 = vpack.c.b16 %v6309, %v6308
        %v6332 = vpack.c.b16 %v6311, %v6310
        %v6333 = vpack.c.b16 %v6313, %v6312
        %v6334 = vpack.c.b16 %v6315, %v6314
        %v6335 = vpack.c.b16 %v6317, %v6316
        %v6336 = vpack.c.b16 %v6319, %v6318
        %v6337 = vpack.c.b16 %v6321, %v6320
        %v6370 = vunpack.c.l.b16 %v5808
        %v6371 = vunpack.c.l.b16 %v5809
        %v6372 = vunpack.c.l.b16 %v5810
        %v6373 = vunpack.c.l.b16 %v5811
        %v6374 = vunpack.c.l.b16 %v5812
        %v6375 = vunpack.c.l.b16 %v5813
        %v6376 = vunpack.c.l.b16 %v5814
        %v6377 = vunpack.c.l.b16 %v5815
        %v6378 = vunpack.c.l.b16 %v5816
        %v6379 = vunpack.c.l.b16 %v5817
        %v6380 = vunpack.c.l.b16 %v5818
        %v6381 = vunpack.c.l.b16 %v5819
        %v6382 = vunpack.c.l.b16 %v5820
        %v6383 = vunpack.c.l.b16 %v5821
        %v6384 = vunpack.c.l.b16 %v5822
        %v6385 = vunpack.c.l.b16 %v5823
        %v6386 = vpack.c.b16 %v6371, %v6370
        %v6387 = vpack.c.b16 %v6373, %v6372
        %v6388 = vpack.c.b16 %v6375, %v6374
        %v6389 = vpack.c.b16 %v6377, %v6376
        %v6390 = vpack.c.b16 %v6379, %v6378
        %v6391 = vpack.c.b16 %v6381, %v6380
        %v6392 = vpack.c.b16 %v6383, %v6382
        %v6393 = vpack.c.b16 %v6385, %v6384
        %6402 = vmatprep.subr.bf16.mxu0 0
        %6403 = vmatpush1.bf16.msra.mxu0 %v6393
        %6404 = vmatprep.subr.bf16.mxu0 0
        %6405 = vmatpush1.bf16.msra.mxu0 %v6392
        %6406 = vmatprep.subr.bf16.mxu0 0
        %6407 = vmatpush1.bf16.msra.mxu0 %v6391
        %6408 = vmatprep.subr.bf16.mxu0 0
        %6409 = vmatpush1.bf16.msra.mxu0 %v6390
        %6410 = vmatprep.subr.bf16.mxu0 0
        %6411 = vmatpush1.bf16.msra.mxu0 %v6389
        %6412 = vmatprep.subr.bf16.mxu0 0
        %6413 = vmatpush1.bf16.msra.mxu0 %v6388
        %6414 = vmatprep.subr.bf16.mxu0 0
        %6415 = vmatpush1.bf16.msra.mxu0 %v6387
        %6416 = vmatprep.subr.bf16.mxu0 0
        %6417 = vmatpush1.bf16.msra.mxu0 %v6386
        %6418 = vmatprep.subr.bf16.mxu0 0
        %6419 = vmatpush2.bf16.msra.mxu0 0
        %6420 = vmatprep.subr.bf16.mxu0 0
        %6421 = vmatpush2.bf16.msra.mxu0 0
        %6422 = vmatprep.subr.bf16.mxu0 0
        %6423 = vmatpush2.bf16.msra.mxu0 0
        %6424 = vmatprep.subr.bf16.mxu0 0
        %6425 = vmatpush2.bf16.msra.mxu0 0
        %6426 = vmatprep.subr.bf16.mxu0 0
        %6427 = vmatpush2.bf16.msra.mxu0 0
        %6428 = vmatprep.subr.bf16.mxu0 0
        %6429 = vmatpush2.bf16.msra.mxu0 0
        %6430 = vmatprep.subr.bf16.mxu0 0
        %6431 = vmatpush2.bf16.msra.mxu0 0
        %6432 = vmatprep.subr.bf16.mxu0 0
        %6433 = vmatpush2.bf16.msra.mxu0 0
        %6434 = vmatprep.mubr.bf16.mxu0 0
        %6435 = vmatmul.mubr.bf16.gmra.mxu0 %v6322
        %v6436 = vpop.f32.mrf.mxu0
        %v6437 = vadd.f32 %v6164, %v6436
        %v6438 = vpop.f32.mrf.mxu0
        %v6439 = vpop.f32.mrf.mxu0
        %v6440 = vadd.f32 %v6167, %v6439
        %v6441 = vpop.f32.mrf.mxu0
        %6442 = vmatprep.mubr.bf16.mxu0 0
        %6443 = vmatmul.mubr.bf16.gmra.mxu0 %v6323
        %v6444 = vpop.f32.mrf.mxu0
        %v6445 = vadd.f32 %v6172, %v6444
        %v6446 = vpop.f32.mrf.mxu0
        %v6447 = vpop.f32.mrf.mxu0
        %v6448 = vadd.f32 %v6175, %v6447
        %v6449 = vpop.f32.mrf.mxu0
        %6450 = vmatprep.mubr.bf16.mxu0 0
        %6451 = vmatmul.mubr.bf16.gmra.mxu0 %v6324
        %v6452 = vpop.f32.mrf.mxu0
        %v6453 = vadd.f32 %v6180, %v6452
        %v6454 = vpop.f32.mrf.mxu0
        %v6455 = vpop.f32.mrf.mxu0
        %v6456 = vadd.f32 %v6183, %v6455
        %v6457 = vpop.f32.mrf.mxu0
        %6458 = vmatprep.mubr.bf16.mxu0 0
        %6459 = vmatmul.mubr.bf16.gmra.mxu0 %v6325
        %v6460 = vpop.f32.mrf.mxu0
        %v6461 = vadd.f32 %v6188, %v6460
        %v6462 = vpop.f32.mrf.mxu0
        %v6463 = vpop.f32.mrf.mxu0
        %v6464 = vadd.f32 %v6191, %v6463
        %v6465 = vpop.f32.mrf.mxu0
        %6466 = vmatprep.mubr.bf16.mxu0 0
        %6467 = vmatmul.mubr.bf16.gmra.mxu0 %v6326
        %v6468 = vpop.f32.mrf.mxu0
        %v6469 = vadd.f32 %v6196, %v6468
        %v6470 = vpop.f32.mrf.mxu0
        %v6471 = vpop.f32.mrf.mxu0
        %v6472 = vadd.f32 %v6199, %v6471
        %v6473 = vpop.f32.mrf.mxu0
        %6474 = vmatprep.mubr.bf16.mxu0 0
        %6475 = vmatmul.mubr.bf16.gmra.mxu0 %v6327
        %v6476 = vpop.f32.mrf.mxu0
        %v6477 = vadd.f32 %v6204, %v6476
        %v6478 = vpop.f32.mrf.mxu0
        %v6479 = vpop.f32.mrf.mxu0
        %v6480 = vadd.f32 %v6207, %v6479
        %v6481 = vpop.f32.mrf.mxu0
        %6482 = vmatprep.mubr.bf16.mxu0 0
        %6483 = vmatmul.mubr.bf16.gmra.mxu0 %v6328
        %v6484 = vpop.f32.mrf.mxu0
        %v6485 = vadd.f32 %v6212, %v6484
        %v6486 = vpop.f32.mrf.mxu0
        %v6487 = vpop.f32.mrf.mxu0
        %v6488 = vadd.f32 %v6215, %v6487
        %v6489 = vpop.f32.mrf.mxu0
        %6490 = vmatprep.mubr.bf16.mxu0 0
        %6491 = vmatmul.mubr.bf16.gmra.mxu0 %v6329
        %v6492 = vpop.f32.mrf.mxu0
        %v6493 = vadd.f32 %v6220, %v6492
        %v6494 = vpop.f32.mrf.mxu0
        %v6495 = vpop.f32.mrf.mxu0
        %v6496 = vadd.f32 %v6223, %v6495
        %v6497 = vpop.f32.mrf.mxu0
        %6498 = vmatprep.mubr.bf16.mxu0 0
        %6499 = vmatmul.mubr.bf16.gmra.mxu0 %v6330
        %v6500 = vpop.f32.mrf.mxu0
        %v6501 = vadd.f32 %v6228, %v6500
        %v6502 = vpop.f32.mrf.mxu0
        %v6503 = vpop.f32.mrf.mxu0
        %v6504 = vadd.f32 %v6231, %v6503
        %v6505 = vpop.f32.mrf.mxu0
        %6506 = vmatprep.mubr.bf16.mxu0 0
        %6507 = vmatmul.mubr.bf16.gmra.mxu0 %v6331
        %v6508 = vpop.f32.mrf.mxu0
        %v6509 = vadd.f32 %v6236, %v6508
        %v6510 = vpop.f32.mrf.mxu0
        %v6511 = vpop.f32.mrf.mxu0
        %v6512 = vadd.f32 %v6239, %v6511
        %v6513 = vpop.f32.mrf.mxu0
        %6514 = vmatprep.mubr.bf16.mxu0 0
        %6515 = vmatmul.mubr.bf16.gmra.mxu0 %v6332
        %v6516 = vpop.f32.mrf.mxu0
        %v6517 = vadd.f32 %v6244, %v6516
        %v6518 = vpop.f32.mrf.mxu0
        %v6519 = vpop.f32.mrf.mxu0
        %v6520 = vadd.f32 %v6247, %v6519
        %v6521 = vpop.f32.mrf.mxu0
        %6522 = vmatprep.mubr.bf16.mxu0 0
        %6523 = vmatmul.mubr.bf16.gmra.mxu0 %v6333
        %v6524 = vpop.f32.mrf.mxu0
        %v6525 = vadd.f32 %v6252, %v6524
        %v6526 = vpop.f32.mrf.mxu0
        %v6527 = vpop.f32.mrf.mxu0
        %v6528 = vadd.f32 %v6255, %v6527
        %v6529 = vpop.f32.mrf.mxu0
        %6530 = vmatprep.mubr.bf16.mxu0 0
        %6531 = vmatmul.mubr.bf16.gmra.mxu0 %v6334
        %v6532 = vpop.f32.mrf.mxu0
        %v6533 = vadd.f32 %v6260, %v6532
        %v6534 = vpop.f32.mrf.mxu0
        %v6535 = vpop.f32.mrf.mxu0
        %v6536 = vadd.f32 %v6263, %v6535
        %v6537 = vpop.f32.mrf.mxu0
        %6538 = vmatprep.mubr.bf16.mxu0 0
        %6539 = vmatmul.mubr.bf16.gmra.mxu0 %v6335
        %v6540 = vpop.f32.mrf.mxu0
        %v6541 = vadd.f32 %v6268, %v6540
        %v6542 = vpop.f32.mrf.mxu0
        %v6543 = vpop.f32.mrf.mxu0
        %v6544 = vadd.f32 %v6271, %v6543
        %v6545 = vpop.f32.mrf.mxu0
        %6546 = vmatprep.mubr.bf16.mxu0 0
        %6547 = vmatmul.mubr.bf16.gmra.mxu0 %v6336
        %v6548 = vpop.f32.mrf.mxu0
        %v6549 = vadd.f32 %v6276, %v6548
        %v6550 = vpop.f32.mrf.mxu0
        %v6551 = vpop.f32.mrf.mxu0
        %v6552 = vadd.f32 %v6279, %v6551
        %v6553 = vpop.f32.mrf.mxu0
        %6554 = vmatprep.mubr.bf16.mxu0 0
        %6555 = vmatmul.mubr.bf16.gmra.mxu0 %v6337
        %v6556 = vpop.f32.mrf.mxu0
        %v6557 = vadd.f32 %v6284, %v6556
        %v6558 = vpop.f32.mrf.mxu0
        %v6559 = vpop.f32.mrf.mxu0
        %v6560 = vadd.f32 %v6287, %v6559
        %v6561 = vpop.f32.mrf.mxu0
        %6562 = vdwg.mxu0
        %v6563 = vld [vmem:[#allocation3 + $0xc] sm:$0xf]
        %v6564 = vld [vmem:[#allocation3 + $0x24] sm:$0xf]
        %v6565 = vld [vmem:[#allocation3 + $0x3c] sm:$0xf]
        %v6566 = vld [vmem:[#allocation3 + $0x54] sm:$0xf]
        %v6567 = vld [vmem:[#allocation3 + $0x6c] sm:$0xf]
        %v6568 = vld [vmem:[#allocation3 + $0x84] sm:$0xf]
        %v6569 = vld [vmem:[#allocation3 + $0x9c] sm:$0xf]
        %v6570 = vld [vmem:[#allocation3 + $0xb4] sm:$0xf]
        %v6571 = vld [vmem:[#allocation3 + $0xcc] sm:$0xf]
        %v6572 = vld [vmem:[#allocation3 + $0xe4] sm:$0xf]
        %v6573 = vld [vmem:[#allocation3 + $0xfc] sm:$0xf]
        %v6574 = vld [vmem:[#allocation3 + $0x114] sm:$0xf]
        %v6575 = vld [vmem:[#allocation3 + $0x12c] sm:$0xf]
        %v6576 = vld [vmem:[#allocation3 + $0x144] sm:$0xf]
        %v6577 = vld [vmem:[#allocation3 + $0x15c] sm:$0xf]
        %v6578 = vld [vmem:[#allocation3 + $0x174] sm:$0xf]
        %v6580 = vshrl.u32 %v5824, 16
        %v6582 = vrot.slane %v6580, 7
        %v6583 = vrot.slane %v6582, 4
        %v6584 = vrot.slane %v5370, 7
        %v6585 = vor.u32 %v6584, %v5373
        %v6586 = vsel %vm1792, %v6583, %v6585
        %v6587 = vrot.slane %v6584, 4
        %v6589 = vshrl.u32 %v6563, 16
        %v6591 = vrot.slane %v6589, 7
        %v6592 = vshll.u32 %v6563, 16
        %v6594 = vor.u32 %v6591, %v6592
        %v6595 = vsel %vm1792, %v6587, %v6594
        %v6597 = vshrl.u32 %v5825, 16
        %v6599 = vrot.slane %v6597, 7
        %v6600 = vrot.slane %v6599, 4
        %v6601 = vrot.slane %v5398, 7
        %v6602 = vor.u32 %v6601, %v5401
        %v6603 = vsel %vm1792, %v6600, %v6602
        %v6604 = vrot.slane %v6601, 4
        %v6606 = vshrl.u32 %v6564, 16
        %v6608 = vrot.slane %v6606, 7
        %v6609 = vshll.u32 %v6564, 16
        %v6611 = vor.u32 %v6608, %v6609
        %v6612 = vsel %vm1792, %v6604, %v6611
        %v6614 = vshrl.u32 %v5826, 16
        %v6616 = vrot.slane %v6614, 7
        %v6617 = vrot.slane %v6616, 4
        %v6618 = vrot.slane %v5426, 7
        %v6619 = vor.u32 %v6618, %v5429
        %v6620 = vsel %vm1792, %v6617, %v6619
        %v6621 = vrot.slane %v6618, 4
        %v6623 = vshrl.u32 %v6565, 16
        %v6625 = vrot.slane %v6623, 7
        %v6626 = vshll.u32 %v6565, 16
        %v6628 = vor.u32 %v6625, %v6626
        %v6629 = vsel %vm1792, %v6621, %v6628
        %v6631 = vshrl.u32 %v5827, 16
        %v6633 = vrot.slane %v6631, 7
        %v6634 = vrot.slane %v6633, 4
        %v6635 = vrot.slane %v5454, 7
        %v6636 = vor.u32 %v6635, %v5457
        %v6637 = vsel %vm1792, %v6634, %v6636
        %v6638 = vrot.slane %v6635, 4
        %v6640 = vshrl.u32 %v6566, 16
        %v6642 = vrot.slane %v6640, 7
        %v6643 = vshll.u32 %v6566, 16
        %v6645 = vor.u32 %v6642, %v6643
        %v6646 = vsel %vm1792, %v6638, %v6645
        %v6648 = vshrl.u32 %v5828, 16
        %v6650 = vrot.slane %v6648, 7
        %v6651 = vrot.slane %v6650, 4
        %v6652 = vrot.slane %v5482, 7
        %v6653 = vor.u32 %v6652, %v5485
        %v6654 = vsel %vm1792, %v6651, %v6653
        %v6655 = vrot.slane %v6652, 4
        %v6657 = vshrl.u32 %v6567, 16
        %v6659 = vrot.slane %v6657, 7
        %v6660 = vshll.u32 %v6567, 16
        %v6662 = vor.u32 %v6659, %v6660
        %v6663 = vsel %vm1792, %v6655, %v6662
        %v6665 = vshrl.u32 %v5829, 16
        %v6667 = vrot.slane %v6665, 7
        %v6668 = vrot.slane %v6667, 4
        %v6669 = vrot.slane %v5510, 7
        %v6670 = vor.u32 %v6669, %v5513
        %v6671 = vsel %vm1792, %v6668, %v6670
        %v6672 = vrot.slane %v6669, 4
        %v6674 = vshrl.u32 %v6568, 16
        %v6676 = vrot.slane %v6674, 7
        %v6677 = vshll.u32 %v6568, 16
        %v6679 = vor.u32 %v6676, %v6677
        %v6680 = vsel %vm1792, %v6672, %v6679
        %v6682 = vshrl.u32 %v5830, 16
        %v6684 = vrot.slane %v6682, 7
        %v6685 = vrot.slane %v6684, 4
        %v6686 = vrot.slane %v5538, 7
        %v6687 = vor.u32 %v6686, %v5541
        %v6688 = vsel %vm1792, %v6685, %v6687
        %v6689 = vrot.slane %v6686, 4
        %v6691 = vshrl.u32 %v6569, 16
        %v6693 = vrot.slane %v6691, 7
        %v6694 = vshll.u32 %v6569, 16
        %v6696 = vor.u32 %v6693, %v6694
        %v6697 = vsel %vm1792, %v6689, %v6696
        %v6699 = vshrl.u32 %v5831, 16
        %v6701 = vrot.slane %v6699, 7
        %v6702 = vrot.slane %v6701, 4
        %v6703 = vrot.slane %v5566, 7
        %v6704 = vor.u32 %v6703, %v5569
        %v6705 = vsel %vm1792, %v6702, %v6704
        %v6706 = vrot.slane %v6703, 4
        %v6708 = vshrl.u32 %v6570, 16
        %v6710 = vrot.slane %v6708, 7
        %v6711 = vshll.u32 %v6570, 16
        %v6713 = vor.u32 %v6710, %v6711
        %v6714 = vsel %vm1792, %v6706, %v6713
        %v6716 = vshrl.u32 %v5832, 16
        %v6718 = vrot.slane %v6716, 7
        %v6719 = vrot.slane %v6718, 4
        %v6720 = vrot.slane %v5594, 7
        %v6721 = vor.u32 %v6720, %v5597
        %v6722 = vsel %vm1792, %v6719, %v6721
        %v6723 = vrot.slane %v6720, 4
        %v6725 = vshrl.u32 %v6571, 16
        %v6727 = vrot.slane %v6725, 7
        %v6728 = vshll.u32 %v6571, 16
        %v6730 = vor.u32 %v6727, %v6728
        %v6731 = vsel %vm1792, %v6723, %v6730
        %v6733 = vshrl.u32 %v5833, 16
        %v6735 = vrot.slane %v6733, 7
        %v6736 = vrot.slane %v6735, 4
        %v6737 = vrot.slane %v5622, 7
        %v6738 = vor.u32 %v6737, %v5625
        %v6739 = vsel %vm1792, %v6736, %v6738
        %v6740 = vrot.slane %v6737, 4
        %v6742 = vshrl.u32 %v6572, 16
        %v6744 = vrot.slane %v6742, 7
        %v6745 = vshll.u32 %v6572, 16
        %v6747 = vor.u32 %v6744, %v6745
        %v6748 = vsel %vm1792, %v6740, %v6747
        %v6750 = vshrl.u32 %v5834, 16
        %v6752 = vrot.slane %v6750, 7
        %v6753 = vrot.slane %v6752, 4
        %v6754 = vrot.slane %v5650, 7
        %v6755 = vor.u32 %v6754, %v5653
        %v6756 = vsel %vm1792, %v6753, %v6755
        %v6757 = vrot.slane %v6754, 4
        %v6759 = vshrl.u32 %v6573, 16
        %v6761 = vrot.slane %v6759, 7
        %v6762 = vshll.u32 %v6573, 16
        %v6764 = vor.u32 %v6761, %v6762
        %v6765 = vsel %vm1792, %v6757, %v6764
        %v6767 = vshrl.u32 %v5835, 16
        %v6769 = vrot.slane %v6767, 7
        %v6770 = vrot.slane %v6769, 4
        %v6771 = vrot.slane %v5678, 7
        %v6772 = vor.u32 %v6771, %v5681
        %v6773 = vsel %vm1792, %v6770, %v6772
        %v6774 = vrot.slane %v6771, 4
        %v6776 = vshrl.u32 %v6574, 16
        %v6778 = vrot.slane %v6776, 7
        %v6779 = vshll.u32 %v6574, 16
        %v6781 = vor.u32 %v6778, %v6779
        %v6782 = vsel %vm1792, %v6774, %v6781
        %v6784 = vshrl.u32 %v5836, 16
        %v6786 = vrot.slane %v6784, 7
        %v6787 = vrot.slane %v6786, 4
        %v6788 = vrot.slane %v5706, 7
        %v6789 = vor.u32 %v6788, %v5709
        %v6790 = vsel %vm1792, %v6787, %v6789
        %v6791 = vrot.slane %v6788, 4
        %v6793 = vshrl.u32 %v6575, 16
        %v6795 = vrot.slane %v6793, 7
        %v6796 = vshll.u32 %v6575, 16
        %v6798 = vor.u32 %v6795, %v6796
        %v6799 = vsel %vm1792, %v6791, %v6798
        %v6801 = vshrl.u32 %v5837, 16
        %v6803 = vrot.slane %v6801, 7
        %v6804 = vrot.slane %v6803, 4
        %v6805 = vrot.slane %v5734, 7
        %v6806 = vor.u32 %v6805, %v5737
        %v6807 = vsel %vm1792, %v6804, %v6806
        %v6808 = vrot.slane %v6805, 4
        %v6810 = vshrl.u32 %v6576, 16
        %v6812 = vrot.slane %v6810, 7
        %v6813 = vshll.u32 %v6576, 16
        %v6815 = vor.u32 %v6812, %v6813
        %v6816 = vsel %vm1792, %v6808, %v6815
        %v6818 = vshrl.u32 %v5838, 16
        %v6820 = vrot.slane %v6818, 7
        %v6821 = vrot.slane %v6820, 4
        %v6822 = vrot.slane %v5762, 7
        %v6823 = vor.u32 %v6822, %v5765
        %v6824 = vsel %vm1792, %v6821, %v6823
        %v6825 = vrot.slane %v6822, 4
        %v6827 = vshrl.u32 %v6577, 16
        %v6829 = vrot.slane %v6827, 7
        %v6830 = vshll.u32 %v6577, 16
        %v6832 = vor.u32 %v6829, %v6830
        %v6833 = vsel %vm1792, %v6825, %v6832
        %v6835 = vshrl.u32 %v5839, 16
        %v6837 = vrot.slane %v6835, 7
        %v6838 = vrot.slane %v6837, 4
        %v6839 = vrot.slane %v5790, 7
        %v6840 = vor.u32 %v6839, %v5793
        %v6841 = vsel %vm1792, %v6838, %v6840
        %v6842 = vrot.slane %v6839, 4
        %v6844 = vshrl.u32 %v6578, 16
        %v6846 = vrot.slane %v6844, 7
        %v6847 = vshll.u32 %v6578, 16
        %v6849 = vor.u32 %v6846, %v6847
        %v6850 = vsel %vm1792, %v6842, %v6849
        %s6851 = scalar_lea.vmem [#allocation4], 128
        %v6852 = vld [vmem:[%s6851] sm:$0xf]
        %v6853 = vld [vmem:[%s6851 + $0x4] sm:$0xf]
        %v6854 = vld [vmem:[%s6851 + $0x8] sm:$0xf]
        %v6855 = vld [vmem:[%s6851 + $0xc] sm:$0xf]
        %v6856 = vld [vmem:[%s6851 + $0x10] sm:$0xf]
        %v6857 = vld [vmem:[%s6851 + $0x14] sm:$0xf]
        %v6858 = vld [vmem:[%s6851 + $0x18] sm:$0xf]
        %v6859 = vld [vmem:[%s6851 + $0x1c] sm:$0xf]
        %v6860 = vld [vmem:[%s6851 + $0x20] sm:$0xf]
        %v6861 = vld [vmem:[%s6851 + $0x24] sm:$0xf]
        %v6862 = vld [vmem:[%s6851 + $0x28] sm:$0xf]
        %v6863 = vld [vmem:[%s6851 + $0x2c] sm:$0xf]
        %v6864 = vld [vmem:[%s6851 + $0x30] sm:$0xf]
        %v6865 = vld [vmem:[%s6851 + $0x34] sm:$0xf]
        %v6866 = vld [vmem:[%s6851 + $0x38] sm:$0xf]
        %v6867 = vld [vmem:[%s6851 + $0x3c] sm:$0xf]
        %v6868 = vunpack.c.l.b16 %v6586
        %v6869 = vunpack.c.l.b16 %v6595
        %v6870 = vunpack.c.l.b16 %v6603
        %v6871 = vunpack.c.l.b16 %v6612
        %v6872 = vunpack.c.l.b16 %v6620
        %v6873 = vunpack.c.l.b16 %v6629
        %v6874 = vunpack.c.l.b16 %v6637
        %v6875 = vunpack.c.l.b16 %v6646
        %v6876 = vunpack.c.l.b16 %v6654
        %v6877 = vunpack.c.l.b16 %v6663
        %v6878 = vunpack.c.l.b16 %v6671
        %v6879 = vunpack.c.l.b16 %v6680
        %v6880 = vunpack.c.l.b16 %v6688
        %v6881 = vunpack.c.l.b16 %v6697
        %v6882 = vunpack.c.l.b16 %v6705
        %v6883 = vunpack.c.l.b16 %v6714
        %v6884 = vunpack.c.l.b16 %v6722
        %v6885 = vunpack.c.l.b16 %v6731
        %v6886 = vunpack.c.l.b16 %v6739
        %v6887 = vunpack.c.l.b16 %v6748
        %v6888 = vunpack.c.l.b16 %v6756
        %v6889 = vunpack.c.l.b16 %v6765
        %v6890 = vunpack.c.l.b16 %v6773
        %v6891 = vunpack.c.l.b16 %v6782
        %v6892 = vunpack.c.l.b16 %v6790
        %v6893 = vunpack.c.l.b16 %v6799
        %v6894 = vunpack.c.l.b16 %v6807
        %v6895 = vunpack.c.l.b16 %v6816
        %v6896 = vunpack.c.l.b16 %v6824
        %v6897 = vunpack.c.l.b16 %v6833
        %v6898 = vunpack.c.l.b16 %v6841
        %v6899 = vunpack.c.l.b16 %v6850
        %v6900 = vpack.c.b16 %v6869, %v6868
        %v6901 = vpack.c.b16 %v6871, %v6870
        %v6902 = vpack.c.b16 %v6873, %v6872
        %v6903 = vpack.c.b16 %v6875, %v6874
        %v6904 = vpack.c.b16 %v6877, %v6876
        %v6905 = vpack.c.b16 %v6879, %v6878
        %v6906 = vpack.c.b16 %v6881, %v6880
        %v6907 = vpack.c.b16 %v6883, %v6882
        %v6908 = vpack.c.b16 %v6885, %v6884
        %v6909 = vpack.c.b16 %v6887, %v6886
        %v6910 = vpack.c.b16 %v6889, %v6888
        %v6911 = vpack.c.b16 %v6891, %v6890
        %v6912 = vpack.c.b16 %v6893, %v6892
        %v6913 = vpack.c.b16 %v6895, %v6894
        %v6914 = vpack.c.b16 %v6897, %v6896
        %v6915 = vpack.c.b16 %v6899, %v6898
        %v6948 = vunpack.c.l.b16 %v6852
        %v6949 = vunpack.c.l.b16 %v6853
        %v6950 = vunpack.c.l.b16 %v6854
        %v6951 = vunpack.c.l.b16 %v6855
        %v6952 = vunpack.c.l.b16 %v6856
        %v6953 = vunpack.c.l.b16 %v6857
        %v6954 = vunpack.c.l.b16 %v6858
        %v6955 = vunpack.c.l.b16 %v6859
        %v6956 = vunpack.c.l.b16 %v6860
        %v6957 = vunpack.c.l.b16 %v6861
        %v6958 = vunpack.c.l.b16 %v6862
        %v6959 = vunpack.c.l.b16 %v6863
        %v6960 = vunpack.c.l.b16 %v6864
        %v6961 = vunpack.c.l.b16 %v6865
        %v6962 = vunpack.c.l.b16 %v6866
        %v6963 = vunpack.c.l.b16 %v6867
        %v6964 = vpack.c.b16 %v6949, %v6948
        %v6965 = vpack.c.b16 %v6951, %v6950
        %v6966 = vpack.c.b16 %v6953, %v6952
        %v6967 = vpack.c.b16 %v6955, %v6954
        %v6968 = vpack.c.b16 %v6957, %v6956
        %v6969 = vpack.c.b16 %v6959, %v6958
        %v6970 = vpack.c.b16 %v6961, %v6960
        %v6971 = vpack.c.b16 %v6963, %v6962
        %6980 = vmatprep.subr.bf16.mxu0 0
        %6981 = vmatpush1.bf16.msra.mxu0 %v6971
        %6982 = vmatprep.subr.bf16.mxu0 0
        %6983 = vmatpush1.bf16.msra.mxu0 %v6970
        %6984 = vmatprep.subr.bf16.mxu0 0
        %6985 = vmatpush1.bf16.msra.mxu0 %v6969
        %6986 = vmatprep.subr.bf16.mxu0 0
        %6987 = vmatpush1.bf16.msra.mxu0 %v6968
        %6988 = vmatprep.subr.bf16.mxu0 0
        %6989 = vmatpush1.bf16.msra.mxu0 %v6967
        %6990 = vmatprep.subr.bf16.mxu0 0
        %6991 = vmatpush1.bf16.msra.mxu0 %v6966
        %6992 = vmatprep.subr.bf16.mxu0 0
        %6993 = vmatpush1.bf16.msra.mxu0 %v6965
        %6994 = vmatprep.subr.bf16.mxu0 0
        %6995 = vmatpush1.bf16.msra.mxu0 %v6964
        %6996 = vmatprep.subr.bf16.mxu0 0
        %6997 = vmatpush2.bf16.msra.mxu0 0
        %6998 = vmatprep.subr.bf16.mxu0 0
        %6999 = vmatpush2.bf16.msra.mxu0 0
        %7000 = vmatprep.subr.bf16.mxu0 0
        %7001 = vmatpush2.bf16.msra.mxu0 0
        %7002 = vmatprep.subr.bf16.mxu0 0
        %7003 = vmatpush2.bf16.msra.mxu0 0
        %7004 = vmatprep.subr.bf16.mxu0 0
        %7005 = vmatpush2.bf16.msra.mxu0 0
        %7006 = vmatprep.subr.bf16.mxu0 0
        %7007 = vmatpush2.bf16.msra.mxu0 0
        %7008 = vmatprep.subr.bf16.mxu0 0
        %7009 = vmatpush2.bf16.msra.mxu0 0
        %7010 = vmatprep.subr.bf16.mxu0 0
        %7011 = vmatpush2.bf16.msra.mxu0 0
        %7012 = vmatprep.mubr.bf16.mxu0 0
        %7013 = vmatmul.mubr.bf16.gmra.mxu0 %v6900
        %v7014 = vpop.f32.mrf.mxu0
        %v7015 = vadd.f32 0.0, %v7014
        %v7016 = vpop.f32.mrf.mxu0
        %v7017 = vpop.f32.mrf.mxu0
        %v7018 = vadd.f32 0.0, %v7017
        %v7019 = vpop.f32.mrf.mxu0
        %7020 = vmatprep.mubr.bf16.mxu0 0
        %7021 = vmatmul.mubr.bf16.gmra.mxu0 %v6901
        %v7022 = vpop.f32.mrf.mxu0
        %v7023 = vadd.f32 0.0, %v7022
        %v7024 = vpop.f32.mrf.mxu0
        %v7025 = vpop.f32.mrf.mxu0
        %v7026 = vadd.f32 0.0, %v7025
        %v7027 = vpop.f32.mrf.mxu0
        %7028 = vmatprep.mubr.bf16.mxu0 0
        %7029 = vmatmul.mubr.bf16.gmra.mxu0 %v6902
        %v7030 = vpop.f32.mrf.mxu0
        %v7031 = vadd.f32 0.0, %v7030
        %v7032 = vpop.f32.mrf.mxu0
        %v7033 = vpop.f32.mrf.mxu0
        %v7034 = vadd.f32 0.0, %v7033
        %v7035 = vpop.f32.mrf.mxu0
        %7036 = vmatprep.mubr.bf16.mxu0 0
        %7037 = vmatmul.mubr.bf16.gmra.mxu0 %v6903
        %v7038 = vpop.f32.mrf.mxu0
        %v7039 = vadd.f32 0.0, %v7038
        %v7040 = vpop.f32.mrf.mxu0
        %v7041 = vpop.f32.mrf.mxu0
        %v7042 = vadd.f32 0.0, %v7041
        %v7043 = vpop.f32.mrf.mxu0
        %7044 = vmatprep.mubr.bf16.mxu0 0
        %7045 = vmatmul.mubr.bf16.gmra.mxu0 %v6904
        %v7046 = vpop.f32.mrf.mxu0
        %v7047 = vadd.f32 0.0, %v7046
        %v7048 = vpop.f32.mrf.mxu0
        %v7049 = vpop.f32.mrf.mxu0
        %v7050 = vadd.f32 0.0, %v7049
        %v7051 = vpop.f32.mrf.mxu0
        %7052 = vmatprep.mubr.bf16.mxu0 0
        %7053 = vmatmul.mubr.bf16.gmra.mxu0 %v6905
        %v7054 = vpop.f32.mrf.mxu0
        %v7055 = vadd.f32 0.0, %v7054
        %v7056 = vpop.f32.mrf.mxu0
        %v7057 = vpop.f32.mrf.mxu0
        %v7058 = vadd.f32 0.0, %v7057
        %v7059 = vpop.f32.mrf.mxu0
        %7060 = vmatprep.mubr.bf16.mxu0 0
        %7061 = vmatmul.mubr.bf16.gmra.mxu0 %v6906
        %v7062 = vpop.f32.mrf.mxu0
        %v7063 = vadd.f32 0.0, %v7062
        %v7064 = vpop.f32.mrf.mxu0
        %v7065 = vpop.f32.mrf.mxu0
        %v7066 = vadd.f32 0.0, %v7065
        %v7067 = vpop.f32.mrf.mxu0
        %7068 = vmatprep.mubr.bf16.mxu0 0
        %7069 = vmatmul.mubr.bf16.gmra.mxu0 %v6907
        %v7070 = vpop.f32.mrf.mxu0
        %v7071 = vadd.f32 0.0, %v7070
        %v7072 = vpop.f32.mrf.mxu0
        %v7073 = vpop.f32.mrf.mxu0
        %v7074 = vadd.f32 0.0, %v7073
        %v7075 = vpop.f32.mrf.mxu0
        %7076 = vmatprep.mubr.bf16.mxu0 0
        %7077 = vmatmul.mubr.bf16.gmra.mxu0 %v6908
        %v7078 = vpop.f32.mrf.mxu0
        %v7079 = vadd.f32 0.0, %v7078
        %v7080 = vpop.f32.mrf.mxu0
        %v7081 = vpop.f32.mrf.mxu0
        %v7082 = vadd.f32 0.0, %v7081
        %v7083 = vpop.f32.mrf.mxu0
        %7084 = vmatprep.mubr.bf16.mxu0 0
        %7085 = vmatmul.mubr.bf16.gmra.mxu0 %v6909
        %v7086 = vpop.f32.mrf.mxu0
        %v7087 = vadd.f32 0.0, %v7086
        %v7088 = vpop.f32.mrf.mxu0
        %v7089 = vpop.f32.mrf.mxu0
        %v7090 = vadd.f32 0.0, %v7089
        %v7091 = vpop.f32.mrf.mxu0
        %7092 = vmatprep.mubr.bf16.mxu0 0
        %7093 = vmatmul.mubr.bf16.gmra.mxu0 %v6910
        %v7094 = vpop.f32.mrf.mxu0
        %v7095 = vadd.f32 0.0, %v7094
        %v7096 = vpop.f32.mrf.mxu0
        %v7097 = vpop.f32.mrf.mxu0
        %v7098 = vadd.f32 0.0, %v7097
        %v7099 = vpop.f32.mrf.mxu0
        %7100 = vmatprep.mubr.bf16.mxu0 0
        %7101 = vmatmul.mubr.bf16.gmra.mxu0 %v6911
        %v7102 = vpop.f32.mrf.mxu0
        %v7103 = vadd.f32 0.0, %v7102
        %v7104 = vpop.f32.mrf.mxu0
        %v7105 = vpop.f32.mrf.mxu0
        %v7106 = vadd.f32 0.0, %v7105
        %v7107 = vpop.f32.mrf.mxu0
        %7108 = vmatprep.mubr.bf16.mxu0 0
        %7109 = vmatmul.mubr.bf16.gmra.mxu0 %v6912
        %v7110 = vpop.f32.mrf.mxu0
        %v7111 = vadd.f32 0.0, %v7110
        %v7112 = vpop.f32.mrf.mxu0
        %v7113 = vpop.f32.mrf.mxu0
        %v7114 = vadd.f32 0.0, %v7113
        %v7115 = vpop.f32.mrf.mxu0
        %7116 = vmatprep.mubr.bf16.mxu0 0
        %7117 = vmatmul.mubr.bf16.gmra.mxu0 %v6913
        %v7118 = vpop.f32.mrf.mxu0
        %v7119 = vadd.f32 0.0, %v7118
        %v7120 = vpop.f32.mrf.mxu0
        %v7121 = vpop.f32.mrf.mxu0
        %v7122 = vadd.f32 0.0, %v7121
        %v7123 = vpop.f32.mrf.mxu0
        %7124 = vmatprep.mubr.bf16.mxu0 0
        %7125 = vmatmul.mubr.bf16.gmra.mxu0 %v6914
        %v7126 = vpop.f32.mrf.mxu0
        %v7127 = vadd.f32 0.0, %v7126
        %v7128 = vpop.f32.mrf.mxu0
        %v7129 = vpop.f32.mrf.mxu0
        %v7130 = vadd.f32 0.0, %v7129
        %v7131 = vpop.f32.mrf.mxu0
        %7132 = vmatprep.mubr.bf16.mxu0 0
        %7133 = vmatmul.mubr.bf16.gmra.mxu0 %v6915
        %v7134 = vpop.f32.mrf.mxu0
        %v7135 = vadd.f32 0.0, %v7134
        %v7136 = vpop.f32.mrf.mxu0
        %v7137 = vpop.f32.mrf.mxu0
        %v7138 = vadd.f32 0.0, %v7137
        %v7139 = vpop.f32.mrf.mxu0
        %7140 = vdwg.mxu0
        %v7141 = vadd.f32 %v6437, %v7015
        %v7142 = vadd.f32 %v6440, %v7018
        %v7143 = vadd.f32 %v6445, %v7023
        %v7144 = vadd.f32 %v6448, %v7026
        %v7145 = vadd.f32 %v6453, %v7031
        %v7146 = vadd.f32 %v6456, %v7034
        %v7147 = vadd.f32 %v6461, %v7039
        %v7148 = vadd.f32 %v6464, %v7042
        %v7149 = vadd.f32 %v6469, %v7047
        %v7150 = vadd.f32 %v6472, %v7050
        %v7151 = vadd.f32 %v6477, %v7055
        %v7152 = vadd.f32 %v6480, %v7058
        %v7153 = vadd.f32 %v6485, %v7063
        %v7154 = vadd.f32 %v6488, %v7066
        %v7155 = vadd.f32 %v6493, %v7071
        %v7156 = vadd.f32 %v6496, %v7074
        %v7157 = vadd.f32 %v6501, %v7079
        %v7158 = vadd.f32 %v6504, %v7082
        %v7159 = vadd.f32 %v6509, %v7087
        %v7160 = vadd.f32 %v6512, %v7090
        %v7161 = vadd.f32 %v6517, %v7095
        %v7162 = vadd.f32 %v6520, %v7098
        %v7163 = vadd.f32 %v6525, %v7103
        %v7164 = vadd.f32 %v6528, %v7106
        %v7165 = vadd.f32 %v6533, %v7111
        %v7166 = vadd.f32 %v6536, %v7114
        %v7167 = vadd.f32 %v6541, %v7119
        %v7168 = vadd.f32 %v6544, %v7122
        %v7169 = vadd.f32 %v6549, %v7127
        %v7170 = vadd.f32 %v6552, %v7130
        %v7171 = vadd.f32 %v6557, %v7135
        %v7172 = vadd.f32 %v6560, %v7138
        %s7173 = scalar_lea.vmem [#allocation4], 192
        %v7174 = vld [vmem:[%s7173] sm:$0xf]
        %v7175 = vld [vmem:[%s7173 + $0x4] sm:$0xf]
        %v7176 = vld [vmem:[%s7173 + $0x8] sm:$0xf]
        %v7177 = vld [vmem:[%s7173 + $0xc] sm:$0xf]
        %v7178 = vld [vmem:[%s7173 + $0x10] sm:$0xf]
        %v7179 = vld [vmem:[%s7173 + $0x14] sm:$0xf]
        %v7180 = vld [vmem:[%s7173 + $0x18] sm:$0xf]
        %v7181 = vld [vmem:[%s7173 + $0x1c] sm:$0xf]
        %v7182 = vld [vmem:[%s7173 + $0x20] sm:$0xf]
        %v7183 = vld [vmem:[%s7173 + $0x24] sm:$0xf]
        %v7184 = vld [vmem:[%s7173 + $0x28] sm:$0xf]
        %v7185 = vld [vmem:[%s7173 + $0x2c] sm:$0xf]
        %v7186 = vld [vmem:[%s7173 + $0x30] sm:$0xf]
        %v7187 = vld [vmem:[%s7173 + $0x34] sm:$0xf]
        %v7188 = vld [vmem:[%s7173 + $0x38] sm:$0xf]
        %v7189 = vld [vmem:[%s7173 + $0x3c] sm:$0xf]
        %v7206 = vunpack.c.l.b16 %v5313
        %v7207 = vunpack.c.l.b16 %v6563
        %v7208 = vunpack.c.l.b16 %v5316
        %v7209 = vunpack.c.l.b16 %v6564
        %v7210 = vunpack.c.l.b16 %v5319
        %v7211 = vunpack.c.l.b16 %v6565
        %v7212 = vunpack.c.l.b16 %v5322
        %v7213 = vunpack.c.l.b16 %v6566
        %v7214 = vunpack.c.l.b16 %v5325
        %v7215 = vunpack.c.l.b16 %v6567
        %v7216 = vunpack.c.l.b16 %v5328
        %v7217 = vunpack.c.l.b16 %v6568
        %v7218 = vunpack.c.l.b16 %v5331
        %v7219 = vunpack.c.l.b16 %v6569
        %v7220 = vunpack.c.l.b16 %v5334
        %v7221 = vunpack.c.l.b16 %v6570
        %v7222 = vunpack.c.l.b16 %v5337
        %v7223 = vunpack.c.l.b16 %v6571
        %v7224 = vunpack.c.l.b16 %v5340
        %v7225 = vunpack.c.l.b16 %v6572
        %v7226 = vunpack.c.l.b16 %v5343
        %v7227 = vunpack.c.l.b16 %v6573
        %v7228 = vunpack.c.l.b16 %v5346
        %v7229 = vunpack.c.l.b16 %v6574
        %v7230 = vunpack.c.l.b16 %v5349
        %v7231 = vunpack.c.l.b16 %v6575
        %v7232 = vunpack.c.l.b16 %v5352
        %v7233 = vunpack.c.l.b16 %v6576
        %v7234 = vunpack.c.l.b16 %v5355
        %v7235 = vunpack.c.l.b16 %v6577
        %v7236 = vunpack.c.l.b16 %v5358
        %v7237 = vunpack.c.l.b16 %v6578
        %v7238 = vpack.c.b16 %v7207, %v7206
        %v7239 = vpack.c.b16 %v7209, %v7208
        %v7240 = vpack.c.b16 %v7211, %v7210
        %v7241 = vpack.c.b16 %v7213, %v7212
        %v7242 = vpack.c.b16 %v7215, %v7214
        %v7243 = vpack.c.b16 %v7217, %v7216
        %v7244 = vpack.c.b16 %v7219, %v7218
        %v7245 = vpack.c.b16 %v7221, %v7220
        %v7246 = vpack.c.b16 %v7223, %v7222
        %v7247 = vpack.c.b16 %v7225, %v7224
        %v7248 = vpack.c.b16 %v7227, %v7226
        %v7249 = vpack.c.b16 %v7229, %v7228
        %v7250 = vpack.c.b16 %v7231, %v7230
        %v7251 = vpack.c.b16 %v7233, %v7232
        %v7252 = vpack.c.b16 %v7235, %v7234
        %v7253 = vpack.c.b16 %v7237, %v7236
        %v7286 = vunpack.c.l.b16 %v7174
        %v7287 = vunpack.c.l.b16 %v7175
        %v7288 = vunpack.c.l.b16 %v7176
        %v7289 = vunpack.c.l.b16 %v7177
        %v7290 = vunpack.c.l.b16 %v7178
        %v7291 = vunpack.c.l.b16 %v7179
        %v7292 = vunpack.c.l.b16 %v7180
        %v7293 = vunpack.c.l.b16 %v7181
        %v7294 = vunpack.c.l.b16 %v7182
        %v7295 = vunpack.c.l.b16 %v7183
        %v7296 = vunpack.c.l.b16 %v7184
        %v7297 = vunpack.c.l.b16 %v7185
        %v7298 = vunpack.c.l.b16 %v7186
        %v7299 = vunpack.c.l.b16 %v7187
        %v7300 = vunpack.c.l.b16 %v7188
        %v7301 = vunpack.c.l.b16 %v7189
        %v7302 = vpack.c.b16 %v7287, %v7286
        %v7303 = vpack.c.b16 %v7289, %v7288
        %v7304 = vpack.c.b16 %v7291, %v7290
        %v7305 = vpack.c.b16 %v7293, %v7292
        %v7306 = vpack.c.b16 %v7295, %v7294
        %v7307 = vpack.c.b16 %v7297, %v7296
        %v7308 = vpack.c.b16 %v7299, %v7298
        %v7309 = vpack.c.b16 %v7301, %v7300
        %7318 = vmatprep.subr.bf16.mxu0 0
        %7319 = vmatpush1.bf16.msra.mxu0 %v7309
        %7320 = vmatprep.subr.bf16.mxu0 0
        %7321 = vmatpush1.bf16.msra.mxu0 %v7308
        %7322 = vmatprep.subr.bf16.mxu0 0
        %7323 = vmatpush1.bf16.msra.mxu0 %v7307
        %7324 = vmatprep.subr.bf16.mxu0 0
        %7325 = vmatpush1.bf16.msra.mxu0 %v7306
        %7326 = vmatprep.subr.bf16.mxu0 0
        %7327 = vmatpush1.bf16.msra.mxu0 %v7305
        %7328 = vmatprep.subr.bf16.mxu0 0
        %7329 = vmatpush1.bf16.msra.mxu0 %v7304
        %7330 = vmatprep.subr.bf16.mxu0 0
        %7331 = vmatpush1.bf16.msra.mxu0 %v7303
        %7332 = vmatprep.subr.bf16.mxu0 0
        %7333 = vmatpush1.bf16.msra.mxu0 %v7302
        %7334 = vmatprep.subr.bf16.mxu0 0
        %7335 = vmatpush2.bf16.msra.mxu0 0
        %7336 = vmatprep.subr.bf16.mxu0 0
        %7337 = vmatpush2.bf16.msra.mxu0 0
        %7338 = vmatprep.subr.bf16.mxu0 0
        %7339 = vmatpush2.bf16.msra.mxu0 0
        %7340 = vmatprep.subr.bf16.mxu0 0
        %7341 = vmatpush2.bf16.msra.mxu0 0
        %7342 = vmatprep.subr.bf16.mxu0 0
        %7343 = vmatpush2.bf16.msra.mxu0 0
        %7344 = vmatprep.subr.bf16.mxu0 0
        %7345 = vmatpush2.bf16.msra.mxu0 0
        %7346 = vmatprep.subr.bf16.mxu0 0
        %7347 = vmatpush2.bf16.msra.mxu0 0
        %7348 = vmatprep.subr.bf16.mxu0 0
        %7349 = vmatpush2.bf16.msra.mxu0 0
        %7350 = vmatprep.mubr.bf16.mxu0 0
        %7351 = vmatmul.mubr.bf16.gmra.mxu0 %v7238
        %v7352 = vpop.f32.mrf.mxu0
        %v7353 = vadd.f32 0.0, %v7352
        %v7354 = vpop.f32.mrf.mxu0
        %v7355 = vpop.f32.mrf.mxu0
        %v7356 = vadd.f32 0.0, %v7355
        %v7357 = vpop.f32.mrf.mxu0
        %7358 = vmatprep.mubr.bf16.mxu0 0
        %7359 = vmatmul.mubr.bf16.gmra.mxu0 %v7239
        %v7360 = vpop.f32.mrf.mxu0
        %v7361 = vadd.f32 0.0, %v7360
        %v7362 = vpop.f32.mrf.mxu0
        %v7363 = vpop.f32.mrf.mxu0
        %v7364 = vadd.f32 0.0, %v7363
        %v7365 = vpop.f32.mrf.mxu0
        %7366 = vmatprep.mubr.bf16.mxu0 0
        %7367 = vmatmul.mubr.bf16.gmra.mxu0 %v7240
        %v7368 = vpop.f32.mrf.mxu0
        %v7369 = vadd.f32 0.0, %v7368
        %v7370 = vpop.f32.mrf.mxu0
        %v7371 = vpop.f32.mrf.mxu0
        %v7372 = vadd.f32 0.0, %v7371
        %v7373 = vpop.f32.mrf.mxu0
        %7374 = vmatprep.mubr.bf16.mxu0 0
        %7375 = vmatmul.mubr.bf16.gmra.mxu0 %v7241
        %v7376 = vpop.f32.mrf.mxu0
        %v7377 = vadd.f32 0.0, %v7376
        %v7378 = vpop.f32.mrf.mxu0
        %v7379 = vpop.f32.mrf.mxu0
        %v7380 = vadd.f32 0.0, %v7379
        %v7381 = vpop.f32.mrf.mxu0
        %7382 = vmatprep.mubr.bf16.mxu0 0
        %7383 = vmatmul.mubr.bf16.gmra.mxu0 %v7242
        %v7384 = vpop.f32.mrf.mxu0
        %v7385 = vadd.f32 0.0, %v7384
        %v7386 = vpop.f32.mrf.mxu0
        %v7387 = vpop.f32.mrf.mxu0
        %v7388 = vadd.f32 0.0, %v7387
        %v7389 = vpop.f32.mrf.mxu0
        %7390 = vmatprep.mubr.bf16.mxu0 0
        %7391 = vmatmul.mubr.bf16.gmra.mxu0 %v7243
        %v7392 = vpop.f32.mrf.mxu0
        %v7393 = vadd.f32 0.0, %v7392
        %v7394 = vpop.f32.mrf.mxu0
        %v7395 = vpop.f32.mrf.mxu0
        %v7396 = vadd.f32 0.0, %v7395
        %v7397 = vpop.f32.mrf.mxu0
        %7398 = vmatprep.mubr.bf16.mxu0 0
        %7399 = vmatmul.mubr.bf16.gmra.mxu0 %v7244
        %v7400 = vpop.f32.mrf.mxu0
        %v7401 = vadd.f32 0.0, %v7400
        %v7402 = vpop.f32.mrf.mxu0
        %v7403 = vpop.f32.mrf.mxu0
        %v7404 = vadd.f32 0.0, %v7403
        %v7405 = vpop.f32.mrf.mxu0
        %7406 = vmatprep.mubr.bf16.mxu0 0
        %7407 = vmatmul.mubr.bf16.gmra.mxu0 %v7245
        %v7408 = vpop.f32.mrf.mxu0
        %v7409 = vadd.f32 0.0, %v7408
        %v7410 = vpop.f32.mrf.mxu0
        %v7411 = vpop.f32.mrf.mxu0
        %v7412 = vadd.f32 0.0, %v7411
        %v7413 = vpop.f32.mrf.mxu0
        %7414 = vmatprep.mubr.bf16.mxu0 0
        %7415 = vmatmul.mubr.bf16.gmra.mxu0 %v7246
        %v7416 = vpop.f32.mrf.mxu0
        %v7417 = vadd.f32 0.0, %v7416
        %v7418 = vpop.f32.mrf.mxu0
        %v7419 = vpop.f32.mrf.mxu0
        %v7420 = vadd.f32 0.0, %v7419
        %v7421 = vpop.f32.mrf.mxu0
        %7422 = vmatprep.mubr.bf16.mxu0 0
        %7423 = vmatmul.mubr.bf16.gmra.mxu0 %v7247
        %v7424 = vpop.f32.mrf.mxu0
        %v7425 = vadd.f32 0.0, %v7424
        %v7426 = vpop.f32.mrf.mxu0
        %v7427 = vpop.f32.mrf.mxu0
        %v7428 = vadd.f32 0.0, %v7427
        %v7429 = vpop.f32.mrf.mxu0
        %7430 = vmatprep.mubr.bf16.mxu0 0
        %7431 = vmatmul.mubr.bf16.gmra.mxu0 %v7248
        %v7432 = vpop.f32.mrf.mxu0
        %v7433 = vadd.f32 0.0, %v7432
        %v7434 = vpop.f32.mrf.mxu0
        %v7435 = vpop.f32.mrf.mxu0
        %v7436 = vadd.f32 0.0, %v7435
        %v7437 = vpop.f32.mrf.mxu0
        %7438 = vmatprep.mubr.bf16.mxu0 0
        %7439 = vmatmul.mubr.bf16.gmra.mxu0 %v7249
        %v7440 = vpop.f32.mrf.mxu0
        %v7441 = vadd.f32 0.0, %v7440
        %v7442 = vpop.f32.mrf.mxu0
        %v7443 = vpop.f32.mrf.mxu0
        %v7444 = vadd.f32 0.0, %v7443
        %v7445 = vpop.f32.mrf.mxu0
        %7446 = vmatprep.mubr.bf16.mxu0 0
        %7447 = vmatmul.mubr.bf16.gmra.mxu0 %v7250
        %v7448 = vpop.f32.mrf.mxu0
        %v7449 = vadd.f32 0.0, %v7448
        %v7450 = vpop.f32.mrf.mxu0
        %v7451 = vpop.f32.mrf.mxu0
        %v7452 = vadd.f32 0.0, %v7451
        %v7453 = vpop.f32.mrf.mxu0
        %7454 = vmatprep.mubr.bf16.mxu0 0
        %7455 = vmatmul.mubr.bf16.gmra.mxu0 %v7251
        %v7456 = vpop.f32.mrf.mxu0
        %v7457 = vadd.f32 0.0, %v7456
        %v7458 = vpop.f32.mrf.mxu0
        %v7459 = vpop.f32.mrf.mxu0
        %v7460 = vadd.f32 0.0, %v7459
        %v7461 = vpop.f32.mrf.mxu0
        %7462 = vmatprep.mubr.bf16.mxu0 0
        %7463 = vmatmul.mubr.bf16.gmra.mxu0 %v7252
        %v7464 = vpop.f32.mrf.mxu0
        %v7465 = vadd.f32 0.0, %v7464
        %v7466 = vpop.f32.mrf.mxu0
        %v7467 = vpop.f32.mrf.mxu0
        %v7468 = vadd.f32 0.0, %v7467
        %v7469 = vpop.f32.mrf.mxu0
        %7470 = vmatprep.mubr.bf16.mxu0 0
        %7471 = vmatmul.mubr.bf16.gmra.mxu0 %v7253
        %v7472 = vpop.f32.mrf.mxu0
        %v7473 = vadd.f32 0.0, %v7472
        %v7474 = vpop.f32.mrf.mxu0
        %v7475 = vpop.f32.mrf.mxu0
        %v7476 = vadd.f32 0.0, %v7475
        %v7477 = vpop.f32.mrf.mxu0
        %7478 = vdwg.mxu0
        %v7479 = vadd.f32 %v7141, %v7353
        %v7480 = vadd.f32 %v7142, %v7356
        %v7481 = vadd.f32 %v7143, %v7361
        %v7482 = vadd.f32 %v7144, %v7364
        %v7483 = vadd.f32 %v7145, %v7369
        %v7484 = vadd.f32 %v7146, %v7372
        %v7485 = vadd.f32 %v7147, %v7377
        %v7486 = vadd.f32 %v7148, %v7380
        %v7487 = vadd.f32 %v7149, %v7385
        %v7488 = vadd.f32 %v7150, %v7388
        %v7489 = vadd.f32 %v7151, %v7393
        %v7490 = vadd.f32 %v7152, %v7396
        %v7491 = vadd.f32 %v7153, %v7401
        %v7492 = vadd.f32 %v7154, %v7404
        %v7493 = vadd.f32 %v7155, %v7409
        %v7494 = vadd.f32 %v7156, %v7412
        %v7495 = vadd.f32 %v7157, %v7417
        %v7496 = vadd.f32 %v7158, %v7420
        %v7497 = vadd.f32 %v7159, %v7425
        %v7498 = vadd.f32 %v7160, %v7428
        %v7499 = vadd.f32 %v7161, %v7433
        %v7500 = vadd.f32 %v7162, %v7436
        %v7501 = vadd.f32 %v7163, %v7441
        %v7502 = vadd.f32 %v7164, %v7444
        %v7503 = vadd.f32 %v7165, %v7449
        %v7504 = vadd.f32 %v7166, %v7452
        %v7505 = vadd.f32 %v7167, %v7457
        %v7506 = vadd.f32 %v7168, %v7460
        %v7507 = vadd.f32 %v7169, %v7465
        %v7508 = vadd.f32 %v7170, %v7468
        %v7509 = vadd.f32 %v7171, %v7473
        %v7510 = vadd.f32 %v7172, %v7476
        %v7511 = vld [vmem:[#allocation3 + $0x8] sm:$0xf]
        %v7512 = vld [vmem:[#allocation3 + $0xc] sm:$0xf]
        %v7513 = vld [vmem:[#allocation3 + $0x10] sm:$0x1]
        %v7514 = vld [vmem:[#allocation3 + $0x20] sm:$0xf]
        %v7515 = vld [vmem:[#allocation3 + $0x24] sm:$0xf]
        %v7516 = vld [vmem:[#allocation3 + $0x28] sm:$0x1]
        %v7517 = vld [vmem:[#allocation3 + $0x38] sm:$0xf]
        %v7518 = vld [vmem:[#allocation3 + $0x3c] sm:$0xf]
        %v7519 = vld [vmem:[#allocation3 + $0x40] sm:$0x1]
        %v7520 = vld [vmem:[#allocation3 + $0x50] sm:$0xf]
        %v7521 = vld [vmem:[#allocation3 + $0x54] sm:$0xf]
        %v7522 = vld [vmem:[#allocation3 + $0x58] sm:$0x1]
        %v7523 = vld [vmem:[#allocation3 + $0x68] sm:$0xf]
        %v7524 = vld [vmem:[#allocation3 + $0x6c] sm:$0xf]
        %v7525 = vld [vmem:[#allocation3 + $0x70] sm:$0x1]
        %v7526 = vld [vmem:[#allocation3 + $0x80] sm:$0xf]
        %v7527 = vld [vmem:[#allocation3 + $0x84] sm:$0xf]
        %v7528 = vld [vmem:[#allocation3 + $0x88] sm:$0x1]
        %v7529 = vld [vmem:[#allocation3 + $0x98] sm:$0xf]
        %v7530 = vld [vmem:[#allocation3 + $0x9c] sm:$0xf]
        %v7531 = vld [vmem:[#allocation3 + $0xa0] sm:$0x1]
        %v7532 = vld [vmem:[#allocation3 + $0xb0] sm:$0xf]
        %v7533 = vld [vmem:[#allocation3 + $0xb4] sm:$0xf]
        %v7534 = vld [vmem:[#allocation3 + $0xb8] sm:$0x1]
        %v7535 = vld [vmem:[#allocation3 + $0xc8] sm:$0xf]
        %v7536 = vld [vmem:[#allocation3 + $0xcc] sm:$0xf]
        %v7537 = vld [vmem:[#allocation3 + $0xd0] sm:$0x1]
        %v7538 = vld [vmem:[#allocation3 + $0xe0] sm:$0xf]
        %v7539 = vld [vmem:[#allocation3 + $0xe4] sm:$0xf]
        %v7540 = vld [vmem:[#allocation3 + $0xe8] sm:$0x1]
        %v7541 = vld [vmem:[#allocation3 + $0xf8] sm:$0xf]
        %v7542 = vld [vmem:[#allocation3 + $0xfc] sm:$0xf]
        %v7543 = vld [vmem:[#allocation3 + $0x100] sm:$0x1]
        %v7544 = vld [vmem:[#allocation3 + $0x110] sm:$0xf]
        %v7545 = vld [vmem:[#allocation3 + $0x114] sm:$0xf]
        %v7546 = vld [vmem:[#allocation3 + $0x118] sm:$0x1]
        %v7547 = vld [vmem:[#allocation3 + $0x128] sm:$0xf]
        %v7548 = vld [vmem:[#allocation3 + $0x12c] sm:$0xf]
        %v7549 = vld [vmem:[#allocation3 + $0x130] sm:$0x1]
        %v7550 = vld [vmem:[#allocation3 + $0x140] sm:$0xf]
        %v7551 = vld [vmem:[#allocation3 + $0x144] sm:$0xf]
        %v7552 = vld [vmem:[#allocation3 + $0x148] sm:$0x1]
        %v7553 = vld [vmem:[#allocation3 + $0x158] sm:$0xf]
        %v7554 = vld [vmem:[#allocation3 + $0x15c] sm:$0xf]
        %v7555 = vld [vmem:[#allocation3 + $0x160] sm:$0x1]
        %v7556 = vld [vmem:[#allocation3 + $0x170] sm:$0xf]
        %v7557 = vld [vmem:[#allocation3 + $0x174] sm:$0xf]
        %v7558 = vld [vmem:[#allocation3 + $0x178] sm:$0x1]
        %v7560 = vshrl.u32 %v7511, 16
        %v7562 = vrot.slane %v7560, 4
        %v7563 = vshll.u32 %v7511, 16
        %v7565 = vrot.slane %v7563, 5
        %v7566 = vor.u32 %v7562, %v7565
        %v7567 = vrot.slane %v7566, 4
        %v7569 = vshll.u32 %v7512, 16
        %v7571 = vrot.slane %v7569, 5
        %v7572 = vsel %vm2743, %v7567, %v7571
        %v7573 = vshrl.u32 %v7512, 16
        %v7575 = vrot.slane %v7573, 4
        %v7576 = vor.u32 %v7575, %v7571
        %v7577 = vrot.slane %v7576, 4
        %v7579 = vshll.u32 %v7513, 16
        %v7581 = vrot.slane %v7579, 5
        %v7582 = vsel %vm2743, %v7577, %v7581
        %v7584 = vshrl.u32 %v7514, 16
        %v7586 = vrot.slane %v7584, 4
        %v7587 = vshll.u32 %v7514, 16
        %v7589 = vrot.slane %v7587, 5
        %v7590 = vor.u32 %v7586, %v7589
        %v7591 = vrot.slane %v7590, 4
        %v7593 = vshll.u32 %v7515, 16
        %v7595 = vrot.slane %v7593, 5
        %v7596 = vsel %vm2743, %v7591, %v7595
        %v7597 = vshrl.u32 %v7515, 16
        %v7599 = vrot.slane %v7597, 4
        %v7600 = vor.u32 %v7599, %v7595
        %v7601 = vrot.slane %v7600, 4
        %v7603 = vshll.u32 %v7516, 16
        %v7605 = vrot.slane %v7603, 5
        %v7606 = vsel %vm2743, %v7601, %v7605
        %v7608 = vshrl.u32 %v7517, 16
        %v7610 = vrot.slane %v7608, 4
        %v7611 = vshll.u32 %v7517, 16
        %v7613 = vrot.slane %v7611, 5
        %v7614 = vor.u32 %v7610, %v7613
        %v7615 = vrot.slane %v7614, 4
        %v7617 = vshll.u32 %v7518, 16
        %v7619 = vrot.slane %v7617, 5
        %v7620 = vsel %vm2743, %v7615, %v7619
        %v7621 = vshrl.u32 %v7518, 16
        %v7623 = vrot.slane %v7621, 4
        %v7624 = vor.u32 %v7623, %v7619
        %v7625 = vrot.slane %v7624, 4
        %v7627 = vshll.u32 %v7519, 16
        %v7629 = vrot.slane %v7627, 5
        %v7630 = vsel %vm2743, %v7625, %v7629
        %v7632 = vshrl.u32 %v7520, 16
        %v7634 = vrot.slane %v7632, 4
        %v7635 = vshll.u32 %v7520, 16
        %v7637 = vrot.slane %v7635, 5
        %v7638 = vor.u32 %v7634, %v7637
        %v7639 = vrot.slane %v7638, 4
        %v7641 = vshll.u32 %v7521, 16
        %v7643 = vrot.slane %v7641, 5
        %v7644 = vsel %vm2743, %v7639, %v7643
        %v7645 = vshrl.u32 %v7521, 16
        %v7647 = vrot.slane %v7645, 4
        %v7648 = vor.u32 %v7647, %v7643
        %v7649 = vrot.slane %v7648, 4
        %v7651 = vshll.u32 %v7522, 16
        %v7653 = vrot.slane %v7651, 5
        %v7654 = vsel %vm2743, %v7649, %v7653
        %v7656 = vshrl.u32 %v7523, 16
        %v7658 = vrot.slane %v7656, 4
        %v7659 = vshll.u32 %v7523, 16
        %v7661 = vrot.slane %v7659, 5
        %v7662 = vor.u32 %v7658, %v7661
        %v7663 = vrot.slane %v7662, 4
        %v7665 = vshll.u32 %v7524, 16
        %v7667 = vrot.slane %v7665, 5
        %v7668 = vsel %vm2743, %v7663, %v7667
        %v7669 = vshrl.u32 %v7524, 16
        %v7671 = vrot.slane %v7669, 4
        %v7672 = vor.u32 %v7671, %v7667
        %v7673 = vrot.slane %v7672, 4
        %v7675 = vshll.u32 %v7525, 16
        %v7677 = vrot.slane %v7675, 5
        %v7678 = vsel %vm2743, %v7673, %v7677
        %v7680 = vshrl.u32 %v7526, 16
        %v7682 = vrot.slane %v7680, 4
        %v7683 = vshll.u32 %v7526, 16
        %v7685 = vrot.slane %v7683, 5
        %v7686 = vor.u32 %v7682, %v7685
        %v7687 = vrot.slane %v7686, 4
        %v7689 = vshll.u32 %v7527, 16
        %v7691 = vrot.slane %v7689, 5
        %v7692 = vsel %vm2743, %v7687, %v7691
        %v7693 = vshrl.u32 %v7527, 16
        %v7695 = vrot.slane %v7693, 4
        %v7696 = vor.u32 %v7695, %v7691
        %v7697 = vrot.slane %v7696, 4
        %v7699 = vshll.u32 %v7528, 16
        %v7701 = vrot.slane %v7699, 5
        %v7702 = vsel %vm2743, %v7697, %v7701
        %v7704 = vshrl.u32 %v7529, 16
        %v7706 = vrot.slane %v7704, 4
        %v7707 = vshll.u32 %v7529, 16
        %v7709 = vrot.slane %v7707, 5
        %v7710 = vor.u32 %v7706, %v7709
        %v7711 = vrot.slane %v7710, 4
        %v7713 = vshll.u32 %v7530, 16
        %v7715 = vrot.slane %v7713, 5
        %v7716 = vsel %vm2743, %v7711, %v7715
        %v7717 = vshrl.u32 %v7530, 16
        %v7719 = vrot.slane %v7717, 4
        %v7720 = vor.u32 %v7719, %v7715
        %v7721 = vrot.slane %v7720, 4
        %v7723 = vshll.u32 %v7531, 16
        %v7725 = vrot.slane %v7723, 5
        %v7726 = vsel %vm2743, %v7721, %v7725
        %v7728 = vshrl.u32 %v7532, 16
        %v7730 = vrot.slane %v7728, 4
        %v7731 = vshll.u32 %v7532, 16
        %v7733 = vrot.slane %v7731, 5
        %v7734 = vor.u32 %v7730, %v7733
        %v7735 = vrot.slane %v7734, 4
        %v7737 = vshll.u32 %v7533, 16
        %v7739 = vrot.slane %v7737, 5
        %v7740 = vsel %vm2743, %v7735, %v7739
        %v7741 = vshrl.u32 %v7533, 16
        %v7743 = vrot.slane %v7741, 4
        %v7744 = vor.u32 %v7743, %v7739
        %v7745 = vrot.slane %v7744, 4
        %v7747 = vshll.u32 %v7534, 16
        %v7749 = vrot.slane %v7747, 5
        %v7750 = vsel %vm2743, %v7745, %v7749
        %v7752 = vshrl.u32 %v7535, 16
        %v7754 = vrot.slane %v7752, 4
        %v7755 = vshll.u32 %v7535, 16
        %v7757 = vrot.slane %v7755, 5
        %v7758 = vor.u32 %v7754, %v7757
        %v7759 = vrot.slane %v7758, 4
        %v7761 = vshll.u32 %v7536, 16
        %v7763 = vrot.slane %v7761, 5
        %v7764 = vsel %vm2743, %v7759, %v7763
        %v7765 = vshrl.u32 %v7536, 16
        %v7767 = vrot.slane %v7765, 4
        %v7768 = vor.u32 %v7767, %v7763
        %v7769 = vrot.slane %v7768, 4
        %v7771 = vshll.u32 %v7537, 16
        %v7773 = vrot.slane %v7771, 5
        %v7774 = vsel %vm2743, %v7769, %v7773
        %v7776 = vshrl.u32 %v7538, 16
        %v7778 = vrot.slane %v7776, 4
        %v7779 = vshll.u32 %v7538, 16
        %v7781 = vrot.slane %v7779, 5
        %v7782 = vor.u32 %v7778, %v7781
        %v7783 = vrot.slane %v7782, 4
        %v7785 = vshll.u32 %v7539, 16
        %v7787 = vrot.slane %v7785, 5
        %v7788 = vsel %vm2743, %v7783, %v7787
        %v7789 = vshrl.u32 %v7539, 16
        %v7791 = vrot.slane %v7789, 4
        %v7792 = vor.u32 %v7791, %v7787
        %v7793 = vrot.slane %v7792, 4
        %v7795 = vshll.u32 %v7540, 16
        %v7797 = vrot.slane %v7795, 5
        %v7798 = vsel %vm2743, %v7793, %v7797
        %v7800 = vshrl.u32 %v7541, 16
        %v7802 = vrot.slane %v7800, 4
        %v7803 = vshll.u32 %v7541, 16
        %v7805 = vrot.slane %v7803, 5
        %v7806 = vor.u32 %v7802, %v7805
        %v7807 = vrot.slane %v7806, 4
        %v7809 = vshll.u32 %v7542, 16
        %v7811 = vrot.slane %v7809, 5
        %v7812 = vsel %vm2743, %v7807, %v7811
        %v7813 = vshrl.u32 %v7542, 16
        %v7815 = vrot.slane %v7813, 4
        %v7816 = vor.u32 %v7815, %v7811
        %v7817 = vrot.slane %v7816, 4
        %v7819 = vshll.u32 %v7543, 16
        %v7821 = vrot.slane %v7819, 5
        %v7822 = vsel %vm2743, %v7817, %v7821
        %v7824 = vshrl.u32 %v7544, 16
        %v7826 = vrot.slane %v7824, 4
        %v7827 = vshll.u32 %v7544, 16
        %v7829 = vrot.slane %v7827, 5
        %v7830 = vor.u32 %v7826, %v7829
        %v7831 = vrot.slane %v7830, 4
        %v7833 = vshll.u32 %v7545, 16
        %v7835 = vrot.slane %v7833, 5
        %v7836 = vsel %vm2743, %v7831, %v7835
        %v7837 = vshrl.u32 %v7545, 16
        %v7839 = vrot.slane %v7837, 4
        %v7840 = vor.u32 %v7839, %v7835
        %v7841 = vrot.slane %v7840, 4
        %v7843 = vshll.u32 %v7546, 16
        %v7845 = vrot.slane %v7843, 5
        %v7846 = vsel %vm2743, %v7841, %v7845
        %v7848 = vshrl.u32 %v7547, 16
        %v7850 = vrot.slane %v7848, 4
        %v7851 = vshll.u32 %v7547, 16
        %v7853 = vrot.slane %v7851, 5
        %v7854 = vor.u32 %v7850, %v7853
        %v7855 = vrot.slane %v7854, 4
        %v7857 = vshll.u32 %v7548, 16
        %v7859 = vrot.slane %v7857, 5
        %v7860 = vsel %vm2743, %v7855, %v7859
        %v7861 = vshrl.u32 %v7548, 16
        %v7863 = vrot.slane %v7861, 4
        %v7864 = vor.u32 %v7863, %v7859
        %v7865 = vrot.slane %v7864, 4
        %v7867 = vshll.u32 %v7549, 16
        %v7869 = vrot.slane %v7867, 5
        %v7870 = vsel %vm2743, %v7865, %v7869
        %v7872 = vshrl.u32 %v7550, 16
        %v7874 = vrot.slane %v7872, 4
        %v7875 = vshll.u32 %v7550, 16
        %v7877 = vrot.slane %v7875, 5
        %v7878 = vor.u32 %v7874, %v7877
        %v7879 = vrot.slane %v7878, 4
        %v7881 = vshll.u32 %v7551, 16
        %v7883 = vrot.slane %v7881, 5
        %v7884 = vsel %vm2743, %v7879, %v7883
        %v7885 = vshrl.u32 %v7551, 16
        %v7887 = vrot.slane %v7885, 4
        %v7888 = vor.u32 %v7887, %v7883
        %v7889 = vrot.slane %v7888, 4
        %v7891 = vshll.u32 %v7552, 16
        %v7893 = vrot.slane %v7891, 5
        %v7894 = vsel %vm2743, %v7889, %v7893
        %v7896 = vshrl.u32 %v7553, 16
        %v7898 = vrot.slane %v7896, 4
        %v7899 = vshll.u32 %v7553, 16
        %v7901 = vrot.slane %v7899, 5
        %v7902 = vor.u32 %v7898, %v7901
        %v7903 = vrot.slane %v7902, 4
        %v7905 = vshll.u32 %v7554, 16
        %v7907 = vrot.slane %v7905, 5
        %v7908 = vsel %vm2743, %v7903, %v7907
        %v7909 = vshrl.u32 %v7554, 16
        %v7911 = vrot.slane %v7909, 4
        %v7912 = vor.u32 %v7911, %v7907
        %v7913 = vrot.slane %v7912, 4
        %v7915 = vshll.u32 %v7555, 16
        %v7917 = vrot.slane %v7915, 5
        %v7918 = vsel %vm2743, %v7913, %v7917
        %v7920 = vshrl.u32 %v7556, 16
        %v7922 = vrot.slane %v7920, 4
        %v7923 = vshll.u32 %v7556, 16
        %v7925 = vrot.slane %v7923, 5
        %v7926 = vor.u32 %v7922, %v7925
        %v7927 = vrot.slane %v7926, 4
        %v7929 = vshll.u32 %v7557, 16
        %v7931 = vrot.slane %v7929, 5
        %v7932 = vsel %vm2743, %v7927, %v7931
        %v7933 = vshrl.u32 %v7557, 16
        %v7935 = vrot.slane %v7933, 4
        %v7936 = vor.u32 %v7935, %v7931
        %v7937 = vrot.slane %v7936, 4
        %v7939 = vshll.u32 %v7558, 16
        %v7941 = vrot.slane %v7939, 5
        %v7942 = vsel %vm2743, %v7937, %v7941
        %s7943 = scalar_lea.vmem [#allocation4], 256
        %v7944 = vld [vmem:[%s7943] sm:$0xf]
        %v7945 = vld [vmem:[%s7943 + $0x4] sm:$0xf]
        %v7946 = vld [vmem:[%s7943 + $0x8] sm:$0xf]
        %v7947 = vld [vmem:[%s7943 + $0xc] sm:$0xf]
        %v7948 = vld [vmem:[%s7943 + $0x10] sm:$0xf]
        %v7949 = vld [vmem:[%s7943 + $0x14] sm:$0xf]
        %v7950 = vld [vmem:[%s7943 + $0x18] sm:$0xf]
        %v7951 = vld [vmem:[%s7943 + $0x1c] sm:$0xf]
        %v7952 = vld [vmem:[%s7943 + $0x20] sm:$0xf]
        %v7953 = vld [vmem:[%s7943 + $0x24] sm:$0xf]
        %v7954 = vld [vmem:[%s7943 + $0x28] sm:$0xf]
        %v7955 = vld [vmem:[%s7943 + $0x2c] sm:$0xf]
        %v7956 = vld [vmem:[%s7943 + $0x30] sm:$0xf]
        %v7957 = vld [vmem:[%s7943 + $0x34] sm:$0xf]
        %v7958 = vld [vmem:[%s7943 + $0x38] sm:$0xf]
        %v7959 = vld [vmem:[%s7943 + $0x3c] sm:$0xf]
        %v7960 = vunpack.c.l.b16 %v7572
        %v7961 = vunpack.c.l.b16 %v7582
        %v7962 = vunpack.c.l.b16 %v7596
        %v7963 = vunpack.c.l.b16 %v7606
        %v7964 = vunpack.c.l.b16 %v7620
        %v7965 = vunpack.c.l.b16 %v7630
        %v7966 = vunpack.c.l.b16 %v7644
        %v7967 = vunpack.c.l.b16 %v7654
        %v7968 = vunpack.c.l.b16 %v7668
        %v7969 = vunpack.c.l.b16 %v7678
        %v7970 = vunpack.c.l.b16 %v7692
        %v7971 = vunpack.c.l.b16 %v7702
        %v7972 = vunpack.c.l.b16 %v7716
        %v7973 = vunpack.c.l.b16 %v7726
        %v7974 = vunpack.c.l.b16 %v7740
        %v7975 = vunpack.c.l.b16 %v7750
        %v7976 = vunpack.c.l.b16 %v7764
        %v7977 = vunpack.c.l.b16 %v7774
        %v7978 = vunpack.c.l.b16 %v7788
        %v7979 = vunpack.c.l.b16 %v7798
        %v7980 = vunpack.c.l.b16 %v7812
        %v7981 = vunpack.c.l.b16 %v7822
        %v7982 = vunpack.c.l.b16 %v7836
        %v7983 = vunpack.c.l.b16 %v7846
        %v7984 = vunpack.c.l.b16 %v7860
        %v7985 = vunpack.c.l.b16 %v7870
        %v7986 = vunpack.c.l.b16 %v7884
        %v7987 = vunpack.c.l.b16 %v7894
        %v7988 = vunpack.c.l.b16 %v7908
        %v7989 = vunpack.c.l.b16 %v7918
        %v7990 = vunpack.c.l.b16 %v7932
        %v7991 = vunpack.c.l.b16 %v7942
        %v7992 = vpack.c.b16 %v7961, %v7960
        %v7993 = vpack.c.b16 %v7963, %v7962
        %v7994 = vpack.c.b16 %v7965, %v7964
        %v7995 = vpack.c.b16 %v7967, %v7966
        %v7996 = vpack.c.b16 %v7969, %v7968
        %v7997 = vpack.c.b16 %v7971, %v7970
        %v7998 = vpack.c.b16 %v7973, %v7972
        %v7999 = vpack.c.b16 %v7975, %v7974
        %v8000 = vpack.c.b16 %v7977, %v7976
        %v8001 = vpack.c.b16 %v7979, %v7978
        %v8002 = vpack.c.b16 %v7981, %v7980
        %v8003 = vpack.c.b16 %v7983, %v7982
        %v8004 = vpack.c.b16 %v7985, %v7984
        %v8005 = vpack.c.b16 %v7987, %v7986
        %v8006 = vpack.c.b16 %v7989, %v7988
        %v8007 = vpack.c.b16 %v7991, %v7990
        %v8040 = vunpack.c.l.b16 %v7944
        %v8041 = vunpack.c.l.b16 %v7945
        %v8042 = vunpack.c.l.b16 %v7946
        %v8043 = vunpack.c.l.b16 %v7947
        %v8044 = vunpack.c.l.b16 %v7948
        %v8045 = vunpack.c.l.b16 %v7949
        %v8046 = vunpack.c.l.b16 %v7950
        %v8047 = vunpack.c.l.b16 %v7951
        %v8048 = vunpack.c.l.b16 %v7952
        %v8049 = vunpack.c.l.b16 %v7953
        %v8050 = vunpack.c.l.b16 %v7954
        %v8051 = vunpack.c.l.b16 %v7955
        %v8052 = vunpack.c.l.b16 %v7956
        %v8053 = vunpack.c.l.b16 %v7957
        %v8054 = vunpack.c.l.b16 %v7958
        %v8055 = vunpack.c.l.b16 %v7959
        %v8056 = vpack.c.b16 %v8041, %v8040
        %v8057 = vpack.c.b16 %v8043, %v8042
        %v8058 = vpack.c.b16 %v8045, %v8044
        %v8059 = vpack.c.b16 %v8047, %v8046
        %v8060 = vpack.c.b16 %v8049, %v8048
        %v8061 = vpack.c.b16 %v8051, %v8050
        %v8062 = vpack.c.b16 %v8053, %v8052
        %v8063 = vpack.c.b16 %v8055, %v8054
        %8072 = vmatprep.subr.bf16.mxu0 0
        %8073 = vmatpush1.bf16.msra.mxu0 %v8063
        %8074 = vmatprep.subr.bf16.mxu0 0
        %8075 = vmatpush1.bf16.msra.mxu0 %v8062
        %8076 = vmatprep.subr.bf16.mxu0 0
        %8077 = vmatpush1.bf16.msra.mxu0 %v8061
        %8078 = vmatprep.subr.bf16.mxu0 0
        %8079 = vmatpush1.bf16.msra.mxu0 %v8060
        %8080 = vmatprep.subr.bf16.mxu0 0
        %8081 = vmatpush1.bf16.msra.mxu0 %v8059
        %8082 = vmatprep.subr.bf16.mxu0 0
        %8083 = vmatpush1.bf16.msra.mxu0 %v8058
        %8084 = vmatprep.subr.bf16.mxu0 0
        %8085 = vmatpush1.bf16.msra.mxu0 %v8057
        %8086 = vmatprep.subr.bf16.mxu0 0
        %8087 = vmatpush1.bf16.msra.mxu0 %v8056
        %8088 = vmatprep.subr.bf16.mxu0 0
        %8089 = vmatpush2.bf16.msra.mxu0 0
        %8090 = vmatprep.subr.bf16.mxu0 0
        %8091 = vmatpush2.bf16.msra.mxu0 0
        %8092 = vmatprep.subr.bf16.mxu0 0
        %8093 = vmatpush2.bf16.msra.mxu0 0
        %8094 = vmatprep.subr.bf16.mxu0 0
        %8095 = vmatpush2.bf16.msra.mxu0 0
        %8096 = vmatprep.subr.bf16.mxu0 0
        %8097 = vmatpush2.bf16.msra.mxu0 0
        %8098 = vmatprep.subr.bf16.mxu0 0
        %8099 = vmatpush2.bf16.msra.mxu0 0
        %8100 = vmatprep.subr.bf16.mxu0 0
        %8101 = vmatpush2.bf16.msra.mxu0 0
        %8102 = vmatprep.subr.bf16.mxu0 0
        %8103 = vmatpush2.bf16.msra.mxu0 0
        %8104 = vmatprep.mubr.bf16.mxu0 0
        %8105 = vmatmul.mubr.bf16.gmra.mxu0 %v7992
        %v8106 = vpop.f32.mrf.mxu0
        %v8107 = vadd.f32 0.0, %v8106
        %v8108 = vpop.f32.mrf.mxu0
        %v8109 = vpop.f32.mrf.mxu0
        %v8110 = vadd.f32 0.0, %v8109
        %v8111 = vpop.f32.mrf.mxu0
        %8112 = vmatprep.mubr.bf16.mxu0 0
        %8113 = vmatmul.mubr.bf16.gmra.mxu0 %v7993
        %v8114 = vpop.f32.mrf.mxu0
        %v8115 = vadd.f32 0.0, %v8114
        %v8116 = vpop.f32.mrf.mxu0
        %v8117 = vpop.f32.mrf.mxu0
        %v8118 = vadd.f32 0.0, %v8117
        %v8119 = vpop.f32.mrf.mxu0
        %8120 = vmatprep.mubr.bf16.mxu0 0
        %8121 = vmatmul.mubr.bf16.gmra.mxu0 %v7994
        %v8122 = vpop.f32.mrf.mxu0
        %v8123 = vadd.f32 0.0, %v8122
        %v8124 = vpop.f32.mrf.mxu0
        %v8125 = vpop.f32.mrf.mxu0
        %v8126 = vadd.f32 0.0, %v8125
        %v8127 = vpop.f32.mrf.mxu0
        %8128 = vmatprep.mubr.bf16.mxu0 0
        %8129 = vmatmul.mubr.bf16.gmra.mxu0 %v7995
        %v8130 = vpop.f32.mrf.mxu0
        %v8131 = vadd.f32 0.0, %v8130
        %v8132 = vpop.f32.mrf.mxu0
        %v8133 = vpop.f32.mrf.mxu0
        %v8134 = vadd.f32 0.0, %v8133
        %v8135 = vpop.f32.mrf.mxu0
        %8136 = vmatprep.mubr.bf16.mxu0 0
        %8137 = vmatmul.mubr.bf16.gmra.mxu0 %v7996
        %v8138 = vpop.f32.mrf.mxu0
        %v8139 = vadd.f32 0.0, %v8138
        %v8140 = vpop.f32.mrf.mxu0
        %v8141 = vpop.f32.mrf.mxu0
        %v8142 = vadd.f32 0.0, %v8141
        %v8143 = vpop.f32.mrf.mxu0
        %8144 = vmatprep.mubr.bf16.mxu0 0
        %8145 = vmatmul.mubr.bf16.gmra.mxu0 %v7997
        %v8146 = vpop.f32.mrf.mxu0
        %v8147 = vadd.f32 0.0, %v8146
        %v8148 = vpop.f32.mrf.mxu0
        %v8149 = vpop.f32.mrf.mxu0
        %v8150 = vadd.f32 0.0, %v8149
        %v8151 = vpop.f32.mrf.mxu0
        %8152 = vmatprep.mubr.bf16.mxu0 0
        %8153 = vmatmul.mubr.bf16.gmra.mxu0 %v7998
        %v8154 = vpop.f32.mrf.mxu0
        %v8155 = vadd.f32 0.0, %v8154
        %v8156 = vpop.f32.mrf.mxu0
        %v8157 = vpop.f32.mrf.mxu0
        %v8158 = vadd.f32 0.0, %v8157
        %v8159 = vpop.f32.mrf.mxu0
        %8160 = vmatprep.mubr.bf16.mxu0 0
        %8161 = vmatmul.mubr.bf16.gmra.mxu0 %v7999
        %v8162 = vpop.f32.mrf.mxu0
        %v8163 = vadd.f32 0.0, %v8162
        %v8164 = vpop.f32.mrf.mxu0
        %v8165 = vpop.f32.mrf.mxu0
        %v8166 = vadd.f32 0.0, %v8165
        %v8167 = vpop.f32.mrf.mxu0
        %8168 = vmatprep.mubr.bf16.mxu0 0
        %8169 = vmatmul.mubr.bf16.gmra.mxu0 %v8000
        %v8170 = vpop.f32.mrf.mxu0
        %v8171 = vadd.f32 0.0, %v8170
        %v8172 = vpop.f32.mrf.mxu0
        %v8173 = vpop.f32.mrf.mxu0
        %v8174 = vadd.f32 0.0, %v8173
        %v8175 = vpop.f32.mrf.mxu0
        %8176 = vmatprep.mubr.bf16.mxu0 0
        %8177 = vmatmul.mubr.bf16.gmra.mxu0 %v8001
        %v8178 = vpop.f32.mrf.mxu0
        %v8179 = vadd.f32 0.0, %v8178
        %v8180 = vpop.f32.mrf.mxu0
        %v8181 = vpop.f32.mrf.mxu0
        %v8182 = vadd.f32 0.0, %v8181
        %v8183 = vpop.f32.mrf.mxu0
        %8184 = vmatprep.mubr.bf16.mxu0 0
        %8185 = vmatmul.mubr.bf16.gmra.mxu0 %v8002
        %v8186 = vpop.f32.mrf.mxu0
        %v8187 = vadd.f32 0.0, %v8186
        %v8188 = vpop.f32.mrf.mxu0
        %v8189 = vpop.f32.mrf.mxu0
        %v8190 = vadd.f32 0.0, %v8189
        %v8191 = vpop.f32.mrf.mxu0
        %8192 = vmatprep.mubr.bf16.mxu0 0
        %8193 = vmatmul.mubr.bf16.gmra.mxu0 %v8003
        %v8194 = vpop.f32.mrf.mxu0
        %v8195 = vadd.f32 0.0, %v8194
        %v8196 = vpop.f32.mrf.mxu0
        %v8197 = vpop.f32.mrf.mxu0
        %v8198 = vadd.f32 0.0, %v8197
        %v8199 = vpop.f32.mrf.mxu0
        %8200 = vmatprep.mubr.bf16.mxu0 0
        %8201 = vmatmul.mubr.bf16.gmra.mxu0 %v8004
        %v8202 = vpop.f32.mrf.mxu0
        %v8203 = vadd.f32 0.0, %v8202
        %v8204 = vpop.f32.mrf.mxu0
        %v8205 = vpop.f32.mrf.mxu0
        %v8206 = vadd.f32 0.0, %v8205
        %v8207 = vpop.f32.mrf.mxu0
        %8208 = vmatprep.mubr.bf16.mxu0 0
        %8209 = vmatmul.mubr.bf16.gmra.mxu0 %v8005
        %v8210 = vpop.f32.mrf.mxu0
        %v8211 = vadd.f32 0.0, %v8210
        %v8212 = vpop.f32.mrf.mxu0
        %v8213 = vpop.f32.mrf.mxu0
        %v8214 = vadd.f32 0.0, %v8213
        %v8215 = vpop.f32.mrf.mxu0
        %8216 = vmatprep.mubr.bf16.mxu0 0
        %8217 = vmatmul.mubr.bf16.gmra.mxu0 %v8006
        %v8218 = vpop.f32.mrf.mxu0
        %v8219 = vadd.f32 0.0, %v8218
        %v8220 = vpop.f32.mrf.mxu0
        %v8221 = vpop.f32.mrf.mxu0
        %v8222 = vadd.f32 0.0, %v8221
        %v8223 = vpop.f32.mrf.mxu0
        %8224 = vmatprep.mubr.bf16.mxu0 0
        %8225 = vmatmul.mubr.bf16.gmra.mxu0 %v8007
        %v8226 = vpop.f32.mrf.mxu0
        %v8227 = vadd.f32 0.0, %v8226
        %v8228 = vpop.f32.mrf.mxu0
        %v8229 = vpop.f32.mrf.mxu0
        %v8230 = vadd.f32 0.0, %v8229
        %v8231 = vpop.f32.mrf.mxu0
        %8232 = vdwg.mxu0
        %v8233 = vadd.f32 %v7479, %v8107
        %v8234 = vadd.f32 %v7480, %v8110
        %v8235 = vadd.f32 %v7481, %v8115
        %v8236 = vadd.f32 %v7482, %v8118
        %v8237 = vadd.f32 %v7483, %v8123
        %v8238 = vadd.f32 %v7484, %v8126
        %v8239 = vadd.f32 %v7485, %v8131
        %v8240 = vadd.f32 %v7486, %v8134
        %v8241 = vadd.f32 %v7487, %v8139
        %v8242 = vadd.f32 %v7488, %v8142
        %v8243 = vadd.f32 %v7489, %v8147
        %v8244 = vadd.f32 %v7490, %v8150
        %v8245 = vadd.f32 %v7491, %v8155
        %v8246 = vadd.f32 %v7492, %v8158
        %v8247 = vadd.f32 %v7493, %v8163
        %v8248 = vadd.f32 %v7494, %v8166
        %v8249 = vadd.f32 %v7495, %v8171
        %v8250 = vadd.f32 %v7496, %v8174
        %v8251 = vadd.f32 %v7497, %v8179
        %v8252 = vadd.f32 %v7498, %v8182
        %v8253 = vadd.f32 %v7499, %v8187
        %v8254 = vadd.f32 %v7500, %v8190
        %v8255 = vadd.f32 %v7501, %v8195
        %v8256 = vadd.f32 %v7502, %v8198
        %v8257 = vadd.f32 %v7503, %v8203
        %v8258 = vadd.f32 %v7504, %v8206
        %v8259 = vadd.f32 %v7505, %v8211
        %v8260 = vadd.f32 %v7506, %v8214
        %v8261 = vadd.f32 %v7507, %v8219
        %v8262 = vadd.f32 %v7508, %v8222
        %v8263 = vadd.f32 %v7509, %v8227
        %v8264 = vadd.f32 %v7510, %v8230
        %v8265 = vld [vmem:[#allocation3 + $0x8] sm:$0xe]
        %v8266 = vld [vmem:[#allocation3 + $0x20] sm:$0xe]
        %v8267 = vld [vmem:[#allocation3 + $0x38] sm:$0xe]
        %v8268 = vld [vmem:[#allocation3 + $0x50] sm:$0xe]
        %v8269 = vld [vmem:[#allocation3 + $0x68] sm:$0xe]
        %v8270 = vld [vmem:[#allocation3 + $0x80] sm:$0xe]
        %v8271 = vld [vmem:[#allocation3 + $0x98] sm:$0xe]
        %v8272 = vld [vmem:[#allocation3 + $0xb0] sm:$0xe]
        %v8273 = vld [vmem:[#allocation3 + $0xc8] sm:$0xe]
        %v8274 = vld [vmem:[#allocation3 + $0xe0] sm:$0xe]
        %v8275 = vld [vmem:[#allocation3 + $0xf8] sm:$0xe]
        %v8276 = vld [vmem:[#allocation3 + $0x110] sm:$0xe]
        %v8277 = vld [vmem:[#allocation3 + $0x128] sm:$0xe]
        %v8278 = vld [vmem:[#allocation3 + $0x140] sm:$0xe]
        %v8279 = vld [vmem:[#allocation3 + $0x158] sm:$0xe]
        %v8280 = vld [vmem:[#allocation3 + $0x170] sm:$0xe]
        %v8329 = vrot.slane %v8265, 5
        %v8330 = vrot.slane %v8329, 4
        %v8331 = vrot.slane %v7512, 5
        %v8332 = vsel %vm3500, %v8330, %v8331
        %v8333 = vrot.slane %v8331, 4
        %v8334 = vrot.slane %v7513, 5
        %v8335 = vsel %vm3500, %v8333, %v8334
        %v8336 = vrot.slane %v8266, 5
        %v8337 = vrot.slane %v8336, 4
        %v8338 = vrot.slane %v7515, 5
        %v8339 = vsel %vm3500, %v8337, %v8338
        %v8340 = vrot.slane %v8338, 4
        %v8341 = vrot.slane %v7516, 5
        %v8342 = vsel %vm3500, %v8340, %v8341
        %v8343 = vrot.slane %v8267, 5
        %v8344 = vrot.slane %v8343, 4
        %v8345 = vrot.slane %v7518, 5
        %v8346 = vsel %vm3500, %v8344, %v8345
        %v8347 = vrot.slane %v8345, 4
        %v8348 = vrot.slane %v7519, 5
        %v8349 = vsel %vm3500, %v8347, %v8348
        %v8350 = vrot.slane %v8268, 5
        %v8351 = vrot.slane %v8350, 4
        %v8352 = vrot.slane %v7521, 5
        %v8353 = vsel %vm3500, %v8351, %v8352
        %v8354 = vrot.slane %v8352, 4
        %v8355 = vrot.slane %v7522, 5
        %v8356 = vsel %vm3500, %v8354, %v8355
        %v8357 = vrot.slane %v8269, 5
        %v8358 = vrot.slane %v8357, 4
        %v8359 = vrot.slane %v7524, 5
        %v8360 = vsel %vm3500, %v8358, %v8359
        %v8361 = vrot.slane %v8359, 4
        %v8362 = vrot.slane %v7525, 5
        %v8363 = vsel %vm3500, %v8361, %v8362
        %v8364 = vrot.slane %v8270, 5
        %v8365 = vrot.slane %v8364, 4
        %v8366 = vrot.slane %v7527, 5
        %v8367 = vsel %vm3500, %v8365, %v8366
        %v8368 = vrot.slane %v8366, 4
        %v8369 = vrot.slane %v7528, 5
        %v8370 = vsel %vm3500, %v8368, %v8369
        %v8371 = vrot.slane %v8271, 5
        %v8372 = vrot.slane %v8371, 4
        %v8373 = vrot.slane %v7530, 5
        %v8374 = vsel %vm3500, %v8372, %v8373
        %v8375 = vrot.slane %v8373, 4
        %v8376 = vrot.slane %v7531, 5
        %v8377 = vsel %vm3500, %v8375, %v8376
        %v8378 = vrot.slane %v8272, 5
        %v8379 = vrot.slane %v8378, 4
        %v8380 = vrot.slane %v7533, 5
        %v8381 = vsel %vm3500, %v8379, %v8380
        %v8382 = vrot.slane %v8380, 4
        %v8383 = vrot.slane %v7534, 5
        %v8384 = vsel %vm3500, %v8382, %v8383
        %v8385 = vrot.slane %v8273, 5
        %v8386 = vrot.slane %v8385, 4
        %v8387 = vrot.slane %v7536, 5
        %v8388 = vsel %vm3500, %v8386, %v8387
        %v8389 = vrot.slane %v8387, 4
        %v8390 = vrot.slane %v7537, 5
        %v8391 = vsel %vm3500, %v8389, %v8390
        %v8392 = vrot.slane %v8274, 5
        %v8393 = vrot.slane %v8392, 4
        %v8394 = vrot.slane %v7539, 5
        %v8395 = vsel %vm3500, %v8393, %v8394
        %v8396 = vrot.slane %v8394, 4
        %v8397 = vrot.slane %v7540, 5
        %v8398 = vsel %vm3500, %v8396, %v8397
        %v8399 = vrot.slane %v8275, 5
        %v8400 = vrot.slane %v8399, 4
        %v8401 = vrot.slane %v7542, 5
        %v8402 = vsel %vm3500, %v8400, %v8401
        %v8403 = vrot.slane %v8401, 4
        %v8404 = vrot.slane %v7543, 5
        %v8405 = vsel %vm3500, %v8403, %v8404
        %v8406 = vrot.slane %v8276, 5
        %v8407 = vrot.slane %v8406, 4
        %v8408 = vrot.slane %v7545, 5
        %v8409 = vsel %vm3500, %v8407, %v8408
        %v8410 = vrot.slane %v8408, 4
        %v8411 = vrot.slane %v7546, 5
        %v8412 = vsel %vm3500, %v8410, %v8411
        %v8413 = vrot.slane %v8277, 5
        %v8414 = vrot.slane %v8413, 4
        %v8415 = vrot.slane %v7548, 5
        %v8416 = vsel %vm3500, %v8414, %v8415
        %v8417 = vrot.slane %v8415, 4
        %v8418 = vrot.slane %v7549, 5
        %v8419 = vsel %vm3500, %v8417, %v8418
        %v8420 = vrot.slane %v8278, 5
        %v8421 = vrot.slane %v8420, 4
        %v8422 = vrot.slane %v7551, 5
        %v8423 = vsel %vm3500, %v8421, %v8422
        %v8424 = vrot.slane %v8422, 4
        %v8425 = vrot.slane %v7552, 5
        %v8426 = vsel %vm3500, %v8424, %v8425
        %v8427 = vrot.slane %v8279, 5
        %v8428 = vrot.slane %v8427, 4
        %v8429 = vrot.slane %v7554, 5
        %v8430 = vsel %vm3500, %v8428, %v8429
        %v8431 = vrot.slane %v8429, 4
        %v8432 = vrot.slane %v7555, 5
        %v8433 = vsel %vm3500, %v8431, %v8432
        %v8434 = vrot.slane %v8280, 5
        %v8435 = vrot.slane %v8434, 4
        %v8436 = vrot.slane %v7557, 5
        %v8437 = vsel %vm3500, %v8435, %v8436
        %v8438 = vrot.slane %v8436, 4
        %v8439 = vrot.slane %v7558, 5
        %v8440 = vsel %vm3500, %v8438, %v8439
        %s8441 = scalar_lea.vmem [#allocation4], 320
        %v8442 = vld [vmem:[%s8441] sm:$0xf]
        %v8443 = vld [vmem:[%s8441 + $0x4] sm:$0xf]
        %v8444 = vld [vmem:[%s8441 + $0x8] sm:$0xf]
        %v8445 = vld [vmem:[%s8441 + $0xc] sm:$0xf]
        %v8446 = vld [vmem:[%s8441 + $0x10] sm:$0xf]
        %v8447 = vld [vmem:[%s8441 + $0x14] sm:$0xf]
        %v8448 = vld [vmem:[%s8441 + $0x18] sm:$0xf]
        %v8449 = vld [vmem:[%s8441 + $0x1c] sm:$0xf]
        %v8450 = vld [vmem:[%s8441 + $0x20] sm:$0xf]
        %v8451 = vld [vmem:[%s8441 + $0x24] sm:$0xf]
        %v8452 = vld [vmem:[%s8441 + $0x28] sm:$0xf]
        %v8453 = vld [vmem:[%s8441 + $0x2c] sm:$0xf]
        %v8454 = vld [vmem:[%s8441 + $0x30] sm:$0xf]
        %v8455 = vld [vmem:[%s8441 + $0x34] sm:$0xf]
        %v8456 = vld [vmem:[%s8441 + $0x38] sm:$0xf]
        %v8457 = vld [vmem:[%s8441 + $0x3c] sm:$0xf]
        %v8458 = vunpack.c.l.b16 %v8332
        %v8459 = vunpack.c.l.b16 %v8335
        %v8460 = vunpack.c.l.b16 %v8339
        %v8461 = vunpack.c.l.b16 %v8342
        %v8462 = vunpack.c.l.b16 %v8346
        %v8463 = vunpack.c.l.b16 %v8349
        %v8464 = vunpack.c.l.b16 %v8353
        %v8465 = vunpack.c.l.b16 %v8356
        %v8466 = vunpack.c.l.b16 %v8360
        %v8467 = vunpack.c.l.b16 %v8363
        %v8468 = vunpack.c.l.b16 %v8367
        %v8469 = vunpack.c.l.b16 %v8370
        %v8470 = vunpack.c.l.b16 %v8374
        %v8471 = vunpack.c.l.b16 %v8377
        %v8472 = vunpack.c.l.b16 %v8381
        %v8473 = vunpack.c.l.b16 %v8384
        %v8474 = vunpack.c.l.b16 %v8388
        %v8475 = vunpack.c.l.b16 %v8391
        %v8476 = vunpack.c.l.b16 %v8395
        %v8477 = vunpack.c.l.b16 %v8398
        %v8478 = vunpack.c.l.b16 %v8402
        %v8479 = vunpack.c.l.b16 %v8405
        %v8480 = vunpack.c.l.b16 %v8409
        %v8481 = vunpack.c.l.b16 %v8412
        %v8482 = vunpack.c.l.b16 %v8416
        %v8483 = vunpack.c.l.b16 %v8419
        %v8484 = vunpack.c.l.b16 %v8423
        %v8485 = vunpack.c.l.b16 %v8426
        %v8486 = vunpack.c.l.b16 %v8430
        %v8487 = vunpack.c.l.b16 %v8433
        %v8488 = vunpack.c.l.b16 %v8437
        %v8489 = vunpack.c.l.b16 %v8440
        %v8490 = vpack.c.b16 %v8459, %v8458
        %v8491 = vpack.c.b16 %v8461, %v8460
        %v8492 = vpack.c.b16 %v8463, %v8462
        %v8493 = vpack.c.b16 %v8465, %v8464
        %v8494 = vpack.c.b16 %v8467, %v8466
        %v8495 = vpack.c.b16 %v8469, %v8468
        %v8496 = vpack.c.b16 %v8471, %v8470
        %v8497 = vpack.c.b16 %v8473, %v8472
        %v8498 = vpack.c.b16 %v8475, %v8474
        %v8499 = vpack.c.b16 %v8477, %v8476
        %v8500 = vpack.c.b16 %v8479, %v8478
        %v8501 = vpack.c.b16 %v8481, %v8480
        %v8502 = vpack.c.b16 %v8483, %v8482
        %v8503 = vpack.c.b16 %v8485, %v8484
        %v8504 = vpack.c.b16 %v8487, %v8486
        %v8505 = vpack.c.b16 %v8489, %v8488
        %v8538 = vunpack.c.l.b16 %v8442
        %v8539 = vunpack.c.l.b16 %v8443
        %v8540 = vunpack.c.l.b16 %v8444
        %v8541 = vunpack.c.l.b16 %v8445
        %v8542 = vunpack.c.l.b16 %v8446
        %v8543 = vunpack.c.l.b16 %v8447
        %v8544 = vunpack.c.l.b16 %v8448
        %v8545 = vunpack.c.l.b16 %v8449
        %v8546 = vunpack.c.l.b16 %v8450
        %v8547 = vunpack.c.l.b16 %v8451
        %v8548 = vunpack.c.l.b16 %v8452
        %v8549 = vunpack.c.l.b16 %v8453
        %v8550 = vunpack.c.l.b16 %v8454
        %v8551 = vunpack.c.l.b16 %v8455
        %v8552 = vunpack.c.l.b16 %v8456
        %v8553 = vunpack.c.l.b16 %v8457
        %v8554 = vpack.c.b16 %v8539, %v8538
        %v8555 = vpack.c.b16 %v8541, %v8540
        %v8556 = vpack.c.b16 %v8543, %v8542
        %v8557 = vpack.c.b16 %v8545, %v8544
        %v8558 = vpack.c.b16 %v8547, %v8546
        %v8559 = vpack.c.b16 %v8549, %v8548
        %v8560 = vpack.c.b16 %v8551, %v8550
        %v8561 = vpack.c.b16 %v8553, %v8552
        %8570 = vmatprep.subr.bf16.mxu0 0
        %8571 = vmatpush1.bf16.msra.mxu0 %v8561
        %8572 = vmatprep.subr.bf16.mxu0 0
        %8573 = vmatpush1.bf16.msra.mxu0 %v8560
        %8574 = vmatprep.subr.bf16.mxu0 0
        %8575 = vmatpush1.bf16.msra.mxu0 %v8559
        %8576 = vmatprep.subr.bf16.mxu0 0
        %8577 = vmatpush1.bf16.msra.mxu0 %v8558
        %8578 = vmatprep.subr.bf16.mxu0 0
        %8579 = vmatpush1.bf16.msra.mxu0 %v8557
        %8580 = vmatprep.subr.bf16.mxu0 0
        %8581 = vmatpush1.bf16.msra.mxu0 %v8556
        %8582 = vmatprep.subr.bf16.mxu0 0
        %8583 = vmatpush1.bf16.msra.mxu0 %v8555
        %8584 = vmatprep.subr.bf16.mxu0 0
        %8585 = vmatpush1.bf16.msra.mxu0 %v8554
        %8586 = vmatprep.subr.bf16.mxu0 0
        %8587 = vmatpush2.bf16.msra.mxu0 0
        %8588 = vmatprep.subr.bf16.mxu0 0
        %8589 = vmatpush2.bf16.msra.mxu0 0
        %8590 = vmatprep.subr.bf16.mxu0 0
        %8591 = vmatpush2.bf16.msra.mxu0 0
        %8592 = vmatprep.subr.bf16.mxu0 0
        %8593 = vmatpush2.bf16.msra.mxu0 0
        %8594 = vmatprep.subr.bf16.mxu0 0
        %8595 = vmatpush2.bf16.msra.mxu0 0
        %8596 = vmatprep.subr.bf16.mxu0 0
        %8597 = vmatpush2.bf16.msra.mxu0 0
        %8598 = vmatprep.subr.bf16.mxu0 0
        %8599 = vmatpush2.bf16.msra.mxu0 0
        %8600 = vmatprep.subr.bf16.mxu0 0
        %8601 = vmatpush2.bf16.msra.mxu0 0
        %8602 = vmatprep.mubr.bf16.mxu0 0
        %8603 = vmatmul.mubr.bf16.gmra.mxu0 %v8490
        %v8604 = vpop.f32.mrf.mxu0
        %v8605 = vadd.f32 0.0, %v8604
        %v8606 = vpop.f32.mrf.mxu0
        %v8607 = vpop.f32.mrf.mxu0
        %v8608 = vadd.f32 0.0, %v8607
        %v8609 = vpop.f32.mrf.mxu0
        %8610 = vmatprep.mubr.bf16.mxu0 0
        %8611 = vmatmul.mubr.bf16.gmra.mxu0 %v8491
        %v8612 = vpop.f32.mrf.mxu0
        %v8613 = vadd.f32 0.0, %v8612
        %v8614 = vpop.f32.mrf.mxu0
        %v8615 = vpop.f32.mrf.mxu0
        %v8616 = vadd.f32 0.0, %v8615
        %v8617 = vpop.f32.mrf.mxu0
        %8618 = vmatprep.mubr.bf16.mxu0 0
        %8619 = vmatmul.mubr.bf16.gmra.mxu0 %v8492
        %v8620 = vpop.f32.mrf.mxu0
        %v8621 = vadd.f32 0.0, %v8620
        %v8622 = vpop.f32.mrf.mxu0
        %v8623 = vpop.f32.mrf.mxu0
        %v8624 = vadd.f32 0.0, %v8623
        %v8625 = vpop.f32.mrf.mxu0
        %8626 = vmatprep.mubr.bf16.mxu0 0
        %8627 = vmatmul.mubr.bf16.gmra.mxu0 %v8493
        %v8628 = vpop.f32.mrf.mxu0
        %v8629 = vadd.f32 0.0, %v8628
        %v8630 = vpop.f32.mrf.mxu0
        %v8631 = vpop.f32.mrf.mxu0
        %v8632 = vadd.f32 0.0, %v8631
        %v8633 = vpop.f32.mrf.mxu0
        %8634 = vmatprep.mubr.bf16.mxu0 0
        %8635 = vmatmul.mubr.bf16.gmra.mxu0 %v8494
        %v8636 = vpop.f32.mrf.mxu0
        %v8637 = vadd.f32 0.0, %v8636
        %v8638 = vpop.f32.mrf.mxu0
        %v8639 = vpop.f32.mrf.mxu0
        %v8640 = vadd.f32 0.0, %v8639
        %v8641 = vpop.f32.mrf.mxu0
        %8642 = vmatprep.mubr.bf16.mxu0 0
        %8643 = vmatmul.mubr.bf16.gmra.mxu0 %v8495
        %v8644 = vpop.f32.mrf.mxu0
        %v8645 = vadd.f32 0.0, %v8644
        %v8646 = vpop.f32.mrf.mxu0
        %v8647 = vpop.f32.mrf.mxu0
        %v8648 = vadd.f32 0.0, %v8647
        %v8649 = vpop.f32.mrf.mxu0
        %8650 = vmatprep.mubr.bf16.mxu0 0
        %8651 = vmatmul.mubr.bf16.gmra.mxu0 %v8496
        %v8652 = vpop.f32.mrf.mxu0
        %v8653 = vadd.f32 0.0, %v8652
        %v8654 = vpop.f32.mrf.mxu0
        %v8655 = vpop.f32.mrf.mxu0
        %v8656 = vadd.f32 0.0, %v8655
        %v8657 = vpop.f32.mrf.mxu0
        %8658 = vmatprep.mubr.bf16.mxu0 0
        %8659 = vmatmul.mubr.bf16.gmra.mxu0 %v8497
        %v8660 = vpop.f32.mrf.mxu0
        %v8661 = vadd.f32 0.0, %v8660
        %v8662 = vpop.f32.mrf.mxu0
        %v8663 = vpop.f32.mrf.mxu0
        %v8664 = vadd.f32 0.0, %v8663
        %v8665 = vpop.f32.mrf.mxu0
        %8666 = vmatprep.mubr.bf16.mxu0 0
        %8667 = vmatmul.mubr.bf16.gmra.mxu0 %v8498
        %v8668 = vpop.f32.mrf.mxu0
        %v8669 = vadd.f32 0.0, %v8668
        %v8670 = vpop.f32.mrf.mxu0
        %v8671 = vpop.f32.mrf.mxu0
        %v8672 = vadd.f32 0.0, %v8671
        %v8673 = vpop.f32.mrf.mxu0
        %8674 = vmatprep.mubr.bf16.mxu0 0
        %8675 = vmatmul.mubr.bf16.gmra.mxu0 %v8499
        %v8676 = vpop.f32.mrf.mxu0
        %v8677 = vadd.f32 0.0, %v8676
        %v8678 = vpop.f32.mrf.mxu0
        %v8679 = vpop.f32.mrf.mxu0
        %v8680 = vadd.f32 0.0, %v8679
        %v8681 = vpop.f32.mrf.mxu0
        %8682 = vmatprep.mubr.bf16.mxu0 0
        %8683 = vmatmul.mubr.bf16.gmra.mxu0 %v8500
        %v8684 = vpop.f32.mrf.mxu0
        %v8685 = vadd.f32 0.0, %v8684
        %v8686 = vpop.f32.mrf.mxu0
        %v8687 = vpop.f32.mrf.mxu0
        %v8688 = vadd.f32 0.0, %v8687
        %v8689 = vpop.f32.mrf.mxu0
        %8690 = vmatprep.mubr.bf16.mxu0 0
        %8691 = vmatmul.mubr.bf16.gmra.mxu0 %v8501
        %v8692 = vpop.f32.mrf.mxu0
        %v8693 = vadd.f32 0.0, %v8692
        %v8694 = vpop.f32.mrf.mxu0
        %v8695 = vpop.f32.mrf.mxu0
        %v8696 = vadd.f32 0.0, %v8695
        %v8697 = vpop.f32.mrf.mxu0
        %8698 = vmatprep.mubr.bf16.mxu0 0
        %8699 = vmatmul.mubr.bf16.gmra.mxu0 %v8502
        %v8700 = vpop.f32.mrf.mxu0
        %v8701 = vadd.f32 0.0, %v8700
        %v8702 = vpop.f32.mrf.mxu0
        %v8703 = vpop.f32.mrf.mxu0
        %v8704 = vadd.f32 0.0, %v8703
        %v8705 = vpop.f32.mrf.mxu0
        %8706 = vmatprep.mubr.bf16.mxu0 0
        %8707 = vmatmul.mubr.bf16.gmra.mxu0 %v8503
        %v8708 = vpop.f32.mrf.mxu0
        %v8709 = vadd.f32 0.0, %v8708
        %v8710 = vpop.f32.mrf.mxu0
        %v8711 = vpop.f32.mrf.mxu0
        %v8712 = vadd.f32 0.0, %v8711
        %v8713 = vpop.f32.mrf.mxu0
        %8714 = vmatprep.mubr.bf16.mxu0 0
        %8715 = vmatmul.mubr.bf16.gmra.mxu0 %v8504
        %v8716 = vpop.f32.mrf.mxu0
        %v8717 = vadd.f32 0.0, %v8716
        %v8718 = vpop.f32.mrf.mxu0
        %v8719 = vpop.f32.mrf.mxu0
        %v8720 = vadd.f32 0.0, %v8719
        %v8721 = vpop.f32.mrf.mxu0
        %8722 = vmatprep.mubr.bf16.mxu0 0
        %8723 = vmatmul.mubr.bf16.gmra.mxu0 %v8505
        %v8724 = vpop.f32.mrf.mxu0
        %v8725 = vadd.f32 0.0, %v8724
        %v8726 = vpop.f32.mrf.mxu0
        %v8727 = vpop.f32.mrf.mxu0
        %v8728 = vadd.f32 0.0, %v8727
        %v8729 = vpop.f32.mrf.mxu0
        %8730 = vdwg.mxu0
        %v8731 = vadd.f32 %v8233, %v8605
        %v8732 = vadd.f32 %v8234, %v8608
        %v8733 = vadd.f32 %v8235, %v8613
        %v8734 = vadd.f32 %v8236, %v8616
        %v8735 = vadd.f32 %v8237, %v8621
        %v8736 = vadd.f32 %v8238, %v8624
        %v8737 = vadd.f32 %v8239, %v8629
        %v8738 = vadd.f32 %v8240, %v8632
        %v8739 = vadd.f32 %v8241, %v8637
        %v8740 = vadd.f32 %v8242, %v8640
        %v8741 = vadd.f32 %v8243, %v8645
        %v8742 = vadd.f32 %v8244, %v8648
        %v8743 = vadd.f32 %v8245, %v8653
        %v8744 = vadd.f32 %v8246, %v8656
        %v8745 = vadd.f32 %v8247, %v8661
        %v8746 = vadd.f32 %v8248, %v8664
        %v8747 = vadd.f32 %v8249, %v8669
        %v8748 = vadd.f32 %v8250, %v8672
        %v8749 = vadd.f32 %v8251, %v8677
        %v8750 = vadd.f32 %v8252, %v8680
        %v8751 = vadd.f32 %v8253, %v8685
        %v8752 = vadd.f32 %v8254, %v8688
        %v8753 = vadd.f32 %v8255, %v8693
        %v8754 = vadd.f32 %v8256, %v8696
        %v8755 = vadd.f32 %v8257, %v8701
        %v8756 = vadd.f32 %v8258, %v8704
        %v8757 = vadd.f32 %v8259, %v8709
        %v8758 = vadd.f32 %v8260, %v8712
        %v8759 = vadd.f32 %v8261, %v8717
        %v8760 = vadd.f32 %v8262, %v8720
        %v8761 = vadd.f32 %v8263, %v8725
        %v8762 = vadd.f32 %v8264, %v8728
        %v8763 = vld [vmem:[#allocation3 + $0x10] sm:$0x3]
        %v8764 = vld [vmem:[#allocation3 + $0x28] sm:$0x3]
        %v8765 = vld [vmem:[#allocation3 + $0x40] sm:$0x3]
        %v8766 = vld [vmem:[#allocation3 + $0x58] sm:$0x3]
        %v8767 = vld [vmem:[#allocation3 + $0x70] sm:$0x3]
        %v8768 = vld [vmem:[#allocation3 + $0x88] sm:$0x3]
        %v8769 = vld [vmem:[#allocation3 + $0xa0] sm:$0x3]
        %v8770 = vld [vmem:[#allocation3 + $0xb8] sm:$0x3]
        %v8771 = vld [vmem:[#allocation3 + $0xd0] sm:$0x3]
        %v8772 = vld [vmem:[#allocation3 + $0xe8] sm:$0x3]
        %v8773 = vld [vmem:[#allocation3 + $0x100] sm:$0x3]
        %v8774 = vld [vmem:[#allocation3 + $0x118] sm:$0x3]
        %v8775 = vld [vmem:[#allocation3 + $0x130] sm:$0x3]
        %v8776 = vld [vmem:[#allocation3 + $0x148] sm:$0x3]
        %v8777 = vld [vmem:[#allocation3 + $0x160] sm:$0x3]
        %v8778 = vld [vmem:[#allocation3 + $0x178] sm:$0x3]
        %v8780 = vshrl.u32 %v8265, 16
        %v8782 = vrot.slane %v8780, 5
        %v8783 = vshll.u32 %v8265, 16
        %v8785 = vrot.slane %v8783, 6
        %v8786 = vor.u32 %v8782, %v8785
        %v8787 = vrot.slane %v8786, 4
        %v8788 = vrot.slane %v7573, 5
        %v8789 = vrot.slane %v7569, 6
        %v8790 = vor.u32 %v8788, %v8789
        %v8791 = vsel %vm3937, %v8787, %v8790
        %v8792 = vrot.slane %v8790, 4
        %v8794 = vshrl.u32 %v8763, 16
        %v8796 = vrot.slane %v8794, 5
        %v8797 = vshll.u32 %v8763, 16
        %v8799 = vrot.slane %v8797, 6
        %v8800 = vor.u32 %v8796, %v8799
        %v8801 = vsel %vm3937, %v8792, %v8800
        %v8803 = vshrl.u32 %v8266, 16
        %v8805 = vrot.slane %v8803, 5
        %v8806 = vshll.u32 %v8266, 16
        %v8808 = vrot.slane %v8806, 6
        %v8809 = vor.u32 %v8805, %v8808
        %v8810 = vrot.slane %v8809, 4
        %v8811 = vrot.slane %v7597, 5
        %v8812 = vrot.slane %v7593, 6
        %v8813 = vor.u32 %v8811, %v8812
        %v8814 = vsel %vm3937, %v8810, %v8813
        %v8815 = vrot.slane %v8813, 4
        %v8817 = vshrl.u32 %v8764, 16
        %v8819 = vrot.slane %v8817, 5
        %v8820 = vshll.u32 %v8764, 16
        %v8822 = vrot.slane %v8820, 6
        %v8823 = vor.u32 %v8819, %v8822
        %v8824 = vsel %vm3937, %v8815, %v8823
        %v8826 = vshrl.u32 %v8267, 16
        %v8828 = vrot.slane %v8826, 5
        %v8829 = vshll.u32 %v8267, 16
        %v8831 = vrot.slane %v8829, 6
        %v8832 = vor.u32 %v8828, %v8831
        %v8833 = vrot.slane %v8832, 4
        %v8834 = vrot.slane %v7621, 5
        %v8835 = vrot.slane %v7617, 6
        %v8836 = vor.u32 %v8834, %v8835
        %v8837 = vsel %vm3937, %v8833, %v8836
        %v8838 = vrot.slane %v8836, 4
        %v8840 = vshrl.u32 %v8765, 16
        %v8842 = vrot.slane %v8840, 5
        %v8843 = vshll.u32 %v8765, 16
        %v8845 = vrot.slane %v8843, 6
        %v8846 = vor.u32 %v8842, %v8845
        %v8847 = vsel %vm3937, %v8838, %v8846
        %v8849 = vshrl.u32 %v8268, 16
        %v8851 = vrot.slane %v8849, 5
        %v8852 = vshll.u32 %v8268, 16
        %v8854 = vrot.slane %v8852, 6
        %v8855 = vor.u32 %v8851, %v8854
        %v8856 = vrot.slane %v8855, 4
        %v8857 = vrot.slane %v7645, 5
        %v8858 = vrot.slane %v7641, 6
        %v8859 = vor.u32 %v8857, %v8858
        %v8860 = vsel %vm3937, %v8856, %v8859
        %v8861 = vrot.slane %v8859, 4
        %v8863 = vshrl.u32 %v8766, 16
        %v8865 = vrot.slane %v8863, 5
        %v8866 = vshll.u32 %v8766, 16
        %v8868 = vrot.slane %v8866, 6
        %v8869 = vor.u32 %v8865, %v8868
        %v8870 = vsel %vm3937, %v8861, %v8869
        %v8872 = vshrl.u32 %v8269, 16
        %v8874 = vrot.slane %v8872, 5
        %v8875 = vshll.u32 %v8269, 16
        %v8877 = vrot.slane %v8875, 6
        %v8878 = vor.u32 %v8874, %v8877
        %v8879 = vrot.slane %v8878, 4
        %v8880 = vrot.slane %v7669, 5
        %v8881 = vrot.slane %v7665, 6
        %v8882 = vor.u32 %v8880, %v8881
        %v8883 = vsel %vm3937, %v8879, %v8882
        %v8884 = vrot.slane %v8882, 4
        %v8886 = vshrl.u32 %v8767, 16
        %v8888 = vrot.slane %v8886, 5
        %v8889 = vshll.u32 %v8767, 16
        %v8891 = vrot.slane %v8889, 6
        %v8892 = vor.u32 %v8888, %v8891
        %v8893 = vsel %vm3937, %v8884, %v8892
        %v8895 = vshrl.u32 %v8270, 16
        %v8897 = vrot.slane %v8895, 5
        %v8898 = vshll.u32 %v8270, 16
        %v8900 = vrot.slane %v8898, 6
        %v8901 = vor.u32 %v8897, %v8900
        %v8902 = vrot.slane %v8901, 4
        %v8903 = vrot.slane %v7693, 5
        %v8904 = vrot.slane %v7689, 6
        %v8905 = vor.u32 %v8903, %v8904
        %v8906 = vsel %vm3937, %v8902, %v8905
        %v8907 = vrot.slane %v8905, 4
        %v8909 = vshrl.u32 %v8768, 16
        %v8911 = vrot.slane %v8909, 5
        %v8912 = vshll.u32 %v8768, 16
        %v8914 = vrot.slane %v8912, 6
        %v8915 = vor.u32 %v8911, %v8914
        %v8916 = vsel %vm3937, %v8907, %v8915
        %v8918 = vshrl.u32 %v8271, 16
        %v8920 = vrot.slane %v8918, 5
        %v8921 = vshll.u32 %v8271, 16
        %v8923 = vrot.slane %v8921, 6
        %v8924 = vor.u32 %v8920, %v8923
        %v8925 = vrot.slane %v8924, 4
        %v8926 = vrot.slane %v7717, 5
        %v8927 = vrot.slane %v7713, 6
        %v8928 = vor.u32 %v8926, %v8927
        %v8929 = vsel %vm3937, %v8925, %v8928
        %v8930 = vrot.slane %v8928, 4
        %v8932 = vshrl.u32 %v8769, 16
        %v8934 = vrot.slane %v8932, 5
        %v8935 = vshll.u32 %v8769, 16
        %v8937 = vrot.slane %v8935, 6
        %v8938 = vor.u32 %v8934, %v8937
        %v8939 = vsel %vm3937, %v8930, %v8938
        %v8941 = vshrl.u32 %v8272, 16
        %v8943 = vrot.slane %v8941, 5
        %v8944 = vshll.u32 %v8272, 16
        %v8946 = vrot.slane %v8944, 6
        %v8947 = vor.u32 %v8943, %v8946
        %v8948 = vrot.slane %v8947, 4
        %v8949 = vrot.slane %v7741, 5
        %v8950 = vrot.slane %v7737, 6
        %v8951 = vor.u32 %v8949, %v8950
        %v8952 = vsel %vm3937, %v8948, %v8951
        %v8953 = vrot.slane %v8951, 4
        %v8955 = vshrl.u32 %v8770, 16
        %v8957 = vrot.slane %v8955, 5
        %v8958 = vshll.u32 %v8770, 16
        %v8960 = vrot.slane %v8958, 6
        %v8961 = vor.u32 %v8957, %v8960
        %v8962 = vsel %vm3937, %v8953, %v8961
        %v8964 = vshrl.u32 %v8273, 16
        %v8966 = vrot.slane %v8964, 5
        %v8967 = vshll.u32 %v8273, 16
        %v8969 = vrot.slane %v8967, 6
        %v8970 = vor.u32 %v8966, %v8969
        %v8971 = vrot.slane %v8970, 4
        %v8972 = vrot.slane %v7765, 5
        %v8973 = vrot.slane %v7761, 6
        %v8974 = vor.u32 %v8972, %v8973
        %v8975 = vsel %vm3937, %v8971, %v8974
        %v8976 = vrot.slane %v8974, 4
        %v8978 = vshrl.u32 %v8771, 16
        %v8980 = vrot.slane %v8978, 5
        %v8981 = vshll.u32 %v8771, 16
        %v8983 = vrot.slane %v8981, 6
        %v8984 = vor.u32 %v8980, %v8983
        %v8985 = vsel %vm3937, %v8976, %v8984
        %v8987 = vshrl.u32 %v8274, 16
        %v8989 = vrot.slane %v8987, 5
        %v8990 = vshll.u32 %v8274, 16
        %v8992 = vrot.slane %v8990, 6
        %v8993 = vor.u32 %v8989, %v8992
        %v8994 = vrot.slane %v8993, 4
        %v8995 = vrot.slane %v7789, 5
        %v8996 = vrot.slane %v7785, 6
        %v8997 = vor.u32 %v8995, %v8996
        %v8998 = vsel %vm3937, %v8994, %v8997
        %v8999 = vrot.slane %v8997, 4
        %v9001 = vshrl.u32 %v8772, 16
        %v9003 = vrot.slane %v9001, 5
        %v9004 = vshll.u32 %v8772, 16
        %v9006 = vrot.slane %v9004, 6
        %v9007 = vor.u32 %v9003, %v9006
        %v9008 = vsel %vm3937, %v8999, %v9007
        %v9010 = vshrl.u32 %v8275, 16
        %v9012 = vrot.slane %v9010, 5
        %v9013 = vshll.u32 %v8275, 16
        %v9015 = vrot.slane %v9013, 6
        %v9016 = vor.u32 %v9012, %v9015
        %v9017 = vrot.slane %v9016, 4
        %v9018 = vrot.slane %v7813, 5
        %v9019 = vrot.slane %v7809, 6
        %v9020 = vor.u32 %v9018, %v9019
        %v9021 = vsel %vm3937, %v9017, %v9020
        %v9022 = vrot.slane %v9020, 4
        %v9024 = vshrl.u32 %v8773, 16
        %v9026 = vrot.slane %v9024, 5
        %v9027 = vshll.u32 %v8773, 16
        %v9029 = vrot.slane %v9027, 6
        %v9030 = vor.u32 %v9026, %v9029
        %v9031 = vsel %vm3937, %v9022, %v9030
        %v9033 = vshrl.u32 %v8276, 16
        %v9035 = vrot.slane %v9033, 5
        %v9036 = vshll.u32 %v8276, 16
        %v9038 = vrot.slane %v9036, 6
        %v9039 = vor.u32 %v9035, %v9038
        %v9040 = vrot.slane %v9039, 4
        %v9041 = vrot.slane %v7837, 5
        %v9042 = vrot.slane %v7833, 6
        %v9043 = vor.u32 %v9041, %v9042
        %v9044 = vsel %vm3937, %v9040, %v9043
        %v9045 = vrot.slane %v9043, 4
        %v9047 = vshrl.u32 %v8774, 16
        %v9049 = vrot.slane %v9047, 5
        %v9050 = vshll.u32 %v8774, 16
        %v9052 = vrot.slane %v9050, 6
        %v9053 = vor.u32 %v9049, %v9052
        %v9054 = vsel %vm3937, %v9045, %v9053
        %v9056 = vshrl.u32 %v8277, 16
        %v9058 = vrot.slane %v9056, 5
        %v9059 = vshll.u32 %v8277, 16
        %v9061 = vrot.slane %v9059, 6
        %v9062 = vor.u32 %v9058, %v9061
        %v9063 = vrot.slane %v9062, 4
        %v9064 = vrot.slane %v7861, 5
        %v9065 = vrot.slane %v7857, 6
        %v9066 = vor.u32 %v9064, %v9065
        %v9067 = vsel %vm3937, %v9063, %v9066
        %v9068 = vrot.slane %v9066, 4
        %v9070 = vshrl.u32 %v8775, 16
        %v9072 = vrot.slane %v9070, 5
        %v9073 = vshll.u32 %v8775, 16
        %v9075 = vrot.slane %v9073, 6
        %v9076 = vor.u32 %v9072, %v9075
        %v9077 = vsel %vm3937, %v9068, %v9076
        %v9079 = vshrl.u32 %v8278, 16
        %v9081 = vrot.slane %v9079, 5
        %v9082 = vshll.u32 %v8278, 16
        %v9084 = vrot.slane %v9082, 6
        %v9085 = vor.u32 %v9081, %v9084
        %v9086 = vrot.slane %v9085, 4
        %v9087 = vrot.slane %v7885, 5
        %v9088 = vrot.slane %v7881, 6
        %v9089 = vor.u32 %v9087, %v9088
        %v9090 = vsel %vm3937, %v9086, %v9089
        %v9091 = vrot.slane %v9089, 4
        %v9093 = vshrl.u32 %v8776, 16
        %v9095 = vrot.slane %v9093, 5
        %v9096 = vshll.u32 %v8776, 16
        %v9098 = vrot.slane %v9096, 6
        %v9099 = vor.u32 %v9095, %v9098
        %v9100 = vsel %vm3937, %v9091, %v9099
        %v9102 = vshrl.u32 %v8279, 16
        %v9104 = vrot.slane %v9102, 5
        %v9105 = vshll.u32 %v8279, 16
        %v9107 = vrot.slane %v9105, 6
        %v9108 = vor.u32 %v9104, %v9107
        %v9109 = vrot.slane %v9108, 4
        %v9110 = vrot.slane %v7909, 5
        %v9111 = vrot.slane %v7905, 6
        %v9112 = vor.u32 %v9110, %v9111
        %v9113 = vsel %vm3937, %v9109, %v9112
        %v9114 = vrot.slane %v9112, 4
        %v9116 = vshrl.u32 %v8777, 16
        %v9118 = vrot.slane %v9116, 5
        %v9119 = vshll.u32 %v8777, 16
        %v9121 = vrot.slane %v9119, 6
        %v9122 = vor.u32 %v9118, %v9121
        %v9123 = vsel %vm3937, %v9114, %v9122
        %v9125 = vshrl.u32 %v8280, 16
        %v9127 = vrot.slane %v9125, 5
        %v9128 = vshll.u32 %v8280, 16
        %v9130 = vrot.slane %v9128, 6
        %v9131 = vor.u32 %v9127, %v9130
        %v9132 = vrot.slane %v9131, 4
        %v9133 = vrot.slane %v7933, 5
        %v9134 = vrot.slane %v7929, 6
        %v9135 = vor.u32 %v9133, %v9134
        %v9136 = vsel %vm3937, %v9132, %v9135
        %v9137 = vrot.slane %v9135, 4
        %v9139 = vshrl.u32 %v8778, 16
        %v9141 = vrot.slane %v9139, 5
        %v9142 = vshll.u32 %v8778, 16
        %v9144 = vrot.slane %v9142, 6
        %v9145 = vor.u32 %v9141, %v9144
        %v9146 = vsel %vm3937, %v9137, %v9145
        %s9147 = scalar_lea.vmem [#allocation4], 384
        %v9148 = vld [vmem:[%s9147] sm:$0xf]
        %v9149 = vld [vmem:[%s9147 + $0x4] sm:$0xf]
        %v9150 = vld [vmem:[%s9147 + $0x8] sm:$0xf]
        %v9151 = vld [vmem:[%s9147 + $0xc] sm:$0xf]
        %v9152 = vld [vmem:[%s9147 + $0x10] sm:$0xf]
        %v9153 = vld [vmem:[%s9147 + $0x14] sm:$0xf]
        %v9154 = vld [vmem:[%s9147 + $0x18] sm:$0xf]
        %v9155 = vld [vmem:[%s9147 + $0x1c] sm:$0xf]
        %v9156 = vld [vmem:[%s9147 + $0x20] sm:$0xf]
        %v9157 = vld [vmem:[%s9147 + $0x24] sm:$0xf]
        %v9158 = vld [vmem:[%s9147 + $0x28] sm:$0xf]
        %v9159 = vld [vmem:[%s9147 + $0x2c] sm:$0xf]
        %v9160 = vld [vmem:[%s9147 + $0x30] sm:$0xf]
        %v9161 = vld [vmem:[%s9147 + $0x34] sm:$0xf]
        %v9162 = vld [vmem:[%s9147 + $0x38] sm:$0xf]
        %v9163 = vld [vmem:[%s9147 + $0x3c] sm:$0xf]
        %v9164 = vunpack.c.l.b16 %v8791
        %v9165 = vunpack.c.l.b16 %v8801
        %v9166 = vunpack.c.l.b16 %v8814
        %v9167 = vunpack.c.l.b16 %v8824
        %v9168 = vunpack.c.l.b16 %v8837
        %v9169 = vunpack.c.l.b16 %v8847
        %v9170 = vunpack.c.l.b16 %v8860
        %v9171 = vunpack.c.l.b16 %v8870
        %v9172 = vunpack.c.l.b16 %v8883
        %v9173 = vunpack.c.l.b16 %v8893
        %v9174 = vunpack.c.l.b16 %v8906
        %v9175 = vunpack.c.l.b16 %v8916
        %v9176 = vunpack.c.l.b16 %v8929
        %v9177 = vunpack.c.l.b16 %v8939
        %v9178 = vunpack.c.l.b16 %v8952
        %v9179 = vunpack.c.l.b16 %v8962
        %v9180 = vunpack.c.l.b16 %v8975
        %v9181 = vunpack.c.l.b16 %v8985
        %v9182 = vunpack.c.l.b16 %v8998
        %v9183 = vunpack.c.l.b16 %v9008
        %v9184 = vunpack.c.l.b16 %v9021
        %v9185 = vunpack.c.l.b16 %v9031
        %v9186 = vunpack.c.l.b16 %v9044
        %v9187 = vunpack.c.l.b16 %v9054
        %v9188 = vunpack.c.l.b16 %v9067
        %v9189 = vunpack.c.l.b16 %v9077
        %v9190 = vunpack.c.l.b16 %v9090
        %v9191 = vunpack.c.l.b16 %v9100
        %v9192 = vunpack.c.l.b16 %v9113
        %v9193 = vunpack.c.l.b16 %v9123
        %v9194 = vunpack.c.l.b16 %v9136
        %v9195 = vunpack.c.l.b16 %v9146
        %v9196 = vpack.c.b16 %v9165, %v9164
        %v9197 = vpack.c.b16 %v9167, %v9166
        %v9198 = vpack.c.b16 %v9169, %v9168
        %v9199 = vpack.c.b16 %v9171, %v9170
        %v9200 = vpack.c.b16 %v9173, %v9172
        %v9201 = vpack.c.b16 %v9175, %v9174
        %v9202 = vpack.c.b16 %v9177, %v9176
        %v9203 = vpack.c.b16 %v9179, %v9178
        %v9204 = vpack.c.b16 %v9181, %v9180
        %v9205 = vpack.c.b16 %v9183, %v9182
        %v9206 = vpack.c.b16 %v9185, %v9184
        %v9207 = vpack.c.b16 %v9187, %v9186
        %v9208 = vpack.c.b16 %v9189, %v9188
        %v9209 = vpack.c.b16 %v9191, %v9190
        %v9210 = vpack.c.b16 %v9193, %v9192
        %v9211 = vpack.c.b16 %v9195, %v9194
        %v9244 = vunpack.c.l.b16 %v9148
        %v9245 = vunpack.c.l.b16 %v9149
        %v9246 = vunpack.c.l.b16 %v9150
        %v9247 = vunpack.c.l.b16 %v9151
        %v9248 = vunpack.c.l.b16 %v9152
        %v9249 = vunpack.c.l.b16 %v9153
        %v9250 = vunpack.c.l.b16 %v9154
        %v9251 = vunpack.c.l.b16 %v9155
        %v9252 = vunpack.c.l.b16 %v9156
        %v9253 = vunpack.c.l.b16 %v9157
        %v9254 = vunpack.c.l.b16 %v9158
        %v9255 = vunpack.c.l.b16 %v9159
        %v9256 = vunpack.c.l.b16 %v9160
        %v9257 = vunpack.c.l.b16 %v9161
        %v9258 = vunpack.c.l.b16 %v9162
        %v9259 = vunpack.c.l.b16 %v9163
        %v9260 = vpack.c.b16 %v9245, %v9244
        %v9261 = vpack.c.b16 %v9247, %v9246
        %v9262 = vpack.c.b16 %v9249, %v9248
        %v9263 = vpack.c.b16 %v9251, %v9250
        %v9264 = vpack.c.b16 %v9253, %v9252
        %v9265 = vpack.c.b16 %v9255, %v9254
        %v9266 = vpack.c.b16 %v9257, %v9256
        %v9267 = vpack.c.b16 %v9259, %v9258
        %9276 = vmatprep.subr.bf16.mxu0 0
        %9277 = vmatpush1.bf16.msra.mxu0 %v9267
        %9278 = vmatprep.subr.bf16.mxu0 0
        %9279 = vmatpush1.bf16.msra.mxu0 %v9266
        %9280 = vmatprep.subr.bf16.mxu0 0
        %9281 = vmatpush1.bf16.msra.mxu0 %v9265
        %9282 = vmatprep.subr.bf16.mxu0 0
        %9283 = vmatpush1.bf16.msra.mxu0 %v9264
        %9284 = vmatprep.subr.bf16.mxu0 0
        %9285 = vmatpush1.bf16.msra.mxu0 %v9263
        %9286 = vmatprep.subr.bf16.mxu0 0
        %9287 = vmatpush1.bf16.msra.mxu0 %v9262
        %9288 = vmatprep.subr.bf16.mxu0 0
        %9289 = vmatpush1.bf16.msra.mxu0 %v9261
        %9290 = vmatprep.subr.bf16.mxu0 0
        %9291 = vmatpush1.bf16.msra.mxu0 %v9260
        %9292 = vmatprep.subr.bf16.mxu0 0
        %9293 = vmatpush2.bf16.msra.mxu0 0
        %9294 = vmatprep.subr.bf16.mxu0 0
        %9295 = vmatpush2.bf16.msra.mxu0 0
        %9296 = vmatprep.subr.bf16.mxu0 0
        %9297 = vmatpush2.bf16.msra.mxu0 0
        %9298 = vmatprep.subr.bf16.mxu0 0
        %9299 = vmatpush2.bf16.msra.mxu0 0
        %9300 = vmatprep.subr.bf16.mxu0 0
        %9301 = vmatpush2.bf16.msra.mxu0 0
        %9302 = vmatprep.subr.bf16.mxu0 0
        %9303 = vmatpush2.bf16.msra.mxu0 0
        %9304 = vmatprep.subr.bf16.mxu0 0
        %9305 = vmatpush2.bf16.msra.mxu0 0
        %9306 = vmatprep.subr.bf16.mxu0 0
        %9307 = vmatpush2.bf16.msra.mxu0 0
        %9308 = vmatprep.mubr.bf16.mxu0 0
        %9309 = vmatmul.mubr.bf16.gmra.mxu0 %v9196
        %v9310 = vpop.f32.mrf.mxu0
        %v9311 = vadd.f32 0.0, %v9310
        %v9312 = vpop.f32.mrf.mxu0
        %v9313 = vpop.f32.mrf.mxu0
        %v9314 = vadd.f32 0.0, %v9313
        %v9315 = vpop.f32.mrf.mxu0
        %9316 = vmatprep.mubr.bf16.mxu0 0
        %9317 = vmatmul.mubr.bf16.gmra.mxu0 %v9197
        %v9318 = vpop.f32.mrf.mxu0
        %v9319 = vadd.f32 0.0, %v9318
        %v9320 = vpop.f32.mrf.mxu0
        %v9321 = vpop.f32.mrf.mxu0
        %v9322 = vadd.f32 0.0, %v9321
        %v9323 = vpop.f32.mrf.mxu0
        %9324 = vmatprep.mubr.bf16.mxu0 0
        %9325 = vmatmul.mubr.bf16.gmra.mxu0 %v9198
        %v9326 = vpop.f32.mrf.mxu0
        %v9327 = vadd.f32 0.0, %v9326
        %v9328 = vpop.f32.mrf.mxu0
        %v9329 = vpop.f32.mrf.mxu0
        %v9330 = vadd.f32 0.0, %v9329
        %v9331 = vpop.f32.mrf.mxu0
        %9332 = vmatprep.mubr.bf16.mxu0 0
        %9333 = vmatmul.mubr.bf16.gmra.mxu0 %v9199
        %v9334 = vpop.f32.mrf.mxu0
        %v9335 = vadd.f32 0.0, %v9334
        %v9336 = vpop.f32.mrf.mxu0
        %v9337 = vpop.f32.mrf.mxu0
        %v9338 = vadd.f32 0.0, %v9337
        %v9339 = vpop.f32.mrf.mxu0
        %9340 = vmatprep.mubr.bf16.mxu0 0
        %9341 = vmatmul.mubr.bf16.gmra.mxu0 %v9200
        %v9342 = vpop.f32.mrf.mxu0
        %v9343 = vadd.f32 0.0, %v9342
        %v9344 = vpop.f32.mrf.mxu0
        %v9345 = vpop.f32.mrf.mxu0
        %v9346 = vadd.f32 0.0, %v9345
        %v9347 = vpop.f32.mrf.mxu0
        %9348 = vmatprep.mubr.bf16.mxu0 0
        %9349 = vmatmul.mubr.bf16.gmra.mxu0 %v9201
        %v9350 = vpop.f32.mrf.mxu0
        %v9351 = vadd.f32 0.0, %v9350
        %v9352 = vpop.f32.mrf.mxu0
        %v9353 = vpop.f32.mrf.mxu0
        %v9354 = vadd.f32 0.0, %v9353
        %v9355 = vpop.f32.mrf.mxu0
        %9356 = vmatprep.mubr.bf16.mxu0 0
        %9357 = vmatmul.mubr.bf16.gmra.mxu0 %v9202
        %v9358 = vpop.f32.mrf.mxu0
        %v9359 = vadd.f32 0.0, %v9358
        %v9360 = vpop.f32.mrf.mxu0
        %v9361 = vpop.f32.mrf.mxu0
        %v9362 = vadd.f32 0.0, %v9361
        %v9363 = vpop.f32.mrf.mxu0
        %9364 = vmatprep.mubr.bf16.mxu0 0
        %9365 = vmatmul.mubr.bf16.gmra.mxu0 %v9203
        %v9366 = vpop.f32.mrf.mxu0
        %v9367 = vadd.f32 0.0, %v9366
        %v9368 = vpop.f32.mrf.mxu0
        %v9369 = vpop.f32.mrf.mxu0
        %v9370 = vadd.f32 0.0, %v9369
        %v9371 = vpop.f32.mrf.mxu0
        %9372 = vmatprep.mubr.bf16.mxu0 0
        %9373 = vmatmul.mubr.bf16.gmra.mxu0 %v9204
        %v9374 = vpop.f32.mrf.mxu0
        %v9375 = vadd.f32 0.0, %v9374
        %v9376 = vpop.f32.mrf.mxu0
        %v9377 = vpop.f32.mrf.mxu0
        %v9378 = vadd.f32 0.0, %v9377
        %v9379 = vpop.f32.mrf.mxu0
        %9380 = vmatprep.mubr.bf16.mxu0 0
        %9381 = vmatmul.mubr.bf16.gmra.mxu0 %v9205
        %v9382 = vpop.f32.mrf.mxu0
        %v9383 = vadd.f32 0.0, %v9382
        %v9384 = vpop.f32.mrf.mxu0
        %v9385 = vpop.f32.mrf.mxu0
        %v9386 = vadd.f32 0.0, %v9385
        %v9387 = vpop.f32.mrf.mxu0
        %9388 = vmatprep.mubr.bf16.mxu0 0
        %9389 = vmatmul.mubr.bf16.gmra.mxu0 %v9206
        %v9390 = vpop.f32.mrf.mxu0
        %v9391 = vadd.f32 0.0, %v9390
        %v9392 = vpop.f32.mrf.mxu0
        %v9393 = vpop.f32.mrf.mxu0
        %v9394 = vadd.f32 0.0, %v9393
        %v9395 = vpop.f32.mrf.mxu0
        %9396 = vmatprep.mubr.bf16.mxu0 0
        %9397 = vmatmul.mubr.bf16.gmra.mxu0 %v9207
        %v9398 = vpop.f32.mrf.mxu0
        %v9399 = vadd.f32 0.0, %v9398
        %v9400 = vpop.f32.mrf.mxu0
        %v9401 = vpop.f32.mrf.mxu0
        %v9402 = vadd.f32 0.0, %v9401
        %v9403 = vpop.f32.mrf.mxu0
        %9404 = vmatprep.mubr.bf16.mxu0 0
        %9405 = vmatmul.mubr.bf16.gmra.mxu0 %v9208
        %v9406 = vpop.f32.mrf.mxu0
        %v9407 = vadd.f32 0.0, %v9406
        %v9408 = vpop.f32.mrf.mxu0
        %v9409 = vpop.f32.mrf.mxu0
        %v9410 = vadd.f32 0.0, %v9409
        %v9411 = vpop.f32.mrf.mxu0
        %9412 = vmatprep.mubr.bf16.mxu0 0
        %9413 = vmatmul.mubr.bf16.gmra.mxu0 %v9209
        %v9414 = vpop.f32.mrf.mxu0
        %v9415 = vadd.f32 0.0, %v9414
        %v9416 = vpop.f32.mrf.mxu0
        %v9417 = vpop.f32.mrf.mxu0
        %v9418 = vadd.f32 0.0, %v9417
        %v9419 = vpop.f32.mrf.mxu0
        %9420 = vmatprep.mubr.bf16.mxu0 0
        %9421 = vmatmul.mubr.bf16.gmra.mxu0 %v9210
        %v9422 = vpop.f32.mrf.mxu0
        %v9423 = vadd.f32 0.0, %v9422
        %v9424 = vpop.f32.mrf.mxu0
        %v9425 = vpop.f32.mrf.mxu0
        %v9426 = vadd.f32 0.0, %v9425
        %v9427 = vpop.f32.mrf.mxu0
        %9428 = vmatprep.mubr.bf16.mxu0 0
        %9429 = vmatmul.mubr.bf16.gmra.mxu0 %v9211
        %v9430 = vpop.f32.mrf.mxu0
        %v9431 = vadd.f32 0.0, %v9430
        %v9432 = vpop.f32.mrf.mxu0
        %v9433 = vpop.f32.mrf.mxu0
        %v9434 = vadd.f32 0.0, %v9433
        %v9435 = vpop.f32.mrf.mxu0
        %9436 = vdwg.mxu0
        %v9437 = vadd.f32 %v8731, %v9311
        %v9438 = vadd.f32 %v8732, %v9314
        %v9439 = vadd.f32 %v8733, %v9319
        %v9440 = vadd.f32 %v8734, %v9322
        %v9441 = vadd.f32 %v8735, %v9327
        %v9442 = vadd.f32 %v8736, %v9330
        %v9443 = vadd.f32 %v8737, %v9335
        %v9444 = vadd.f32 %v8738, %v9338
        %v9445 = vadd.f32 %v8739, %v9343
        %v9446 = vadd.f32 %v8740, %v9346
        %v9447 = vadd.f32 %v8741, %v9351
        %v9448 = vadd.f32 %v8742, %v9354
        %v9449 = vadd.f32 %v8743, %v9359
        %v9450 = vadd.f32 %v8744, %v9362
        %v9451 = vadd.f32 %v8745, %v9367
        %v9452 = vadd.f32 %v8746, %v9370
        %v9453 = vadd.f32 %v8747, %v9375
        %v9454 = vadd.f32 %v8748, %v9378
        %v9455 = vadd.f32 %v8749, %v9383
        %v9456 = vadd.f32 %v8750, %v9386
        %v9457 = vadd.f32 %v8751, %v9391
        %v9458 = vadd.f32 %v8752, %v9394
        %v9459 = vadd.f32 %v8753, %v9399
        %v9460 = vadd.f32 %v8754, %v9402
        %v9461 = vadd.f32 %v8755, %v9407
        %v9462 = vadd.f32 %v8756, %v9410
        %v9463 = vadd.f32 %v8757, %v9415
        %v9464 = vadd.f32 %v8758, %v9418
        %v9465 = vadd.f32 %v8759, %v9423
        %v9466 = vadd.f32 %v8760, %v9426
        %v9467 = vadd.f32 %v8761, %v9431
        %v9468 = vadd.f32 %v8762, %v9434
        %v9469 = vld [vmem:[#allocation3 + $0x8] sm:$0xc]
        %v9470 = vld [vmem:[#allocation3 + $0x20] sm:$0xc]
        %v9471 = vld [vmem:[#allocation3 + $0x38] sm:$0xc]
        %v9472 = vld [vmem:[#allocation3 + $0x50] sm:$0xc]
        %v9473 = vld [vmem:[#allocation3 + $0x68] sm:$0xc]
        %v9474 = vld [vmem:[#allocation3 + $0x80] sm:$0xc]
        %v9475 = vld [vmem:[#allocation3 + $0x98] sm:$0xc]
        %v9476 = vld [vmem:[#allocation3 + $0xb0] sm:$0xc]
        %v9477 = vld [vmem:[#allocation3 + $0xc8] sm:$0xc]
        %v9478 = vld [vmem:[#allocation3 + $0xe0] sm:$0xc]
        %v9479 = vld [vmem:[#allocation3 + $0xf8] sm:$0xc]
        %v9480 = vld [vmem:[#allocation3 + $0x110] sm:$0xc]
        %v9481 = vld [vmem:[#allocation3 + $0x128] sm:$0xc]
        %v9482 = vld [vmem:[#allocation3 + $0x140] sm:$0xc]
        %v9483 = vld [vmem:[#allocation3 + $0x158] sm:$0xc]
        %v9484 = vld [vmem:[#allocation3 + $0x170] sm:$0xc]
        %v9517 = vrot.slane %v9469, 6
        %v9518 = vrot.slane %v9517, 4
        %v9519 = vrot.slane %v7512, 6
        %v9520 = vsel %vm4662, %v9518, %v9519
        %v9521 = vrot.slane %v9519, 4
        %v9522 = vrot.slane %v8763, 6
        %v9523 = vsel %vm4662, %v9521, %v9522
        %v9524 = vrot.slane %v9470, 6
        %v9525 = vrot.slane %v9524, 4
        %v9526 = vrot.slane %v7515, 6
        %v9527 = vsel %vm4662, %v9525, %v9526
        %v9528 = vrot.slane %v9526, 4
        %v9529 = vrot.slane %v8764, 6
        %v9530 = vsel %vm4662, %v9528, %v9529
        %v9531 = vrot.slane %v9471, 6
        %v9532 = vrot.slane %v9531, 4
        %v9533 = vrot.slane %v7518, 6
        %v9534 = vsel %vm4662, %v9532, %v9533
        %v9535 = vrot.slane %v9533, 4
        %v9536 = vrot.slane %v8765, 6
        %v9537 = vsel %vm4662, %v9535, %v9536
        %v9538 = vrot.slane %v9472, 6
        %v9539 = vrot.slane %v9538, 4
        %v9540 = vrot.slane %v7521, 6
        %v9541 = vsel %vm4662, %v9539, %v9540
        %v9542 = vrot.slane %v9540, 4
        %v9543 = vrot.slane %v8766, 6
        %v9544 = vsel %vm4662, %v9542, %v9543
        %v9545 = vrot.slane %v9473, 6
        %v9546 = vrot.slane %v9545, 4
        %v9547 = vrot.slane %v7524, 6
        %v9548 = vsel %vm4662, %v9546, %v9547
        %v9549 = vrot.slane %v9547, 4
        %v9550 = vrot.slane %v8767, 6
        %v9551 = vsel %vm4662, %v9549, %v9550
        %v9552 = vrot.slane %v9474, 6
        %v9553 = vrot.slane %v9552, 4
        %v9554 = vrot.slane %v7527, 6
        %v9555 = vsel %vm4662, %v9553, %v9554
        %v9556 = vrot.slane %v9554, 4
        %v9557 = vrot.slane %v8768, 6
        %v9558 = vsel %vm4662, %v9556, %v9557
        %v9559 = vrot.slane %v9475, 6
        %v9560 = vrot.slane %v9559, 4
        %v9561 = vrot.slane %v7530, 6
        %v9562 = vsel %vm4662, %v9560, %v9561
        %v9563 = vrot.slane %v9561, 4
        %v9564 = vrot.slane %v8769, 6
        %v9565 = vsel %vm4662, %v9563, %v9564
        %v9566 = vrot.slane %v9476, 6
        %v9567 = vrot.slane %v9566, 4
        %v9568 = vrot.slane %v7533, 6
        %v9569 = vsel %vm4662, %v9567, %v9568
        %v9570 = vrot.slane %v9568, 4
        %v9571 = vrot.slane %v8770, 6
        %v9572 = vsel %vm4662, %v9570, %v9571
        %v9573 = vrot.slane %v9477, 6
        %v9574 = vrot.slane %v9573, 4
        %v9575 = vrot.slane %v7536, 6
        %v9576 = vsel %vm4662, %v9574, %v9575
        %v9577 = vrot.slane %v9575, 4
        %v9578 = vrot.slane %v8771, 6
        %v9579 = vsel %vm4662, %v9577, %v9578
        %v9580 = vrot.slane %v9478, 6
        %v9581 = vrot.slane %v9580, 4
        %v9582 = vrot.slane %v7539, 6
        %v9583 = vsel %vm4662, %v9581, %v9582
        %v9584 = vrot.slane %v9582, 4
        %v9585 = vrot.slane %v8772, 6
        %v9586 = vsel %vm4662, %v9584, %v9585
        %v9587 = vrot.slane %v9479, 6
        %v9588 = vrot.slane %v9587, 4
        %v9589 = vrot.slane %v7542, 6
        %v9590 = vsel %vm4662, %v9588, %v9589
        %v9591 = vrot.slane %v9589, 4
        %v9592 = vrot.slane %v8773, 6
        %v9593 = vsel %vm4662, %v9591, %v9592
        %v9594 = vrot.slane %v9480, 6
        %v9595 = vrot.slane %v9594, 4
        %v9596 = vrot.slane %v7545, 6
        %v9597 = vsel %vm4662, %v9595, %v9596
        %v9598 = vrot.slane %v9596, 4
        %v9599 = vrot.slane %v8774, 6
        %v9600 = vsel %vm4662, %v9598, %v9599
        %v9601 = vrot.slane %v9481, 6
        %v9602 = vrot.slane %v9601, 4
        %v9603 = vrot.slane %v7548, 6
        %v9604 = vsel %vm4662, %v9602, %v9603
        %v9605 = vrot.slane %v9603, 4
        %v9606 = vrot.slane %v8775, 6
        %v9607 = vsel %vm4662, %v9605, %v9606
        %v9608 = vrot.slane %v9482, 6
        %v9609 = vrot.slane %v9608, 4
        %v9610 = vrot.slane %v7551, 6
        %v9611 = vsel %vm4662, %v9609, %v9610
        %v9612 = vrot.slane %v9610, 4
        %v9613 = vrot.slane %v8776, 6
        %v9614 = vsel %vm4662, %v9612, %v9613
        %v9615 = vrot.slane %v9483, 6
        %v9616 = vrot.slane %v9615, 4
        %v9617 = vrot.slane %v7554, 6
        %v9618 = vsel %vm4662, %v9616, %v9617
        %v9619 = vrot.slane %v9617, 4
        %v9620 = vrot.slane %v8777, 6
        %v9621 = vsel %vm4662, %v9619, %v9620
        %v9622 = vrot.slane %v9484, 6
        %v9623 = vrot.slane %v9622, 4
        %v9624 = vrot.slane %v7557, 6
        %v9625 = vsel %vm4662, %v9623, %v9624
        %v9626 = vrot.slane %v9624, 4
        %v9627 = vrot.slane %v8778, 6
        %v9628 = vsel %vm4662, %v9626, %v9627
        %s9629 = scalar_lea.vmem [#allocation4], 448
        %v9630 = vld [vmem:[%s9629] sm:$0xf]
        %v9631 = vld [vmem:[%s9629 + $0x4] sm:$0xf]
        %v9632 = vld [vmem:[%s9629 + $0x8] sm:$0xf]
        %v9633 = vld [vmem:[%s9629 + $0xc] sm:$0xf]
        %v9634 = vld [vmem:[%s9629 + $0x10] sm:$0xf]
        %v9635 = vld [vmem:[%s9629 + $0x14] sm:$0xf]
        %v9636 = vld [vmem:[%s9629 + $0x18] sm:$0xf]
        %v9637 = vld [vmem:[%s9629 + $0x1c] sm:$0xf]
        %v9638 = vld [vmem:[%s9629 + $0x20] sm:$0xf]
        %v9639 = vld [vmem:[%s9629 + $0x24] sm:$0xf]
        %v9640 = vld [vmem:[%s9629 + $0x28] sm:$0xf]
        %v9641 = vld [vmem:[%s9629 + $0x2c] sm:$0xf]
        %v9642 = vld [vmem:[%s9629 + $0x30] sm:$0xf]
        %v9643 = vld [vmem:[%s9629 + $0x34] sm:$0xf]
        %v9644 = vld [vmem:[%s9629 + $0x38] sm:$0xf]
        %v9645 = vld [vmem:[%s9629 + $0x3c] sm:$0xf]
        %v9646 = vunpack.c.l.b16 %v9520
        %v9647 = vunpack.c.l.b16 %v9523
        %v9648 = vunpack.c.l.b16 %v9527
        %v9649 = vunpack.c.l.b16 %v9530
        %v9650 = vunpack.c.l.b16 %v9534
        %v9651 = vunpack.c.l.b16 %v9537
        %v9652 = vunpack.c.l.b16 %v9541
        %v9653 = vunpack.c.l.b16 %v9544
        %v9654 = vunpack.c.l.b16 %v9548
        %v9655 = vunpack.c.l.b16 %v9551
        %v9656 = vunpack.c.l.b16 %v9555
        %v9657 = vunpack.c.l.b16 %v9558
        %v9658 = vunpack.c.l.b16 %v9562
        %v9659 = vunpack.c.l.b16 %v9565
        %v9660 = vunpack.c.l.b16 %v9569
        %v9661 = vunpack.c.l.b16 %v9572
        %v9662 = vunpack.c.l.b16 %v9576
        %v9663 = vunpack.c.l.b16 %v9579
        %v9664 = vunpack.c.l.b16 %v9583
        %v9665 = vunpack.c.l.b16 %v9586
        %v9666 = vunpack.c.l.b16 %v9590
        %v9667 = vunpack.c.l.b16 %v9593
        %v9668 = vunpack.c.l.b16 %v9597
        %v9669 = vunpack.c.l.b16 %v9600
        %v9670 = vunpack.c.l.b16 %v9604
        %v9671 = vunpack.c.l.b16 %v9607
        %v9672 = vunpack.c.l.b16 %v9611
        %v9673 = vunpack.c.l.b16 %v9614
        %v9674 = vunpack.c.l.b16 %v9618
        %v9675 = vunpack.c.l.b16 %v9621
        %v9676 = vunpack.c.l.b16 %v9625
        %v9677 = vunpack.c.l.b16 %v9628
        %v9678 = vpack.c.b16 %v9647, %v9646
        %v9679 = vpack.c.b16 %v9649, %v9648
        %v9680 = vpack.c.b16 %v9651, %v9650
        %v9681 = vpack.c.b16 %v9653, %v9652
        %v9682 = vpack.c.b16 %v9655, %v9654
        %v9683 = vpack.c.b16 %v9657, %v9656
        %v9684 = vpack.c.b16 %v9659, %v9658
        %v9685 = vpack.c.b16 %v9661, %v9660
        %v9686 = vpack.c.b16 %v9663, %v9662
        %v9687 = vpack.c.b16 %v9665, %v9664
        %v9688 = vpack.c.b16 %v9667, %v9666
        %v9689 = vpack.c.b16 %v9669, %v9668
        %v9690 = vpack.c.b16 %v9671, %v9670
        %v9691 = vpack.c.b16 %v9673, %v9672
        %v9692 = vpack.c.b16 %v9675, %v9674
        %v9693 = vpack.c.b16 %v9677, %v9676
        %v9726 = vunpack.c.l.b16 %v9630
        %v9727 = vunpack.c.l.b16 %v9631
        %v9728 = vunpack.c.l.b16 %v9632
        %v9729 = vunpack.c.l.b16 %v9633
        %v9730 = vunpack.c.l.b16 %v9634
        %v9731 = vunpack.c.l.b16 %v9635
        %v9732 = vunpack.c.l.b16 %v9636
        %v9733 = vunpack.c.l.b16 %v9637
        %v9734 = vunpack.c.l.b16 %v9638
        %v9735 = vunpack.c.l.b16 %v9639
        %v9736 = vunpack.c.l.b16 %v9640
        %v9737 = vunpack.c.l.b16 %v9641
        %v9738 = vunpack.c.l.b16 %v9642
        %v9739 = vunpack.c.l.b16 %v9643
        %v9740 = vunpack.c.l.b16 %v9644
        %v9741 = vunpack.c.l.b16 %v9645
        %v9742 = vpack.c.b16 %v9727, %v9726
        %v9743 = vpack.c.b16 %v9729, %v9728
        %v9744 = vpack.c.b16 %v9731, %v9730
        %v9745 = vpack.c.b16 %v9733, %v9732
        %v9746 = vpack.c.b16 %v9735, %v9734
        %v9747 = vpack.c.b16 %v9737, %v9736
        %v9748 = vpack.c.b16 %v9739, %v9738
        %v9749 = vpack.c.b16 %v9741, %v9740
        %9758 = vmatprep.subr.bf16.mxu0 0
        %9759 = vmatpush1.bf16.msra.mxu0 %v9749
        %9760 = vmatprep.subr.bf16.mxu0 0
        %9761 = vmatpush1.bf16.msra.mxu0 %v9748
        %9762 = vmatprep.subr.bf16.mxu0 0
        %9763 = vmatpush1.bf16.msra.mxu0 %v9747
        %9764 = vmatprep.subr.bf16.mxu0 0
        %9765 = vmatpush1.bf16.msra.mxu0 %v9746
        %9766 = vmatprep.subr.bf16.mxu0 0
        %9767 = vmatpush1.bf16.msra.mxu0 %v9745
        %9768 = vmatprep.subr.bf16.mxu0 0
        %9769 = vmatpush1.bf16.msra.mxu0 %v9744
        %9770 = vmatprep.subr.bf16.mxu0 0
        %9771 = vmatpush1.bf16.msra.mxu0 %v9743
        %9772 = vmatprep.subr.bf16.mxu0 0
        %9773 = vmatpush1.bf16.msra.mxu0 %v9742
        %9774 = vmatprep.subr.bf16.mxu0 0
        %9775 = vmatpush2.bf16.msra.mxu0 0
        %9776 = vmatprep.subr.bf16.mxu0 0
        %9777 = vmatpush2.bf16.msra.mxu0 0
        %9778 = vmatprep.subr.bf16.mxu0 0
        %9779 = vmatpush2.bf16.msra.mxu0 0
        %9780 = vmatprep.subr.bf16.mxu0 0
        %9781 = vmatpush2.bf16.msra.mxu0 0
        %9782 = vmatprep.subr.bf16.mxu0 0
        %9783 = vmatpush2.bf16.msra.mxu0 0
        %9784 = vmatprep.subr.bf16.mxu0 0
        %9785 = vmatpush2.bf16.msra.mxu0 0
        %9786 = vmatprep.subr.bf16.mxu0 0
        %9787 = vmatpush2.bf16.msra.mxu0 0
        %9788 = vmatprep.subr.bf16.mxu0 0
        %9789 = vmatpush2.bf16.msra.mxu0 0
        %9790 = vmatprep.mubr.bf16.mxu0 0
        %9791 = vmatmul.mubr.bf16.gmra.mxu0 %v9678
        %v9792 = vpop.f32.mrf.mxu0
        %v9793 = vadd.f32 0.0, %v9792
        %v9794 = vpop.f32.mrf.mxu0
        %v9795 = vpop.f32.mrf.mxu0
        %v9796 = vadd.f32 0.0, %v9795
        %v9797 = vpop.f32.mrf.mxu0
        %9798 = vmatprep.mubr.bf16.mxu0 0
        %9799 = vmatmul.mubr.bf16.gmra.mxu0 %v9679
        %v9800 = vpop.f32.mrf.mxu0
        %v9801 = vadd.f32 0.0, %v9800
        %v9802 = vpop.f32.mrf.mxu0
        %v9803 = vpop.f32.mrf.mxu0
        %v9804 = vadd.f32 0.0, %v9803
        %v9805 = vpop.f32.mrf.mxu0
        %9806 = vmatprep.mubr.bf16.mxu0 0
        %9807 = vmatmul.mubr.bf16.gmra.mxu0 %v9680
        %v9808 = vpop.f32.mrf.mxu0
        %v9809 = vadd.f32 0.0, %v9808
        %v9810 = vpop.f32.mrf.mxu0
        %v9811 = vpop.f32.mrf.mxu0
        %v9812 = vadd.f32 0.0, %v9811
        %v9813 = vpop.f32.mrf.mxu0
        %9814 = vmatprep.mubr.bf16.mxu0 0
        %9815 = vmatmul.mubr.bf16.gmra.mxu0 %v9681
        %v9816 = vpop.f32.mrf.mxu0
        %v9817 = vadd.f32 0.0, %v9816
        %v9818 = vpop.f32.mrf.mxu0
        %v9819 = vpop.f32.mrf.mxu0
        %v9820 = vadd.f32 0.0, %v9819
        %v9821 = vpop.f32.mrf.mxu0
        %9822 = vmatprep.mubr.bf16.mxu0 0
        %9823 = vmatmul.mubr.bf16.gmra.mxu0 %v9682
        %v9824 = vpop.f32.mrf.mxu0
        %v9825 = vadd.f32 0.0, %v9824
        %v9826 = vpop.f32.mrf.mxu0
        %v9827 = vpop.f32.mrf.mxu0
        %v9828 = vadd.f32 0.0, %v9827
        %v9829 = vpop.f32.mrf.mxu0
        %9830 = vmatprep.mubr.bf16.mxu0 0
        %9831 = vmatmul.mubr.bf16.gmra.mxu0 %v9683
        %v9832 = vpop.f32.mrf.mxu0
        %v9833 = vadd.f32 0.0, %v9832
        %v9834 = vpop.f32.mrf.mxu0
        %v9835 = vpop.f32.mrf.mxu0
        %v9836 = vadd.f32 0.0, %v9835
        %v9837 = vpop.f32.mrf.mxu0
        %9838 = vmatprep.mubr.bf16.mxu0 0
        %9839 = vmatmul.mubr.bf16.gmra.mxu0 %v9684
        %v9840 = vpop.f32.mrf.mxu0
        %v9841 = vadd.f32 0.0, %v9840
        %v9842 = vpop.f32.mrf.mxu0
        %v9843 = vpop.f32.mrf.mxu0
        %v9844 = vadd.f32 0.0, %v9843
        %v9845 = vpop.f32.mrf.mxu0
        %9846 = vmatprep.mubr.bf16.mxu0 0
        %9847 = vmatmul.mubr.bf16.gmra.mxu0 %v9685
        %v9848 = vpop.f32.mrf.mxu0
        %v9849 = vadd.f32 0.0, %v9848
        %v9850 = vpop.f32.mrf.mxu0
        %v9851 = vpop.f32.mrf.mxu0
        %v9852 = vadd.f32 0.0, %v9851
        %v9853 = vpop.f32.mrf.mxu0
        %9854 = vmatprep.mubr.bf16.mxu0 0
        %9855 = vmatmul.mubr.bf16.gmra.mxu0 %v9686
        %v9856 = vpop.f32.mrf.mxu0
        %v9857 = vadd.f32 0.0, %v9856
        %v9858 = vpop.f32.mrf.mxu0
        %v9859 = vpop.f32.mrf.mxu0
        %v9860 = vadd.f32 0.0, %v9859
        %v9861 = vpop.f32.mrf.mxu0
        %9862 = vmatprep.mubr.bf16.mxu0 0
        %9863 = vmatmul.mubr.bf16.gmra.mxu0 %v9687
        %v9864 = vpop.f32.mrf.mxu0
        %v9865 = vadd.f32 0.0, %v9864
        %v9866 = vpop.f32.mrf.mxu0
        %v9867 = vpop.f32.mrf.mxu0
        %v9868 = vadd.f32 0.0, %v9867
        %v9869 = vpop.f32.mrf.mxu0
        %9870 = vmatprep.mubr.bf16.mxu0 0
        %9871 = vmatmul.mubr.bf16.gmra.mxu0 %v9688
        %v9872 = vpop.f32.mrf.mxu0
        %v9873 = vadd.f32 0.0, %v9872
        %v9874 = vpop.f32.mrf.mxu0
        %v9875 = vpop.f32.mrf.mxu0
        %v9876 = vadd.f32 0.0, %v9875
        %v9877 = vpop.f32.mrf.mxu0
        %9878 = vmatprep.mubr.bf16.mxu0 0
        %9879 = vmatmul.mubr.bf16.gmra.mxu0 %v9689
        %v9880 = vpop.f32.mrf.mxu0
        %v9881 = vadd.f32 0.0, %v9880
        %v9882 = vpop.f32.mrf.mxu0
        %v9883 = vpop.f32.mrf.mxu0
        %v9884 = vadd.f32 0.0, %v9883
        %v9885 = vpop.f32.mrf.mxu0
        %9886 = vmatprep.mubr.bf16.mxu0 0
        %9887 = vmatmul.mubr.bf16.gmra.mxu0 %v9690
        %v9888 = vpop.f32.mrf.mxu0
        %v9889 = vadd.f32 0.0, %v9888
        %v9890 = vpop.f32.mrf.mxu0
        %v9891 = vpop.f32.mrf.mxu0
        %v9892 = vadd.f32 0.0, %v9891
        %v9893 = vpop.f32.mrf.mxu0
        %9894 = vmatprep.mubr.bf16.mxu0 0
        %9895 = vmatmul.mubr.bf16.gmra.mxu0 %v9691
        %v9896 = vpop.f32.mrf.mxu0
        %v9897 = vadd.f32 0.0, %v9896
        %v9898 = vpop.f32.mrf.mxu0
        %v9899 = vpop.f32.mrf.mxu0
        %v9900 = vadd.f32 0.0, %v9899
        %v9901 = vpop.f32.mrf.mxu0
        %9902 = vmatprep.mubr.bf16.mxu0 0
        %9903 = vmatmul.mubr.bf16.gmra.mxu0 %v9692
        %v9904 = vpop.f32.mrf.mxu0
        %v9905 = vadd.f32 0.0, %v9904
        %v9906 = vpop.f32.mrf.mxu0
        %v9907 = vpop.f32.mrf.mxu0
        %v9908 = vadd.f32 0.0, %v9907
        %v9909 = vpop.f32.mrf.mxu0
        %9910 = vmatprep.mubr.bf16.mxu0 0
        %9911 = vmatmul.mubr.bf16.gmra.mxu0 %v9693
        %v9912 = vpop.f32.mrf.mxu0
        %v9913 = vadd.f32 0.0, %v9912
        %v9914 = vpop.f32.mrf.mxu0
        %v9915 = vpop.f32.mrf.mxu0
        %v9916 = vadd.f32 0.0, %v9915
        %v9917 = vpop.f32.mrf.mxu0
        %9918 = vdwg.mxu0
        %v9919 = vadd.f32 %v9437, %v9793
        %v9920 = vadd.f32 %v9438, %v9796
        %v9921 = vadd.f32 %v9439, %v9801
        %v9922 = vadd.f32 %v9440, %v9804
        %v9923 = vadd.f32 %v9441, %v9809
        %v9924 = vadd.f32 %v9442, %v9812
        %v9925 = vadd.f32 %v9443, %v9817
        %v9926 = vadd.f32 %v9444, %v9820
        %v9927 = vadd.f32 %v9445, %v9825
        %v9928 = vadd.f32 %v9446, %v9828
        %v9929 = vadd.f32 %v9447, %v9833
        %v9930 = vadd.f32 %v9448, %v9836
        %v9931 = vadd.f32 %v9449, %v9841
        %v9932 = vadd.f32 %v9450, %v9844
        %v9933 = vadd.f32 %v9451, %v9849
        %v9934 = vadd.f32 %v9452, %v9852
        %v9935 = vadd.f32 %v9453, %v9857
        %v9936 = vadd.f32 %v9454, %v9860
        %v9937 = vadd.f32 %v9455, %v9865
        %v9938 = vadd.f32 %v9456, %v9868
        %v9939 = vadd.f32 %v9457, %v9873
        %v9940 = vadd.f32 %v9458, %v9876
        %v9941 = vadd.f32 %v9459, %v9881
        %v9942 = vadd.f32 %v9460, %v9884
        %v9943 = vadd.f32 %v9461, %v9889
        %v9944 = vadd.f32 %v9462, %v9892
        %v9945 = vadd.f32 %v9463, %v9897
        %v9946 = vadd.f32 %v9464, %v9900
        %v9947 = vadd.f32 %v9465, %v9905
        %v9948 = vadd.f32 %v9466, %v9908
        %v9949 = vadd.f32 %v9467, %v9913
        %v9950 = vadd.f32 %v9468, %v9916
        %v9951 = vld [vmem:[%s4] sm:$0x1]
        %v9953 = vlaneseq
        %v9954 = vshrl.u32 %v9953, 7
        %v9955 = vsub.s32 0, %v9954
        %v9956 = vrot.slane %v9951, %v9955
        %v9958 = vadd.f32 %v9919, %v9956
        %v9959 = vadd.f32 %v9920, %v9956
        %v9960 = vadd.f32 %v9921, %v9956
        %v9961 = vadd.f32 %v9922, %v9956
        %v9962 = vadd.f32 %v9923, %v9956
        %v9963 = vadd.f32 %v9924, %v9956
        %v9964 = vadd.f32 %v9925, %v9956
        %v9965 = vadd.f32 %v9926, %v9956
        %v9966 = vadd.f32 %v9927, %v9956
        %v9967 = vadd.f32 %v9928, %v9956
        %v9968 = vadd.f32 %v9929, %v9956
        %v9969 = vadd.f32 %v9930, %v9956
        %v9970 = vadd.f32 %v9931, %v9956
        %v9971 = vadd.f32 %v9932, %v9956
        %v9972 = vadd.f32 %v9933, %v9956
        %v9973 = vadd.f32 %v9934, %v9956
        %v9974 = vadd.f32 %v9935, %v9956
        %v9975 = vadd.f32 %v9936, %v9956
        %v9976 = vadd.f32 %v9937, %v9956
        %v9977 = vadd.f32 %v9938, %v9956
        %v9978 = vadd.f32 %v9939, %v9956
        %v9979 = vadd.f32 %v9940, %v9956
        %v9980 = vadd.f32 %v9941, %v9956
        %v9981 = vadd.f32 %v9942, %v9956
        %v9982 = vadd.f32 %v9943, %v9956
        %v9983 = vadd.f32 %v9944, %v9956
        %v9984 = vadd.f32 %v9945, %v9956
        %v9985 = vadd.f32 %v9946, %v9956
        %v9986 = vadd.f32 %v9947, %v9956
        %v9987 = vadd.f32 %v9948, %v9956
        %v9988 = vadd.f32 %v9949, %v9956
        %v9989 = vadd.f32 %v9950, %v9956
        %v9990 = vmax.f32 %v9958, 0.0
        %v9991 = vmax.f32 %v9959, 0.0
        %v9992 = vmax.f32 %v9960, 0.0
        %v9993 = vmax.f32 %v9961, 0.0
        %v9994 = vmax.f32 %v9962, 0.0
        %v9995 = vmax.f32 %v9963, 0.0
        %v9996 = vmax.f32 %v9964, 0.0
        %v9997 = vmax.f32 %v9965, 0.0
        %v9998 = vmax.f32 %v9966, 0.0
        %v9999 = vmax.f32 %v9967, 0.0
        %v10000 = vmax.f32 %v9968, 0.0
        %v10001 = vmax.f32 %v9969, 0.0
        %v10002 = vmax.f32 %v9970, 0.0
        %v10003 = vmax.f32 %v9971, 0.0
        %v10004 = vmax.f32 %v9972, 0.0
        %v10005 = vmax.f32 %v9973, 0.0
        %v10006 = vmax.f32 %v9974, 0.0
        %v10007 = vmax.f32 %v9975, 0.0
        %v10008 = vmax.f32 %v9976, 0.0
        %v10009 = vmax.f32 %v9977, 0.0
        %v10010 = vmax.f32 %v9978, 0.0
        %v10011 = vmax.f32 %v9979, 0.0
        %v10012 = vmax.f32 %v9980, 0.0
        %v10013 = vmax.f32 %v9981, 0.0
        %v10014 = vmax.f32 %v9982, 0.0
        %v10015 = vmax.f32 %v9983, 0.0
        %v10016 = vmax.f32 %v9984, 0.0
        %v10017 = vmax.f32 %v9985, 0.0
        %v10018 = vmax.f32 %v9986, 0.0
        %v10019 = vmax.f32 %v9987, 0.0
        %v10020 = vmax.f32 %v9988, 0.0
        %v10021 = vmax.f32 %v9989, 0.0
        %v10022 = vpack.c.bf16 %v9991, %v9990
        %v10023 = vpack.c.bf16 %v9993, %v9992
        %v10024 = vpack.c.bf16 %v9995, %v9994
        %v10025 = vpack.c.bf16 %v9997, %v9996
        %v10026 = vpack.c.bf16 %v9999, %v9998
        %v10027 = vpack.c.bf16 %v10001, %v10000
        %v10028 = vpack.c.bf16 %v10003, %v10002
        %v10029 = vpack.c.bf16 %v10005, %v10004
        %v10030 = vpack.c.bf16 %v10007, %v10006
        %v10031 = vpack.c.bf16 %v10009, %v10008
        %v10032 = vpack.c.bf16 %v10011, %v10010
        %v10033 = vpack.c.bf16 %v10013, %v10012
        %v10034 = vpack.c.bf16 %v10015, %v10014
        %v10035 = vpack.c.bf16 %v10017, %v10016
        %v10036 = vpack.c.bf16 %v10019, %v10018
        %v10037 = vpack.c.bf16 %v10021, %v10020
        %v10038 = vld [vmem:[%s5] sm:$0xf]
        %v10039 = vld [vmem:[%s5 + $0x4] sm:$0xf]
        %v10040 = vld [vmem:[%s5 + $0x8] sm:$0xf]
        %v10041 = vld [vmem:[%s5 + $0xc] sm:$0xf]
        %v10042 = vld [vmem:[%s5 + $0x10] sm:$0xf]
        %v10043 = vld [vmem:[%s5 + $0x14] sm:$0xf]
        %v10044 = vld [vmem:[%s5 + $0x18] sm:$0xf]
        %v10045 = vld [vmem:[%s5 + $0x1c] sm:$0xf]
        %v10046 = vld [vmem:[%s5 + $0x20] sm:$0xf]
        %v10047 = vld [vmem:[%s5 + $0x24] sm:$0xf]
        %v10048 = vld [vmem:[%s5 + $0x28] sm:$0xf]
        %v10049 = vld [vmem:[%s5 + $0x2c] sm:$0xf]
        %v10050 = vld [vmem:[%s5 + $0x30] sm:$0xf]
        %v10051 = vld [vmem:[%s5 + $0x34] sm:$0xf]
        %v10052 = vld [vmem:[%s5 + $0x38] sm:$0xf]
        %v10053 = vld [vmem:[%s5 + $0x3c] sm:$0xf]
        %v10054 = vld [vmem:[%s5 + $0x40] sm:$0xf]
        %v10055 = vld [vmem:[%s5 + $0x44] sm:$0xf]
        %v10056 = vld [vmem:[%s5 + $0x48] sm:$0xf]
        %v10057 = vld [vmem:[%s5 + $0x4c] sm:$0xf]
        %v10058 = vld [vmem:[%s5 + $0x50] sm:$0xf]
        %v10059 = vld [vmem:[%s5 + $0x54] sm:$0xf]
        %v10060 = vld [vmem:[%s5 + $0x58] sm:$0xf]
        %v10061 = vld [vmem:[%s5 + $0x5c] sm:$0xf]
        %v10062 = vld [vmem:[%s5 + $0x60] sm:$0xf]
        %v10063 = vld [vmem:[%s5 + $0x64] sm:$0xf]
        %v10064 = vld [vmem:[%s5 + $0x68] sm:$0xf]
        %v10065 = vld [vmem:[%s5 + $0x6c] sm:$0xf]
        %v10066 = vld [vmem:[%s5 + $0x70] sm:$0xf]
        %v10067 = vld [vmem:[%s5 + $0x74] sm:$0xf]
        %v10068 = vld [vmem:[%s5 + $0x78] sm:$0xf]
        %v10069 = vld [vmem:[%s5 + $0x7c] sm:$0xf]
        %v10070 = vld [vmem:[%s5 + $0x80] sm:$0xf]
        %v10071 = vld [vmem:[%s5 + $0x84] sm:$0xf]
        %v10072 = vld [vmem:[%s5 + $0x88] sm:$0xf]
        %v10073 = vld [vmem:[%s5 + $0x8c] sm:$0xf]
        %v10074 = vld [vmem:[%s5 + $0x90] sm:$0xf]
        %v10075 = vld [vmem:[%s5 + $0x94] sm:$0xf]
        %v10076 = vld [vmem:[%s5 + $0x98] sm:$0xf]
        %v10077 = vld [vmem:[%s5 + $0x9c] sm:$0xf]
        %v10078 = vld [vmem:[%s5 + $0xa0] sm:$0xf]
        %v10079 = vld [vmem:[%s5 + $0xa4] sm:$0xf]
        %v10080 = vld [vmem:[%s5 + $0xa8] sm:$0xf]
        %v10081 = vld [vmem:[%s5 + $0xac] sm:$0xf]
        %v10082 = vld [vmem:[%s5 + $0xb0] sm:$0xf]
        %v10083 = vld [vmem:[%s5 + $0xb4] sm:$0xf]
        %v10084 = vld [vmem:[%s5 + $0xb8] sm:$0xf]
        %v10085 = vld [vmem:[%s5 + $0xbc] sm:$0xf]
        %v10086 = vld [vmem:[%s5 + $0xc0] sm:$0xf]
        %v10087 = vld [vmem:[%s5 + $0xc4] sm:$0xf]
        %v10088 = vld [vmem:[%s5 + $0xc8] sm:$0xf]
        %v10089 = vld [vmem:[%s5 + $0xcc] sm:$0xf]
        %v10090 = vld [vmem:[%s5 + $0xd0] sm:$0xf]
        %v10091 = vld [vmem:[%s5 + $0xd4] sm:$0xf]
        %v10092 = vld [vmem:[%s5 + $0xd8] sm:$0xf]
        %v10093 = vld [vmem:[%s5 + $0xdc] sm:$0xf]
        %v10094 = vld [vmem:[%s5 + $0xe0] sm:$0xf]
        %v10095 = vld [vmem:[%s5 + $0xe4] sm:$0xf]
        %v10096 = vld [vmem:[%s5 + $0xe8] sm:$0xf]
        %v10097 = vld [vmem:[%s5 + $0xec] sm:$0xf]
        %v10098 = vld [vmem:[%s5 + $0xf0] sm:$0xf]
        %v10099 = vld [vmem:[%s5 + $0xf4] sm:$0xf]
        %v10100 = vld [vmem:[%s5 + $0xf8] sm:$0xf]
        %v10101 = vld [vmem:[%s5 + $0xfc] sm:$0xf]
        %v10102 = vld [vmem:[%s5 + $0x100] sm:$0xf]
        %v10103 = vld [vmem:[%s5 + $0x104] sm:$0xf]
        %v10104 = vld [vmem:[%s5 + $0x108] sm:$0xf]
        %v10105 = vld [vmem:[%s5 + $0x10c] sm:$0xf]
        %v10106 = vld [vmem:[%s5 + $0x110] sm:$0xf]
        %v10107 = vld [vmem:[%s5 + $0x114] sm:$0xf]
        %v10108 = vld [vmem:[%s5 + $0x118] sm:$0xf]
        %v10109 = vld [vmem:[%s5 + $0x11c] sm:$0xf]
        %v10110 = vld [vmem:[%s5 + $0x120] sm:$0xf]
        %v10111 = vld [vmem:[%s5 + $0x124] sm:$0xf]
        %v10112 = vld [vmem:[%s5 + $0x128] sm:$0xf]
        %v10113 = vld [vmem:[%s5 + $0x12c] sm:$0xf]
        %v10114 = vld [vmem:[%s5 + $0x130] sm:$0xf]
        %v10115 = vld [vmem:[%s5 + $0x134] sm:$0xf]
        %v10116 = vld [vmem:[%s5 + $0x138] sm:$0xf]
        %v10117 = vld [vmem:[%s5 + $0x13c] sm:$0xf]
        %v10118 = vld [vmem:[%s5 + $0x140] sm:$0xf]
        %v10119 = vld [vmem:[%s5 + $0x144] sm:$0xf]
        %v10120 = vld [vmem:[%s5 + $0x148] sm:$0xf]
        %v10121 = vld [vmem:[%s5 + $0x14c] sm:$0xf]
        %v10122 = vld [vmem:[%s5 + $0x150] sm:$0xf]
        %v10123 = vld [vmem:[%s5 + $0x154] sm:$0xf]
        %v10124 = vld [vmem:[%s5 + $0x158] sm:$0xf]
        %v10125 = vld [vmem:[%s5 + $0x15c] sm:$0xf]
        %v10126 = vld [vmem:[%s5 + $0x160] sm:$0xf]
        %v10127 = vld [vmem:[%s5 + $0x164] sm:$0xf]
        %v10128 = vld [vmem:[%s5 + $0x168] sm:$0xf]
        %v10129 = vld [vmem:[%s5 + $0x16c] sm:$0xf]
        %v10130 = vld [vmem:[%s5 + $0x170] sm:$0xf]
        %v10131 = vld [vmem:[%s5 + $0x174] sm:$0xf]
        %v10132 = vld [vmem:[%s5 + $0x178] sm:$0xf]
        %v10133 = vld [vmem:[%s5 + $0x17c] sm:$0xf]
        %v10134 = vld [vmem:[%s5 + $0x180] sm:$0xf]
        %v10135 = vld [vmem:[%s5 + $0x184] sm:$0xf]
        %v10136 = vld [vmem:[%s5 + $0x188] sm:$0xf]
        %v10137 = vld [vmem:[%s5 + $0x18c] sm:$0xf]
        %v10138 = vld [vmem:[%s5 + $0x190] sm:$0xf]
        %v10139 = vld [vmem:[%s5 + $0x194] sm:$0xf]
        %v10140 = vld [vmem:[%s5 + $0x198] sm:$0xf]
        %v10141 = vld [vmem:[%s5 + $0x19c] sm:$0xf]
        %v10142 = vld [vmem:[%s5 + $0x1a0] sm:$0xf]
        %v10143 = vld [vmem:[%s5 + $0x1a4] sm:$0xf]
        %v10144 = vld [vmem:[%s5 + $0x1a8] sm:$0xf]
        %v10145 = vld [vmem:[%s5 + $0x1ac] sm:$0xf]
        %v10146 = vld [vmem:[%s5 + $0x1b0] sm:$0xf]
        %v10147 = vld [vmem:[%s5 + $0x1b4] sm:$0xf]
        %v10148 = vld [vmem:[%s5 + $0x1b8] sm:$0xf]
        %v10149 = vld [vmem:[%s5 + $0x1bc] sm:$0xf]
        %v10150 = vld [vmem:[%s5 + $0x1c0] sm:$0xf]
        %v10151 = vld [vmem:[%s5 + $0x1c4] sm:$0xf]
        %v10152 = vld [vmem:[%s5 + $0x1c8] sm:$0xf]
        %v10153 = vld [vmem:[%s5 + $0x1cc] sm:$0xf]
        %v10154 = vld [vmem:[%s5 + $0x1d0] sm:$0xf]
        %v10155 = vld [vmem:[%s5 + $0x1d4] sm:$0xf]
        %v10156 = vld [vmem:[%s5 + $0x1d8] sm:$0xf]
        %v10157 = vld [vmem:[%s5 + $0x1dc] sm:$0xf]
        %v10158 = vld [vmem:[%s5 + $0x1e0] sm:$0xf]
        %v10159 = vld [vmem:[%s5 + $0x1e4] sm:$0xf]
        %v10160 = vld [vmem:[%s5 + $0x1e8] sm:$0xf]
        %v10161 = vld [vmem:[%s5 + $0x1ec] sm:$0xf]
        %v10162 = vld [vmem:[%s5 + $0x1f0] sm:$0xf]
        %v10163 = vld [vmem:[%s5 + $0x1f4] sm:$0xf]
        %v10164 = vld [vmem:[%s5 + $0x1f8] sm:$0xf]
        %v10165 = vld [vmem:[%s5 + $0x1fc] sm:$0xf]
        %v10166 = vld [vmem:[%s5 + $0x200] sm:$0xf]
        %v10167 = vld [vmem:[%s5 + $0x204] sm:$0xf]
        %v10168 = vld [vmem:[%s5 + $0x208] sm:$0xf]
        %v10169 = vld [vmem:[%s5 + $0x20c] sm:$0xf]
        %v10170 = vld [vmem:[%s5 + $0x210] sm:$0xf]
        %v10171 = vld [vmem:[%s5 + $0x214] sm:$0xf]
        %v10172 = vld [vmem:[%s5 + $0x218] sm:$0xf]
        %v10173 = vld [vmem:[%s5 + $0x21c] sm:$0xf]
        %v10174 = vld [vmem:[%s5 + $0x220] sm:$0xf]
        %v10175 = vld [vmem:[%s5 + $0x224] sm:$0xf]
        %v10176 = vld [vmem:[%s5 + $0x228] sm:$0xf]
        %v10177 = vld [vmem:[%s5 + $0x22c] sm:$0xf]
        %v10178 = vld [vmem:[%s5 + $0x230] sm:$0xf]
        %v10179 = vld [vmem:[%s5 + $0x234] sm:$0xf]
        %v10180 = vld [vmem:[%s5 + $0x238] sm:$0xf]
        %v10181 = vld [vmem:[%s5 + $0x23c] sm:$0xf]
        %v10182 = vld [vmem:[%s5 + $0x240] sm:$0xf]
        %v10183 = vld [vmem:[%s5 + $0x244] sm:$0xf]
        %v10184 = vld [vmem:[%s5 + $0x248] sm:$0xf]
        %v10185 = vld [vmem:[%s5 + $0x24c] sm:$0xf]
        %v10186 = vld [vmem:[%s5 + $0x250] sm:$0xf]
        %v10187 = vld [vmem:[%s5 + $0x254] sm:$0xf]
        %v10188 = vld [vmem:[%s5 + $0x258] sm:$0xf]
        %v10189 = vld [vmem:[%s5 + $0x25c] sm:$0xf]
        %v10190 = vld [vmem:[%s5 + $0x260] sm:$0xf]
        %v10191 = vld [vmem:[%s5 + $0x264] sm:$0xf]
        %v10192 = vld [vmem:[%s5 + $0x268] sm:$0xf]
        %v10193 = vld [vmem:[%s5 + $0x26c] sm:$0xf]
        %v10194 = vld [vmem:[%s5 + $0x270] sm:$0xf]
        %v10195 = vld [vmem:[%s5 + $0x274] sm:$0xf]
        %v10196 = vld [vmem:[%s5 + $0x278] sm:$0xf]
        %v10197 = vld [vmem:[%s5 + $0x27c] sm:$0xf]
        %v10198 = vld [vmem:[%s5 + $0x280] sm:$0xf]
        %v10199 = vld [vmem:[%s5 + $0x284] sm:$0xf]
        %v10200 = vld [vmem:[%s5 + $0x288] sm:$0xf]
        %v10201 = vld [vmem:[%s5 + $0x28c] sm:$0xf]
        %v10202 = vld [vmem:[%s5 + $0x290] sm:$0xf]
        %v10203 = vld [vmem:[%s5 + $0x294] sm:$0xf]
        %v10204 = vld [vmem:[%s5 + $0x298] sm:$0xf]
        %v10205 = vld [vmem:[%s5 + $0x29c] sm:$0xf]
        %v10206 = vld [vmem:[%s5 + $0x2a0] sm:$0xf]
        %v10207 = vld [vmem:[%s5 + $0x2a4] sm:$0xf]
        %v10208 = vld [vmem:[%s5 + $0x2a8] sm:$0xf]
        %v10209 = vld [vmem:[%s5 + $0x2ac] sm:$0xf]
        %v10210 = vld [vmem:[%s5 + $0x2b0] sm:$0xf]
        %v10211 = vld [vmem:[%s5 + $0x2b4] sm:$0xf]
        %v10212 = vld [vmem:[%s5 + $0x2b8] sm:$0xf]
        %v10213 = vld [vmem:[%s5 + $0x2bc] sm:$0xf]
        %v10214 = vld [vmem:[%s5 + $0x2c0] sm:$0xf]
        %v10215 = vld [vmem:[%s5 + $0x2c4] sm:$0xf]
        %v10216 = vld [vmem:[%s5 + $0x2c8] sm:$0xf]
        %v10217 = vld [vmem:[%s5 + $0x2cc] sm:$0xf]
        %v10218 = vld [vmem:[%s5 + $0x2d0] sm:$0xf]
        %v10219 = vld [vmem:[%s5 + $0x2d4] sm:$0xf]
        %v10220 = vld [vmem:[%s5 + $0x2d8] sm:$0xf]
        %v10221 = vld [vmem:[%s5 + $0x2dc] sm:$0xf]
        %v10222 = vld [vmem:[%s5 + $0x2e0] sm:$0xf]
        %v10223 = vld [vmem:[%s5 + $0x2e4] sm:$0xf]
        %v10224 = vld [vmem:[%s5 + $0x2e8] sm:$0xf]
        %v10225 = vld [vmem:[%s5 + $0x2ec] sm:$0xf]
        %v10226 = vld [vmem:[%s5 + $0x2f0] sm:$0xf]
        %v10227 = vld [vmem:[%s5 + $0x2f4] sm:$0xf]
        %v10228 = vld [vmem:[%s5 + $0x2f8] sm:$0xf]
        %v10229 = vld [vmem:[%s5 + $0x2fc] sm:$0xf]
        %v10230 = vld [vmem:[%s5 + $0x300] sm:$0xf]
        %v10231 = vld [vmem:[%s5 + $0x304] sm:$0xf]
        %v10232 = vld [vmem:[%s5 + $0x308] sm:$0xf]
        %v10233 = vld [vmem:[%s5 + $0x30c] sm:$0xf]
        %v10234 = vld [vmem:[%s5 + $0x310] sm:$0xf]
        %v10235 = vld [vmem:[%s5 + $0x314] sm:$0xf]
        %v10236 = vld [vmem:[%s5 + $0x318] sm:$0xf]
        %v10237 = vld [vmem:[%s5 + $0x31c] sm:$0xf]
        %v10238 = vld [vmem:[%s5 + $0x320] sm:$0xf]
        %v10239 = vld [vmem:[%s5 + $0x324] sm:$0xf]
        %v10240 = vld [vmem:[%s5 + $0x328] sm:$0xf]
        %v10241 = vld [vmem:[%s5 + $0x32c] sm:$0xf]
        %v10242 = vld [vmem:[%s5 + $0x330] sm:$0xf]
        %v10243 = vld [vmem:[%s5 + $0x334] sm:$0xf]
        %v10244 = vld [vmem:[%s5 + $0x338] sm:$0xf]
        %v10245 = vld [vmem:[%s5 + $0x33c] sm:$0xf]
        %v10246 = vld [vmem:[%s5 + $0x340] sm:$0xf]
        %v10247 = vld [vmem:[%s5 + $0x344] sm:$0xf]
        %v10248 = vld [vmem:[%s5 + $0x348] sm:$0xf]
        %v10249 = vld [vmem:[%s5 + $0x34c] sm:$0xf]
        %v10250 = vld [vmem:[%s5 + $0x350] sm:$0xf]
        %v10251 = vld [vmem:[%s5 + $0x354] sm:$0xf]
        %v10252 = vld [vmem:[%s5 + $0x358] sm:$0xf]
        %v10253 = vld [vmem:[%s5 + $0x35c] sm:$0xf]
        %v10254 = vld [vmem:[%s5 + $0x360] sm:$0xf]
        %v10255 = vld [vmem:[%s5 + $0x364] sm:$0xf]
        %v10256 = vld [vmem:[%s5 + $0x368] sm:$0xf]
        %v10257 = vld [vmem:[%s5 + $0x36c] sm:$0xf]
        %v10258 = vld [vmem:[%s5 + $0x370] sm:$0xf]
        %v10259 = vld [vmem:[%s5 + $0x374] sm:$0xf]
        %v10260 = vld [vmem:[%s5 + $0x378] sm:$0xf]
        %v10261 = vld [vmem:[%s5 + $0x37c] sm:$0xf]
        %v10262 = vld [vmem:[%s5 + $0x380] sm:$0xf]
        %v10263 = vld [vmem:[%s5 + $0x384] sm:$0xf]
        %v10264 = vld [vmem:[%s5 + $0x388] sm:$0xf]
        %v10265 = vld [vmem:[%s5 + $0x38c] sm:$0xf]
        %v10266 = vld [vmem:[%s5 + $0x390] sm:$0xf]
        %v10267 = vld [vmem:[%s5 + $0x394] sm:$0xf]
        %v10268 = vld [vmem:[%s5 + $0x398] sm:$0xf]
        %v10269 = vld [vmem:[%s5 + $0x39c] sm:$0xf]
        %v10270 = vld [vmem:[%s5 + $0x3a0] sm:$0xf]
        %v10271 = vld [vmem:[%s5 + $0x3a4] sm:$0xf]
        %v10272 = vld [vmem:[%s5 + $0x3a8] sm:$0xf]
        %v10273 = vld [vmem:[%s5 + $0x3ac] sm:$0xf]
        %v10274 = vld [vmem:[%s5 + $0x3b0] sm:$0xf]
        %v10275 = vld [vmem:[%s5 + $0x3b4] sm:$0xf]
        %v10276 = vld [vmem:[%s5 + $0x3b8] sm:$0xf]
        %v10277 = vld [vmem:[%s5 + $0x3bc] sm:$0xf]
        %v10278 = vld [vmem:[%s5 + $0x3c0] sm:$0xf]
        %v10279 = vld [vmem:[%s5 + $0x3c4] sm:$0xf]
        %v10280 = vld [vmem:[%s5 + $0x3c8] sm:$0xf]
        %v10281 = vld [vmem:[%s5 + $0x3cc] sm:$0xf]
        %v10282 = vld [vmem:[%s5 + $0x3d0] sm:$0xf]
        %v10283 = vld [vmem:[%s5 + $0x3d4] sm:$0xf]
        %v10284 = vld [vmem:[%s5 + $0x3d8] sm:$0xf]
        %v10285 = vld [vmem:[%s5 + $0x3dc] sm:$0xf]
        %v10286 = vld [vmem:[%s5 + $0x3e0] sm:$0xf]
        %v10287 = vld [vmem:[%s5 + $0x3e4] sm:$0xf]
        %v10288 = vld [vmem:[%s5 + $0x3e8] sm:$0xf]
        %v10289 = vld [vmem:[%s5 + $0x3ec] sm:$0xf]
        %v10290 = vld [vmem:[%s5 + $0x3f0] sm:$0xf]
        %v10291 = vld [vmem:[%s5 + $0x3f4] sm:$0xf]
        %v10292 = vld [vmem:[%s5 + $0x3f8] sm:$0xf]
        %v10293 = vld [vmem:[%s5 + $0x3fc] sm:$0xf]
        %v10294 = vld [vmem:[%s6] sm:$0x1]
        %v10296 = vlaneseq
        %v10297 = vshrl.u32 %v10296, 7
        %v10298 = vsub.s32 0, %v10297
        %v10299 = vrot.slane %v10294, %v10298
        %v10317 = vunpack.c.l.b16 %v10022
        %v10318 = vunpack.c.h.b16 %v10022
        %v10319 = vunpack.c.l.b16 %v10023
        %v10320 = vunpack.c.h.b16 %v10023
        %v10321 = vunpack.c.l.b16 %v10024
        %v10322 = vunpack.c.h.b16 %v10024
        %v10323 = vunpack.c.l.b16 %v10025
        %v10324 = vunpack.c.h.b16 %v10025
        %v10325 = vunpack.c.l.b16 %v10026
        %v10326 = vunpack.c.h.b16 %v10026
        %v10327 = vunpack.c.l.b16 %v10027
        %v10328 = vunpack.c.h.b16 %v10027
        %v10329 = vunpack.c.l.b16 %v10028
        %v10330 = vunpack.c.h.b16 %v10028
        %v10331 = vunpack.c.l.b16 %v10029
        %v10332 = vunpack.c.h.b16 %v10029
        %v10333 = vunpack.c.l.b16 %v10030
        %v10334 = vunpack.c.h.b16 %v10030
        %v10335 = vunpack.c.l.b16 %v10031
        %v10336 = vunpack.c.h.b16 %v10031
        %v10337 = vunpack.c.l.b16 %v10032
        %v10338 = vunpack.c.h.b16 %v10032
        %v10339 = vunpack.c.l.b16 %v10033
        %v10340 = vunpack.c.h.b16 %v10033
        %v10341 = vunpack.c.l.b16 %v10034
        %v10342 = vunpack.c.h.b16 %v10034
        %v10343 = vunpack.c.l.b16 %v10035
        %v10344 = vunpack.c.h.b16 %v10035
        %v10345 = vunpack.c.l.b16 %v10036
        %v10346 = vunpack.c.h.b16 %v10036
        %v10347 = vunpack.c.l.b16 %v10037
        %v10348 = vunpack.c.h.b16 %v10037
        %v10349 = vpack.i.b16 %v10319, %v10317
        %v10350 = vpack.i.b16 %v10320, %v10318
        %v10351 = vpack.i.b16 %v10323, %v10321
        %v10352 = vpack.i.b16 %v10324, %v10322
        %v10353 = vpack.i.b16 %v10327, %v10325
        %v10354 = vpack.i.b16 %v10328, %v10326
        %v10355 = vpack.i.b16 %v10331, %v10329
        %v10356 = vpack.i.b16 %v10332, %v10330
        %v10357 = vpack.i.b16 %v10335, %v10333
        %v10358 = vpack.i.b16 %v10336, %v10334
        %v10359 = vpack.i.b16 %v10339, %v10337
        %v10360 = vpack.i.b16 %v10340, %v10338
        %v10361 = vpack.i.b16 %v10343, %v10341
        %v10362 = vpack.i.b16 %v10344, %v10342
        %v10363 = vpack.i.b16 %v10347, %v10345
        %v10364 = vpack.i.b16 %v10348, %v10346
        %v10365 = vcombine.low %v10349, %v10351
        %v10366 = vcombine.high %v10349, %v10351
        %v10367 = vcombine.low %v10353, %v10355
        %v10368 = vcombine.high %v10353, %v10355
        %v10369 = vcombine.low %v10357, %v10359
        %v10370 = vcombine.high %v10357, %v10359
        %v10371 = vcombine.low %v10361, %v10363
        %v10372 = vcombine.high %v10361, %v10363
        %v10374 = vunpack.c.l.s4 1966171168
        %v10375 = vunpack.c.0.s8 %v10374
        %v10376 = vlaneseq
        %v10377 = vshrl.u32 %v10376, 7
        %v10378 = vsub.s32 %v10375, %v10377
        %v10379 = vrot.slane %v10365, %v10378
        %v10381 = vunpack.c.l.s4 1966171168
        %v10382 = vunpack.c.0.s8 %v10381
        %v10383 = vlaneseq
        %v10384 = vshrl.u32 %v10383, 7
        %v10385 = vsub.s32 %v10382, %v10384
        %v10386 = vrot.slane %v10366, %v10385
        %v10388 = vunpack.c.l.s4 1966171168
        %v10389 = vunpack.c.0.s8 %v10388
        %v10390 = vlaneseq
        %v10391 = vshrl.u32 %v10390, 7
        %v10392 = vsub.s32 %v10389, %v10391
        %v10393 = vrot.slane %v10367, %v10392
        %v10395 = vunpack.c.l.s4 1966171168
        %v10396 = vunpack.c.0.s8 %v10395
        %v10397 = vlaneseq
        %v10398 = vshrl.u32 %v10397, 7
        %v10399 = vsub.s32 %v10396, %v10398
        %v10400 = vrot.slane %v10368, %v10399
        %v10402 = vunpack.c.l.s4 1966171168
        %v10403 = vunpack.c.0.s8 %v10402
        %v10404 = vlaneseq
        %v10405 = vshrl.u32 %v10404, 7
        %v10406 = vsub.s32 %v10403, %v10405
        %v10407 = vrot.slane %v10369, %v10406
        %v10409 = vunpack.c.l.s4 1966171168
        %v10410 = vunpack.c.0.s8 %v10409
        %v10411 = vlaneseq
        %v10412 = vshrl.u32 %v10411, 7
        %v10413 = vsub.s32 %v10410, %v10412
        %v10414 = vrot.slane %v10370, %v10413
        %v10416 = vunpack.c.l.s4 1966171168
        %v10417 = vunpack.c.0.s8 %v10416
        %v10418 = vlaneseq
        %v10419 = vshrl.u32 %v10418, 7
        %v10420 = vsub.s32 %v10417, %v10419
        %v10421 = vrot.slane %v10371, %v10420
        %v10423 = vunpack.c.l.s4 1966171168
        %v10424 = vunpack.c.0.s8 %v10423
        %v10425 = vlaneseq
        %v10426 = vshrl.u32 %v10425, 7
        %v10427 = vsub.s32 %v10424, %v10426
        %v10428 = vrot.slane %v10372, %v10427
        %v10429 = vcombine.low %v10379, %v10393
        %v10430 = vcombine.high %v10379, %v10393
        %v10431 = vcombine.low %v10386, %v10400
        %v10432 = vcombine.high %v10386, %v10400
        %v10433 = vcombine.low %v10407, %v10421
        %v10434 = vcombine.high %v10407, %v10421
        %v10435 = vcombine.low %v10414, %v10428
        %v10436 = vcombine.high %v10414, %v10428
        %v10438 = vunpack.c.l.s4 1966171168
        %v10439 = vunpack.c.0.s8 %v10438
        %v10440 = vlaneseq
        %v10441 = vshrl.u32 %v10440, 7
        %v10442 = vsub.s32 %v10439, %v10441
        %v10443 = vrot.slane %v10429, %v10442
        %v10445 = vunpack.c.l.s4 1966171168
        %v10446 = vunpack.c.0.s8 %v10445
        %v10447 = vlaneseq
        %v10448 = vshrl.u32 %v10447, 7
        %v10449 = vsub.s32 %v10446, %v10448
        %v10450 = vrot.slane %v10431, %v10449
        %v10452 = vunpack.c.l.s4 1966171168
        %v10453 = vunpack.c.0.s8 %v10452
        %v10454 = vlaneseq
        %v10455 = vshrl.u32 %v10454, 7
        %v10456 = vsub.s32 %v10453, %v10455
        %v10457 = vrot.slane %v10430, %v10456
        %v10459 = vunpack.c.l.s4 1966171168
        %v10460 = vunpack.c.0.s8 %v10459
        %v10461 = vlaneseq
        %v10462 = vshrl.u32 %v10461, 7
        %v10463 = vsub.s32 %v10460, %v10462
        %v10464 = vrot.slane %v10432, %v10463
        %v10466 = vunpack.c.l.s4 1966171168
        %v10467 = vunpack.c.0.s8 %v10466
        %v10468 = vlaneseq
        %v10469 = vshrl.u32 %v10468, 7
        %v10470 = vsub.s32 %v10467, %v10469
        %v10471 = vrot.slane %v10433, %v10470
        %v10473 = vunpack.c.l.s4 1966171168
        %v10474 = vunpack.c.0.s8 %v10473
        %v10475 = vlaneseq
        %v10476 = vshrl.u32 %v10475, 7
        %v10477 = vsub.s32 %v10474, %v10476
        %v10478 = vrot.slane %v10435, %v10477
        %v10480 = vunpack.c.l.s4 1966171168
        %v10481 = vunpack.c.0.s8 %v10480
        %v10482 = vlaneseq
        %v10483 = vshrl.u32 %v10482, 7
        %v10484 = vsub.s32 %v10481, %v10483
        %v10485 = vrot.slane %v10434, %v10484
        %v10487 = vunpack.c.l.s4 1966171168
        %v10488 = vunpack.c.0.s8 %v10487
        %v10489 = vlaneseq
        %v10490 = vshrl.u32 %v10489, 7
        %v10491 = vsub.s32 %v10488, %v10490
        %v10492 = vrot.slane %v10436, %v10491
        %v10493 = vcombine.low %v10443, %v10471
        %v10494 = vcombine.high %v10443, %v10471
        %v10495 = vcombine.low %v10450, %v10478
        %v10496 = vcombine.high %v10450, %v10478
        %v10497 = vcombine.low %v10457, %v10485
        %v10498 = vcombine.high %v10457, %v10485
        %v10499 = vcombine.low %v10464, %v10492
        %v10500 = vcombine.high %v10464, %v10492
        %v10501 = vcombine.low %v10350, %v10352
        %v10502 = vcombine.high %v10350, %v10352
        %v10503 = vcombine.low %v10354, %v10356
        %v10504 = vcombine.high %v10354, %v10356
        %v10505 = vcombine.low %v10358, %v10360
        %v10506 = vcombine.high %v10358, %v10360
        %v10507 = vcombine.low %v10362, %v10364
        %v10508 = vcombine.high %v10362, %v10364
        %v10510 = vunpack.c.l.s4 1966171168
        %v10511 = vunpack.c.0.s8 %v10510
        %v10512 = vlaneseq
        %v10513 = vshrl.u32 %v10512, 7
        %v10514 = vsub.s32 %v10511, %v10513
        %v10515 = vrot.slane %v10501, %v10514
        %v10517 = vunpack.c.l.s4 1966171168
        %v10518 = vunpack.c.0.s8 %v10517
        %v10519 = vlaneseq
        %v10520 = vshrl.u32 %v10519, 7
        %v10521 = vsub.s32 %v10518, %v10520
        %v10522 = vrot.slane %v10502, %v10521
        %v10524 = vunpack.c.l.s4 1966171168
        %v10525 = vunpack.c.0.s8 %v10524
        %v10526 = vlaneseq
        %v10527 = vshrl.u32 %v10526, 7
        %v10528 = vsub.s32 %v10525, %v10527
        %v10529 = vrot.slane %v10503, %v10528
        %v10531 = vunpack.c.l.s4 1966171168
        %v10532 = vunpack.c.0.s8 %v10531
        %v10533 = vlaneseq
        %v10534 = vshrl.u32 %v10533, 7
        %v10535 = vsub.s32 %v10532, %v10534
        %v10536 = vrot.slane %v10504, %v10535
        %v10538 = vunpack.c.l.s4 1966171168
        %v10539 = vunpack.c.0.s8 %v10538
        %v10540 = vlaneseq
        %v10541 = vshrl.u32 %v10540, 7
        %v10542 = vsub.s32 %v10539, %v10541
        %v10543 = vrot.slane %v10505, %v10542
        %v10545 = vunpack.c.l.s4 1966171168
        %v10546 = vunpack.c.0.s8 %v10545
        %v10547 = vlaneseq
        %v10548 = vshrl.u32 %v10547, 7
        %v10549 = vsub.s32 %v10546, %v10548
        %v10550 = vrot.slane %v10506, %v10549
        %v10552 = vunpack.c.l.s4 1966171168
        %v10553 = vunpack.c.0.s8 %v10552
        %v10554 = vlaneseq
        %v10555 = vshrl.u32 %v10554, 7
        %v10556 = vsub.s32 %v10553, %v10555
        %v10557 = vrot.slane %v10507, %v10556
        %v10559 = vunpack.c.l.s4 1966171168
        %v10560 = vunpack.c.0.s8 %v10559
        %v10561 = vlaneseq
        %v10562 = vshrl.u32 %v10561, 7
        %v10563 = vsub.s32 %v10560, %v10562
        %v10564 = vrot.slane %v10508, %v10563
        %v10565 = vcombine.low %v10515, %v10529
        %v10566 = vcombine.high %v10515, %v10529
        %v10567 = vcombine.low %v10522, %v10536
        %v10568 = vcombine.high %v10522, %v10536
        %v10569 = vcombine.low %v10543, %v10557
        %v10570 = vcombine.high %v10543, %v10557
        %v10571 = vcombine.low %v10550, %v10564
        %v10572 = vcombine.high %v10550, %v10564
        %v10574 = vunpack.c.l.s4 1966171168
        %v10575 = vunpack.c.0.s8 %v10574
        %v10576 = vlaneseq
        %v10577 = vshrl.u32 %v10576, 7
        %v10578 = vsub.s32 %v10575, %v10577
        %v10579 = vrot.slane %v10565, %v10578
        %v10581 = vunpack.c.l.s4 1966171168
        %v10582 = vunpack.c.0.s8 %v10581
        %v10583 = vlaneseq
        %v10584 = vshrl.u32 %v10583, 7
        %v10585 = vsub.s32 %v10582, %v10584
        %v10586 = vrot.slane %v10567, %v10585
        %v10588 = vunpack.c.l.s4 1966171168
        %v10589 = vunpack.c.0.s8 %v10588
        %v10590 = vlaneseq
        %v10591 = vshrl.u32 %v10590, 7
        %v10592 = vsub.s32 %v10589, %v10591
        %v10593 = vrot.slane %v10566, %v10592
        %v10595 = vunpack.c.l.s4 1966171168
        %v10596 = vunpack.c.0.s8 %v10595
        %v10597 = vlaneseq
        %v10598 = vshrl.u32 %v10597, 7
        %v10599 = vsub.s32 %v10596, %v10598
        %v10600 = vrot.slane %v10568, %v10599
        %v10602 = vunpack.c.l.s4 1966171168
        %v10603 = vunpack.c.0.s8 %v10602
        %v10604 = vlaneseq
        %v10605 = vshrl.u32 %v10604, 7
        %v10606 = vsub.s32 %v10603, %v10605
        %v10607 = vrot.slane %v10569, %v10606
        %v10609 = vunpack.c.l.s4 1966171168
        %v10610 = vunpack.c.0.s8 %v10609
        %v10611 = vlaneseq
        %v10612 = vshrl.u32 %v10611, 7
        %v10613 = vsub.s32 %v10610, %v10612
        %v10614 = vrot.slane %v10571, %v10613
        %v10616 = vunpack.c.l.s4 1966171168
        %v10617 = vunpack.c.0.s8 %v10616
        %v10618 = vlaneseq
        %v10619 = vshrl.u32 %v10618, 7
        %v10620 = vsub.s32 %v10617, %v10619
        %v10621 = vrot.slane %v10570, %v10620
        %v10623 = vunpack.c.l.s4 1966171168
        %v10624 = vunpack.c.0.s8 %v10623
        %v10625 = vlaneseq
        %v10626 = vshrl.u32 %v10625, 7
        %v10627 = vsub.s32 %v10624, %v10626
        %v10628 = vrot.slane %v10572, %v10627
        %v10629 = vcombine.low %v10579, %v10607
        %v10630 = vcombine.high %v10579, %v10607
        %v10631 = vcombine.low %v10586, %v10614
        %v10632 = vcombine.high %v10586, %v10614
        %v10633 = vcombine.low %v10593, %v10621
        %v10634 = vcombine.high %v10593, %v10621
        %v10635 = vcombine.low %v10600, %v10628
        %v10636 = vcombine.high %v10600, %v10628
        %v10909 = vunpack.c.l.b16 %v10038
        %v10910 = vunpack.c.l.b16 %v10039
        %v10911 = vunpack.c.l.b16 %v10040
        %v10912 = vunpack.c.l.b16 %v10041
        %v10913 = vunpack.c.l.b16 %v10042
        %v10914 = vunpack.c.l.b16 %v10043
        %v10915 = vunpack.c.l.b16 %v10044
        %v10916 = vunpack.c.l.b16 %v10045
        %v10917 = vunpack.c.l.b16 %v10046
        %v10918 = vunpack.c.l.b16 %v10047
        %v10919 = vunpack.c.l.b16 %v10048
        %v10920 = vunpack.c.l.b16 %v10049
        %v10921 = vunpack.c.l.b16 %v10050
        %v10922 = vunpack.c.l.b16 %v10051
        %v10923 = vunpack.c.l.b16 %v10052
        %v10924 = vunpack.c.l.b16 %v10053
        %v10925 = vunpack.c.l.b16 %v10054
        %v10926 = vunpack.c.l.b16 %v10055
        %v10927 = vunpack.c.l.b16 %v10056
        %v10928 = vunpack.c.l.b16 %v10057
        %v10929 = vunpack.c.l.b16 %v10058
        %v10930 = vunpack.c.l.b16 %v10059
        %v10931 = vunpack.c.l.b16 %v10060
        %v10932 = vunpack.c.l.b16 %v10061
        %v10933 = vunpack.c.l.b16 %v10062
        %v10934 = vunpack.c.l.b16 %v10063
        %v10935 = vunpack.c.l.b16 %v10064
        %v10936 = vunpack.c.l.b16 %v10065
        %v10937 = vunpack.c.l.b16 %v10066
        %v10938 = vunpack.c.l.b16 %v10067
        %v10939 = vunpack.c.l.b16 %v10068
        %v10940 = vunpack.c.l.b16 %v10069
        %v10941 = vunpack.c.l.b16 %v10070
        %v10942 = vunpack.c.l.b16 %v10071
        %v10943 = vunpack.c.l.b16 %v10072
        %v10944 = vunpack.c.l.b16 %v10073
        %v10945 = vunpack.c.l.b16 %v10074
        %v10946 = vunpack.c.l.b16 %v10075
        %v10947 = vunpack.c.l.b16 %v10076
        %v10948 = vunpack.c.l.b16 %v10077
        %v10949 = vunpack.c.l.b16 %v10078
        %v10950 = vunpack.c.l.b16 %v10079
        %v10951 = vunpack.c.l.b16 %v10080
        %v10952 = vunpack.c.l.b16 %v10081
        %v10953 = vunpack.c.l.b16 %v10082
        %v10954 = vunpack.c.l.b16 %v10083
        %v10955 = vunpack.c.l.b16 %v10084
        %v10956 = vunpack.c.l.b16 %v10085
        %v10957 = vunpack.c.l.b16 %v10086
        %v10958 = vunpack.c.l.b16 %v10087
        %v10959 = vunpack.c.l.b16 %v10088
        %v10960 = vunpack.c.l.b16 %v10089
        %v10961 = vunpack.c.l.b16 %v10090
        %v10962 = vunpack.c.l.b16 %v10091
        %v10963 = vunpack.c.l.b16 %v10092
        %v10964 = vunpack.c.l.b16 %v10093
        %v10965 = vunpack.c.l.b16 %v10094
        %v10966 = vunpack.c.l.b16 %v10095
        %v10967 = vunpack.c.l.b16 %v10096
        %v10968 = vunpack.c.l.b16 %v10097
        %v10969 = vunpack.c.l.b16 %v10098
        %v10970 = vunpack.c.l.b16 %v10099
        %v10971 = vunpack.c.l.b16 %v10100
        %v10972 = vunpack.c.l.b16 %v10101
        %v10973 = vunpack.c.l.b16 %v10102
        %v10974 = vunpack.c.l.b16 %v10103
        %v10975 = vunpack.c.l.b16 %v10104
        %v10976 = vunpack.c.l.b16 %v10105
        %v10977 = vunpack.c.l.b16 %v10106
        %v10978 = vunpack.c.l.b16 %v10107
        %v10979 = vunpack.c.l.b16 %v10108
        %v10980 = vunpack.c.l.b16 %v10109
        %v10981 = vunpack.c.l.b16 %v10110
        %v10982 = vunpack.c.l.b16 %v10111
        %v10983 = vunpack.c.l.b16 %v10112
        %v10984 = vunpack.c.l.b16 %v10113
        %v10985 = vunpack.c.l.b16 %v10114
        %v10986 = vunpack.c.l.b16 %v10115
        %v10987 = vunpack.c.l.b16 %v10116
        %v10988 = vunpack.c.l.b16 %v10117
        %v10989 = vunpack.c.l.b16 %v10118
        %v10990 = vunpack.c.l.b16 %v10119
        %v10991 = vunpack.c.l.b16 %v10120
        %v10992 = vunpack.c.l.b16 %v10121
        %v10993 = vunpack.c.l.b16 %v10122
        %v10994 = vunpack.c.l.b16 %v10123
        %v10995 = vunpack.c.l.b16 %v10124
        %v10996 = vunpack.c.l.b16 %v10125
        %v10997 = vunpack.c.l.b16 %v10126
        %v10998 = vunpack.c.l.b16 %v10127
        %v10999 = vunpack.c.l.b16 %v10128
        %v11000 = vunpack.c.l.b16 %v10129
        %v11001 = vunpack.c.l.b16 %v10130
        %v11002 = vunpack.c.l.b16 %v10131
        %v11003 = vunpack.c.l.b16 %v10132
        %v11004 = vunpack.c.l.b16 %v10133
        %v11005 = vunpack.c.l.b16 %v10134
        %v11006 = vunpack.c.l.b16 %v10135
        %v11007 = vunpack.c.l.b16 %v10136
        %v11008 = vunpack.c.l.b16 %v10137
        %v11009 = vunpack.c.l.b16 %v10138
        %v11010 = vunpack.c.l.b16 %v10139
        %v11011 = vunpack.c.l.b16 %v10140
        %v11012 = vunpack.c.l.b16 %v10141
        %v11013 = vunpack.c.l.b16 %v10142
        %v11014 = vunpack.c.l.b16 %v10143
        %v11015 = vunpack.c.l.b16 %v10144
        %v11016 = vunpack.c.l.b16 %v10145
        %v11017 = vunpack.c.l.b16 %v10146
        %v11018 = vunpack.c.l.b16 %v10147
        %v11019 = vunpack.c.l.b16 %v10148
        %v11020 = vunpack.c.l.b16 %v10149
        %v11021 = vunpack.c.l.b16 %v10150
        %v11022 = vunpack.c.l.b16 %v10151
        %v11023 = vunpack.c.l.b16 %v10152
        %v11024 = vunpack.c.l.b16 %v10153
        %v11025 = vunpack.c.l.b16 %v10154
        %v11026 = vunpack.c.l.b16 %v10155
        %v11027 = vunpack.c.l.b16 %v10156
        %v11028 = vunpack.c.l.b16 %v10157
        %v11029 = vunpack.c.l.b16 %v10158
        %v11030 = vunpack.c.l.b16 %v10159
        %v11031 = vunpack.c.l.b16 %v10160
        %v11032 = vunpack.c.l.b16 %v10161
        %v11033 = vunpack.c.l.b16 %v10162
        %v11034 = vunpack.c.l.b16 %v10163
        %v11035 = vunpack.c.l.b16 %v10164
        %v11036 = vunpack.c.l.b16 %v10165
        %v11037 = vunpack.c.l.b16 %v10166
        %v11038 = vunpack.c.l.b16 %v10167
        %v11039 = vunpack.c.l.b16 %v10168
        %v11040 = vunpack.c.l.b16 %v10169
        %v11041 = vunpack.c.l.b16 %v10170
        %v11042 = vunpack.c.l.b16 %v10171
        %v11043 = vunpack.c.l.b16 %v10172
        %v11044 = vunpack.c.l.b16 %v10173
        %v11045 = vunpack.c.l.b16 %v10174
        %v11046 = vunpack.c.l.b16 %v10175
        %v11047 = vunpack.c.l.b16 %v10176
        %v11048 = vunpack.c.l.b16 %v10177
        %v11049 = vunpack.c.l.b16 %v10178
        %v11050 = vunpack.c.l.b16 %v10179
        %v11051 = vunpack.c.l.b16 %v10180
        %v11052 = vunpack.c.l.b16 %v10181
        %v11053 = vunpack.c.l.b16 %v10182
        %v11054 = vunpack.c.l.b16 %v10183
        %v11055 = vunpack.c.l.b16 %v10184
        %v11056 = vunpack.c.l.b16 %v10185
        %v11057 = vunpack.c.l.b16 %v10186
        %v11058 = vunpack.c.l.b16 %v10187
        %v11059 = vunpack.c.l.b16 %v10188
        %v11060 = vunpack.c.l.b16 %v10189
        %v11061 = vunpack.c.l.b16 %v10190
        %v11062 = vunpack.c.l.b16 %v10191
        %v11063 = vunpack.c.l.b16 %v10192
        %v11064 = vunpack.c.l.b16 %v10193
        %v11065 = vunpack.c.l.b16 %v10194
        %v11066 = vunpack.c.l.b16 %v10195
        %v11067 = vunpack.c.l.b16 %v10196
        %v11068 = vunpack.c.l.b16 %v10197
        %v11069 = vunpack.c.l.b16 %v10198
        %v11070 = vunpack.c.l.b16 %v10199
        %v11071 = vunpack.c.l.b16 %v10200
        %v11072 = vunpack.c.l.b16 %v10201
        %v11073 = vunpack.c.l.b16 %v10202
        %v11074 = vunpack.c.l.b16 %v10203
        %v11075 = vunpack.c.l.b16 %v10204
        %v11076 = vunpack.c.l.b16 %v10205
        %v11077 = vunpack.c.l.b16 %v10206
        %v11078 = vunpack.c.l.b16 %v10207
        %v11079 = vunpack.c.l.b16 %v10208
        %v11080 = vunpack.c.l.b16 %v10209
        %v11081 = vunpack.c.l.b16 %v10210
        %v11082 = vunpack.c.l.b16 %v10211
        %v11083 = vunpack.c.l.b16 %v10212
        %v11084 = vunpack.c.l.b16 %v10213
        %v11085 = vunpack.c.l.b16 %v10214
        %v11086 = vunpack.c.l.b16 %v10215
        %v11087 = vunpack.c.l.b16 %v10216
        %v11088 = vunpack.c.l.b16 %v10217
        %v11089 = vunpack.c.l.b16 %v10218
        %v11090 = vunpack.c.l.b16 %v10219
        %v11091 = vunpack.c.l.b16 %v10220
        %v11092 = vunpack.c.l.b16 %v10221
        %v11093 = vunpack.c.l.b16 %v10222
        %v11094 = vunpack.c.l.b16 %v10223
        %v11095 = vunpack.c.l.b16 %v10224
        %v11096 = vunpack.c.l.b16 %v10225
        %v11097 = vunpack.c.l.b16 %v10226
        %v11098 = vunpack.c.l.b16 %v10227
        %v11099 = vunpack.c.l.b16 %v10228
        %v11100 = vunpack.c.l.b16 %v10229
        %v11101 = vunpack.c.l.b16 %v10230
        %v11102 = vunpack.c.l.b16 %v10231
        %v11103 = vunpack.c.l.b16 %v10232
        %v11104 = vunpack.c.l.b16 %v10233
        %v11105 = vunpack.c.l.b16 %v10234
        %v11106 = vunpack.c.l.b16 %v10235
        %v11107 = vunpack.c.l.b16 %v10236
        %v11108 = vunpack.c.l.b16 %v10237
        %v11109 = vunpack.c.l.b16 %v10238
        %v11110 = vunpack.c.l.b16 %v10239
        %v11111 = vunpack.c.l.b16 %v10240
        %v11112 = vunpack.c.l.b16 %v10241
        %v11113 = vunpack.c.l.b16 %v10242
        %v11114 = vunpack.c.l.b16 %v10243
        %v11115 = vunpack.c.l.b16 %v10244
        %v11116 = vunpack.c.l.b16 %v10245
        %v11117 = vunpack.c.l.b16 %v10246
        %v11118 = vunpack.c.l.b16 %v10247
        %v11119 = vunpack.c.l.b16 %v10248
        %v11120 = vunpack.c.l.b16 %v10249
        %v11121 = vunpack.c.l.b16 %v10250
        %v11122 = vunpack.c.l.b16 %v10251
        %v11123 = vunpack.c.l.b16 %v10252
        %v11124 = vunpack.c.l.b16 %v10253
        %v11125 = vunpack.c.l.b16 %v10254
        %v11126 = vunpack.c.l.b16 %v10255
        %v11127 = vunpack.c.l.b16 %v10256
        %v11128 = vunpack.c.l.b16 %v10257
        %v11129 = vunpack.c.l.b16 %v10258
        %v11130 = vunpack.c.l.b16 %v10259
        %v11131 = vunpack.c.l.b16 %v10260
        %v11132 = vunpack.c.l.b16 %v10261
        %v11133 = vunpack.c.l.b16 %v10262
        %v11134 = vunpack.c.l.b16 %v10263
        %v11135 = vunpack.c.l.b16 %v10264
        %v11136 = vunpack.c.l.b16 %v10265
        %v11137 = vunpack.c.l.b16 %v10266
        %v11138 = vunpack.c.l.b16 %v10267
        %v11139 = vunpack.c.l.b16 %v10268
        %v11140 = vunpack.c.l.b16 %v10269
        %v11141 = vunpack.c.l.b16 %v10270
        %v11142 = vunpack.c.l.b16 %v10271
        %v11143 = vunpack.c.l.b16 %v10272
        %v11144 = vunpack.c.l.b16 %v10273
        %v11145 = vunpack.c.l.b16 %v10274
        %v11146 = vunpack.c.l.b16 %v10275
        %v11147 = vunpack.c.l.b16 %v10276
        %v11148 = vunpack.c.l.b16 %v10277
        %v11149 = vunpack.c.l.b16 %v10278
        %v11150 = vunpack.c.l.b16 %v10279
        %v11151 = vunpack.c.l.b16 %v10280
        %v11152 = vunpack.c.l.b16 %v10281
        %v11153 = vunpack.c.l.b16 %v10282
        %v11154 = vunpack.c.l.b16 %v10283
        %v11155 = vunpack.c.l.b16 %v10284
        %v11156 = vunpack.c.l.b16 %v10285
        %v11157 = vunpack.c.l.b16 %v10286
        %v11158 = vunpack.c.l.b16 %v10287
        %v11159 = vunpack.c.l.b16 %v10288
        %v11160 = vunpack.c.l.b16 %v10289
        %v11161 = vunpack.c.l.b16 %v10290
        %v11162 = vunpack.c.l.b16 %v10291
        %v11163 = vunpack.c.l.b16 %v10292
        %v11164 = vunpack.c.l.b16 %v10293
        %v11165 = vpack.c.b16 %v10910, %v10909
        %v11166 = vpack.c.b16 %v10912, %v10911
        %v11167 = vpack.c.b16 %v10914, %v10913
        %v11168 = vpack.c.b16 %v10916, %v10915
        %v11169 = vpack.c.b16 %v10918, %v10917
        %v11170 = vpack.c.b16 %v10920, %v10919
        %v11171 = vpack.c.b16 %v10922, %v10921
        %v11172 = vpack.c.b16 %v10924, %v10923
        %v11173 = vpack.c.b16 %v10926, %v10925
        %v11174 = vpack.c.b16 %v10928, %v10927
        %v11175 = vpack.c.b16 %v10930, %v10929
        %v11176 = vpack.c.b16 %v10932, %v10931
        %v11177 = vpack.c.b16 %v10934, %v10933
        %v11178 = vpack.c.b16 %v10936, %v10935
        %v11179 = vpack.c.b16 %v10938, %v10937
        %v11180 = vpack.c.b16 %v10940, %v10939
        %v11181 = vpack.c.b16 %v10942, %v10941
        %v11182 = vpack.c.b16 %v10944, %v10943
        %v11183 = vpack.c.b16 %v10946, %v10945
        %v11184 = vpack.c.b16 %v10948, %v10947
        %v11185 = vpack.c.b16 %v10950, %v10949
        %v11186 = vpack.c.b16 %v10952, %v10951
        %v11187 = vpack.c.b16 %v10954, %v10953
        %v11188 = vpack.c.b16 %v10956, %v10955
        %v11189 = vpack.c.b16 %v10958, %v10957
        %v11190 = vpack.c.b16 %v10960, %v10959
        %v11191 = vpack.c.b16 %v10962, %v10961
        %v11192 = vpack.c.b16 %v10964, %v10963
        %v11193 = vpack.c.b16 %v10966, %v10965
        %v11194 = vpack.c.b16 %v10968, %v10967
        %v11195 = vpack.c.b16 %v10970, %v10969
        %v11196 = vpack.c.b16 %v10972, %v10971
        %v11197 = vpack.c.b16 %v10974, %v10973
        %v11198 = vpack.c.b16 %v10976, %v10975
        %v11199 = vpack.c.b16 %v10978, %v10977
        %v11200 = vpack.c.b16 %v10980, %v10979
        %v11201 = vpack.c.b16 %v10982, %v10981
        %v11202 = vpack.c.b16 %v10984, %v10983
        %v11203 = vpack.c.b16 %v10986, %v10985
        %v11204 = vpack.c.b16 %v10988, %v10987
        %v11205 = vpack.c.b16 %v10990, %v10989
        %v11206 = vpack.c.b16 %v10992, %v10991
        %v11207 = vpack.c.b16 %v10994, %v10993
        %v11208 = vpack.c.b16 %v10996, %v10995
        %v11209 = vpack.c.b16 %v10998, %v10997
        %v11210 = vpack.c.b16 %v11000, %v10999
        %v11211 = vpack.c.b16 %v11002, %v11001
        %v11212 = vpack.c.b16 %v11004, %v11003
        %v11213 = vpack.c.b16 %v11006, %v11005
        %v11214 = vpack.c.b16 %v11008, %v11007
        %v11215 = vpack.c.b16 %v11010, %v11009
        %v11216 = vpack.c.b16 %v11012, %v11011
        %v11217 = vpack.c.b16 %v11014, %v11013
        %v11218 = vpack.c.b16 %v11016, %v11015
        %v11219 = vpack.c.b16 %v11018, %v11017
        %v11220 = vpack.c.b16 %v11020, %v11019
        %v11221 = vpack.c.b16 %v11022, %v11021
        %v11222 = vpack.c.b16 %v11024, %v11023
        %v11223 = vpack.c.b16 %v11026, %v11025
        %v11224 = vpack.c.b16 %v11028, %v11027
        %v11225 = vpack.c.b16 %v11030, %v11029
        %v11226 = vpack.c.b16 %v11032, %v11031
        %v11227 = vpack.c.b16 %v11034, %v11033
        %v11228 = vpack.c.b16 %v11036, %v11035
        %v11229 = vpack.c.b16 %v11038, %v11037
        %v11230 = vpack.c.b16 %v11040, %v11039
        %v11231 = vpack.c.b16 %v11042, %v11041
        %v11232 = vpack.c.b16 %v11044, %v11043
        %v11233 = vpack.c.b16 %v11046, %v11045
        %v11234 = vpack.c.b16 %v11048, %v11047
        %v11235 = vpack.c.b16 %v11050, %v11049
        %v11236 = vpack.c.b16 %v11052, %v11051
        %v11237 = vpack.c.b16 %v11054, %v11053
        %v11238 = vpack.c.b16 %v11056, %v11055
        %v11239 = vpack.c.b16 %v11058, %v11057
        %v11240 = vpack.c.b16 %v11060, %v11059
        %v11241 = vpack.c.b16 %v11062, %v11061
        %v11242 = vpack.c.b16 %v11064, %v11063
        %v11243 = vpack.c.b16 %v11066, %v11065
        %v11244 = vpack.c.b16 %v11068, %v11067
        %v11245 = vpack.c.b16 %v11070, %v11069
        %v11246 = vpack.c.b16 %v11072, %v11071
        %v11247 = vpack.c.b16 %v11074, %v11073
        %v11248 = vpack.c.b16 %v11076, %v11075
        %v11249 = vpack.c.b16 %v11078, %v11077
        %v11250 = vpack.c.b16 %v11080, %v11079
        %v11251 = vpack.c.b16 %v11082, %v11081
        %v11252 = vpack.c.b16 %v11084, %v11083
        %v11253 = vpack.c.b16 %v11086, %v11085
        %v11254 = vpack.c.b16 %v11088, %v11087
        %v11255 = vpack.c.b16 %v11090, %v11089
        %v11256 = vpack.c.b16 %v11092, %v11091
        %v11257 = vpack.c.b16 %v11094, %v11093
        %v11258 = vpack.c.b16 %v11096, %v11095
        %v11259 = vpack.c.b16 %v11098, %v11097
        %v11260 = vpack.c.b16 %v11100, %v11099
        %v11261 = vpack.c.b16 %v11102, %v11101
        %v11262 = vpack.c.b16 %v11104, %v11103
        %v11263 = vpack.c.b16 %v11106, %v11105
        %v11264 = vpack.c.b16 %v11108, %v11107
        %v11265 = vpack.c.b16 %v11110, %v11109
        %v11266 = vpack.c.b16 %v11112, %v11111
        %v11267 = vpack.c.b16 %v11114, %v11113
        %v11268 = vpack.c.b16 %v11116, %v11115
        %v11269 = vpack.c.b16 %v11118, %v11117
        %v11270 = vpack.c.b16 %v11120, %v11119
        %v11271 = vpack.c.b16 %v11122, %v11121
        %v11272 = vpack.c.b16 %v11124, %v11123
        %v11273 = vpack.c.b16 %v11126, %v11125
        %v11274 = vpack.c.b16 %v11128, %v11127
        %v11275 = vpack.c.b16 %v11130, %v11129
        %v11276 = vpack.c.b16 %v11132, %v11131
        %v11277 = vpack.c.b16 %v11134, %v11133
        %v11278 = vpack.c.b16 %v11136, %v11135
        %v11279 = vpack.c.b16 %v11138, %v11137
        %v11280 = vpack.c.b16 %v11140, %v11139
        %v11281 = vpack.c.b16 %v11142, %v11141
        %v11282 = vpack.c.b16 %v11144, %v11143
        %v11283 = vpack.c.b16 %v11146, %v11145
        %v11284 = vpack.c.b16 %v11148, %v11147
        %v11285 = vpack.c.b16 %v11150, %v11149
        %v11286 = vpack.c.b16 %v11152, %v11151
        %v11287 = vpack.c.b16 %v11154, %v11153
        %v11288 = vpack.c.b16 %v11156, %v11155
        %v11289 = vpack.c.b16 %v11158, %v11157
        %v11290 = vpack.c.b16 %v11160, %v11159
        %v11291 = vpack.c.b16 %v11162, %v11161
        %v11292 = vpack.c.b16 %v11164, %v11163
        %11421 = vmatprep.subr.bf16.mxu0 0
        %11422 = vmatpush1.bf16.msra.mxu0 %v11172
        %11423 = vmatprep.subr.bf16.mxu0 0
        %11424 = vmatpush1.bf16.msra.mxu0 %v11171
        %11425 = vmatprep.subr.bf16.mxu0 0
        %11426 = vmatpush1.bf16.msra.mxu0 %v11170
        %11427 = vmatprep.subr.bf16.mxu0 0
        %11428 = vmatpush1.bf16.msra.mxu0 %v11169
        %11429 = vmatprep.subr.bf16.mxu0 0
        %11430 = vmatpush1.bf16.msra.mxu0 %v11168
        %11431 = vmatprep.subr.bf16.mxu0 0
        %11432 = vmatpush1.bf16.msra.mxu0 %v11167
        %11433 = vmatprep.subr.bf16.mxu0 0
        %11434 = vmatpush1.bf16.msra.mxu0 %v11166
        %11435 = vmatprep.subr.bf16.mxu0 0
        %11436 = vmatpush1.bf16.msra.mxu0 %v11165
        %11437 = vmatprep.subr.bf16.mxu0 0
        %11438 = vmatpush2.bf16.msra.mxu0 %v11180
        %11439 = vmatprep.subr.bf16.mxu0 0
        %11440 = vmatpush2.bf16.msra.mxu0 %v11179
        %11441 = vmatprep.subr.bf16.mxu0 0
        %11442 = vmatpush2.bf16.msra.mxu0 %v11178
        %11443 = vmatprep.subr.bf16.mxu0 0
        %11444 = vmatpush2.bf16.msra.mxu0 %v11177
        %11445 = vmatprep.subr.bf16.mxu0 0
        %11446 = vmatpush2.bf16.msra.mxu0 %v11176
        %11447 = vmatprep.subr.bf16.mxu0 0
        %11448 = vmatpush2.bf16.msra.mxu0 %v11175
        %11449 = vmatprep.subr.bf16.mxu0 0
        %11450 = vmatpush2.bf16.msra.mxu0 %v11174
        %11451 = vmatprep.subr.bf16.mxu0 0
        %11452 = vmatpush2.bf16.msra.mxu0 %v11173
        %11453 = vmatprep.mubr.bf16.mxu0 %v10497
        %11454 = vmatmul.mubr.bf16.gmra.mxu0 %v10493
        %v11455 = vpop.f32.mrf.mxu0
        %v11456 = vadd.f32 %v10299, %v11455
        %v11457 = vpop.f32.mrf.mxu0
        %v11458 = vpop.f32.mrf.mxu0
        %v11459 = vadd.f32 %v10299, %v11458
        %v11460 = vpop.f32.mrf.mxu0
        %11461 = vdwg.mxu0
        %11462 = vmatprep.subr.bf16.mxu0 0
        %11463 = vmatpush1.bf16.msra.mxu0 %v11188
        %11464 = vmatprep.subr.bf16.mxu0 0
        %11465 = vmatpush1.bf16.msra.mxu0 %v11187
        %11466 = vmatprep.subr.bf16.mxu0 0
        %11467 = vmatpush1.bf16.msra.mxu0 %v11186
        %11468 = vmatprep.subr.bf16.mxu0 0
        %11469 = vmatpush1.bf16.msra.mxu0 %v11185
        %11470 = vmatprep.subr.bf16.mxu0 0
        %11471 = vmatpush1.bf16.msra.mxu0 %v11184
        %11472 = vmatprep.subr.bf16.mxu0 0
        %11473 = vmatpush1.bf16.msra.mxu0 %v11183
        %11474 = vmatprep.subr.bf16.mxu0 0
        %11475 = vmatpush1.bf16.msra.mxu0 %v11182
        %11476 = vmatprep.subr.bf16.mxu0 0
        %11477 = vmatpush1.bf16.msra.mxu0 %v11181
        %11478 = vmatprep.subr.bf16.mxu0 0
        %11479 = vmatpush2.bf16.msra.mxu0 %v11196
        %11480 = vmatprep.subr.bf16.mxu0 0
        %11481 = vmatpush2.bf16.msra.mxu0 %v11195
        %11482 = vmatprep.subr.bf16.mxu0 0
        %11483 = vmatpush2.bf16.msra.mxu0 %v11194
        %11484 = vmatprep.subr.bf16.mxu0 0
        %11485 = vmatpush2.bf16.msra.mxu0 %v11193
        %11486 = vmatprep.subr.bf16.mxu0 0
        %11487 = vmatpush2.bf16.msra.mxu0 %v11192
        %11488 = vmatprep.subr.bf16.mxu0 0
        %11489 = vmatpush2.bf16.msra.mxu0 %v11191
        %11490 = vmatprep.subr.bf16.mxu0 0
        %11491 = vmatpush2.bf16.msra.mxu0 %v11190
        %11492 = vmatprep.subr.bf16.mxu0 0
        %11493 = vmatpush2.bf16.msra.mxu0 %v11189
        %11494 = vmatprep.mubr.bf16.mxu0 %v10498
        %11495 = vmatmul.mubr.bf16.gmra.mxu0 %v10494
        %v11496 = vpop.f32.mrf.mxu0
        %v11497 = vadd.f32 %v11456, %v11496
        %v11498 = vpop.f32.mrf.mxu0
        %v11499 = vpop.f32.mrf.mxu0
        %v11500 = vadd.f32 %v11459, %v11499
        %v11501 = vpop.f32.mrf.mxu0
        %11502 = vdwg.mxu0
        %11503 = vmatprep.subr.bf16.mxu0 0
        %11504 = vmatpush1.bf16.msra.mxu0 %v11204
        %11505 = vmatprep.subr.bf16.mxu0 0
        %11506 = vmatpush1.bf16.msra.mxu0 %v11203
        %11507 = vmatprep.subr.bf16.mxu0 0
        %11508 = vmatpush1.bf16.msra.mxu0 %v11202
        %11509 = vmatprep.subr.bf16.mxu0 0
        %11510 = vmatpush1.bf16.msra.mxu0 %v11201
        %11511 = vmatprep.subr.bf16.mxu0 0
        %11512 = vmatpush1.bf16.msra.mxu0 %v11200
        %11513 = vmatprep.subr.bf16.mxu0 0
        %11514 = vmatpush1.bf16.msra.mxu0 %v11199
        %11515 = vmatprep.subr.bf16.mxu0 0
        %11516 = vmatpush1.bf16.msra.mxu0 %v11198
        %11517 = vmatprep.subr.bf16.mxu0 0
        %11518 = vmatpush1.bf16.msra.mxu0 %v11197
        %11519 = vmatprep.subr.bf16.mxu0 0
        %11520 = vmatpush2.bf16.msra.mxu0 %v11212
        %11521 = vmatprep.subr.bf16.mxu0 0
        %11522 = vmatpush2.bf16.msra.mxu0 %v11211
        %11523 = vmatprep.subr.bf16.mxu0 0
        %11524 = vmatpush2.bf16.msra.mxu0 %v11210
        %11525 = vmatprep.subr.bf16.mxu0 0
        %11526 = vmatpush2.bf16.msra.mxu0 %v11209
        %11527 = vmatprep.subr.bf16.mxu0 0
        %11528 = vmatpush2.bf16.msra.mxu0 %v11208
        %11529 = vmatprep.subr.bf16.mxu0 0
        %11530 = vmatpush2.bf16.msra.mxu0 %v11207
        %11531 = vmatprep.subr.bf16.mxu0 0
        %11532 = vmatpush2.bf16.msra.mxu0 %v11206
        %11533 = vmatprep.subr.bf16.mxu0 0
        %11534 = vmatpush2.bf16.msra.mxu0 %v11205
        %11535 = vmatprep.mubr.bf16.mxu0 %v10499
        %11536 = vmatmul.mubr.bf16.gmra.mxu0 %v10495
        %v11537 = vpop.f32.mrf.mxu0
        %v11538 = vadd.f32 %v11497, %v11537
        %v11539 = vpop.f32.mrf.mxu0
        %v11540 = vpop.f32.mrf.mxu0
        %v11541 = vadd.f32 %v11500, %v11540
        %v11542 = vpop.f32.mrf.mxu0
        %11543 = vdwg.mxu0
        %11544 = vmatprep.subr.bf16.mxu0 0
        %11545 = vmatpush1.bf16.msra.mxu0 %v11220
        %11546 = vmatprep.subr.bf16.mxu0 0
        %11547 = vmatpush1.bf16.msra.mxu0 %v11219
        %11548 = vmatprep.subr.bf16.mxu0 0
        %11549 = vmatpush1.bf16.msra.mxu0 %v11218
        %11550 = vmatprep.subr.bf16.mxu0 0
        %11551 = vmatpush1.bf16.msra.mxu0 %v11217
        %11552 = vmatprep.subr.bf16.mxu0 0
        %11553 = vmatpush1.bf16.msra.mxu0 %v11216
        %11554 = vmatprep.subr.bf16.mxu0 0
        %11555 = vmatpush1.bf16.msra.mxu0 %v11215
        %11556 = vmatprep.subr.bf16.mxu0 0
        %11557 = vmatpush1.bf16.msra.mxu0 %v11214
        %11558 = vmatprep.subr.bf16.mxu0 0
        %11559 = vmatpush1.bf16.msra.mxu0 %v11213
        %11560 = vmatprep.subr.bf16.mxu0 0
        %11561 = vmatpush2.bf16.msra.mxu0 %v11228
        %11562 = vmatprep.subr.bf16.mxu0 0
        %11563 = vmatpush2.bf16.msra.mxu0 %v11227
        %11564 = vmatprep.subr.bf16.mxu0 0
        %11565 = vmatpush2.bf16.msra.mxu0 %v11226
        %11566 = vmatprep.subr.bf16.mxu0 0
        %11567 = vmatpush2.bf16.msra.mxu0 %v11225
        %11568 = vmatprep.subr.bf16.mxu0 0
        %11569 = vmatpush2.bf16.msra.mxu0 %v11224
        %11570 = vmatprep.subr.bf16.mxu0 0
        %11571 = vmatpush2.bf16.msra.mxu0 %v11223
        %11572 = vmatprep.subr.bf16.mxu0 0
        %11573 = vmatpush2.bf16.msra.mxu0 %v11222
        %11574 = vmatprep.subr.bf16.mxu0 0
        %11575 = vmatpush2.bf16.msra.mxu0 %v11221
        %11576 = vmatprep.mubr.bf16.mxu0 %v10500
        %11577 = vmatmul.mubr.bf16.gmra.mxu0 %v10496
        %v11578 = vpop.f32.mrf.mxu0
        %v11579 = vadd.f32 %v11538, %v11578
        %v11580 = vpop.f32.mrf.mxu0
        %v11581 = vpop.f32.mrf.mxu0
        %v11582 = vadd.f32 %v11541, %v11581
        %v11583 = vpop.f32.mrf.mxu0
        %11584 = vdwg.mxu0
        %11585 = vmatprep.subr.bf16.mxu0 0
        %11586 = vmatpush1.bf16.msra.mxu0 %v11236
        %11587 = vmatprep.subr.bf16.mxu0 0
        %11588 = vmatpush1.bf16.msra.mxu0 %v11235
        %11589 = vmatprep.subr.bf16.mxu0 0
        %11590 = vmatpush1.bf16.msra.mxu0 %v11234
        %11591 = vmatprep.subr.bf16.mxu0 0
        %11592 = vmatpush1.bf16.msra.mxu0 %v11233
        %11593 = vmatprep.subr.bf16.mxu0 0
        %11594 = vmatpush1.bf16.msra.mxu0 %v11232
        %11595 = vmatprep.subr.bf16.mxu0 0
        %11596 = vmatpush1.bf16.msra.mxu0 %v11231
        %11597 = vmatprep.subr.bf16.mxu0 0
        %11598 = vmatpush1.bf16.msra.mxu0 %v11230
        %11599 = vmatprep.subr.bf16.mxu0 0
        %11600 = vmatpush1.bf16.msra.mxu0 %v11229
        %11601 = vmatprep.subr.bf16.mxu0 0
        %11602 = vmatpush2.bf16.msra.mxu0 %v11244
        %11603 = vmatprep.subr.bf16.mxu0 0
        %11604 = vmatpush2.bf16.msra.mxu0 %v11243
        %11605 = vmatprep.subr.bf16.mxu0 0
        %11606 = vmatpush2.bf16.msra.mxu0 %v11242
        %11607 = vmatprep.subr.bf16.mxu0 0
        %11608 = vmatpush2.bf16.msra.mxu0 %v11241
        %11609 = vmatprep.subr.bf16.mxu0 0
        %11610 = vmatpush2.bf16.msra.mxu0 %v11240
        %11611 = vmatprep.subr.bf16.mxu0 0
        %11612 = vmatpush2.bf16.msra.mxu0 %v11239
        %11613 = vmatprep.subr.bf16.mxu0 0
        %11614 = vmatpush2.bf16.msra.mxu0 %v11238
        %11615 = vmatprep.subr.bf16.mxu0 0
        %11616 = vmatpush2.bf16.msra.mxu0 %v11237
        %11617 = vmatprep.mubr.bf16.mxu0 %v10633
        %11618 = vmatmul.mubr.bf16.gmra.mxu0 %v10629
        %v11619 = vpop.f32.mrf.mxu0
        %v11620 = vadd.f32 %v11579, %v11619
        %v11621 = vpop.f32.mrf.mxu0
        %v11622 = vpop.f32.mrf.mxu0
        %v11623 = vadd.f32 %v11582, %v11622
        %v11624 = vpop.f32.mrf.mxu0
        %11625 = vdwg.mxu0
        %11626 = vmatprep.subr.bf16.mxu0 0
        %11627 = vmatpush1.bf16.msra.mxu0 %v11252
        %11628 = vmatprep.subr.bf16.mxu0 0
        %11629 = vmatpush1.bf16.msra.mxu0 %v11251
        %11630 = vmatprep.subr.bf16.mxu0 0
        %11631 = vmatpush1.bf16.msra.mxu0 %v11250
        %11632 = vmatprep.subr.bf16.mxu0 0
        %11633 = vmatpush1.bf16.msra.mxu0 %v11249
        %11634 = vmatprep.subr.bf16.mxu0 0
        %11635 = vmatpush1.bf16.msra.mxu0 %v11248
        %11636 = vmatprep.subr.bf16.mxu0 0
        %11637 = vmatpush1.bf16.msra.mxu0 %v11247
        %11638 = vmatprep.subr.bf16.mxu0 0
        %11639 = vmatpush1.bf16.msra.mxu0 %v11246
        %11640 = vmatprep.subr.bf16.mxu0 0
        %11641 = vmatpush1.bf16.msra.mxu0 %v11245
        %11642 = vmatprep.subr.bf16.mxu0 0
        %11643 = vmatpush2.bf16.msra.mxu0 %v11260
        %11644 = vmatprep.subr.bf16.mxu0 0
        %11645 = vmatpush2.bf16.msra.mxu0 %v11259
        %11646 = vmatprep.subr.bf16.mxu0 0
        %11647 = vmatpush2.bf16.msra.mxu0 %v11258
        %11648 = vmatprep.subr.bf16.mxu0 0
        %11649 = vmatpush2.bf16.msra.mxu0 %v11257
        %11650 = vmatprep.subr.bf16.mxu0 0
        %11651 = vmatpush2.bf16.msra.mxu0 %v11256
        %11652 = vmatprep.subr.bf16.mxu0 0
        %11653 = vmatpush2.bf16.msra.mxu0 %v11255
        %11654 = vmatprep.subr.bf16.mxu0 0
        %11655 = vmatpush2.bf16.msra.mxu0 %v11254
        %11656 = vmatprep.subr.bf16.mxu0 0
        %11657 = vmatpush2.bf16.msra.mxu0 %v11253
        %11658 = vmatprep.mubr.bf16.mxu0 %v10634
        %11659 = vmatmul.mubr.bf16.gmra.mxu0 %v10630
        %v11660 = vpop.f32.mrf.mxu0
        %v11661 = vadd.f32 %v11620, %v11660
        %v11662 = vpop.f32.mrf.mxu0
        %v11663 = vpop.f32.mrf.mxu0
        %v11664 = vadd.f32 %v11623, %v11663
        %v11665 = vpop.f32.mrf.mxu0
        %11666 = vdwg.mxu0
        %11667 = vmatprep.subr.bf16.mxu0 0
        %11668 = vmatpush1.bf16.msra.mxu0 %v11268
        %11669 = vmatprep.subr.bf16.mxu0 0
        %11670 = vmatpush1.bf16.msra.mxu0 %v11267
        %11671 = vmatprep.subr.bf16.mxu0 0
        %11672 = vmatpush1.bf16.msra.mxu0 %v11266
        %11673 = vmatprep.subr.bf16.mxu0 0
        %11674 = vmatpush1.bf16.msra.mxu0 %v11265
        %11675 = vmatprep.subr.bf16.mxu0 0
        %11676 = vmatpush1.bf16.msra.mxu0 %v11264
        %11677 = vmatprep.subr.bf16.mxu0 0
        %11678 = vmatpush1.bf16.msra.mxu0 %v11263
        %11679 = vmatprep.subr.bf16.mxu0 0
        %11680 = vmatpush1.bf16.msra.mxu0 %v11262
        %11681 = vmatprep.subr.bf16.mxu0 0
        %11682 = vmatpush1.bf16.msra.mxu0 %v11261
        %11683 = vmatprep.subr.bf16.mxu0 0
        %11684 = vmatpush2.bf16.msra.mxu0 %v11276
        %11685 = vmatprep.subr.bf16.mxu0 0
        %11686 = vmatpush2.bf16.msra.mxu0 %v11275
        %11687 = vmatprep.subr.bf16.mxu0 0
        %11688 = vmatpush2.bf16.msra.mxu0 %v11274
        %11689 = vmatprep.subr.bf16.mxu0 0
        %11690 = vmatpush2.bf16.msra.mxu0 %v11273
        %11691 = vmatprep.subr.bf16.mxu0 0
        %11692 = vmatpush2.bf16.msra.mxu0 %v11272
        %11693 = vmatprep.subr.bf16.mxu0 0
        %11694 = vmatpush2.bf16.msra.mxu0 %v11271
        %11695 = vmatprep.subr.bf16.mxu0 0
        %11696 = vmatpush2.bf16.msra.mxu0 %v11270
        %11697 = vmatprep.subr.bf16.mxu0 0
        %11698 = vmatpush2.bf16.msra.mxu0 %v11269
        %11699 = vmatprep.mubr.bf16.mxu0 %v10635
        %11700 = vmatmul.mubr.bf16.gmra.mxu0 %v10631
        %v11701 = vpop.f32.mrf.mxu0
        %v11702 = vadd.f32 %v11661, %v11701
        %v11703 = vpop.f32.mrf.mxu0
        %v11704 = vpop.f32.mrf.mxu0
        %v11705 = vadd.f32 %v11664, %v11704
        %v11706 = vpop.f32.mrf.mxu0
        %11707 = vdwg.mxu0
        %11708 = vmatprep.subr.bf16.mxu0 0
        %11709 = vmatpush1.bf16.msra.mxu0 %v11284
        %11710 = vmatprep.subr.bf16.mxu0 0
        %11711 = vmatpush1.bf16.msra.mxu0 %v11283
        %11712 = vmatprep.subr.bf16.mxu0 0
        %11713 = vmatpush1.bf16.msra.mxu0 %v11282
        %11714 = vmatprep.subr.bf16.mxu0 0
        %11715 = vmatpush1.bf16.msra.mxu0 %v11281
        %11716 = vmatprep.subr.bf16.mxu0 0
        %11717 = vmatpush1.bf16.msra.mxu0 %v11280
        %11718 = vmatprep.subr.bf16.mxu0 0
        %11719 = vmatpush1.bf16.msra.mxu0 %v11279
        %11720 = vmatprep.subr.bf16.mxu0 0
        %11721 = vmatpush1.bf16.msra.mxu0 %v11278
        %11722 = vmatprep.subr.bf16.mxu0 0
        %11723 = vmatpush1.bf16.msra.mxu0 %v11277
        %11724 = vmatprep.subr.bf16.mxu0 0
        %11725 = vmatpush2.bf16.msra.mxu0 %v11292
        %11726 = vmatprep.subr.bf16.mxu0 0
        %11727 = vmatpush2.bf16.msra.mxu0 %v11291
        %11728 = vmatprep.subr.bf16.mxu0 0
        %11729 = vmatpush2.bf16.msra.mxu0 %v11290
        %11730 = vmatprep.subr.bf16.mxu0 0
        %11731 = vmatpush2.bf16.msra.mxu0 %v11289
        %11732 = vmatprep.subr.bf16.mxu0 0
        %11733 = vmatpush2.bf16.msra.mxu0 %v11288
        %11734 = vmatprep.subr.bf16.mxu0 0
        %11735 = vmatpush2.bf16.msra.mxu0 %v11287
        %11736 = vmatprep.subr.bf16.mxu0 0
        %11737 = vmatpush2.bf16.msra.mxu0 %v11286
        %11738 = vmatprep.subr.bf16.mxu0 0
        %11739 = vmatpush2.bf16.msra.mxu0 %v11285
        %11740 = vmatprep.mubr.bf16.mxu0 %v10636
        %11741 = vmatmul.mubr.bf16.gmra.mxu0 %v10632
        %v11742 = vpop.f32.mrf.mxu0
        %v11743 = vadd.f32 %v11702, %v11742
        %v11744 = vpop.f32.mrf.mxu0
        %v11745 = vpop.f32.mrf.mxu0
        %v11746 = vadd.f32 %v11705, %v11745
        %v11747 = vpop.f32.mrf.mxu0
        %11748 = vdwg.mxu0
        %v11749 = vmax.f32 %v11743, 0.0
        %v11750 = vmax.f32 %v11746, 0.0
        %v11751 = vpack.c.bf16 %v11750, %v11749
        %v11752 = vld [vmem:[%s7] sm:$0xf]
        %v11753 = vld [vmem:[%s7 + $0x4] sm:$0xf]
        %v11754 = vld [vmem:[%s7 + $0x8] sm:$0xf]
        %v11755 = vld [vmem:[%s7 + $0xc] sm:$0xf]
        %v11756 = vld [vmem:[%s7 + $0x10] sm:$0xf]
        %v11757 = vld [vmem:[%s7 + $0x14] sm:$0xf]
        %v11758 = vld [vmem:[%s7 + $0x18] sm:$0xf]
        %v11759 = vld [vmem:[%s7 + $0x1c] sm:$0xf]
        %v11760 = vld [vmem:[%s7 + $0x20] sm:$0xf]
        %v11761 = vld [vmem:[%s7 + $0x24] sm:$0xf]
        %v11762 = vld [vmem:[%s7 + $0x28] sm:$0xf]
        %v11763 = vld [vmem:[%s7 + $0x2c] sm:$0xf]
        %v11764 = vld [vmem:[%s7 + $0x30] sm:$0xf]
        %v11765 = vld [vmem:[%s7 + $0x34] sm:$0xf]
        %v11766 = vld [vmem:[%s7 + $0x38] sm:$0xf]
        %v11767 = vld [vmem:[%s7 + $0x3c] sm:$0xf]
        %v11768 = vld [vmem:[%s8] sm:$0x1]
        %v11770 = vlaneseq
        %v11771 = vshrl.u32 %v11770, 7
        %v11772 = vsub.s32 0, %v11771
        %v11773 = vrot.slane %v11768, %v11772
        %v11791 = vunpack.c.l.b16 %v11752
        %v11792 = vunpack.c.l.b16 %v11753
        %v11793 = vunpack.c.l.b16 %v11754
        %v11794 = vunpack.c.l.b16 %v11755
        %v11795 = vunpack.c.l.b16 %v11756
        %v11796 = vunpack.c.l.b16 %v11757
        %v11797 = vunpack.c.l.b16 %v11758
        %v11798 = vunpack.c.l.b16 %v11759
        %v11799 = vunpack.c.l.b16 %v11760
        %v11800 = vunpack.c.l.b16 %v11761
        %v11801 = vunpack.c.l.b16 %v11762
        %v11802 = vunpack.c.l.b16 %v11763
        %v11803 = vunpack.c.l.b16 %v11764
        %v11804 = vunpack.c.l.b16 %v11765
        %v11805 = vunpack.c.l.b16 %v11766
        %v11806 = vunpack.c.l.b16 %v11767
        %v11807 = vpack.c.b16 %v11792, %v11791
        %v11808 = vpack.c.b16 %v11794, %v11793
        %v11809 = vpack.c.b16 %v11796, %v11795
        %v11810 = vpack.c.b16 %v11798, %v11797
        %v11811 = vpack.c.b16 %v11800, %v11799
        %v11812 = vpack.c.b16 %v11802, %v11801
        %v11813 = vpack.c.b16 %v11804, %v11803
        %v11814 = vpack.c.b16 %v11806, %v11805
        %11823 = vmatprep.subr.bf16.mxu0 0
        %11824 = vmatpush1.bf16.msra.mxu0 %v11814
        %11825 = vmatprep.subr.bf16.mxu0 0
        %11826 = vmatpush1.bf16.msra.mxu0 %v11813
        %11827 = vmatprep.subr.bf16.mxu0 0
        %11828 = vmatpush1.bf16.msra.mxu0 %v11812
        %11829 = vmatprep.subr.bf16.mxu0 0
        %11830 = vmatpush1.bf16.msra.mxu0 %v11811
        %11831 = vmatprep.subr.bf16.mxu0 0
        %11832 = vmatpush1.bf16.msra.mxu0 %v11810
        %11833 = vmatprep.subr.bf16.mxu0 0
        %11834 = vmatpush1.bf16.msra.mxu0 %v11809
        %11835 = vmatprep.subr.bf16.mxu0 0
        %11836 = vmatpush1.bf16.msra.mxu0 %v11808
        %11837 = vmatprep.subr.bf16.mxu0 0
        %11838 = vmatpush1.bf16.msra.mxu0 %v11807
        %11839 = vmatprep.subr.bf16.mxu0 0
        %11840 = vmatpush2.bf16.msra.mxu0 0
        %11841 = vmatprep.subr.bf16.mxu0 0
        %11842 = vmatpush2.bf16.msra.mxu0 0
        %11843 = vmatprep.subr.bf16.mxu0 0
        %11844 = vmatpush2.bf16.msra.mxu0 0
        %11845 = vmatprep.subr.bf16.mxu0 0
        %11846 = vmatpush2.bf16.msra.mxu0 0
        %11847 = vmatprep.subr.bf16.mxu0 0
        %11848 = vmatpush2.bf16.msra.mxu0 0
        %11849 = vmatprep.subr.bf16.mxu0 0
        %11850 = vmatpush2.bf16.msra.mxu0 0
        %11851 = vmatprep.subr.bf16.mxu0 0
        %11852 = vmatpush2.bf16.msra.mxu0 0
        %11853 = vmatprep.subr.bf16.mxu0 0
        %11854 = vmatpush2.bf16.msra.mxu0 0
        %11855 = vmatprep.mubr.bf16.mxu0 0
        %11856 = vmatmul.mubr.bf16.gmra.mxu0 %v11751
        %v11857 = vpop.f32.mrf.mxu0
        %v11858 = vadd.f32 %v11773, %v11857
        %v11859 = vpop.f32.mrf.mxu0
        %v11860 = vpop.f32.mrf.mxu0
        %v11861 = vadd.f32 %v11773, %v11860
        %v11862 = vpop.f32.mrf.mxu0
        %11863 = vdwg.mxu0
        %11864 = vst [vmem:[%s352] sm:$0xff] %v11858
        %11865 = vst [vmem:[%s352 + $0x8] sm:$0xff] %v11861
        %s11866 = smul.u32 2, %s21
        %p11867 = scmp.lt.s32.totalorder %s11866, 7
        %s11868 = scalar_select %p11867, %s11866, 7
        %s11869 = smul.addr %s11868, 8
        %s11870 = scalar_lea.vmem %s9, %s11869
        // Predicated region
        $region61: #{cnn_linear_forward.1} parent=55 // pred_check
          %p11871 = pneg %p233
        $region62: #{cnn_linear_forward.1} parent=55 // pred_check_branch
          %11873 = sbr.rel (%p11871) target = $region64
        $region63: #{cnn_linear_forward.1} parent=55 // pred_region
          %s11874 = smul.u32 2, %s21
        $region64: #{cnn_linear_forward.1} parent=55 // pred_fallthru
          _
      $region56: #{cnn_linear_forward.1} parent=5 // pred_fallthru
        _
      %p11875 = scmp.le.s32.totalorder 2, %s16
      // Predicated region
      $region65: #{cnn_linear_forward.1} parent=5 // pred_check
        %p11876 = pneg %p11875
      $region66: #{cnn_linear_forward.1} parent=5 // pred_check_branch
        %11878 = sbr.rel (%p11876) target = $region68
      $region67: #{cnn_linear_forward.1} parent=5 // pred_region
        %s11879 = ssub.s32 %s16, 2
        // Predicated region
        $region69: #{cnn_linear_forward.1} parent=67 // pred_check
          %p11880 = pneg %p239
        $region70: #{cnn_linear_forward.1} parent=67 // pred_check_branch
          %11882 = sbr.rel (%p11880) target = $region72
        $region71: #{cnn_linear_forward.1} parent=67 // pred_region
          %s11883 = smul.u32 2, %s22
          %p11884 = scmp.lt.s32.totalorder %s11883, 7
          %s11885 = scalar_select %p11884, %s11883, 7
          %s11886 = smul.addr %s11885, 8
          %s11887 = scalar_lea.vmem %s9, %s11886
        $region72: #{cnn_linear_forward.1} parent=67 // pred_fallthru
          _
      $region68: #{cnn_linear_forward.1} parent=5 // pred_fallthru
        _
    $region6: #{cnn_linear_forward.1} parent=1 // loop_footer
      %s20 = sadd.s32 1, %s16
    $region7: #{cnn_linear_forward.1} parent=1 // loop_footer_branch
      %15 = sbr.rel target = $region3
    $region8: #{cnn_linear_forward.1} parent=1 // loop_exit
      _
    %11888 = vsyncpa [#allocation5], 1
    %s11889 = scalar_lea.sflag [#allocation5], 1
    %11890 = vsyncpa %s11889, 1

</llo_original>
